<compile_context>
chip_gen: v7x
topology: tpu7x:2x2x1
jax: 0.10.0
libtpu: 0.0.40
codegen_flags: <defaults>
</compile_context>

<pallas_src>
import functools

import jax
import jax.numpy as jnp
import numpy as np
from jax.experimental import pallas as pl
from jax.experimental.pallas import tpu as pltpu


# (cin, cout, stride) of the 6 ResidualBlocks produced by make_layer.
_BLOCK_CFG = [(16, 16, 2), (16, 16, 1), (16, 32, 1),
              (32, 64, 2), (64, 64, 1), (64, 128, 1)]


def _conv_out(h, s):
    # 3x3 conv, padding=1, stride s, square input.
    return (h + 2 - 3) // s + 1


def _make_gather_stacked(h, stride, n):
    """Tap-stacked, batch-block-diagonal 0/1 selection matrix.

    Shape (9 * n*ho*ho, n*h*h); row block k selects tap k of the 3x3 window for
    every (image, output position); rows are zero where the tap falls into the
    conv's zero padding.  0/1 entries are exact in bf16.
    """
    ho = _conv_out(h, stride)
    p = n * ho * ho
    g = np.zeros((9 * p, n * h * h), np.float32)
    for k in range(9):
        kh, kw = divmod(k, 3)
        for img in range(n):
            for oh in range(ho):
                for ow in range(ho):
                    ih = oh * stride + kh - 1
                    iw = ow * stride + kw - 1
                    if 0 <= ih < h and 0 <= iw < h:
                        g[k * p + img * ho * ho + oh * ho + ow,
                          img * h * h + ih * h + iw] = 1.0
    return g


# ----------------------------------------------------------------------------
# Static plan: packing offsets + per-block config, derived purely from shapes
# (so the jitted wrapper can rebuild it from x.shape and keep it static).
# ----------------------------------------------------------------------------
def _plan(n, spatial):
    h0 = _conv_out(spatial, 2)

    gkeys, blk_hs, hh = [], [], h0
    for cin, cout, s in _BLOCK_CFG:
        if (hh, s) not in gkeys:
            gkeys.append((hh, s))
        ho = _conv_out(hh, s)
        if (ho, 1) not in gkeys:
            gkeys.append((ho, 1))
        blk_hs.append((hh, ho))
        hh = ho

    g_meta, grow = {}, 0
    for hin, s in gkeys:
        p = n * _conv_out(hin, s) ** 2
        g_meta[(hin, s)] = (grow, n * hin * hin, p)   # (row off, cols, rows/tap)
        grow += 9 * p
    g_lanes = max(128, max(n * hin * hin for hin, _ in gkeys))

    off128, off256, nbias = 0, 0, 0

    def alloc_w(rows, cout):
        nonlocal off128, off256
        if cout <= 128:
            off, off128 = off128, off128 + rows
            return off, False
        off, off256 = off256, off256 + rows
        return off, True

    def alloc_b():
        nonlocal nbias
        nbias += 1
        return nbias - 1

    stem_w_off, _ = alloc_w(32, 16)                    # (27->32, 16) stem weight
    stem = (stem_w_off, alloc_b(), 16)

    blocks = []
    for (cin, cout, s), (hin, ho) in zip(_BLOCK_CFG, blk_hs):
        fused = (s != 1 or cin != cout)                # shortcut conv exists
        cout1 = 2 * cout if fused else cout
        w1_off, use256 = alloc_w(9 * cin, cout1)
        b1_row = alloc_b()
        w2_off, _ = alloc_w(9 * cout, cout)
        b2_row = alloc_b()
        g1_off, g1_cols, p1 = g_meta[(hin, s)]
        g2_off, g2_cols, p2 = g_meta[(ho, 1)]
        blocks.append((g1_off, g1_cols, p1, cin, cout, fused, use256,
                       w1_off, b1_row, g2_off, g2_cols, p2, w2_off, b2_row))

    return {"h0": h0, "hf": hh, "cf": _BLOCK_CFG[-1][1],
            "gkeys": tuple(gkeys), "g_meta": g_meta,
            "g_rows": grow, "g_lanes": g_lanes,
            "w128_rows": off128, "w256_rows": max(off256, 8),
            "n_bias": -(-nbias // 8) * 8,
            "stem": stem, "blocks": tuple(blocks)}


# ----------------------------------------------------------------------------
# The fused kernel: one invocation == the full ResNet forward for the batch.
# ----------------------------------------------------------------------------
def _resnet_kernel(x_ref, g_ref, w128_ref, w256_ref, b_ref, out_ref,
                   *, stem, blocks):
    def bias(row, cout):
        return b_ref[row:row + 1, :cout]               # (1, cout) f32

    def conv9(patches, p, wref, w_off, cin, cout):
        # 9 tap dots; pairwise tree-sum to shorten the dependent add chain.
        def d(k):
            return jnp.dot(patches[k * p:(k + 1) * p, :],
                           wref[w_off + k * cin:w_off + (k + 1) * cin, :cout],
                           preferred_element_type=jnp.float32)
        s01, s23 = d(0) + d(1), d(2) + d(3)
        s45, s67 = d(4) + d(5), d(6) + d(7)
        return (s01 + s23) + (s45 + s67) + d(8)

    def gather(g_off, g_cols, p, act):
        # One stacked im2col selection matmul per conv input (exact 0/1 copy).
        pat = jnp.dot(g_ref[g_off:g_off + 9 * p, :g_cols], act,
                      preferred_element_type=jnp.float32)
        return pat.astype(jnp.bfloat16)

    # ---- stem: pre-im2col'd input, one (N*64,32)@(32,16) dot ----
    sw_off, sb_row, scout = stem
    acc = jnp.dot(x_ref[...], w128_ref[sw_off:sw_off + 32, :scout],
                  preferred_element_type=jnp.float32)
    act = jnp.maximum(acc + bias(sb_row, scout), 0.0).astype(jnp.bfloat16)

    act_f32 = None
    for (g1_off, g1_cols, p1, cin, cmid, fused, use256, w1_off, b1_row,
         g2_off, g2_cols, p2, w2_off, b2_row) in blocks:
        # conv1 (+ fused shortcut conv) share the same gathered patches.
        patches = gather(g1_off, g1_cols, p1, act)
        wref1 = w256_ref if use256 else w128_ref
        cout1 = 2 * cmid if fused else cmid
        z1 = conv9(patches, p1, wref1, w1_off, cin, cout1) + bias(b1_row, cout1)
        y = jnp.maximum(z1[:, :cmid], 0.0).astype(jnp.bfloat16)
        sc = z1[:, cmid:] if fused else act.astype(jnp.float32)
        # conv2 + residual add + ReLU.
        patches2 = gather(g2_off, g2_cols, p2, y)
        z2 = conv9(patches2, p2, w128_ref, w2_off, cmid, cmid) + bias(b2_row, cmid)
        act_f32 = jnp.maximum(z2 + sc, 0.0)
        act = act_f32.astype(jnp.bfloat16)

    out_ref[...] = act_f32.astype(out_ref.dtype)


# ----------------------------------------------------------------------------
# Wrapper: stem im2col in XLA, then a single pallas_call for the whole net.
# ----------------------------------------------------------------------------
def resnet_forward(x_nchw, params):
    N, C, H, W = x_nchw.shape
    assert C == 3 and H == W
    pln = _plan(N, H)
    h0, hf, cf = pln["h0"], pln["hf"], pln["cf"]

    # Stem pre-im2col: (N,3,H,W) -> (N*h0*h0, 27) patches, K padded to 32.
    xh = jnp.transpose(x_nchw, (0, 2, 3, 1)).astype(jnp.bfloat16)
    xp = jnp.pad(xh, ((0, 0), (1, 1), (1, 1), (0, 0)))
    taps = [xp[:, kh:kh + 2 * h0:2, kw:kw + 2 * h0:2, :]
            for kh in range(3) for kw in range(3)]
    patches = jnp.concatenate(taps, axis=-1).reshape(N * h0 * h0, 9 * C)
    patches = jnp.pad(patches, ((0, 0), (0, 32 - 9 * C)))

    packed = params["packed"]
    args = (patches, packed["g"], packed["w128"], packed["w256"], packed["bias"])
    out_rows = N * hf * hf

    out = pl.pallas_call(
        functools.partial(_resnet_kernel, stem=pln["stem"], blocks=pln["blocks"]),
        out_shape=jax.ShapeDtypeStruct((out_rows, cf), jnp.float32),
        grid=(1,),
        in_specs=[pl.BlockSpec(a.shape, lambda i: (0, 0)) for a in args],
        out_specs=pl.BlockSpec((out_rows, cf), lambda i: (0, 0)),
        compiler_params=pltpu.CompilerParams(
            dimension_semantics=("arbitrary",)),
    )(*args)
    return jnp.transpose(out.reshape(N, hf, hf, cf), (0, 3, 1, 2))


# ----------------------------------------------------------------------------
# Deterministic params: Conv2d weight+bias and BN gamma/beta/mean/var with
# eval-mode BN folded into the conv.  Raw (per-conv) params feed the pure-JAX
# reference; packed params feed the kernel.
# ----------------------------------------------------------------------------
def _fold_conv_bn(key, cin, cout):
    ks = jax.random.split(key, 6)
    w = jax.random.normal(ks[0], (3, 3, cin, cout), jnp.float32) / np.sqrt(9.0 * cin)
    bias = 0.05 * jax.random.normal(ks[1], (cout,), jnp.float32)
    gamma = 1.0 + 0.1 * jax.random.normal(ks[2], (cout,), jnp.float32)
    beta = 0.05 * jax.random.normal(ks[3], (cout,), jnp.float32)
    mean = 0.05 * jax.random.normal(ks[4], (cout,), jnp.float32)
    var = 0.5 + jax.random.uniform(ks[5], (cout,), jnp.float32)
    scale = gamma * jax.lax.rsqrt(var + 1e-5)
    w_f = (w * scale).reshape(9, cin, cout).astype(jnp.bfloat16)
    b_f = ((bias - mean) * scale + beta).reshape(1, cout)        # keep f32
    return w_f, b_f


def _pack(raw, n, spatial):
    pln = _plan(n, spatial)

    # gathers -> one lane-dense bf16 array
    g_packed = np.zeros((pln["g_rows"], pln["g_lanes"]), np.float32)
    for hin, s in pln["gkeys"]:
        off, cols, _ = pln["g_meta"][(hin, s)]
        g = _make_gather_stacked(hin, s, n)
        g_packed[off:off + g.shape[0], :cols] = g

    w128 = np.zeros((pln["w128_rows"], 128), np.float32)
    w256 = np.zeros((pln["w256_rows"], 256), np.float32)
    bias = np.zeros((pln["n_bias"], 256), np.float32)

    def f32(a):
        return np.asarray(jnp.asarray(a, jnp.float32))

    def put_w(off, use256, wmat):
        dst = w256 if use256 else w128
        dst[off:off + wmat.shape[0], :wmat.shape[1]] = wmat

    # stem: (9,3,16) -> (27,16), contraction dim padded to 32.
    sw_off, sb_row, _ = pln["stem"]
    put_w(sw_off, False, np.pad(f32(raw["stem"][0]).reshape(27, 16), ((0, 5), (0, 0))))
    bias[sb_row, :16] = f32(raw["stem"][1]).reshape(-1)

    for bp, blk in zip(raw["blocks"], pln["blocks"]):
        (_, _, _, cin, cmid, fused, use256, w1_off, b1_row,
         _, _, _, w2_off, b2_row) = blk
        w1, b1 = f32(bp["w1"]), f32(bp["b1"]).reshape(-1)
        if fused:  # fuse the shortcut conv along Cout
            w1 = np.concatenate([w1, f32(bp["ws"])], axis=2)
            b1 = np.concatenate([b1, f32(bp["bs"]).reshape(-1)])
        put_w(w1_off, use256, w1.reshape(9 * cin, -1))
        bias[b1_row, :b1.shape[0]] = b1
        put_w(w2_off, False, f32(bp["w2"]).reshape(9 * cmid, cmid))
        b2 = f32(bp["b2"]).reshape(-1)
        bias[b2_row, :b2.shape[0]] = b2

    return {"g": jnp.asarray(g_packed, jnp.bfloat16),
            "w128": jnp.asarray(w128, jnp.bfloat16),
            "w256": jnp.asarray(w256, jnp.bfloat16),
            "bias": jnp.asarray(bias, jnp.float32)}


def init_resnet(key, spatial=16, batch=2):
    keys = jax.random.split(key, 1 + 3 * len(_BLOCK_CFG))
    it = iter(keys)
    raw = {"stem": _fold_conv_bn(next(it), 3, 16), "blocks": []}
    for cin, cout, s in _BLOCK_CFG:
        bp = {"stride": s}
        bp["w1"], bp["b1"] = _fold_conv_bn(next(it), cin, cout)
        bp["w2"], bp["b2"] = _fold_conv_bn(next(it), cout, cout)
        if s != 1 or cin != cout:
            bp["ws"], bp["bs"] = _fold_conv_bn(next(it), cin, cout)
        raw["blocks"].append(bp)
    return {"raw": raw, "packed": _pack(raw, batch, spatial)}


# ----------------------------------------------------------------------------
# Pure-JAX reference (mirrors the kernel's bf16 storage / f32 accumulation).
# ----------------------------------------------------------------------------
def _round_bf16(x):
    return x.astype(jnp.bfloat16).astype(jnp.float32)


def _conv_ref(x, w9, b, stride, relu, residual=None):
    cin, cout = w9.shape[1], w9.shape[2]
    w = w9.astype(jnp.float32).reshape(3, 3, cin, cout)
    y = jax.lax.conv_general_dilated(
        x, w, (stride, stride), ((1, 1), (1, 1)),
        dimension_numbers=("NHWC", "HWIO", "NHWC"),
        precision=jax.lax.Precision.HIGHEST)
    y = y + b.reshape(1, 1, 1, -1)
    if residual is not None:
        y = y + residual
    return jnp.maximum(y, 0.0) if relu else y


def resnet_ref(x_nchw, params):
    raw = params["raw"]
    x = jnp.transpose(x_nchw, (0, 2, 3, 1))
    a = _conv_ref(_round_bf16(x), raw["stem"][0], raw["stem"][1], 2, True)
    for bp in raw["blocks"]:
        s = bp["stride"]
        ar = _round_bf16(a)
        y = _round_bf16(_conv_ref(ar, bp["w1"], bp["b1"], s, True))
        sc = _conv_ref(ar, bp["ws"], bp["bs"], s, False) if "ws" in bp else ar
        a = _conv_ref(y, bp["w2"], bp["b2"], 1, True, residual=sc)
    return jnp.transpose(a, (0, 3, 1, 2))


if __name__ == "__main__":
    x = jax.random.normal(jax.random.PRNGKey(0), (2, 3, 16, 16), jnp.float32)
    params = init_resnet(jax.random.PRNGKey(42), spatial=16, batch=2)

    fwd = jax.jit(resnet_forward)
    out = jax.block_until_ready(fwd(x, params))
    assert out.shape == (2, 128, 2, 2), out.shape

    ref = jax.block_until_ready(resnet_ref(x, params))
    np.testing.assert_allclose(np.asarray(out), np.asarray(ref),
                               rtol=5e-3, atol=5e-3)
    print("KERNEL_OK")
</pallas_src>

<mosaic_0001>
module attributes {stable_mosaic.version = 11 : i64} {
  func.func @_resnet_kernel(%arg0: i32, %arg1: memref<128x32xbf16, #tpu.memory_space<vmem>>, %arg2: memref<720x128xbf16, #tpu.memory_space<vmem>>, %arg3: memref<4208x128xbf16, #tpu.memory_space<vmem>>, %arg4: memref<576x256xbf16, #tpu.memory_space<vmem>>, %arg5: memref<16x256xf32, #tpu.memory_space<vmem>>, %arg6: memref<8x128xf32, #tpu.memory_space<vmem>>) attributes {dimension_semantics = [#tpu.dimension_semantics<arbitrary>], iteration_bounds = array<i64: 1>, scalar_prefetch = 0 : i64, scratch_operands = 0 : i64, tpu.core_type = #tpu.core_type<tc>, window_params = [{pipeline_mode = #tpu.pipeline_mode<synchronous>, transform_indices = @transform_0, window_bounds = array<i64: 128, 32>}, {pipeline_mode = #tpu.pipeline_mode<synchronous>, transform_indices = @transform_1, window_bounds = array<i64: 720, 128>}, {pipeline_mode = #tpu.pipeline_mode<synchronous>, transform_indices = @transform_2, window_bounds = array<i64: 4208, 128>}, {pipeline_mode = #tpu.pipeline_mode<synchronous>, transform_indices = @transform_3, window_bounds = array<i64: 576, 256>}, {pipeline_mode = #tpu.pipeline_mode<synchronous>, transform_indices = @transform_4, window_bounds = array<i64: 16, 256>}, {pipeline_mode = #tpu.pipeline_mode<synchronous>, transform_indices = @transform_5, window_bounds = array<i64: 8, 128>}]} {
    %c0 = arith.constant 0 : index
    %c0_0 = arith.constant 0 : index
    %0 = vector.load %arg1[%c0, %c0_0] : memref<128x32xbf16, #tpu.memory_space<vmem>>, vector<128x32xbf16>
    %c0_1 = arith.constant 0 : index
    %c0_2 = arith.constant 0 : index
    %1 = vector.load %arg3[%c0_1, %c0_2] : memref<4208x128xbf16, #tpu.memory_space<vmem>>, vector<32x16xbf16>
    %cst = arith.constant dense<0.000000e+00> : vector<128x16xf32>
    %2 = tpu.matmul %0, %1, %cst {dimension_numbers = #tpu.dot_dimension_numbers<[1], [0], [0], [1], [0, 0, 1, 1], [], []>} : vector<128x32xbf16>, vector<32x16xbf16>, vector<128x16xf32> -> vector<128x16xf32>
    %c0_3 = arith.constant 0 : index
    %c0_4 = arith.constant 0 : index
    %3 = vector.load %arg5[%c0_3, %c0_4] : memref<16x256xf32, #tpu.memory_space<vmem>>, vector<1x16xf32>
    %4 = vector.broadcast %3 : vector<1x16xf32> to vector<128x16xf32>
    %5 = arith.addf %2, %4 : vector<128x16xf32>
    %cst_5 = arith.constant 0.000000e+00 : f32
    %6 = vector.broadcast %cst_5 : f32 to vector<128x16xf32>
    %7 = arith.maximumf %5, %6 : vector<128x16xf32>
    %8 = arith.truncf %7 : vector<128x16xf32> to vector<128x16xbf16>
    %c0_6 = arith.constant 0 : index
    %c0_7 = arith.constant 0 : index
    %9 = vector.load %arg2[%c0_6, %c0_7] : memref<720x128xbf16, #tpu.memory_space<vmem>>, vector<288x128xbf16>
    %cst_8 = arith.constant dense<0.000000e+00> : vector<288x16xf32>
    %10 = tpu.matmul %9, %8, %cst_8 {dimension_numbers = #tpu.dot_dimension_numbers<[1], [0], [0], [1], [0, 0, 1, 1], [], []>} : vector<288x128xbf16>, vector<128x16xbf16>, vector<288x16xf32> -> vector<288x16xf32>
    %11 = arith.truncf %10 : vector<288x16xf32> to vector<288x16xbf16>
    %12 = vector.extract_strided_slice %11 {offsets = [0, 0], sizes = [32, 16], strides = [1, 1]} : vector<288x16xbf16> to vector<32x16xbf16>
    %c32 = arith.constant 32 : index
    %c0_9 = arith.constant 0 : index
    %13 = vector.load %arg3[%c32, %c0_9] : memref<4208x128xbf16, #tpu.memory_space<vmem>>, vector<16x32xbf16>
    %cst_10 = arith.constant dense<0.000000e+00> : vector<32x32xf32>
    %14 = tpu.matmul %12, %13, %cst_10 {dimension_numbers = #tpu.dot_dimension_numbers<[1], [0], [0], [1], [0, 0, 1, 1], [], []>} : vector<32x16xbf16>, vector<16x32xbf16>, vector<32x32xf32> -> vector<32x32xf32>
    %15 = vector.extract_strided_slice %11 {offsets = [32, 0], sizes = [32, 16], strides = [1, 1]} : vector<288x16xbf16> to vector<32x16xbf16>
    %c48 = arith.constant 48 : index
    %c0_11 = arith.constant 0 : index
    %16 = vector.load %arg3[%c48, %c0_11] : memref<4208x128xbf16, #tpu.memory_space<vmem>>, vector<16x32xbf16>
    %cst_12 = arith.constant dense<0.000000e+00> : vector<32x32xf32>
    %17 = tpu.matmul %15, %16, %cst_12 {dimension_numbers = #tpu.dot_dimension_numbers<[1], [0], [0], [1], [0, 0, 1, 1], [], []>} : vector<32x16xbf16>, vector<16x32xbf16>, vector<32x32xf32> -> vector<32x32xf32>
    %18 = arith.addf %14, %17 : vector<32x32xf32>
    %19 = vector.extract_strided_slice %11 {offsets = [64, 0], sizes = [32, 16], strides = [1, 1]} : vector<288x16xbf16> to vector<32x16xbf16>
    %c64 = arith.constant 64 : index
    %c0_13 = arith.constant 0 : index
    %20 = vector.load %arg3[%c64, %c0_13] : memref<4208x128xbf16, #tpu.memory_space<vmem>>, vector<16x32xbf16>
    %cst_14 = arith.constant dense<0.000000e+00> : vector<32x32xf32>
    %21 = tpu.matmul %19, %20, %cst_14 {dimension_numbers = #tpu.dot_dimension_numbers<[1], [0], [0], [1], [0, 0, 1, 1], [], []>} : vector<32x16xbf16>, vector<16x32xbf16>, vector<32x32xf32> -> vector<32x32xf32>
    %22 = vector.extract_strided_slice %11 {offsets = [96, 0], sizes = [32, 16], strides = [1, 1]} : vector<288x16xbf16> to vector<32x16xbf16>
    %c80 = arith.constant 80 : index
    %c0_15 = arith.constant 0 : index
    %23 = vector.load %arg3[%c80, %c0_15] : memref<4208x128xbf16, #tpu.memory_space<vmem>>, vector<16x32xbf16>
    %cst_16 = arith.constant dense<0.000000e+00> : vector<32x32xf32>
    %24 = tpu.matmul %22, %23, %cst_16 {dimension_numbers = #tpu.dot_dimension_numbers<[1], [0], [0], [1], [0, 0, 1, 1], [], []>} : vector<32x16xbf16>, vector<16x32xbf16>, vector<32x32xf32> -> vector<32x32xf32>
    %25 = arith.addf %21, %24 : vector<32x32xf32>
    %26 = vector.extract_strided_slice %11 {offsets = [128, 0], sizes = [32, 16], strides = [1, 1]} : vector<288x16xbf16> to vector<32x16xbf16>
    %c96 = arith.constant 96 : index
    %c0_17 = arith.constant 0 : index
    %27 = vector.load %arg3[%c96, %c0_17] : memref<4208x128xbf16, #tpu.memory_space<vmem>>, vector<16x32xbf16>
    %cst_18 = arith.constant dense<0.000000e+00> : vector<32x32xf32>
    %28 = tpu.matmul %26, %27, %cst_18 {dimension_numbers = #tpu.dot_dimension_numbers<[1], [0], [0], [1], [0, 0, 1, 1], [], []>} : vector<32x16xbf16>, vector<16x32xbf16>, vector<32x32xf32> -> vector<32x32xf32>
    %29 = vector.extract_strided_slice %11 {offsets = [160, 0], sizes = [32, 16], strides = [1, 1]} : vector<288x16xbf16> to vector<32x16xbf16>
    %c112 = arith.constant 112 : index
    %c0_19 = arith.constant 0 : index
    %30 = vector.load %arg3[%c112, %c0_19] : memref<4208x128xbf16, #tpu.memory_space<vmem>>, vector<16x32xbf16>
    %cst_20 = arith.constant dense<0.000000e+00> : vector<32x32xf32>
    %31 = tpu.matmul %29, %30, %cst_20 {dimension_numbers = #tpu.dot_dimension_numbers<[1], [0], [0], [1], [0, 0, 1, 1], [], []>} : vector<32x16xbf16>, vector<16x32xbf16>, vector<32x32xf32> -> vector<32x32xf32>
    %32 = arith.addf %28, %31 : vector<32x32xf32>
    %33 = vector.extract_strided_slice %11 {offsets = [192, 0], sizes = [32, 16], strides = [1, 1]} : vector<288x16xbf16> to vector<32x16xbf16>
    %c128 = arith.constant 128 : index
    %c0_21 = arith.constant 0 : index
    %34 = vector.load %arg3[%c128, %c0_21] : memref<4208x128xbf16, #tpu.memory_space<vmem>>, vector<16x32xbf16>
    %cst_22 = arith.constant dense<0.000000e+00> : vector<32x32xf32>
    %35 = tpu.matmul %33, %34, %cst_22 {dimension_numbers = #tpu.dot_dimension_numbers<[1], [0], [0], [1], [0, 0, 1, 1], [], []>} : vector<32x16xbf16>, vector<16x32xbf16>, vector<32x32xf32> -> vector<32x32xf32>
    %36 = vector.extract_strided_slice %11 {offsets = [224, 0], sizes = [32, 16], strides = [1, 1]} : vector<288x16xbf16> to vector<32x16xbf16>
    %c144 = arith.constant 144 : index
    %c0_23 = arith.constant 0 : index
    %37 = vector.load %arg3[%c144, %c0_23] : memref<4208x128xbf16, #tpu.memory_space<vmem>>, vector<16x32xbf16>
    %cst_24 = arith.constant dense<0.000000e+00> : vector<32x32xf32>
    %38 = tpu.matmul %36, %37, %cst_24 {dimension_numbers = #tpu.dot_dimension_numbers<[1], [0], [0], [1], [0, 0, 1, 1], [], []>} : vector<32x16xbf16>, vector<16x32xbf16>, vector<32x32xf32> -> vector<32x32xf32>
    %39 = arith.addf %35, %38 : vector<32x32xf32>
    %40 = arith.addf %18, %25 : vector<32x32xf32>
    %41 = arith.addf %32, %39 : vector<32x32xf32>
    %42 = arith.addf %40, %41 : vector<32x32xf32>
    %43 = vector.extract_strided_slice %11 {offsets = [256, 0], sizes = [32, 16], strides = [1, 1]} : vector<288x16xbf16> to vector<32x16xbf16>
    %c160 = arith.constant 160 : index
    %c0_25 = arith.constant 0 : index
    %44 = vector.load %arg3[%c160, %c0_25] : memref<4208x128xbf16, #tpu.memory_space<vmem>>, vector<16x32xbf16>
    %cst_26 = arith.constant dense<0.000000e+00> : vector<32x32xf32>
    %45 = tpu.matmul %43, %44, %cst_26 {dimension_numbers = #tpu.dot_dimension_numbers<[1], [0], [0], [1], [0, 0, 1, 1], [], []>} : vector<32x16xbf16>, vector<16x32xbf16>, vector<32x32xf32> -> vector<32x32xf32>
    %46 = arith.addf %42, %45 : vector<32x32xf32>
    %c1 = arith.constant 1 : index
    %c0_27 = arith.constant 0 : index
    %47 = vector.load %arg5[%c1, %c0_27] : memref<16x256xf32, #tpu.memory_space<vmem>>, vector<1x32xf32>
    %48 = vector.broadcast %47 : vector<1x32xf32> to vector<32x32xf32>
    %49 = arith.addf %46, %48 : vector<32x32xf32>
    %50 = vector.extract_strided_slice %49 {offsets = [0, 0], sizes = [32, 16], strides = [1, 1]} : vector<32x32xf32> to vector<32x16xf32>
    %cst_28 = arith.constant 0.000000e+00 : f32
    %51 = vector.broadcast %cst_28 : f32 to vector<32x16xf32>
    %52 = arith.maximumf %50, %51 : vector<32x16xf32>
    %53 = arith.truncf %52 : vector<32x16xf32> to vector<32x16xbf16>
    %54 = vector.extract_strided_slice %49 {offsets = [0, 16], sizes = [32, 16], strides = [1, 1]} : vector<32x32xf32> to vector<32x16xf32>
    %c288 = arith.constant 288 : index
    %c0_29 = arith.constant 0 : index
    %55 = vector.load %arg2[%c288, %c0_29] : memref<720x128xbf16, #tpu.memory_space<vmem>>, vector<288x32xbf16>
    %cst_30 = arith.constant dense<0.000000e+00> : vector<288x16xf32>
    %56 = tpu.matmul %55, %53, %cst_30 {dimension_numbers = #tpu.dot_dimension_numbers<[1], [0], [0], [1], [0, 0, 1, 1], [], []>} : vector<288x32xbf16>, vector<32x16xbf16>, vector<288x16xf32> -> vector<288x16xf32>
    %57 = arith.truncf %56 : vector<288x16xf32> to vector<288x16xbf16>
    %58 = vector.extract_strided_slice %57 {offsets = [0, 0], sizes = [32, 16], strides = [1, 1]} : vector<288x16xbf16> to vector<32x16xbf16>
    %c176 = arith.constant 176 : index
    %c0_31 = arith.constant 0 : index
    %59 = vector.load %arg3[%c176, %c0_31] : memref<4208x128xbf16, #tpu.memory_space<vmem>>, vector<16x16xbf16>
    %cst_32 = arith.constant dense<0.000000e+00> : vector<32x16xf32>
    %60 = tpu.matmul %58, %59, %cst_32 {dimension_numbers = #tpu.dot_dimension_numbers<[1], [0], [0], [1], [0, 0, 1, 1], [], []>} : vector<32x16xbf16>, vector<16x16xbf16>, vector<32x16xf32> -> vector<32x16xf32>
    %61 = vector.extract_strided_slice %57 {offsets = [32, 0], sizes = [32, 16], strides = [1, 1]} : vector<288x16xbf16> to vector<32x16xbf16>
    %c192 = arith.constant 192 : index
    %c0_33 = arith.constant 0 : index
    %62 = vector.load %arg3[%c192, %c0_33] : memref<4208x128xbf16, #tpu.memory_space<vmem>>, vector<16x16xbf16>
    %cst_34 = arith.constant dense<0.000000e+00> : vector<32x16xf32>
    %63 = tpu.matmul %61, %62, %cst_34 {dimension_numbers = #tpu.dot_dimension_numbers<[1], [0], [0], [1], [0, 0, 1, 1], [], []>} : vector<32x16xbf16>, vector<16x16xbf16>, vector<32x16xf32> -> vector<32x16xf32>
    %64 = arith.addf %60, %63 : vector<32x16xf32>
    %65 = vector.extract_strided_slice %57 {offsets = [64, 0], sizes = [32, 16], strides = [1, 1]} : vector<288x16xbf16> to vector<32x16xbf16>
    %c208 = arith.constant 208 : index
    %c0_35 = arith.constant 0 : index
    %66 = vector.load %arg3[%c208, %c0_35] : memref<4208x128xbf16, #tpu.memory_space<vmem>>, vector<16x16xbf16>
    %cst_36 = arith.constant dense<0.000000e+00> : vector<32x16xf32>
    %67 = tpu.matmul %65, %66, %cst_36 {dimension_numbers = #tpu.dot_dimension_numbers<[1], [0], [0], [1], [0, 0, 1, 1], [], []>} : vector<32x16xbf16>, vector<16x16xbf16>, vector<32x16xf32> -> vector<32x16xf32>
    %68 = vector.extract_strided_slice %57 {offsets = [96, 0], sizes = [32, 16], strides = [1, 1]} : vector<288x16xbf16> to vector<32x16xbf16>
    %c224 = arith.constant 224 : index
    %c0_37 = arith.constant 0 : index
    %69 = vector.load %arg3[%c224, %c0_37] : memref<4208x128xbf16, #tpu.memory_space<vmem>>, vector<16x16xbf16>
    %cst_38 = arith.constant dense<0.000000e+00> : vector<32x16xf32>
    %70 = tpu.matmul %68, %69, %cst_38 {dimension_numbers = #tpu.dot_dimension_numbers<[1], [0], [0], [1], [0, 0, 1, 1], [], []>} : vector<32x16xbf16>, vector<16x16xbf16>, vector<32x16xf32> -> vector<32x16xf32>
    %71 = arith.addf %67, %70 : vector<32x16xf32>
    %72 = vector.extract_strided_slice %57 {offsets = [128, 0], sizes = [32, 16], strides = [1, 1]} : vector<288x16xbf16> to vector<32x16xbf16>
    %c240 = arith.constant 240 : index
    %c0_39 = arith.constant 0 : index
    %73 = vector.load %arg3[%c240, %c0_39] : memref<4208x128xbf16, #tpu.memory_space<vmem>>, vector<16x16xbf16>
    %cst_40 = arith.constant dense<0.000000e+00> : vector<32x16xf32>
    %74 = tpu.matmul %72, %73, %cst_40 {dimension_numbers = #tpu.dot_dimension_numbers<[1], [0], [0], [1], [0, 0, 1, 1], [], []>} : vector<32x16xbf16>, vector<16x16xbf16>, vector<32x16xf32> -> vector<32x16xf32>
    %75 = vector.extract_strided_slice %57 {offsets = [160, 0], sizes = [32, 16], strides = [1, 1]} : vector<288x16xbf16> to vector<32x16xbf16>
    %c256 = arith.constant 256 : index
    %c0_41 = arith.constant 0 : index
    %76 = vector.load %arg3[%c256, %c0_41] : memref<4208x128xbf16, #tpu.memory_space<vmem>>, vector<16x16xbf16>
    %cst_42 = arith.constant dense<0.000000e+00> : vector<32x16xf32>
    %77 = tpu.matmul %75, %76, %cst_42 {dimension_numbers = #tpu.dot_dimension_numbers<[1], [0], [0], [1], [0, 0, 1, 1], [], []>} : vector<32x16xbf16>, vector<16x16xbf16>, vector<32x16xf32> -> vector<32x16xf32>
    %78 = arith.addf %74, %77 : vector<32x16xf32>
    %79 = vector.extract_strided_slice %57 {offsets = [192, 0], sizes = [32, 16], strides = [1, 1]} : vector<288x16xbf16> to vector<32x16xbf16>
    %c272 = arith.constant 272 : index
    %c0_43 = arith.constant 0 : index
    %80 = vector.load %arg3[%c272, %c0_43] : memref<4208x128xbf16, #tpu.memory_space<vmem>>, vector<16x16xbf16>
    %cst_44 = arith.constant dense<0.000000e+00> : vector<32x16xf32>
    %81 = tpu.matmul %79, %80, %cst_44 {dimension_numbers = #tpu.dot_dimension_numbers<[1], [0], [0], [1], [0, 0, 1, 1], [], []>} : vector<32x16xbf16>, vector<16x16xbf16>, vector<32x16xf32> -> vector<32x16xf32>
    %82 = vector.extract_strided_slice %57 {offsets = [224, 0], sizes = [32, 16], strides = [1, 1]} : vector<288x16xbf16> to vector<32x16xbf16>
    %c288_45 = arith.constant 288 : index
    %c0_46 = arith.constant 0 : index
    %83 = vector.load %arg3[%c288_45, %c0_46] : memref<4208x128xbf16, #tpu.memory_space<vmem>>, vector<16x16xbf16>
    %cst_47 = arith.constant dense<0.000000e+00> : vector<32x16xf32>
    %84 = tpu.matmul %82, %83, %cst_47 {dimension_numbers = #tpu.dot_dimension_numbers<[1], [0], [0], [1], [0, 0, 1, 1], [], []>} : vector<32x16xbf16>, vector<16x16xbf16>, vector<32x16xf32> -> vector<32x16xf32>
    %85 = arith.addf %81, %84 : vector<32x16xf32>
    %86 = arith.addf %64, %71 : vector<32x16xf32>
    %87 = arith.addf %78, %85 : vector<32x16xf32>
    %88 = arith.addf %86, %87 : vector<32x16xf32>
    %89 = vector.extract_strided_slice %57 {offsets = [256, 0], sizes = [32, 16], strides = [1, 1]} : vector<288x16xbf16> to vector<32x16xbf16>
    %c304 = arith.constant 304 : index
    %c0_48 = arith.constant 0 : index
    %90 = vector.load %arg3[%c304, %c0_48] : memref<4208x128xbf16, #tpu.memory_space<vmem>>, vector<16x16xbf16>
    %cst_49 = arith.constant dense<0.000000e+00> : vector<32x16xf32>
    %91 = tpu.matmul %89, %90, %cst_49 {dimension_numbers = #tpu.dot_dimension_numbers<[1], [0], [0], [1], [0, 0, 1, 1], [], []>} : vector<32x16xbf16>, vector<16x16xbf16>, vector<32x16xf32> -> vector<32x16xf32>
    %92 = arith.addf %88, %91 : vector<32x16xf32>
    %c2 = arith.constant 2 : index
    %c0_50 = arith.constant 0 : index
    %93 = vector.load %arg5[%c2, %c0_50] : memref<16x256xf32, #tpu.memory_space<vmem>>, vector<1x16xf32>
    %94 = vector.broadcast %93 : vector<1x16xf32> to vector<32x16xf32>
    %95 = arith.addf %92, %94 : vector<32x16xf32>
    %96 = arith.addf %95, %54 : vector<32x16xf32>
    %cst_51 = arith.constant 0.000000e+00 : f32
    %97 = vector.broadcast %cst_51 : f32 to vector<32x16xf32>
    %98 = arith.maximumf %96, %97 : vector<32x16xf32>
    %99 = arith.truncf %98 : vector<32x16xf32> to vector<32x16xbf16>
    %c288_52 = arith.constant 288 : index
    %c0_53 = arith.constant 0 : index
    %100 = vector.load %arg2[%c288_52, %c0_53] : memref<720x128xbf16, #tpu.memory_space<vmem>>, vector<288x32xbf16>
    %cst_54 = arith.constant dense<0.000000e+00> : vector<288x16xf32>
    %101 = tpu.matmul %100, %99, %cst_54 {dimension_numbers = #tpu.dot_dimension_numbers<[1], [0], [0], [1], [0, 0, 1, 1], [], []>} : vector<288x32xbf16>, vector<32x16xbf16>, vector<288x16xf32> -> vector<288x16xf32>
    %102 = arith.truncf %101 : vector<288x16xf32> to vector<288x16xbf16>
    %103 = vector.extract_strided_slice %102 {offsets = [0, 0], sizes = [32, 16], strides = [1, 1]} : vector<288x16xbf16> to vector<32x16xbf16>
    %c320 = arith.constant 320 : index
    %c0_55 = arith.constant 0 : index
    %104 = vector.load %arg3[%c320, %c0_55] : memref<4208x128xbf16, #tpu.memory_space<vmem>>, vector<16x16xbf16>
    %cst_56 = arith.constant dense<0.000000e+00> : vector<32x16xf32>
    %105 = tpu.matmul %103, %104, %cst_56 {dimension_numbers = #tpu.dot_dimension_numbers<[1], [0], [0], [1], [0, 0, 1, 1], [], []>} : vector<32x16xbf16>, vector<16x16xbf16>, vector<32x16xf32> -> vector<32x16xf32>
    %106 = vector.extract_strided_slice %102 {offsets = [32, 0], sizes = [32, 16], strides = [1, 1]} : vector<288x16xbf16> to vector<32x16xbf16>
    %c336 = arith.constant 336 : index
    %c0_57 = arith.constant 0 : index
    %107 = vector.load %arg3[%c336, %c0_57] : memref<4208x128xbf16, #tpu.memory_space<vmem>>, vector<16x16xbf16>
    %cst_58 = arith.constant dense<0.000000e+00> : vector<32x16xf32>
    %108 = tpu.matmul %106, %107, %cst_58 {dimension_numbers = #tpu.dot_dimension_numbers<[1], [0], [0], [1], [0, 0, 1, 1], [], []>} : vector<32x16xbf16>, vector<16x16xbf16>, vector<32x16xf32> -> vector<32x16xf32>
    %109 = arith.addf %105, %108 : vector<32x16xf32>
    %110 = vector.extract_strided_slice %102 {offsets = [64, 0], sizes = [32, 16], strides = [1, 1]} : vector<288x16xbf16> to vector<32x16xbf16>
    %c352 = arith.constant 352 : index
    %c0_59 = arith.constant 0 : index
    %111 = vector.load %arg3[%c352, %c0_59] : memref<4208x128xbf16, #tpu.memory_space<vmem>>, vector<16x16xbf16>
    %cst_60 = arith.constant dense<0.000000e+00> : vector<32x16xf32>
    %112 = tpu.matmul %110, %111, %cst_60 {dimension_numbers = #tpu.dot_dimension_numbers<[1], [0], [0], [1], [0, 0, 1, 1], [], []>} : vector<32x16xbf16>, vector<16x16xbf16>, vector<32x16xf32> -> vector<32x16xf32>
    %113 = vector.extract_strided_slice %102 {offsets = [96, 0], sizes = [32, 16], strides = [1, 1]} : vector<288x16xbf16> to vector<32x16xbf16>
    %c368 = arith.constant 368 : index
    %c0_61 = arith.constant 0 : index
    %114 = vector.load %arg3[%c368, %c0_61] : memref<4208x128xbf16, #tpu.memory_space<vmem>>, vector<16x16xbf16>
    %cst_62 = arith.constant dense<0.000000e+00> : vector<32x16xf32>
    %115 = tpu.matmul %113, %114, %cst_62 {dimension_numbers = #tpu.dot_dimension_numbers<[1], [0], [0], [1], [0, 0, 1, 1], [], []>} : vector<32x16xbf16>, vector<16x16xbf16>, vector<32x16xf32> -> vector<32x16xf32>
    %116 = arith.addf %112, %115 : vector<32x16xf32>
    %117 = vector.extract_strided_slice %102 {offsets = [128, 0], sizes = [32, 16], strides = [1, 1]} : vector<288x16xbf16> to vector<32x16xbf16>
    %c384 = arith.constant 384 : index
    %c0_63 = arith.constant 0 : index
    %118 = vector.load %arg3[%c384, %c0_63] : memref<4208x128xbf16, #tpu.memory_space<vmem>>, vector<16x16xbf16>
    %cst_64 = arith.constant dense<0.000000e+00> : vector<32x16xf32>
    %119 = tpu.matmul %117, %118, %cst_64 {dimension_numbers = #tpu.dot_dimension_numbers<[1], [0], [0], [1], [0, 0, 1, 1], [], []>} : vector<32x16xbf16>, vector<16x16xbf16>, vector<32x16xf32> -> vector<32x16xf32>
    %120 = vector.extract_strided_slice %102 {offsets = [160, 0], sizes = [32, 16], strides = [1, 1]} : vector<288x16xbf16> to vector<32x16xbf16>
    %c400 = arith.constant 400 : index
    %c0_65 = arith.constant 0 : index
    %121 = vector.load %arg3[%c400, %c0_65] : memref<4208x128xbf16, #tpu.memory_space<vmem>>, vector<16x16xbf16>
    %cst_66 = arith.constant dense<0.000000e+00> : vector<32x16xf32>
    %122 = tpu.matmul %120, %121, %cst_66 {dimension_numbers = #tpu.dot_dimension_numbers<[1], [0], [0], [1], [0, 0, 1, 1], [], []>} : vector<32x16xbf16>, vector<16x16xbf16>, vector<32x16xf32> -> vector<32x16xf32>
    %123 = arith.addf %119, %122 : vector<32x16xf32>
    %124 = vector.extract_strided_slice %102 {offsets = [192, 0], sizes = [32, 16], strides = [1, 1]} : vector<288x16xbf16> to vector<32x16xbf16>
    %c416 = arith.constant 416 : index
    %c0_67 = arith.constant 0 : index
    %125 = vector.load %arg3[%c416, %c0_67] : memref<4208x128xbf16, #tpu.memory_space<vmem>>, vector<16x16xbf16>
    %cst_68 = arith.constant dense<0.000000e+00> : vector<32x16xf32>
    %126 = tpu.matmul %124, %125, %cst_68 {dimension_numbers = #tpu.dot_dimension_numbers<[1], [0], [0], [1], [0, 0, 1, 1], [], []>} : vector<32x16xbf16>, vector<16x16xbf16>, vector<32x16xf32> -> vector<32x16xf32>
    %127 = vector.extract_strided_slice %102 {offsets = [224, 0], sizes = [32, 16], strides = [1, 1]} : vector<288x16xbf16> to vector<32x16xbf16>
    %c432 = arith.constant 432 : index
    %c0_69 = arith.constant 0 : index
    %128 = vector.load %arg3[%c432, %c0_69] : memref<4208x128xbf16, #tpu.memory_space<vmem>>, vector<16x16xbf16>
    %cst_70 = arith.constant dense<0.000000e+00> : vector<32x16xf32>
    %129 = tpu.matmul %127, %128, %cst_70 {dimension_numbers = #tpu.dot_dimension_numbers<[1], [0], [0], [1], [0, 0, 1, 1], [], []>} : vector<32x16xbf16>, vector<16x16xbf16>, vector<32x16xf32> -> vector<32x16xf32>
    %130 = arith.addf %126, %129 : vector<32x16xf32>
    %131 = arith.addf %109, %116 : vector<32x16xf32>
    %132 = arith.addf %123, %130 : vector<32x16xf32>
    %133 = arith.addf %131, %132 : vector<32x16xf32>
    %134 = vector.extract_strided_slice %102 {offsets = [256, 0], sizes = [32, 16], strides = [1, 1]} : vector<288x16xbf16> to vector<32x16xbf16>
    %c448 = arith.constant 448 : index
    %c0_71 = arith.constant 0 : index
    %135 = vector.load %arg3[%c448, %c0_71] : memref<4208x128xbf16, #tpu.memory_space<vmem>>, vector<16x16xbf16>
    %cst_72 = arith.constant dense<0.000000e+00> : vector<32x16xf32>
    %136 = tpu.matmul %134, %135, %cst_72 {dimension_numbers = #tpu.dot_dimension_numbers<[1], [0], [0], [1], [0, 0, 1, 1], [], []>} : vector<32x16xbf16>, vector<16x16xbf16>, vector<32x16xf32> -> vector<32x16xf32>
    %137 = arith.addf %133, %136 : vector<32x16xf32>
    %c3 = arith.constant 3 : index
    %c0_73 = arith.constant 0 : index
    %138 = vector.load %arg5[%c3, %c0_73] : memref<16x256xf32, #tpu.memory_space<vmem>>, vector<1x16xf32>
    %139 = vector.broadcast %138 : vector<1x16xf32> to vector<32x16xf32>
    %140 = arith.addf %137, %139 : vector<32x16xf32>
    %cst_74 = arith.constant 0.000000e+00 : f32
    %141 = vector.broadcast %cst_74 : f32 to vector<32x16xf32>
    %142 = arith.maximumf %140, %141 : vector<32x16xf32>
    %143 = arith.truncf %142 : vector<32x16xf32> to vector<32x16xbf16>
    %144 = arith.extf %99 : vector<32x16xbf16> to vector<32x16xf32>
    %c288_75 = arith.constant 288 : index
    %c0_76 = arith.constant 0 : index
    %145 = vector.load %arg2[%c288_75, %c0_76] : memref<720x128xbf16, #tpu.memory_space<vmem>>, vector<288x32xbf16>
    %cst_77 = arith.constant dense<0.000000e+00> : vector<288x16xf32>
    %146 = tpu.matmul %145, %143, %cst_77 {dimension_numbers = #tpu.dot_dimension_numbers<[1], [0], [0], [1], [0, 0, 1, 1], [], []>} : vector<288x32xbf16>, vector<32x16xbf16>, vector<288x16xf32> -> vector<288x16xf32>
    %147 = arith.truncf %146 : vector<288x16xf32> to vector<288x16xbf16>
    %148 = vector.extract_strided_slice %147 {offsets = [0, 0], sizes = [32, 16], strides = [1, 1]} : vector<288x16xbf16> to vector<32x16xbf16>
    %c464 = arith.constant 464 : index
    %c0_78 = arith.constant 0 : index
    %149 = vector.load %arg3[%c464, %c0_78] : memref<4208x128xbf16, #tpu.memory_space<vmem>>, vector<16x16xbf16>
    %cst_79 = arith.constant dense<0.000000e+00> : vector<32x16xf32>
    %150 = tpu.matmul %148, %149, %cst_79 {dimension_numbers = #tpu.dot_dimension_numbers<[1], [0], [0], [1], [0, 0, 1, 1], [], []>} : vector<32x16xbf16>, vector<16x16xbf16>, vector<32x16xf32> -> vector<32x16xf32>
    %151 = vector.extract_strided_slice %147 {offsets = [32, 0], sizes = [32, 16], strides = [1, 1]} : vector<288x16xbf16> to vector<32x16xbf16>
    %c480 = arith.constant 480 : index
    %c0_80 = arith.constant 0 : index
    %152 = vector.load %arg3[%c480, %c0_80] : memref<4208x128xbf16, #tpu.memory_space<vmem>>, vector<16x16xbf16>
    %cst_81 = arith.constant dense<0.000000e+00> : vector<32x16xf32>
    %153 = tpu.matmul %151, %152, %cst_81 {dimension_numbers = #tpu.dot_dimension_numbers<[1], [0], [0], [1], [0, 0, 1, 1], [], []>} : vector<32x16xbf16>, vector<16x16xbf16>, vector<32x16xf32> -> vector<32x16xf32>
    %154 = arith.addf %150, %153 : vector<32x16xf32>
    %155 = vector.extract_strided_slice %147 {offsets = [64, 0], sizes = [32, 16], strides = [1, 1]} : vector<288x16xbf16> to vector<32x16xbf16>
    %c496 = arith.constant 496 : index
    %c0_82 = arith.constant 0 : index
    %156 = vector.load %arg3[%c496, %c0_82] : memref<4208x128xbf16, #tpu.memory_space<vmem>>, vector<16x16xbf16>
    %cst_83 = arith.constant dense<0.000000e+00> : vector<32x16xf32>
    %157 = tpu.matmul %155, %156, %cst_83 {dimension_numbers = #tpu.dot_dimension_numbers<[1], [0], [0], [1], [0, 0, 1, 1], [], []>} : vector<32x16xbf16>, vector<16x16xbf16>, vector<32x16xf32> -> vector<32x16xf32>
    %158 = vector.extract_strided_slice %147 {offsets = [96, 0], sizes = [32, 16], strides = [1, 1]} : vector<288x16xbf16> to vector<32x16xbf16>
    %c512 = arith.constant 512 : index
    %c0_84 = arith.constant 0 : index
    %159 = vector.load %arg3[%c512, %c0_84] : memref<4208x128xbf16, #tpu.memory_space<vmem>>, vector<16x16xbf16>
    %cst_85 = arith.constant dense<0.000000e+00> : vector<32x16xf32>
    %160 = tpu.matmul %158, %159, %cst_85 {dimension_numbers = #tpu.dot_dimension_numbers<[1], [0], [0], [1], [0, 0, 1, 1], [], []>} : vector<32x16xbf16>, vector<16x16xbf16>, vector<32x16xf32> -> vector<32x16xf32>
    %161 = arith.addf %157, %160 : vector<32x16xf32>
    %162 = vector.extract_strided_slice %147 {offsets = [128, 0], sizes = [32, 16], strides = [1, 1]} : vector<288x16xbf16> to vector<32x16xbf16>
    %c528 = arith.constant 528 : index
    %c0_86 = arith.constant 0 : index
    %163 = vector.load %arg3[%c528, %c0_86] : memref<4208x128xbf16, #tpu.memory_space<vmem>>, vector<16x16xbf16>
    %cst_87 = arith.constant dense<0.000000e+00> : vector<32x16xf32>
    %164 = tpu.matmul %162, %163, %cst_87 {dimension_numbers = #tpu.dot_dimension_numbers<[1], [0], [0], [1], [0, 0, 1, 1], [], []>} : vector<32x16xbf16>, vector<16x16xbf16>, vector<32x16xf32> -> vector<32x16xf32>
    %165 = vector.extract_strided_slice %147 {offsets = [160, 0], sizes = [32, 16], strides = [1, 1]} : vector<288x16xbf16> to vector<32x16xbf16>
    %c544 = arith.constant 544 : index
    %c0_88 = arith.constant 0 : index
    %166 = vector.load %arg3[%c544, %c0_88] : memref<4208x128xbf16, #tpu.memory_space<vmem>>, vector<16x16xbf16>
    %cst_89 = arith.constant dense<0.000000e+00> : vector<32x16xf32>
    %167 = tpu.matmul %165, %166, %cst_89 {dimension_numbers = #tpu.dot_dimension_numbers<[1], [0], [0], [1], [0, 0, 1, 1], [], []>} : vector<32x16xbf16>, vector<16x16xbf16>, vector<32x16xf32> -> vector<32x16xf32>
    %168 = arith.addf %164, %167 : vector<32x16xf32>
    %169 = vector.extract_strided_slice %147 {offsets = [192, 0], sizes = [32, 16], strides = [1, 1]} : vector<288x16xbf16> to vector<32x16xbf16>
    %c560 = arith.constant 560 : index
    %c0_90 = arith.constant 0 : index
    %170 = vector.load %arg3[%c560, %c0_90] : memref<4208x128xbf16, #tpu.memory_space<vmem>>, vector<16x16xbf16>
    %cst_91 = arith.constant dense<0.000000e+00> : vector<32x16xf32>
    %171 = tpu.matmul %169, %170, %cst_91 {dimension_numbers = #tpu.dot_dimension_numbers<[1], [0], [0], [1], [0, 0, 1, 1], [], []>} : vector<32x16xbf16>, vector<16x16xbf16>, vector<32x16xf32> -> vector<32x16xf32>
    %172 = vector.extract_strided_slice %147 {offsets = [224, 0], sizes = [32, 16], strides = [1, 1]} : vector<288x16xbf16> to vector<32x16xbf16>
    %c576 = arith.constant 576 : index
    %c0_92 = arith.constant 0 : index
    %173 = vector.load %arg3[%c576, %c0_92] : memref<4208x128xbf16, #tpu.memory_space<vmem>>, vector<16x16xbf16>
    %cst_93 = arith.constant dense<0.000000e+00> : vector<32x16xf32>
    %174 = tpu.matmul %172, %173, %cst_93 {dimension_numbers = #tpu.dot_dimension_numbers<[1], [0], [0], [1], [0, 0, 1, 1], [], []>} : vector<32x16xbf16>, vector<16x16xbf16>, vector<32x16xf32> -> vector<32x16xf32>
    %175 = arith.addf %171, %174 : vector<32x16xf32>
    %176 = arith.addf %154, %161 : vector<32x16xf32>
    %177 = arith.addf %168, %175 : vector<32x16xf32>
    %178 = arith.addf %176, %177 : vector<32x16xf32>
    %179 = vector.extract_strided_slice %147 {offsets = [256, 0], sizes = [32, 16], strides = [1, 1]} : vector<288x16xbf16> to vector<32x16xbf16>
    %c592 = arith.constant 592 : index
    %c0_94 = arith.constant 0 : index
    %180 = vector.load %arg3[%c592, %c0_94] : memref<4208x128xbf16, #tpu.memory_space<vmem>>, vector<16x16xbf16>
    %cst_95 = arith.constant dense<0.000000e+00> : vector<32x16xf32>
    %181 = tpu.matmul %179, %180, %cst_95 {dimension_numbers = #tpu.dot_dimension_numbers<[1], [0], [0], [1], [0, 0, 1, 1], [], []>} : vector<32x16xbf16>, vector<16x16xbf16>, vector<32x16xf32> -> vector<32x16xf32>
    %182 = arith.addf %178, %181 : vector<32x16xf32>
    %c4 = arith.constant 4 : index
    %c0_96 = arith.constant 0 : index
    %183 = vector.load %arg5[%c4, %c0_96] : memref<16x256xf32, #tpu.memory_space<vmem>>, vector<1x16xf32>
    %184 = vector.broadcast %183 : vector<1x16xf32> to vector<32x16xf32>
    %185 = arith.addf %182, %184 : vector<32x16xf32>
    %186 = arith.addf %185, %144 : vector<32x16xf32>
    %cst_97 = arith.constant 0.000000e+00 : f32
    %187 = vector.broadcast %cst_97 : f32 to vector<32x16xf32>
    %188 = arith.maximumf %186, %187 : vector<32x16xf32>
    %189 = arith.truncf %188 : vector<32x16xf32> to vector<32x16xbf16>
    %c288_98 = arith.constant 288 : index
    %c0_99 = arith.constant 0 : index
    %190 = vector.load %arg2[%c288_98, %c0_99] : memref<720x128xbf16, #tpu.memory_space<vmem>>, vector<288x32xbf16>
    %cst_100 = arith.constant dense<0.000000e+00> : vector<288x16xf32>
    %191 = tpu.matmul %190, %189, %cst_100 {dimension_numbers = #tpu.dot_dimension_numbers<[1], [0], [0], [1], [0, 0, 1, 1], [], []>} : vector<288x32xbf16>, vector<32x16xbf16>, vector<288x16xf32> -> vector<288x16xf32>
    %192 = arith.truncf %191 : vector<288x16xf32> to vector<288x16xbf16>
    %193 = vector.extract_strided_slice %192 {offsets = [0, 0], sizes = [32, 16], strides = [1, 1]} : vector<288x16xbf16> to vector<32x16xbf16>
    %c608 = arith.constant 608 : index
    %c0_101 = arith.constant 0 : index
    %194 = vector.load %arg3[%c608, %c0_101] : memref<4208x128xbf16, #tpu.memory_space<vmem>>, vector<16x64xbf16>
    %cst_102 = arith.constant dense<0.000000e+00> : vector<32x64xf32>
    %195 = tpu.matmul %193, %194, %cst_102 {dimension_numbers = #tpu.dot_dimension_numbers<[1], [0], [0], [1], [0, 0, 1, 1], [], []>} : vector<32x16xbf16>, vector<16x64xbf16>, vector<32x64xf32> -> vector<32x64xf32>
    %196 = vector.extract_strided_slice %192 {offsets = [32, 0], sizes = [32, 16], strides = [1, 1]} : vector<288x16xbf16> to vector<32x16xbf16>
    %c624 = arith.constant 624 : index
    %c0_103 = arith.constant 0 : index
    %197 = vector.load %arg3[%c624, %c0_103] : memref<4208x128xbf16, #tpu.memory_space<vmem>>, vector<16x64xbf16>
    %cst_104 = arith.constant dense<0.000000e+00> : vector<32x64xf32>
    %198 = tpu.matmul %196, %197, %cst_104 {dimension_numbers = #tpu.dot_dimension_numbers<[1], [0], [0], [1], [0, 0, 1, 1], [], []>} : vector<32x16xbf16>, vector<16x64xbf16>, vector<32x64xf32> -> vector<32x64xf32>
    %199 = arith.addf %195, %198 : vector<32x64xf32>
    %200 = vector.extract_strided_slice %192 {offsets = [64, 0], sizes = [32, 16], strides = [1, 1]} : vector<288x16xbf16> to vector<32x16xbf16>
    %c640 = arith.constant 640 : index
    %c0_105 = arith.constant 0 : index
    %201 = vector.load %arg3[%c640, %c0_105] : memref<4208x128xbf16, #tpu.memory_space<vmem>>, vector<16x64xbf16>
    %cst_106 = arith.constant dense<0.000000e+00> : vector<32x64xf32>
    %202 = tpu.matmul %200, %201, %cst_106 {dimension_numbers = #tpu.dot_dimension_numbers<[1], [0], [0], [1], [0, 0, 1, 1], [], []>} : vector<32x16xbf16>, vector<16x64xbf16>, vector<32x64xf32> -> vector<32x64xf32>
    %203 = vector.extract_strided_slice %192 {offsets = [96, 0], sizes = [32, 16], strides = [1, 1]} : vector<288x16xbf16> to vector<32x16xbf16>
    %c656 = arith.constant 656 : index
    %c0_107 = arith.constant 0 : index
    %204 = vector.load %arg3[%c656, %c0_107] : memref<4208x128xbf16, #tpu.memory_space<vmem>>, vector<16x64xbf16>
    %cst_108 = arith.constant dense<0.000000e+00> : vector<32x64xf32>
    %205 = tpu.matmul %203, %204, %cst_108 {dimension_numbers = #tpu.dot_dimension_numbers<[1], [0], [0], [1], [0, 0, 1, 1], [], []>} : vector<32x16xbf16>, vector<16x64xbf16>, vector<32x64xf32> -> vector<32x64xf32>
    %206 = arith.addf %202, %205 : vector<32x64xf32>
    %207 = vector.extract_strided_slice %192 {offsets = [128, 0], sizes = [32, 16], strides = [1, 1]} : vector<288x16xbf16> to vector<32x16xbf16>
    %c672 = arith.constant 672 : index
    %c0_109 = arith.constant 0 : index
    %208 = vector.load %arg3[%c672, %c0_109] : memref<4208x128xbf16, #tpu.memory_space<vmem>>, vector<16x64xbf16>
    %cst_110 = arith.constant dense<0.000000e+00> : vector<32x64xf32>
    %209 = tpu.matmul %207, %208, %cst_110 {dimension_numbers = #tpu.dot_dimension_numbers<[1], [0], [0], [1], [0, 0, 1, 1], [], []>} : vector<32x16xbf16>, vector<16x64xbf16>, vector<32x64xf32> -> vector<32x64xf32>
    %210 = vector.extract_strided_slice %192 {offsets = [160, 0], sizes = [32, 16], strides = [1, 1]} : vector<288x16xbf16> to vector<32x16xbf16>
    %c688 = arith.constant 688 : index
    %c0_111 = arith.constant 0 : index
    %211 = vector.load %arg3[%c688, %c0_111] : memref<4208x128xbf16, #tpu.memory_space<vmem>>, vector<16x64xbf16>
    %cst_112 = arith.constant dense<0.000000e+00> : vector<32x64xf32>
    %212 = tpu.matmul %210, %211, %cst_112 {dimension_numbers = #tpu.dot_dimension_numbers<[1], [0], [0], [1], [0, 0, 1, 1], [], []>} : vector<32x16xbf16>, vector<16x64xbf16>, vector<32x64xf32> -> vector<32x64xf32>
    %213 = arith.addf %209, %212 : vector<32x64xf32>
    %214 = vector.extract_strided_slice %192 {offsets = [192, 0], sizes = [32, 16], strides = [1, 1]} : vector<288x16xbf16> to vector<32x16xbf16>
    %c704 = arith.constant 704 : index
    %c0_113 = arith.constant 0 : index
    %215 = vector.load %arg3[%c704, %c0_113] : memref<4208x128xbf16, #tpu.memory_space<vmem>>, vector<16x64xbf16>
    %cst_114 = arith.constant dense<0.000000e+00> : vector<32x64xf32>
    %216 = tpu.matmul %214, %215, %cst_114 {dimension_numbers = #tpu.dot_dimension_numbers<[1], [0], [0], [1], [0, 0, 1, 1], [], []>} : vector<32x16xbf16>, vector<16x64xbf16>, vector<32x64xf32> -> vector<32x64xf32>
    %217 = vector.extract_strided_slice %192 {offsets = [224, 0], sizes = [32, 16], strides = [1, 1]} : vector<288x16xbf16> to vector<32x16xbf16>
    %c720 = arith.constant 720 : index
    %c0_115 = arith.constant 0 : index
    %218 = vector.load %arg3[%c720, %c0_115] : memref<4208x128xbf16, #tpu.memory_space<vmem>>, vector<16x64xbf16>
    %cst_116 = arith.constant dense<0.000000e+00> : vector<32x64xf32>
    %219 = tpu.matmul %217, %218, %cst_116 {dimension_numbers = #tpu.dot_dimension_numbers<[1], [0], [0], [1], [0, 0, 1, 1], [], []>} : vector<32x16xbf16>, vector<16x64xbf16>, vector<32x64xf32> -> vector<32x64xf32>
    %220 = arith.addf %216, %219 : vector<32x64xf32>
    %221 = arith.addf %199, %206 : vector<32x64xf32>
    %222 = arith.addf %213, %220 : vector<32x64xf32>
    %223 = arith.addf %221, %222 : vector<32x64xf32>
    %224 = vector.extract_strided_slice %192 {offsets = [256, 0], sizes = [32, 16], strides = [1, 1]} : vector<288x16xbf16> to vector<32x16xbf16>
    %c736 = arith.constant 736 : index
    %c0_117 = arith.constant 0 : index
    %225 = vector.load %arg3[%c736, %c0_117] : memref<4208x128xbf16, #tpu.memory_space<vmem>>, vector<16x64xbf16>
    %cst_118 = arith.constant dense<0.000000e+00> : vector<32x64xf32>
    %226 = tpu.matmul %224, %225, %cst_118 {dimension_numbers = #tpu.dot_dimension_numbers<[1], [0], [0], [1], [0, 0, 1, 1], [], []>} : vector<32x16xbf16>, vector<16x64xbf16>, vector<32x64xf32> -> vector<32x64xf32>
    %227 = arith.addf %223, %226 : vector<32x64xf32>
    %c5 = arith.constant 5 : index
    %c0_119 = arith.constant 0 : index
    %228 = vector.load %arg5[%c5, %c0_119] : memref<16x256xf32, #tpu.memory_space<vmem>>, vector<1x64xf32>
    %229 = vector.broadcast %228 : vector<1x64xf32> to vector<32x64xf32>
    %230 = arith.addf %227, %229 : vector<32x64xf32>
    %231 = vector.extract_strided_slice %230 {offsets = [0, 0], sizes = [32, 32], strides = [1, 1]} : vector<32x64xf32> to vector<32x32xf32>
    %cst_120 = arith.constant 0.000000e+00 : f32
    %232 = vector.broadcast %cst_120 : f32 to vector<32x32xf32>
    %233 = arith.maximumf %231, %232 : vector<32x32xf32>
    %234 = arith.truncf %233 : vector<32x32xf32> to vector<32x32xbf16>
    %235 = vector.extract_strided_slice %230 {offsets = [0, 32], sizes = [32, 32], strides = [1, 1]} : vector<32x64xf32> to vector<32x32xf32>
    %c288_121 = arith.constant 288 : index
    %c0_122 = arith.constant 0 : index
    %236 = vector.load %arg2[%c288_121, %c0_122] : memref<720x128xbf16, #tpu.memory_space<vmem>>, vector<288x32xbf16>
    %cst_123 = arith.constant dense<0.000000e+00> : vector<288x32xf32>
    %237 = tpu.matmul %236, %234, %cst_123 {dimension_numbers = #tpu.dot_dimension_numbers<[1], [0], [0], [1], [0, 0, 1, 1], [], []>} : vector<288x32xbf16>, vector<32x32xbf16>, vector<288x32xf32> -> vector<288x32xf32>
    %238 = arith.truncf %237 : vector<288x32xf32> to vector<288x32xbf16>
    %239 = vector.extract_strided_slice %238 {offsets = [0, 0], sizes = [32, 32], strides = [1, 1]} : vector<288x32xbf16> to vector<32x32xbf16>
    %c752 = arith.constant 752 : index
    %c0_124 = arith.constant 0 : index
    %240 = vector.load %arg3[%c752, %c0_124] : memref<4208x128xbf16, #tpu.memory_space<vmem>>, vector<32x32xbf16>
    %cst_125 = arith.constant dense<0.000000e+00> : vector<32x32xf32>
    %241 = tpu.matmul %239, %240, %cst_125 {dimension_numbers = #tpu.dot_dimension_numbers<[1], [0], [0], [1], [0, 0, 1, 1], [], []>} : vector<32x32xbf16>, vector<32x32xbf16>, vector<32x32xf32> -> vector<32x32xf32>
    %242 = vector.extract_strided_slice %238 {offsets = [32, 0], sizes = [32, 32], strides = [1, 1]} : vector<288x32xbf16> to vector<32x32xbf16>
    %c784 = arith.constant 784 : index
    %c0_126 = arith.constant 0 : index
    %243 = vector.load %arg3[%c784, %c0_126] : memref<4208x128xbf16, #tpu.memory_space<vmem>>, vector<32x32xbf16>
    %cst_127 = arith.constant dense<0.000000e+00> : vector<32x32xf32>
    %244 = tpu.matmul %242, %243, %cst_127 {dimension_numbers = #tpu.dot_dimension_numbers<[1], [0], [0], [1], [0, 0, 1, 1], [], []>} : vector<32x32xbf16>, vector<32x32xbf16>, vector<32x32xf32> -> vector<32x32xf32>
    %245 = arith.addf %241, %244 : vector<32x32xf32>
    %246 = vector.extract_strided_slice %238 {offsets = [64, 0], sizes = [32, 32], strides = [1, 1]} : vector<288x32xbf16> to vector<32x32xbf16>
    %c816 = arith.constant 816 : index
    %c0_128 = arith.constant 0 : index
    %247 = vector.load %arg3[%c816, %c0_128] : memref<4208x128xbf16, #tpu.memory_space<vmem>>, vector<32x32xbf16>
    %cst_129 = arith.constant dense<0.000000e+00> : vector<32x32xf32>
    %248 = tpu.matmul %246, %247, %cst_129 {dimension_numbers = #tpu.dot_dimension_numbers<[1], [0], [0], [1], [0, 0, 1, 1], [], []>} : vector<32x32xbf16>, vector<32x32xbf16>, vector<32x32xf32> -> vector<32x32xf32>
    %249 = vector.extract_strided_slice %238 {offsets = [96, 0], sizes = [32, 32], strides = [1, 1]} : vector<288x32xbf16> to vector<32x32xbf16>
    %c848 = arith.constant 848 : index
    %c0_130 = arith.constant 0 : index
    %250 = vector.load %arg3[%c848, %c0_130] : memref<4208x128xbf16, #tpu.memory_space<vmem>>, vector<32x32xbf16>
    %cst_131 = arith.constant dense<0.000000e+00> : vector<32x32xf32>
    %251 = tpu.matmul %249, %250, %cst_131 {dimension_numbers = #tpu.dot_dimension_numbers<[1], [0], [0], [1], [0, 0, 1, 1], [], []>} : vector<32x32xbf16>, vector<32x32xbf16>, vector<32x32xf32> -> vector<32x32xf32>
    %252 = arith.addf %248, %251 : vector<32x32xf32>
    %253 = vector.extract_strided_slice %238 {offsets = [128, 0], sizes = [32, 32], strides = [1, 1]} : vector<288x32xbf16> to vector<32x32xbf16>
    %c880 = arith.constant 880 : index
    %c0_132 = arith.constant 0 : index
    %254 = vector.load %arg3[%c880, %c0_132] : memref<4208x128xbf16, #tpu.memory_space<vmem>>, vector<32x32xbf16>
    %cst_133 = arith.constant dense<0.000000e+00> : vector<32x32xf32>
    %255 = tpu.matmul %253, %254, %cst_133 {dimension_numbers = #tpu.dot_dimension_numbers<[1], [0], [0], [1], [0, 0, 1, 1], [], []>} : vector<32x32xbf16>, vector<32x32xbf16>, vector<32x32xf32> -> vector<32x32xf32>
    %256 = vector.extract_strided_slice %238 {offsets = [160, 0], sizes = [32, 32], strides = [1, 1]} : vector<288x32xbf16> to vector<32x32xbf16>
    %c912 = arith.constant 912 : index
    %c0_134 = arith.constant 0 : index
    %257 = vector.load %arg3[%c912, %c0_134] : memref<4208x128xbf16, #tpu.memory_space<vmem>>, vector<32x32xbf16>
    %cst_135 = arith.constant dense<0.000000e+00> : vector<32x32xf32>
    %258 = tpu.matmul %256, %257, %cst_135 {dimension_numbers = #tpu.dot_dimension_numbers<[1], [0], [0], [1], [0, 0, 1, 1], [], []>} : vector<32x32xbf16>, vector<32x32xbf16>, vector<32x32xf32> -> vector<32x32xf32>
    %259 = arith.addf %255, %258 : vector<32x32xf32>
    %260 = vector.extract_strided_slice %238 {offsets = [192, 0], sizes = [32, 32], strides = [1, 1]} : vector<288x32xbf16> to vector<32x32xbf16>
    %c944 = arith.constant 944 : index
    %c0_136 = arith.constant 0 : index
    %261 = vector.load %arg3[%c944, %c0_136] : memref<4208x128xbf16, #tpu.memory_space<vmem>>, vector<32x32xbf16>
    %cst_137 = arith.constant dense<0.000000e+00> : vector<32x32xf32>
    %262 = tpu.matmul %260, %261, %cst_137 {dimension_numbers = #tpu.dot_dimension_numbers<[1], [0], [0], [1], [0, 0, 1, 1], [], []>} : vector<32x32xbf16>, vector<32x32xbf16>, vector<32x32xf32> -> vector<32x32xf32>
    %263 = vector.extract_strided_slice %238 {offsets = [224, 0], sizes = [32, 32], strides = [1, 1]} : vector<288x32xbf16> to vector<32x32xbf16>
    %c976 = arith.constant 976 : index
    %c0_138 = arith.constant 0 : index
    %264 = vector.load %arg3[%c976, %c0_138] : memref<4208x128xbf16, #tpu.memory_space<vmem>>, vector<32x32xbf16>
    %cst_139 = arith.constant dense<0.000000e+00> : vector<32x32xf32>
    %265 = tpu.matmul %263, %264, %cst_139 {dimension_numbers = #tpu.dot_dimension_numbers<[1], [0], [0], [1], [0, 0, 1, 1], [], []>} : vector<32x32xbf16>, vector<32x32xbf16>, vector<32x32xf32> -> vector<32x32xf32>
    %266 = arith.addf %262, %265 : vector<32x32xf32>
    %267 = arith.addf %245, %252 : vector<32x32xf32>
    %268 = arith.addf %259, %266 : vector<32x32xf32>
    %269 = arith.addf %267, %268 : vector<32x32xf32>
    %270 = vector.extract_strided_slice %238 {offsets = [256, 0], sizes = [32, 32], strides = [1, 1]} : vector<288x32xbf16> to vector<32x32xbf16>
    %c1008 = arith.constant 1008 : index
    %c0_140 = arith.constant 0 : index
    %271 = vector.load %arg3[%c1008, %c0_140] : memref<4208x128xbf16, #tpu.memory_space<vmem>>, vector<32x32xbf16>
    %cst_141 = arith.constant dense<0.000000e+00> : vector<32x32xf32>
    %272 = tpu.matmul %270, %271, %cst_141 {dimension_numbers = #tpu.dot_dimension_numbers<[1], [0], [0], [1], [0, 0, 1, 1], [], []>} : vector<32x32xbf16>, vector<32x32xbf16>, vector<32x32xf32> -> vector<32x32xf32>
    %273 = arith.addf %269, %272 : vector<32x32xf32>
    %c6 = arith.constant 6 : index
    %c0_142 = arith.constant 0 : index
    %274 = vector.load %arg5[%c6, %c0_142] : memref<16x256xf32, #tpu.memory_space<vmem>>, vector<1x32xf32>
    %275 = vector.broadcast %274 : vector<1x32xf32> to vector<32x32xf32>
    %276 = arith.addf %273, %275 : vector<32x32xf32>
    %277 = arith.addf %276, %235 : vector<32x32xf32>
    %cst_143 = arith.constant 0.000000e+00 : f32
    %278 = vector.broadcast %cst_143 : f32 to vector<32x32xf32>
    %279 = arith.maximumf %277, %278 : vector<32x32xf32>
    %280 = arith.truncf %279 : vector<32x32xf32> to vector<32x32xbf16>
    %c576_144 = arith.constant 576 : index
    %c0_145 = arith.constant 0 : index
    %281 = vector.load %arg2[%c576_144, %c0_145] : memref<720x128xbf16, #tpu.memory_space<vmem>>, vector<72x32xbf16>
    %cst_146 = arith.constant dense<0.000000e+00> : vector<72x32xf32>
    %282 = tpu.matmul %281, %280, %cst_146 {dimension_numbers = #tpu.dot_dimension_numbers<[1], [0], [0], [1], [0, 0, 1, 1], [], []>} : vector<72x32xbf16>, vector<32x32xbf16>, vector<72x32xf32> -> vector<72x32xf32>
    %283 = arith.truncf %282 : vector<72x32xf32> to vector<72x32xbf16>
    %284 = vector.extract_strided_slice %283 {offsets = [0, 0], sizes = [8, 32], strides = [1, 1]} : vector<72x32xbf16> to vector<8x32xbf16>
    %c1040 = arith.constant 1040 : index
    %c0_147 = arith.constant 0 : index
    %285 = vector.load %arg3[%c1040, %c0_147] : memref<4208x128xbf16, #tpu.memory_space<vmem>>, vector<32x128xbf16>
    %cst_148 = arith.constant dense<0.000000e+00> : vector<8x128xf32>
    %286 = tpu.matmul %284, %285, %cst_148 {dimension_numbers = #tpu.dot_dimension_numbers<[1], [0], [0], [1], [0, 0, 1, 1], [], []>} : vector<8x32xbf16>, vector<32x128xbf16>, vector<8x128xf32> -> vector<8x128xf32>
    %287 = vector.extract_strided_slice %283 {offsets = [8, 0], sizes = [8, 32], strides = [1, 1]} : vector<72x32xbf16> to vector<8x32xbf16>
    %c1072 = arith.constant 1072 : index
    %c0_149 = arith.constant 0 : index
    %288 = vector.load %arg3[%c1072, %c0_149] : memref<4208x128xbf16, #tpu.memory_space<vmem>>, vector<32x128xbf16>
    %cst_150 = arith.constant dense<0.000000e+00> : vector<8x128xf32>
    %289 = tpu.matmul %287, %288, %cst_150 {dimension_numbers = #tpu.dot_dimension_numbers<[1], [0], [0], [1], [0, 0, 1, 1], [], []>} : vector<8x32xbf16>, vector<32x128xbf16>, vector<8x128xf32> -> vector<8x128xf32>
    %290 = arith.addf %286, %289 : vector<8x128xf32>
    %291 = vector.extract_strided_slice %283 {offsets = [16, 0], sizes = [8, 32], strides = [1, 1]} : vector<72x32xbf16> to vector<8x32xbf16>
    %c1104 = arith.constant 1104 : index
    %c0_151 = arith.constant 0 : index
    %292 = vector.load %arg3[%c1104, %c0_151] : memref<4208x128xbf16, #tpu.memory_space<vmem>>, vector<32x128xbf16>
    %cst_152 = arith.constant dense<0.000000e+00> : vector<8x128xf32>
    %293 = tpu.matmul %291, %292, %cst_152 {dimension_numbers = #tpu.dot_dimension_numbers<[1], [0], [0], [1], [0, 0, 1, 1], [], []>} : vector<8x32xbf16>, vector<32x128xbf16>, vector<8x128xf32> -> vector<8x128xf32>
    %294 = vector.extract_strided_slice %283 {offsets = [24, 0], sizes = [8, 32], strides = [1, 1]} : vector<72x32xbf16> to vector<8x32xbf16>
    %c1136 = arith.constant 1136 : index
    %c0_153 = arith.constant 0 : index
    %295 = vector.load %arg3[%c1136, %c0_153] : memref<4208x128xbf16, #tpu.memory_space<vmem>>, vector<32x128xbf16>
    %cst_154 = arith.constant dense<0.000000e+00> : vector<8x128xf32>
    %296 = tpu.matmul %294, %295, %cst_154 {dimension_numbers = #tpu.dot_dimension_numbers<[1], [0], [0], [1], [0, 0, 1, 1], [], []>} : vector<8x32xbf16>, vector<32x128xbf16>, vector<8x128xf32> -> vector<8x128xf32>
    %297 = arith.addf %293, %296 : vector<8x128xf32>
    %298 = vector.extract_strided_slice %283 {offsets = [32, 0], sizes = [8, 32], strides = [1, 1]} : vector<72x32xbf16> to vector<8x32xbf16>
    %c1168 = arith.constant 1168 : index
    %c0_155 = arith.constant 0 : index
    %299 = vector.load %arg3[%c1168, %c0_155] : memref<4208x128xbf16, #tpu.memory_space<vmem>>, vector<32x128xbf16>
    %cst_156 = arith.constant dense<0.000000e+00> : vector<8x128xf32>
    %300 = tpu.matmul %298, %299, %cst_156 {dimension_numbers = #tpu.dot_dimension_numbers<[1], [0], [0], [1], [0, 0, 1, 1], [], []>} : vector<8x32xbf16>, vector<32x128xbf16>, vector<8x128xf32> -> vector<8x128xf32>
    %301 = vector.extract_strided_slice %283 {offsets = [40, 0], sizes = [8, 32], strides = [1, 1]} : vector<72x32xbf16> to vector<8x32xbf16>
    %c1200 = arith.constant 1200 : index
    %c0_157 = arith.constant 0 : index
    %302 = vector.load %arg3[%c1200, %c0_157] : memref<4208x128xbf16, #tpu.memory_space<vmem>>, vector<32x128xbf16>
    %cst_158 = arith.constant dense<0.000000e+00> : vector<8x128xf32>
    %303 = tpu.matmul %301, %302, %cst_158 {dimension_numbers = #tpu.dot_dimension_numbers<[1], [0], [0], [1], [0, 0, 1, 1], [], []>} : vector<8x32xbf16>, vector<32x128xbf16>, vector<8x128xf32> -> vector<8x128xf32>
    %304 = arith.addf %300, %303 : vector<8x128xf32>
    %305 = vector.extract_strided_slice %283 {offsets = [48, 0], sizes = [8, 32], strides = [1, 1]} : vector<72x32xbf16> to vector<8x32xbf16>
    %c1232 = arith.constant 1232 : index
    %c0_159 = arith.constant 0 : index
    %306 = vector.load %arg3[%c1232, %c0_159] : memref<4208x128xbf16, #tpu.memory_space<vmem>>, vector<32x128xbf16>
    %cst_160 = arith.constant dense<0.000000e+00> : vector<8x128xf32>
    %307 = tpu.matmul %305, %306, %cst_160 {dimension_numbers = #tpu.dot_dimension_numbers<[1], [0], [0], [1], [0, 0, 1, 1], [], []>} : vector<8x32xbf16>, vector<32x128xbf16>, vector<8x128xf32> -> vector<8x128xf32>
    %308 = vector.extract_strided_slice %283 {offsets = [56, 0], sizes = [8, 32], strides = [1, 1]} : vector<72x32xbf16> to vector<8x32xbf16>
    %c1264 = arith.constant 1264 : index
    %c0_161 = arith.constant 0 : index
    %309 = vector.load %arg3[%c1264, %c0_161] : memref<4208x128xbf16, #tpu.memory_space<vmem>>, vector<32x128xbf16>
    %cst_162 = arith.constant dense<0.000000e+00> : vector<8x128xf32>
    %310 = tpu.matmul %308, %309, %cst_162 {dimension_numbers = #tpu.dot_dimension_numbers<[1], [0], [0], [1], [0, 0, 1, 1], [], []>} : vector<8x32xbf16>, vector<32x128xbf16>, vector<8x128xf32> -> vector<8x128xf32>
    %311 = arith.addf %307, %310 : vector<8x128xf32>
    %312 = arith.addf %290, %297 : vector<8x128xf32>
    %313 = arith.addf %304, %311 : vector<8x128xf32>
    %314 = arith.addf %312, %313 : vector<8x128xf32>
    %315 = vector.extract_strided_slice %283 {offsets = [64, 0], sizes = [8, 32], strides = [1, 1]} : vector<72x32xbf16> to vector<8x32xbf16>
    %c1296 = arith.constant 1296 : index
    %c0_163 = arith.constant 0 : index
    %316 = vector.load %arg3[%c1296, %c0_163] : memref<4208x128xbf16, #tpu.memory_space<vmem>>, vector<32x128xbf16>
    %cst_164 = arith.constant dense<0.000000e+00> : vector<8x128xf32>
    %317 = tpu.matmul %315, %316, %cst_164 {dimension_numbers = #tpu.dot_dimension_numbers<[1], [0], [0], [1], [0, 0, 1, 1], [], []>} : vector<8x32xbf16>, vector<32x128xbf16>, vector<8x128xf32> -> vector<8x128xf32>
    %318 = arith.addf %314, %317 : vector<8x128xf32>
    %c7 = arith.constant 7 : index
    %c0_165 = arith.constant 0 : index
    %319 = vector.load %arg5[%c7, %c0_165] : memref<16x256xf32, #tpu.memory_space<vmem>>, vector<1x128xf32>
    %320 = vector.broadcast %319 : vector<1x128xf32> to vector<8x128xf32>
    %321 = arith.addf %318, %320 : vector<8x128xf32>
    %322 = vector.extract_strided_slice %321 {offsets = [0, 0], sizes = [8, 64], strides = [1, 1]} : vector<8x128xf32> to vector<8x64xf32>
    %cst_166 = arith.constant 0.000000e+00 : f32
    %323 = vector.broadcast %cst_166 : f32 to vector<8x64xf32>
    %324 = arith.maximumf %322, %323 : vector<8x64xf32>
    %325 = arith.truncf %324 : vector<8x64xf32> to vector<8x64xbf16>
    %326 = vector.extract_strided_slice %321 {offsets = [0, 64], sizes = [8, 64], strides = [1, 1]} : vector<8x128xf32> to vector<8x64xf32>
    %c648 = arith.constant 648 : index
    %c0_167 = arith.constant 0 : index
    %327 = vector.load %arg2[%c648, %c0_167] : memref<720x128xbf16, #tpu.memory_space<vmem>>, vector<72x8xbf16>
    %cst_168 = arith.constant dense<0.000000e+00> : vector<72x64xf32>
    %328 = tpu.matmul %327, %325, %cst_168 {dimension_numbers = #tpu.dot_dimension_numbers<[1], [0], [0], [1], [0, 0, 1, 1], [], []>} : vector<72x8xbf16>, vector<8x64xbf16>, vector<72x64xf32> -> vector<72x64xf32>
    %329 = arith.truncf %328 : vector<72x64xf32> to vector<72x64xbf16>
    %330 = vector.extract_strided_slice %329 {offsets = [0, 0], sizes = [8, 64], strides = [1, 1]} : vector<72x64xbf16> to vector<8x64xbf16>
    %c1328 = arith.constant 1328 : index
    %c0_169 = arith.constant 0 : index
    %331 = vector.load %arg3[%c1328, %c0_169] : memref<4208x128xbf16, #tpu.memory_space<vmem>>, vector<64x64xbf16>
    %cst_170 = arith.constant dense<0.000000e+00> : vector<8x64xf32>
    %332 = tpu.matmul %330, %331, %cst_170 {dimension_numbers = #tpu.dot_dimension_numbers<[1], [0], [0], [1], [0, 0, 1, 1], [], []>} : vector<8x64xbf16>, vector<64x64xbf16>, vector<8x64xf32> -> vector<8x64xf32>
    %333 = vector.extract_strided_slice %329 {offsets = [8, 0], sizes = [8, 64], strides = [1, 1]} : vector<72x64xbf16> to vector<8x64xbf16>
    %c1392 = arith.constant 1392 : index
    %c0_171 = arith.constant 0 : index
    %334 = vector.load %arg3[%c1392, %c0_171] : memref<4208x128xbf16, #tpu.memory_space<vmem>>, vector<64x64xbf16>
    %cst_172 = arith.constant dense<0.000000e+00> : vector<8x64xf32>
    %335 = tpu.matmul %333, %334, %cst_172 {dimension_numbers = #tpu.dot_dimension_numbers<[1], [0], [0], [1], [0, 0, 1, 1], [], []>} : vector<8x64xbf16>, vector<64x64xbf16>, vector<8x64xf32> -> vector<8x64xf32>
    %336 = arith.addf %332, %335 : vector<8x64xf32>
    %337 = vector.extract_strided_slice %329 {offsets = [16, 0], sizes = [8, 64], strides = [1, 1]} : vector<72x64xbf16> to vector<8x64xbf16>
    %c1456 = arith.constant 1456 : index
    %c0_173 = arith.constant 0 : index
    %338 = vector.load %arg3[%c1456, %c0_173] : memref<4208x128xbf16, #tpu.memory_space<vmem>>, vector<64x64xbf16>
    %cst_174 = arith.constant dense<0.000000e+00> : vector<8x64xf32>
    %339 = tpu.matmul %337, %338, %cst_174 {dimension_numbers = #tpu.dot_dimension_numbers<[1], [0], [0], [1], [0, 0, 1, 1], [], []>} : vector<8x64xbf16>, vector<64x64xbf16>, vector<8x64xf32> -> vector<8x64xf32>
    %340 = vector.extract_strided_slice %329 {offsets = [24, 0], sizes = [8, 64], strides = [1, 1]} : vector<72x64xbf16> to vector<8x64xbf16>
    %c1520 = arith.constant 1520 : index
    %c0_175 = arith.constant 0 : index
    %341 = vector.load %arg3[%c1520, %c0_175] : memref<4208x128xbf16, #tpu.memory_space<vmem>>, vector<64x64xbf16>
    %cst_176 = arith.constant dense<0.000000e+00> : vector<8x64xf32>
    %342 = tpu.matmul %340, %341, %cst_176 {dimension_numbers = #tpu.dot_dimension_numbers<[1], [0], [0], [1], [0, 0, 1, 1], [], []>} : vector<8x64xbf16>, vector<64x64xbf16>, vector<8x64xf32> -> vector<8x64xf32>
    %343 = arith.addf %339, %342 : vector<8x64xf32>
    %344 = vector.extract_strided_slice %329 {offsets = [32, 0], sizes = [8, 64], strides = [1, 1]} : vector<72x64xbf16> to vector<8x64xbf16>
    %c1584 = arith.constant 1584 : index
    %c0_177 = arith.constant 0 : index
    %345 = vector.load %arg3[%c1584, %c0_177] : memref<4208x128xbf16, #tpu.memory_space<vmem>>, vector<64x64xbf16>
    %cst_178 = arith.constant dense<0.000000e+00> : vector<8x64xf32>
    %346 = tpu.matmul %344, %345, %cst_178 {dimension_numbers = #tpu.dot_dimension_numbers<[1], [0], [0], [1], [0, 0, 1, 1], [], []>} : vector<8x64xbf16>, vector<64x64xbf16>, vector<8x64xf32> -> vector<8x64xf32>
    %347 = vector.extract_strided_slice %329 {offsets = [40, 0], sizes = [8, 64], strides = [1, 1]} : vector<72x64xbf16> to vector<8x64xbf16>
    %c1648 = arith.constant 1648 : index
    %c0_179 = arith.constant 0 : index
    %348 = vector.load %arg3[%c1648, %c0_179] : memref<4208x128xbf16, #tpu.memory_space<vmem>>, vector<64x64xbf16>
    %cst_180 = arith.constant dense<0.000000e+00> : vector<8x64xf32>
    %349 = tpu.matmul %347, %348, %cst_180 {dimension_numbers = #tpu.dot_dimension_numbers<[1], [0], [0], [1], [0, 0, 1, 1], [], []>} : vector<8x64xbf16>, vector<64x64xbf16>, vector<8x64xf32> -> vector<8x64xf32>
    %350 = arith.addf %346, %349 : vector<8x64xf32>
    %351 = vector.extract_strided_slice %329 {offsets = [48, 0], sizes = [8, 64], strides = [1, 1]} : vector<72x64xbf16> to vector<8x64xbf16>
    %c1712 = arith.constant 1712 : index
    %c0_181 = arith.constant 0 : index
    %352 = vector.load %arg3[%c1712, %c0_181] : memref<4208x128xbf16, #tpu.memory_space<vmem>>, vector<64x64xbf16>
    %cst_182 = arith.constant dense<0.000000e+00> : vector<8x64xf32>
    %353 = tpu.matmul %351, %352, %cst_182 {dimension_numbers = #tpu.dot_dimension_numbers<[1], [0], [0], [1], [0, 0, 1, 1], [], []>} : vector<8x64xbf16>, vector<64x64xbf16>, vector<8x64xf32> -> vector<8x64xf32>
    %354 = vector.extract_strided_slice %329 {offsets = [56, 0], sizes = [8, 64], strides = [1, 1]} : vector<72x64xbf16> to vector<8x64xbf16>
    %c1776 = arith.constant 1776 : index
    %c0_183 = arith.constant 0 : index
    %355 = vector.load %arg3[%c1776, %c0_183] : memref<4208x128xbf16, #tpu.memory_space<vmem>>, vector<64x64xbf16>
    %cst_184 = arith.constant dense<0.000000e+00> : vector<8x64xf32>
    %356 = tpu.matmul %354, %355, %cst_184 {dimension_numbers = #tpu.dot_dimension_numbers<[1], [0], [0], [1], [0, 0, 1, 1], [], []>} : vector<8x64xbf16>, vector<64x64xbf16>, vector<8x64xf32> -> vector<8x64xf32>
    %357 = arith.addf %353, %356 : vector<8x64xf32>
    %358 = arith.addf %336, %343 : vector<8x64xf32>
    %359 = arith.addf %350, %357 : vector<8x64xf32>
    %360 = arith.addf %358, %359 : vector<8x64xf32>
    %361 = vector.extract_strided_slice %329 {offsets = [64, 0], sizes = [8, 64], strides = [1, 1]} : vector<72x64xbf16> to vector<8x64xbf16>
    %c1840 = arith.constant 1840 : index
    %c0_185 = arith.constant 0 : index
    %362 = vector.load %arg3[%c1840, %c0_185] : memref<4208x128xbf16, #tpu.memory_space<vmem>>, vector<64x64xbf16>
    %cst_186 = arith.constant dense<0.000000e+00> : vector<8x64xf32>
    %363 = tpu.matmul %361, %362, %cst_186 {dimension_numbers = #tpu.dot_dimension_numbers<[1], [0], [0], [1], [0, 0, 1, 1], [], []>} : vector<8x64xbf16>, vector<64x64xbf16>, vector<8x64xf32> -> vector<8x64xf32>
    %364 = arith.addf %360, %363 : vector<8x64xf32>
    %c8 = arith.constant 8 : index
    %c0_187 = arith.constant 0 : index
    %365 = vector.load %arg5[%c8, %c0_187] : memref<16x256xf32, #tpu.memory_space<vmem>>, vector<1x64xf32>
    %366 = vector.broadcast %365 : vector<1x64xf32> to vector<8x64xf32>
    %367 = arith.addf %364, %366 : vector<8x64xf32>
    %368 = arith.addf %367, %326 : vector<8x64xf32>
    %cst_188 = arith.constant 0.000000e+00 : f32
    %369 = vector.broadcast %cst_188 : f32 to vector<8x64xf32>
    %370 = arith.maximumf %368, %369 : vector<8x64xf32>
    %371 = arith.truncf %370 : vector<8x64xf32> to vector<8x64xbf16>
    %c648_189 = arith.constant 648 : index
    %c0_190 = arith.constant 0 : index
    %372 = vector.load %arg2[%c648_189, %c0_190] : memref<720x128xbf16, #tpu.memory_space<vmem>>, vector<72x8xbf16>
    %cst_191 = arith.constant dense<0.000000e+00> : vector<72x64xf32>
    %373 = tpu.matmul %372, %371, %cst_191 {dimension_numbers = #tpu.dot_dimension_numbers<[1], [0], [0], [1], [0, 0, 1, 1], [], []>} : vector<72x8xbf16>, vector<8x64xbf16>, vector<72x64xf32> -> vector<72x64xf32>
    %374 = arith.truncf %373 : vector<72x64xf32> to vector<72x64xbf16>
    %375 = vector.extract_strided_slice %374 {offsets = [0, 0], sizes = [8, 64], strides = [1, 1]} : vector<72x64xbf16> to vector<8x64xbf16>
    %c1904 = arith.constant 1904 : index
    %c0_192 = arith.constant 0 : index
    %376 = vector.load %arg3[%c1904, %c0_192] : memref<4208x128xbf16, #tpu.memory_space<vmem>>, vector<64x64xbf16>
    %cst_193 = arith.constant dense<0.000000e+00> : vector<8x64xf32>
    %377 = tpu.matmul %375, %376, %cst_193 {dimension_numbers = #tpu.dot_dimension_numbers<[1], [0], [0], [1], [0, 0, 1, 1], [], []>} : vector<8x64xbf16>, vector<64x64xbf16>, vector<8x64xf32> -> vector<8x64xf32>
    %378 = vector.extract_strided_slice %374 {offsets = [8, 0], sizes = [8, 64], strides = [1, 1]} : vector<72x64xbf16> to vector<8x64xbf16>
    %c1968 = arith.constant 1968 : index
    %c0_194 = arith.constant 0 : index
    %379 = vector.load %arg3[%c1968, %c0_194] : memref<4208x128xbf16, #tpu.memory_space<vmem>>, vector<64x64xbf16>
    %cst_195 = arith.constant dense<0.000000e+00> : vector<8x64xf32>
    %380 = tpu.matmul %378, %379, %cst_195 {dimension_numbers = #tpu.dot_dimension_numbers<[1], [0], [0], [1], [0, 0, 1, 1], [], []>} : vector<8x64xbf16>, vector<64x64xbf16>, vector<8x64xf32> -> vector<8x64xf32>
    %381 = arith.addf %377, %380 : vector<8x64xf32>
    %382 = vector.extract_strided_slice %374 {offsets = [16, 0], sizes = [8, 64], strides = [1, 1]} : vector<72x64xbf16> to vector<8x64xbf16>
    %c2032 = arith.constant 2032 : index
    %c0_196 = arith.constant 0 : index
    %383 = vector.load %arg3[%c2032, %c0_196] : memref<4208x128xbf16, #tpu.memory_space<vmem>>, vector<64x64xbf16>
    %cst_197 = arith.constant dense<0.000000e+00> : vector<8x64xf32>
    %384 = tpu.matmul %382, %383, %cst_197 {dimension_numbers = #tpu.dot_dimension_numbers<[1], [0], [0], [1], [0, 0, 1, 1], [], []>} : vector<8x64xbf16>, vector<64x64xbf16>, vector<8x64xf32> -> vector<8x64xf32>
    %385 = vector.extract_strided_slice %374 {offsets = [24, 0], sizes = [8, 64], strides = [1, 1]} : vector<72x64xbf16> to vector<8x64xbf16>
    %c2096 = arith.constant 2096 : index
    %c0_198 = arith.constant 0 : index
    %386 = vector.load %arg3[%c2096, %c0_198] : memref<4208x128xbf16, #tpu.memory_space<vmem>>, vector<64x64xbf16>
    %cst_199 = arith.constant dense<0.000000e+00> : vector<8x64xf32>
    %387 = tpu.matmul %385, %386, %cst_199 {dimension_numbers = #tpu.dot_dimension_numbers<[1], [0], [0], [1], [0, 0, 1, 1], [], []>} : vector<8x64xbf16>, vector<64x64xbf16>, vector<8x64xf32> -> vector<8x64xf32>
    %388 = arith.addf %384, %387 : vector<8x64xf32>
    %389 = vector.extract_strided_slice %374 {offsets = [32, 0], sizes = [8, 64], strides = [1, 1]} : vector<72x64xbf16> to vector<8x64xbf16>
    %c2160 = arith.constant 2160 : index
    %c0_200 = arith.constant 0 : index
    %390 = vector.load %arg3[%c2160, %c0_200] : memref<4208x128xbf16, #tpu.memory_space<vmem>>, vector<64x64xbf16>
    %cst_201 = arith.constant dense<0.000000e+00> : vector<8x64xf32>
    %391 = tpu.matmul %389, %390, %cst_201 {dimension_numbers = #tpu.dot_dimension_numbers<[1], [0], [0], [1], [0, 0, 1, 1], [], []>} : vector<8x64xbf16>, vector<64x64xbf16>, vector<8x64xf32> -> vector<8x64xf32>
    %392 = vector.extract_strided_slice %374 {offsets = [40, 0], sizes = [8, 64], strides = [1, 1]} : vector<72x64xbf16> to vector<8x64xbf16>
    %c2224 = arith.constant 2224 : index
    %c0_202 = arith.constant 0 : index
    %393 = vector.load %arg3[%c2224, %c0_202] : memref<4208x128xbf16, #tpu.memory_space<vmem>>, vector<64x64xbf16>
    %cst_203 = arith.constant dense<0.000000e+00> : vector<8x64xf32>
    %394 = tpu.matmul %392, %393, %cst_203 {dimension_numbers = #tpu.dot_dimension_numbers<[1], [0], [0], [1], [0, 0, 1, 1], [], []>} : vector<8x64xbf16>, vector<64x64xbf16>, vector<8x64xf32> -> vector<8x64xf32>
    %395 = arith.addf %391, %394 : vector<8x64xf32>
    %396 = vector.extract_strided_slice %374 {offsets = [48, 0], sizes = [8, 64], strides = [1, 1]} : vector<72x64xbf16> to vector<8x64xbf16>
    %c2288 = arith.constant 2288 : index
    %c0_204 = arith.constant 0 : index
    %397 = vector.load %arg3[%c2288, %c0_204] : memref<4208x128xbf16, #tpu.memory_space<vmem>>, vector<64x64xbf16>
    %cst_205 = arith.constant dense<0.000000e+00> : vector<8x64xf32>
    %398 = tpu.matmul %396, %397, %cst_205 {dimension_numbers = #tpu.dot_dimension_numbers<[1], [0], [0], [1], [0, 0, 1, 1], [], []>} : vector<8x64xbf16>, vector<64x64xbf16>, vector<8x64xf32> -> vector<8x64xf32>
    %399 = vector.extract_strided_slice %374 {offsets = [56, 0], sizes = [8, 64], strides = [1, 1]} : vector<72x64xbf16> to vector<8x64xbf16>
    %c2352 = arith.constant 2352 : index
    %c0_206 = arith.constant 0 : index
    %400 = vector.load %arg3[%c2352, %c0_206] : memref<4208x128xbf16, #tpu.memory_space<vmem>>, vector<64x64xbf16>
    %cst_207 = arith.constant dense<0.000000e+00> : vector<8x64xf32>
    %401 = tpu.matmul %399, %400, %cst_207 {dimension_numbers = #tpu.dot_dimension_numbers<[1], [0], [0], [1], [0, 0, 1, 1], [], []>} : vector<8x64xbf16>, vector<64x64xbf16>, vector<8x64xf32> -> vector<8x64xf32>
    %402 = arith.addf %398, %401 : vector<8x64xf32>
    %403 = arith.addf %381, %388 : vector<8x64xf32>
    %404 = arith.addf %395, %402 : vector<8x64xf32>
    %405 = arith.addf %403, %404 : vector<8x64xf32>
    %406 = vector.extract_strided_slice %374 {offsets = [64, 0], sizes = [8, 64], strides = [1, 1]} : vector<72x64xbf16> to vector<8x64xbf16>
    %c2416 = arith.constant 2416 : index
    %c0_208 = arith.constant 0 : index
    %407 = vector.load %arg3[%c2416, %c0_208] : memref<4208x128xbf16, #tpu.memory_space<vmem>>, vector<64x64xbf16>
    %cst_209 = arith.constant dense<0.000000e+00> : vector<8x64xf32>
    %408 = tpu.matmul %406, %407, %cst_209 {dimension_numbers = #tpu.dot_dimension_numbers<[1], [0], [0], [1], [0, 0, 1, 1], [], []>} : vector<8x64xbf16>, vector<64x64xbf16>, vector<8x64xf32> -> vector<8x64xf32>
    %409 = arith.addf %405, %408 : vector<8x64xf32>
    %c9 = arith.constant 9 : index
    %c0_210 = arith.constant 0 : index
    %410 = vector.load %arg5[%c9, %c0_210] : memref<16x256xf32, #tpu.memory_space<vmem>>, vector<1x64xf32>
    %411 = vector.broadcast %410 : vector<1x64xf32> to vector<8x64xf32>
    %412 = arith.addf %409, %411 : vector<8x64xf32>
    %cst_211 = arith.constant 0.000000e+00 : f32
    %413 = vector.broadcast %cst_211 : f32 to vector<8x64xf32>
    %414 = arith.maximumf %412, %413 : vector<8x64xf32>
    %415 = arith.truncf %414 : vector<8x64xf32> to vector<8x64xbf16>
    %416 = arith.extf %371 : vector<8x64xbf16> to vector<8x64xf32>
    %c648_212 = arith.constant 648 : index
    %c0_213 = arith.constant 0 : index
    %417 = vector.load %arg2[%c648_212, %c0_213] : memref<720x128xbf16, #tpu.memory_space<vmem>>, vector<72x8xbf16>
    %cst_214 = arith.constant dense<0.000000e+00> : vector<72x64xf32>
    %418 = tpu.matmul %417, %415, %cst_214 {dimension_numbers = #tpu.dot_dimension_numbers<[1], [0], [0], [1], [0, 0, 1, 1], [], []>} : vector<72x8xbf16>, vector<8x64xbf16>, vector<72x64xf32> -> vector<72x64xf32>
    %419 = arith.truncf %418 : vector<72x64xf32> to vector<72x64xbf16>
    %420 = vector.extract_strided_slice %419 {offsets = [0, 0], sizes = [8, 64], strides = [1, 1]} : vector<72x64xbf16> to vector<8x64xbf16>
    %c2480 = arith.constant 2480 : index
    %c0_215 = arith.constant 0 : index
    %421 = vector.load %arg3[%c2480, %c0_215] : memref<4208x128xbf16, #tpu.memory_space<vmem>>, vector<64x64xbf16>
    %cst_216 = arith.constant dense<0.000000e+00> : vector<8x64xf32>
    %422 = tpu.matmul %420, %421, %cst_216 {dimension_numbers = #tpu.dot_dimension_numbers<[1], [0], [0], [1], [0, 0, 1, 1], [], []>} : vector<8x64xbf16>, vector<64x64xbf16>, vector<8x64xf32> -> vector<8x64xf32>
    %423 = vector.extract_strided_slice %419 {offsets = [8, 0], sizes = [8, 64], strides = [1, 1]} : vector<72x64xbf16> to vector<8x64xbf16>
    %c2544 = arith.constant 2544 : index
    %c0_217 = arith.constant 0 : index
    %424 = vector.load %arg3[%c2544, %c0_217] : memref<4208x128xbf16, #tpu.memory_space<vmem>>, vector<64x64xbf16>
    %cst_218 = arith.constant dense<0.000000e+00> : vector<8x64xf32>
    %425 = tpu.matmul %423, %424, %cst_218 {dimension_numbers = #tpu.dot_dimension_numbers<[1], [0], [0], [1], [0, 0, 1, 1], [], []>} : vector<8x64xbf16>, vector<64x64xbf16>, vector<8x64xf32> -> vector<8x64xf32>
    %426 = arith.addf %422, %425 : vector<8x64xf32>
    %427 = vector.extract_strided_slice %419 {offsets = [16, 0], sizes = [8, 64], strides = [1, 1]} : vector<72x64xbf16> to vector<8x64xbf16>
    %c2608 = arith.constant 2608 : index
    %c0_219 = arith.constant 0 : index
    %428 = vector.load %arg3[%c2608, %c0_219] : memref<4208x128xbf16, #tpu.memory_space<vmem>>, vector<64x64xbf16>
    %cst_220 = arith.constant dense<0.000000e+00> : vector<8x64xf32>
    %429 = tpu.matmul %427, %428, %cst_220 {dimension_numbers = #tpu.dot_dimension_numbers<[1], [0], [0], [1], [0, 0, 1, 1], [], []>} : vector<8x64xbf16>, vector<64x64xbf16>, vector<8x64xf32> -> vector<8x64xf32>
    %430 = vector.extract_strided_slice %419 {offsets = [24, 0], sizes = [8, 64], strides = [1, 1]} : vector<72x64xbf16> to vector<8x64xbf16>
    %c2672 = arith.constant 2672 : index
    %c0_221 = arith.constant 0 : index
    %431 = vector.load %arg3[%c2672, %c0_221] : memref<4208x128xbf16, #tpu.memory_space<vmem>>, vector<64x64xbf16>
    %cst_222 = arith.constant dense<0.000000e+00> : vector<8x64xf32>
    %432 = tpu.matmul %430, %431, %cst_222 {dimension_numbers = #tpu.dot_dimension_numbers<[1], [0], [0], [1], [0, 0, 1, 1], [], []>} : vector<8x64xbf16>, vector<64x64xbf16>, vector<8x64xf32> -> vector<8x64xf32>
    %433 = arith.addf %429, %432 : vector<8x64xf32>
    %434 = vector.extract_strided_slice %419 {offsets = [32, 0], sizes = [8, 64], strides = [1, 1]} : vector<72x64xbf16> to vector<8x64xbf16>
    %c2736 = arith.constant 2736 : index
    %c0_223 = arith.constant 0 : index
    %435 = vector.load %arg3[%c2736, %c0_223] : memref<4208x128xbf16, #tpu.memory_space<vmem>>, vector<64x64xbf16>
    %cst_224 = arith.constant dense<0.000000e+00> : vector<8x64xf32>
    %436 = tpu.matmul %434, %435, %cst_224 {dimension_numbers = #tpu.dot_dimension_numbers<[1], [0], [0], [1], [0, 0, 1, 1], [], []>} : vector<8x64xbf16>, vector<64x64xbf16>, vector<8x64xf32> -> vector<8x64xf32>
    %437 = vector.extract_strided_slice %419 {offsets = [40, 0], sizes = [8, 64], strides = [1, 1]} : vector<72x64xbf16> to vector<8x64xbf16>
    %c2800 = arith.constant 2800 : index
    %c0_225 = arith.constant 0 : index
    %438 = vector.load %arg3[%c2800, %c0_225] : memref<4208x128xbf16, #tpu.memory_space<vmem>>, vector<64x64xbf16>
    %cst_226 = arith.constant dense<0.000000e+00> : vector<8x64xf32>
    %439 = tpu.matmul %437, %438, %cst_226 {dimension_numbers = #tpu.dot_dimension_numbers<[1], [0], [0], [1], [0, 0, 1, 1], [], []>} : vector<8x64xbf16>, vector<64x64xbf16>, vector<8x64xf32> -> vector<8x64xf32>
    %440 = arith.addf %436, %439 : vector<8x64xf32>
    %441 = vector.extract_strided_slice %419 {offsets = [48, 0], sizes = [8, 64], strides = [1, 1]} : vector<72x64xbf16> to vector<8x64xbf16>
    %c2864 = arith.constant 2864 : index
    %c0_227 = arith.constant 0 : index
    %442 = vector.load %arg3[%c2864, %c0_227] : memref<4208x128xbf16, #tpu.memory_space<vmem>>, vector<64x64xbf16>
    %cst_228 = arith.constant dense<0.000000e+00> : vector<8x64xf32>
    %443 = tpu.matmul %441, %442, %cst_228 {dimension_numbers = #tpu.dot_dimension_numbers<[1], [0], [0], [1], [0, 0, 1, 1], [], []>} : vector<8x64xbf16>, vector<64x64xbf16>, vector<8x64xf32> -> vector<8x64xf32>
    %444 = vector.extract_strided_slice %419 {offsets = [56, 0], sizes = [8, 64], strides = [1, 1]} : vector<72x64xbf16> to vector<8x64xbf16>
    %c2928 = arith.constant 2928 : index
    %c0_229 = arith.constant 0 : index
    %445 = vector.load %arg3[%c2928, %c0_229] : memref<4208x128xbf16, #tpu.memory_space<vmem>>, vector<64x64xbf16>
    %cst_230 = arith.constant dense<0.000000e+00> : vector<8x64xf32>
    %446 = tpu.matmul %444, %445, %cst_230 {dimension_numbers = #tpu.dot_dimension_numbers<[1], [0], [0], [1], [0, 0, 1, 1], [], []>} : vector<8x64xbf16>, vector<64x64xbf16>, vector<8x64xf32> -> vector<8x64xf32>
    %447 = arith.addf %443, %446 : vector<8x64xf32>
    %448 = arith.addf %426, %433 : vector<8x64xf32>
    %449 = arith.addf %440, %447 : vector<8x64xf32>
    %450 = arith.addf %448, %449 : vector<8x64xf32>
    %451 = vector.extract_strided_slice %419 {offsets = [64, 0], sizes = [8, 64], strides = [1, 1]} : vector<72x64xbf16> to vector<8x64xbf16>
    %c2992 = arith.constant 2992 : index
    %c0_231 = arith.constant 0 : index
    %452 = vector.load %arg3[%c2992, %c0_231] : memref<4208x128xbf16, #tpu.memory_space<vmem>>, vector<64x64xbf16>
    %cst_232 = arith.constant dense<0.000000e+00> : vector<8x64xf32>
    %453 = tpu.matmul %451, %452, %cst_232 {dimension_numbers = #tpu.dot_dimension_numbers<[1], [0], [0], [1], [0, 0, 1, 1], [], []>} : vector<8x64xbf16>, vector<64x64xbf16>, vector<8x64xf32> -> vector<8x64xf32>
    %454 = arith.addf %450, %453 : vector<8x64xf32>
    %c10 = arith.constant 10 : index
    %c0_233 = arith.constant 0 : index
    %455 = vector.load %arg5[%c10, %c0_233] : memref<16x256xf32, #tpu.memory_space<vmem>>, vector<1x64xf32>
    %456 = vector.broadcast %455 : vector<1x64xf32> to vector<8x64xf32>
    %457 = arith.addf %454, %456 : vector<8x64xf32>
    %458 = arith.addf %457, %416 : vector<8x64xf32>
    %cst_234 = arith.constant 0.000000e+00 : f32
    %459 = vector.broadcast %cst_234 : f32 to vector<8x64xf32>
    %460 = arith.maximumf %458, %459 : vector<8x64xf32>
    %461 = arith.truncf %460 : vector<8x64xf32> to vector<8x64xbf16>
    %c648_235 = arith.constant 648 : index
    %c0_236 = arith.constant 0 : index
    %462 = vector.load %arg2[%c648_235, %c0_236] : memref<720x128xbf16, #tpu.memory_space<vmem>>, vector<72x8xbf16>
    %cst_237 = arith.constant dense<0.000000e+00> : vector<72x64xf32>
    %463 = tpu.matmul %462, %461, %cst_237 {dimension_numbers = #tpu.dot_dimension_numbers<[1], [0], [0], [1], [0, 0, 1, 1], [], []>} : vector<72x8xbf16>, vector<8x64xbf16>, vector<72x64xf32> -> vector<72x64xf32>
    %464 = arith.truncf %463 : vector<72x64xf32> to vector<72x64xbf16>
    %465 = vector.extract_strided_slice %464 {offsets = [0, 0], sizes = [8, 64], strides = [1, 1]} : vector<72x64xbf16> to vector<8x64xbf16>
    %c0_238 = arith.constant 0 : index
    %c0_239 = arith.constant 0 : index
    %466 = vector.load %arg4[%c0_238, %c0_239] : memref<576x256xbf16, #tpu.memory_space<vmem>>, vector<64x256xbf16>
    %cst_240 = arith.constant dense<0.000000e+00> : vector<8x256xf32>
    %467 = tpu.matmul %465, %466, %cst_240 {dimension_numbers = #tpu.dot_dimension_numbers<[1], [0], [0], [1], [0, 0, 1, 1], [], []>} : vector<8x64xbf16>, vector<64x256xbf16>, vector<8x256xf32> -> vector<8x256xf32>
    %468 = vector.extract_strided_slice %464 {offsets = [8, 0], sizes = [8, 64], strides = [1, 1]} : vector<72x64xbf16> to vector<8x64xbf16>
    %c64_241 = arith.constant 64 : index
    %c0_242 = arith.constant 0 : index
    %469 = vector.load %arg4[%c64_241, %c0_242] : memref<576x256xbf16, #tpu.memory_space<vmem>>, vector<64x256xbf16>
    %cst_243 = arith.constant dense<0.000000e+00> : vector<8x256xf32>
    %470 = tpu.matmul %468, %469, %cst_243 {dimension_numbers = #tpu.dot_dimension_numbers<[1], [0], [0], [1], [0, 0, 1, 1], [], []>} : vector<8x64xbf16>, vector<64x256xbf16>, vector<8x256xf32> -> vector<8x256xf32>
    %471 = arith.addf %467, %470 : vector<8x256xf32>
    %472 = vector.extract_strided_slice %464 {offsets = [16, 0], sizes = [8, 64], strides = [1, 1]} : vector<72x64xbf16> to vector<8x64xbf16>
    %c128_244 = arith.constant 128 : index
    %c0_245 = arith.constant 0 : index
    %473 = vector.load %arg4[%c128_244, %c0_245] : memref<576x256xbf16, #tpu.memory_space<vmem>>, vector<64x256xbf16>
    %cst_246 = arith.constant dense<0.000000e+00> : vector<8x256xf32>
    %474 = tpu.matmul %472, %473, %cst_246 {dimension_numbers = #tpu.dot_dimension_numbers<[1], [0], [0], [1], [0, 0, 1, 1], [], []>} : vector<8x64xbf16>, vector<64x256xbf16>, vector<8x256xf32> -> vector<8x256xf32>
    %475 = vector.extract_strided_slice %464 {offsets = [24, 0], sizes = [8, 64], strides = [1, 1]} : vector<72x64xbf16> to vector<8x64xbf16>
    %c192_247 = arith.constant 192 : index
    %c0_248 = arith.constant 0 : index
    %476 = vector.load %arg4[%c192_247, %c0_248] : memref<576x256xbf16, #tpu.memory_space<vmem>>, vector<64x256xbf16>
    %cst_249 = arith.constant dense<0.000000e+00> : vector<8x256xf32>
    %477 = tpu.matmul %475, %476, %cst_249 {dimension_numbers = #tpu.dot_dimension_numbers<[1], [0], [0], [1], [0, 0, 1, 1], [], []>} : vector<8x64xbf16>, vector<64x256xbf16>, vector<8x256xf32> -> vector<8x256xf32>
    %478 = arith.addf %474, %477 : vector<8x256xf32>
    %479 = vector.extract_strided_slice %464 {offsets = [32, 0], sizes = [8, 64], strides = [1, 1]} : vector<72x64xbf16> to vector<8x64xbf16>
    %c256_250 = arith.constant 256 : index
    %c0_251 = arith.constant 0 : index
    %480 = vector.load %arg4[%c256_250, %c0_251] : memref<576x256xbf16, #tpu.memory_space<vmem>>, vector<64x256xbf16>
    %cst_252 = arith.constant dense<0.000000e+00> : vector<8x256xf32>
    %481 = tpu.matmul %479, %480, %cst_252 {dimension_numbers = #tpu.dot_dimension_numbers<[1], [0], [0], [1], [0, 0, 1, 1], [], []>} : vector<8x64xbf16>, vector<64x256xbf16>, vector<8x256xf32> -> vector<8x256xf32>
    %482 = vector.extract_strided_slice %464 {offsets = [40, 0], sizes = [8, 64], strides = [1, 1]} : vector<72x64xbf16> to vector<8x64xbf16>
    %c320_253 = arith.constant 320 : index
    %c0_254 = arith.constant 0 : index
    %483 = vector.load %arg4[%c320_253, %c0_254] : memref<576x256xbf16, #tpu.memory_space<vmem>>, vector<64x256xbf16>
    %cst_255 = arith.constant dense<0.000000e+00> : vector<8x256xf32>
    %484 = tpu.matmul %482, %483, %cst_255 {dimension_numbers = #tpu.dot_dimension_numbers<[1], [0], [0], [1], [0, 0, 1, 1], [], []>} : vector<8x64xbf16>, vector<64x256xbf16>, vector<8x256xf32> -> vector<8x256xf32>
    %485 = arith.addf %481, %484 : vector<8x256xf32>
    %486 = vector.extract_strided_slice %464 {offsets = [48, 0], sizes = [8, 64], strides = [1, 1]} : vector<72x64xbf16> to vector<8x64xbf16>
    %c384_256 = arith.constant 384 : index
    %c0_257 = arith.constant 0 : index
    %487 = vector.load %arg4[%c384_256, %c0_257] : memref<576x256xbf16, #tpu.memory_space<vmem>>, vector<64x256xbf16>
    %cst_258 = arith.constant dense<0.000000e+00> : vector<8x256xf32>
    %488 = tpu.matmul %486, %487, %cst_258 {dimension_numbers = #tpu.dot_dimension_numbers<[1], [0], [0], [1], [0, 0, 1, 1], [], []>} : vector<8x64xbf16>, vector<64x256xbf16>, vector<8x256xf32> -> vector<8x256xf32>
    %489 = vector.extract_strided_slice %464 {offsets = [56, 0], sizes = [8, 64], strides = [1, 1]} : vector<72x64xbf16> to vector<8x64xbf16>
    %c448_259 = arith.constant 448 : index
    %c0_260 = arith.constant 0 : index
    %490 = vector.load %arg4[%c448_259, %c0_260] : memref<576x256xbf16, #tpu.memory_space<vmem>>, vector<64x256xbf16>
    %cst_261 = arith.constant dense<0.000000e+00> : vector<8x256xf32>
    %491 = tpu.matmul %489, %490, %cst_261 {dimension_numbers = #tpu.dot_dimension_numbers<[1], [0], [0], [1], [0, 0, 1, 1], [], []>} : vector<8x64xbf16>, vector<64x256xbf16>, vector<8x256xf32> -> vector<8x256xf32>
    %492 = arith.addf %488, %491 : vector<8x256xf32>
    %493 = arith.addf %471, %478 : vector<8x256xf32>
    %494 = arith.addf %485, %492 : vector<8x256xf32>
    %495 = arith.addf %493, %494 : vector<8x256xf32>
    %496 = vector.extract_strided_slice %464 {offsets = [64, 0], sizes = [8, 64], strides = [1, 1]} : vector<72x64xbf16> to vector<8x64xbf16>
    %c512_262 = arith.constant 512 : index
    %c0_263 = arith.constant 0 : index
    %497 = vector.load %arg4[%c512_262, %c0_263] : memref<576x256xbf16, #tpu.memory_space<vmem>>, vector<64x256xbf16>
    %cst_264 = arith.constant dense<0.000000e+00> : vector<8x256xf32>
    %498 = tpu.matmul %496, %497, %cst_264 {dimension_numbers = #tpu.dot_dimension_numbers<[1], [0], [0], [1], [0, 0, 1, 1], [], []>} : vector<8x64xbf16>, vector<64x256xbf16>, vector<8x256xf32> -> vector<8x256xf32>
    %499 = arith.addf %495, %498 : vector<8x256xf32>
    %c11 = arith.constant 11 : index
    %c0_265 = arith.constant 0 : index
    %500 = vector.load %arg5[%c11, %c0_265] : memref<16x256xf32, #tpu.memory_space<vmem>>, vector<1x256xf32>
    %501 = vector.broadcast %500 : vector<1x256xf32> to vector<8x256xf32>
    %502 = arith.addf %499, %501 : vector<8x256xf32>
    %503 = vector.extract_strided_slice %502 {offsets = [0, 0], sizes = [8, 128], strides = [1, 1]} : vector<8x256xf32> to vector<8x128xf32>
    %cst_266 = arith.constant 0.000000e+00 : f32
    %504 = vector.broadcast %cst_266 : f32 to vector<8x128xf32>
    %505 = arith.maximumf %503, %504 : vector<8x128xf32>
    %506 = arith.truncf %505 : vector<8x128xf32> to vector<8x128xbf16>
    %507 = vector.extract_strided_slice %502 {offsets = [0, 128], sizes = [8, 128], strides = [1, 1]} : vector<8x256xf32> to vector<8x128xf32>
    %c648_267 = arith.constant 648 : index
    %c0_268 = arith.constant 0 : index
    %508 = vector.load %arg2[%c648_267, %c0_268] : memref<720x128xbf16, #tpu.memory_space<vmem>>, vector<72x8xbf16>
    %cst_269 = arith.constant dense<0.000000e+00> : vector<72x128xf32>
    %509 = tpu.matmul %508, %506, %cst_269 {dimension_numbers = #tpu.dot_dimension_numbers<[1], [0], [0], [1], [0, 0, 1, 1], [], []>} : vector<72x8xbf16>, vector<8x128xbf16>, vector<72x128xf32> -> vector<72x128xf32>
    %510 = arith.truncf %509 : vector<72x128xf32> to vector<72x128xbf16>
    %511 = vector.extract_strided_slice %510 {offsets = [0, 0], sizes = [8, 128], strides = [1, 1]} : vector<72x128xbf16> to vector<8x128xbf16>
    %c3056 = arith.constant 3056 : index
    %c0_270 = arith.constant 0 : index
    %512 = vector.load %arg3[%c3056, %c0_270] : memref<4208x128xbf16, #tpu.memory_space<vmem>>, vector<128x128xbf16>
    %cst_271 = arith.constant dense<0.000000e+00> : vector<8x128xf32>
    %513 = tpu.matmul %511, %512, %cst_271 {dimension_numbers = #tpu.dot_dimension_numbers<[1], [0], [0], [1], [0, 0, 1, 1], [], []>} : vector<8x128xbf16>, vector<128x128xbf16>, vector<8x128xf32> -> vector<8x128xf32>
    %514 = vector.extract_strided_slice %510 {offsets = [8, 0], sizes = [8, 128], strides = [1, 1]} : vector<72x128xbf16> to vector<8x128xbf16>
    %c3184 = arith.constant 3184 : index
    %c0_272 = arith.constant 0 : index
    %515 = vector.load %arg3[%c3184, %c0_272] : memref<4208x128xbf16, #tpu.memory_space<vmem>>, vector<128x128xbf16>
    %cst_273 = arith.constant dense<0.000000e+00> : vector<8x128xf32>
    %516 = tpu.matmul %514, %515, %cst_273 {dimension_numbers = #tpu.dot_dimension_numbers<[1], [0], [0], [1], [0, 0, 1, 1], [], []>} : vector<8x128xbf16>, vector<128x128xbf16>, vector<8x128xf32> -> vector<8x128xf32>
    %517 = arith.addf %513, %516 : vector<8x128xf32>
    %518 = vector.extract_strided_slice %510 {offsets = [16, 0], sizes = [8, 128], strides = [1, 1]} : vector<72x128xbf16> to vector<8x128xbf16>
    %c3312 = arith.constant 3312 : index
    %c0_274 = arith.constant 0 : index
    %519 = vector.load %arg3[%c3312, %c0_274] : memref<4208x128xbf16, #tpu.memory_space<vmem>>, vector<128x128xbf16>
    %cst_275 = arith.constant dense<0.000000e+00> : vector<8x128xf32>
    %520 = tpu.matmul %518, %519, %cst_275 {dimension_numbers = #tpu.dot_dimension_numbers<[1], [0], [0], [1], [0, 0, 1, 1], [], []>} : vector<8x128xbf16>, vector<128x128xbf16>, vector<8x128xf32> -> vector<8x128xf32>
    %521 = vector.extract_strided_slice %510 {offsets = [24, 0], sizes = [8, 128], strides = [1, 1]} : vector<72x128xbf16> to vector<8x128xbf16>
    %c3440 = arith.constant 3440 : index
    %c0_276 = arith.constant 0 : index
    %522 = vector.load %arg3[%c3440, %c0_276] : memref<4208x128xbf16, #tpu.memory_space<vmem>>, vector<128x128xbf16>
    %cst_277 = arith.constant dense<0.000000e+00> : vector<8x128xf32>
    %523 = tpu.matmul %521, %522, %cst_277 {dimension_numbers = #tpu.dot_dimension_numbers<[1], [0], [0], [1], [0, 0, 1, 1], [], []>} : vector<8x128xbf16>, vector<128x128xbf16>, vector<8x128xf32> -> vector<8x128xf32>
    %524 = arith.addf %520, %523 : vector<8x128xf32>
    %525 = vector.extract_strided_slice %510 {offsets = [32, 0], sizes = [8, 128], strides = [1, 1]} : vector<72x128xbf16> to vector<8x128xbf16>
    %c3568 = arith.constant 3568 : index
    %c0_278 = arith.constant 0 : index
    %526 = vector.load %arg3[%c3568, %c0_278] : memref<4208x128xbf16, #tpu.memory_space<vmem>>, vector<128x128xbf16>
    %cst_279 = arith.constant dense<0.000000e+00> : vector<8x128xf32>
    %527 = tpu.matmul %525, %526, %cst_279 {dimension_numbers = #tpu.dot_dimension_numbers<[1], [0], [0], [1], [0, 0, 1, 1], [], []>} : vector<8x128xbf16>, vector<128x128xbf16>, vector<8x128xf32> -> vector<8x128xf32>
    %528 = vector.extract_strided_slice %510 {offsets = [40, 0], sizes = [8, 128], strides = [1, 1]} : vector<72x128xbf16> to vector<8x128xbf16>
    %c3696 = arith.constant 3696 : index
    %c0_280 = arith.constant 0 : index
    %529 = vector.load %arg3[%c3696, %c0_280] : memref<4208x128xbf16, #tpu.memory_space<vmem>>, vector<128x128xbf16>
    %cst_281 = arith.constant dense<0.000000e+00> : vector<8x128xf32>
    %530 = tpu.matmul %528, %529, %cst_281 {dimension_numbers = #tpu.dot_dimension_numbers<[1], [0], [0], [1], [0, 0, 1, 1], [], []>} : vector<8x128xbf16>, vector<128x128xbf16>, vector<8x128xf32> -> vector<8x128xf32>
    %531 = arith.addf %527, %530 : vector<8x128xf32>
    %532 = vector.extract_strided_slice %510 {offsets = [48, 0], sizes = [8, 128], strides = [1, 1]} : vector<72x128xbf16> to vector<8x128xbf16>
    %c3824 = arith.constant 3824 : index
    %c0_282 = arith.constant 0 : index
    %533 = vector.load %arg3[%c3824, %c0_282] : memref<4208x128xbf16, #tpu.memory_space<vmem>>, vector<128x128xbf16>
    %cst_283 = arith.constant dense<0.000000e+00> : vector<8x128xf32>
    %534 = tpu.matmul %532, %533, %cst_283 {dimension_numbers = #tpu.dot_dimension_numbers<[1], [0], [0], [1], [0, 0, 1, 1], [], []>} : vector<8x128xbf16>, vector<128x128xbf16>, vector<8x128xf32> -> vector<8x128xf32>
    %535 = vector.extract_strided_slice %510 {offsets = [56, 0], sizes = [8, 128], strides = [1, 1]} : vector<72x128xbf16> to vector<8x128xbf16>
    %c3952 = arith.constant 3952 : index
    %c0_284 = arith.constant 0 : index
    %536 = vector.load %arg3[%c3952, %c0_284] : memref<4208x128xbf16, #tpu.memory_space<vmem>>, vector<128x128xbf16>
    %cst_285 = arith.constant dense<0.000000e+00> : vector<8x128xf32>
    %537 = tpu.matmul %535, %536, %cst_285 {dimension_numbers = #tpu.dot_dimension_numbers<[1], [0], [0], [1], [0, 0, 1, 1], [], []>} : vector<8x128xbf16>, vector<128x128xbf16>, vector<8x128xf32> -> vector<8x128xf32>
    %538 = arith.addf %534, %537 : vector<8x128xf32>
    %539 = arith.addf %517, %524 : vector<8x128xf32>
    %540 = arith.addf %531, %538 : vector<8x128xf32>
    %541 = arith.addf %539, %540 : vector<8x128xf32>
    %542 = vector.extract_strided_slice %510 {offsets = [64, 0], sizes = [8, 128], strides = [1, 1]} : vector<72x128xbf16> to vector<8x128xbf16>
    %c4080 = arith.constant 4080 : index
    %c0_286 = arith.constant 0 : index
    %543 = vector.load %arg3[%c4080, %c0_286] : memref<4208x128xbf16, #tpu.memory_space<vmem>>, vector<128x128xbf16>
    %cst_287 = arith.constant dense<0.000000e+00> : vector<8x128xf32>
    %544 = tpu.matmul %542, %543, %cst_287 {dimension_numbers = #tpu.dot_dimension_numbers<[1], [0], [0], [1], [0, 0, 1, 1], [], []>} : vector<8x128xbf16>, vector<128x128xbf16>, vector<8x128xf32> -> vector<8x128xf32>
    %545 = arith.addf %541, %544 : vector<8x128xf32>
    %c12 = arith.constant 12 : index
    %c0_288 = arith.constant 0 : index
    %546 = vector.load %arg5[%c12, %c0_288] : memref<16x256xf32, #tpu.memory_space<vmem>>, vector<1x128xf32>
    %547 = vector.broadcast %546 : vector<1x128xf32> to vector<8x128xf32>
    %548 = arith.addf %545, %547 : vector<8x128xf32>
    %549 = arith.addf %548, %507 : vector<8x128xf32>
    %cst_289 = arith.constant 0.000000e+00 : f32
    %550 = vector.broadcast %cst_289 : f32 to vector<8x128xf32>
    %551 = arith.maximumf %549, %550 : vector<8x128xf32>
    %c0_290 = arith.constant 0 : index
    %c0_291 = arith.constant 0 : index
    %552 = vector.load %arg6[%c0_290, %c0_291] : memref<8x128xf32, #tpu.memory_space<vmem>>, vector<8x128xf32>
    tpu.vector_store %arg6[%c0_290, %c0_291], %551 {strides = array<i32>} : memref<8x128xf32, #tpu.memory_space<vmem>>, vector<8x128xf32>,
    return
  }
  func.func @transform_0(%arg0: i32) -> (i32, i32) {
    %c0_i32 = arith.constant 0 : i32
    %c0_i32_0 = arith.constant 0 : i32
    %c0_i32_1 = arith.constant 0 : i32
    return %c0_i32, %c0_i32_0 : i32, i32
  }
  func.func @transform_1(%arg0: i32) -> (i32, i32) {
    %c0_i32 = arith.constant 0 : i32
    %c0_i32_0 = arith.constant 0 : i32
    %c0_i32_1 = arith.constant 0 : i32
    return %c0_i32, %c0_i32_0 : i32, i32
  }
  func.func @transform_2(%arg0: i32) -> (i32, i32) {
    %c0_i32 = arith.constant 0 : i32
    %c0_i32_0 = arith.constant 0 : i32
    %c0_i32_1 = arith.constant 0 : i32
    return %c0_i32, %c0_i32_0 : i32, i32
  }
  func.func @transform_3(%arg0: i32) -> (i32, i32) {
    %c0_i32 = arith.constant 0 : i32
    %c0_i32_0 = arith.constant 0 : i32
    %c0_i32_1 = arith.constant 0 : i32
    return %c0_i32, %c0_i32_0 : i32, i32
  }
  func.func @transform_4(%arg0: i32) -> (i32, i32) {
    %c0_i32 = arith.constant 0 : i32
    %c0_i32_0 = arith.constant 0 : i32
    %c0_i32_1 = arith.constant 0 : i32
    return %c0_i32, %c0_i32_0 : i32, i32
  }
  func.func @transform_5(%arg0: i32) -> (i32, i32) {
    %c0_i32 = arith.constant 0 : i32
    %c0_i32_0 = arith.constant 0 : i32
    %c0_i32_1 = arith.constant 0 : i32
    return %c0_i32, %c0_i32_0 : i32, i32
  }
}

</mosaic_0001>

<llo_original>
// kernel: resnet_forward.1
$region0: #{resnet_forward.1}
  #allocation0 [shape = 'u32[]', space=smem, size = 0x4, offset = 0x4, fixed_abs, tag = 'smem constant byte address 0x4 - core index']
  #allocation1 [shape = 'u32[144,128]{1,0:T(1,128)}', space=vmem, size = 0x12000, scoped, tag = 'internal scratch']
  %s0 = inlined_call_operand.vmem [shape: bf16[128,32], index: 0, kind: input, shape index: {}]
  %s1 = inlined_call_operand.hbm [shape: bf16[720,128], index: 1, kind: input, shape index: {}]
  %s2 = inlined_call_operand.vmem [shape: bf16[4208,128], index: 2, kind: input, shape index: {}]
  %s3 = inlined_call_operand.hbm [shape: bf16[576,256], index: 3, kind: input, shape index: {}]
  %s4 = inlined_call_operand.vmem [shape: f32[16,256], index: 4, kind: input, shape index: {}]
  %s5 = inlined_call_operand.hbm [shape: f32[8,128], index: 5, kind: output, shape index: {}]
  %s6 = sld [smem:[#allocation0]]
  $region38: #{resnet_forward.1} parent=0
    _
  %s8 = ssub.s32 1, %s6
  %s9 = scalar_select 0, %s8, %s6
  $region1: #{resnet_forward.1} parent=0
    #allocation2 [shape = 'u8[184320]{0}', space=vmem, size = 0x2d000, scoped, tag = 'input window, operand 1, single buffered']
    #allocation3 [shape = 's32[1]{0}', space=sflag, size = 0x4, scoped, tag = 'scoped memory for resnet_forward.1']
    #allocation4 [shape = 's32[1]{0}', space=sflag, size = 0x4, scoped, tag = 'scoped memory for resnet_forward.1']
    #allocation5 [shape = 'u8[294912]{0}', space=vmem, size = 0x48000, scoped, tag = 'input window, operand 3, single buffered']
    #allocation6 [shape = 's32[1]{0}', space=sflag, size = 0x4, scoped, tag = 'scoped memory for resnet_forward.1']
    #allocation7 [shape = 'u8[4096]{0}', space=vmem, size = 0x1000, scoped, tag = 'output window, operand 0, single buffered']
    %10 = vsyncpa [#allocation3], 0
    %11 = vsyncpa [#allocation6], 0
    %12 = vsyncpa [#allocation4], 0
    // Predicated region
    $region2: #{resnet_forward.1} parent=1 // pred_check
      _
    $region3: #{resnet_forward.1} parent=1 // pred_check_branch
      %14 = sbr.rel (0) target = $region5
    $region4: #{resnet_forward.1} parent=1 // pred_region
      _
    $region5: #{resnet_forward.1} parent=1 // pred_fallthru
      _
    // Predicated region
    $region6: #{resnet_forward.1} parent=1 // pred_check
      _
    $region7: #{resnet_forward.1} parent=1 // pred_check_branch
      %16 = sbr.rel (0) target = $region9
    $region8: #{resnet_forward.1} parent=1 // pred_region
      %s18 = ssub.s32 5760, 5760
      %19 = vsyncadd [#allocation3], %s18
      %s20 = sshll.u32 [#allocation2], 4
      %s21 = int_to_ptr.vmem [resolvable:$true] %s20
      %26 = dma.hbm_to_vmem [thread:$0]  %s1, 5760, %s21, [#allocation3], 64, 64, 4
    $region9: #{resnet_forward.1} parent=1 // pred_fallthru
      _
    // Predicated region
    $region10: #{resnet_forward.1} parent=1 // pred_check
      _
    $region11: #{resnet_forward.1} parent=1 // pred_check_branch
      %28 = sbr.rel (0) target = $region13
    $region12: #{resnet_forward.1} parent=1 // pred_region
      _
    $region13: #{resnet_forward.1} parent=1 // pred_fallthru
      _
    // Predicated region
    $region14: #{resnet_forward.1} parent=1 // pred_check
      _
    $region15: #{resnet_forward.1} parent=1 // pred_check_branch
      %30 = sbr.rel (0) target = $region17
    $region16: #{resnet_forward.1} parent=1 // pred_region
      %s32 = ssub.s32 9216, 9216
      %33 = vsyncadd [#allocation6], %s32
      %s34 = sshll.u32 [#allocation5], 4
      %s35 = int_to_ptr.vmem [resolvable:$true] %s34
      %40 = dma.hbm_to_vmem [thread:$0]  %s3, 9216, %s35, [#allocation6], 128, 128, 8
    $region17: #{resnet_forward.1} parent=1 // pred_fallthru
      _
    // Predicated region
    $region18: #{resnet_forward.1} parent=1 // pred_check
      _
    $region19: #{resnet_forward.1} parent=1 // pred_check_branch
      %42 = sbr.rel (0) target = $region21
    $region20: #{resnet_forward.1} parent=1 // pred_region
      _
    $region21: #{resnet_forward.1} parent=1 // pred_fallthru
      _
    // Predicated region
    $region22: #{resnet_forward.1} parent=1 // pred_check
      _
    $region23: #{resnet_forward.1} parent=1 // pred_check_branch
      %44 = sbr.rel (0) target = $region25
    $region24: #{resnet_forward.1} parent=1 // pred_region
      %45 = dma.done [#allocation3], 5760
    $region25: #{resnet_forward.1} parent=1 // pred_fallthru
      _
    // Predicated region
    $region26: #{resnet_forward.1} parent=1 // pred_check
      _
    $region27: #{resnet_forward.1} parent=1 // pred_check_branch
      %47 = sbr.rel (0) target = $region29
    $region28: #{resnet_forward.1} parent=1 // pred_region
      %48 = dma.done [#allocation6], 9216
    $region29: #{resnet_forward.1} parent=1 // pred_fallthru
      _
    %v50 = vld [vmem:[%s0] sm:$0xf]
    %v51 = vld [vmem:[%s0 + $0x4] sm:$0xf]
    %v52 = vld [vmem:[%s0 + $0x8] sm:$0xf]
    %v53 = vld [vmem:[%s0 + $0xc] sm:$0xf]
    %v54 = vld [vmem:[%s0 + $0x10] sm:$0xf]
    %v55 = vld [vmem:[%s0 + $0x14] sm:$0xf]
    %v56 = vld [vmem:[%s0 + $0x18] sm:$0xf]
    %v57 = vld [vmem:[%s0 + $0x1c] sm:$0xf]
    %v58 = vld [vmem:[%s0 + $0x20] sm:$0xf]
    %v59 = vld [vmem:[%s0 + $0x24] sm:$0xf]
    %v60 = vld [vmem:[%s0 + $0x28] sm:$0xf]
    %v61 = vld [vmem:[%s0 + $0x2c] sm:$0xf]
    %v62 = vld [vmem:[%s0 + $0x30] sm:$0xf]
    %v63 = vld [vmem:[%s0 + $0x34] sm:$0xf]
    %v64 = vld [vmem:[%s0 + $0x38] sm:$0xf]
    %v65 = vld [vmem:[%s0 + $0x3c] sm:$0xf]
    %v66 = vld [vmem:[%s2] sm:$0xf]
    %v67 = vld [vmem:[%s2 + $0x4] sm:$0xf]
    %v68 = vld [vmem:[%s2 + $0x8] sm:$0xf]
    %v69 = vld [vmem:[%s2 + $0xc] sm:$0xf]
    %v70 = vld [vmem:[%s4] ss:$0 sm:$0xff]
    %v87 = vunpack.c.l.b16 %v50
    %v88 = vunpack.c.l.b16 %v51
    %v89 = vunpack.c.l.b16 %v52
    %v90 = vunpack.c.l.b16 %v53
    %v91 = vunpack.c.l.b16 %v54
    %v92 = vunpack.c.l.b16 %v55
    %v93 = vunpack.c.l.b16 %v56
    %v94 = vunpack.c.l.b16 %v57
    %v95 = vunpack.c.l.b16 %v58
    %v96 = vunpack.c.l.b16 %v59
    %v97 = vunpack.c.l.b16 %v60
    %v98 = vunpack.c.l.b16 %v61
    %v99 = vunpack.c.l.b16 %v62
    %v100 = vunpack.c.l.b16 %v63
    %v101 = vunpack.c.l.b16 %v64
    %v102 = vunpack.c.l.b16 %v65
    %v103 = vpack.c.b16 %v88, %v87
    %v104 = vpack.c.b16 %v90, %v89
    %v105 = vpack.c.b16 %v92, %v91
    %v106 = vpack.c.b16 %v94, %v93
    %v107 = vpack.c.b16 %v96, %v95
    %v108 = vpack.c.b16 %v98, %v97
    %v109 = vpack.c.b16 %v100, %v99
    %v110 = vpack.c.b16 %v102, %v101
    %v115 = vunpack.c.l.b16 %v66
    %v116 = vunpack.c.l.b16 %v67
    %v117 = vunpack.c.l.b16 %v68
    %v118 = vunpack.c.l.b16 %v69
    %v119 = vpack.c.b16 %v116, %v115
    %v120 = vpack.c.b16 %v118, %v117
    %vm123 = vcmask 261120
    %v125 = vsel %vm123, %v103, 0
    %v128 = vsel %vm123, %v104, 0
    %v131 = vsel %vm123, %v105, 0
    %v134 = vsel %vm123, %v106, 0
    %v137 = vsel %vm123, %v107, 0
    %v140 = vsel %vm123, %v108, 0
    %v143 = vsel %vm123, %v109, 0
    %v146 = vsel %vm123, %v110, 0
    %148 = vmatprep.subr.bf16.mxu0 0
    %149 = vmatpush1.bf16.msra.mxu0 %v119
    %150 = vmatprep.subr.bf16.mxu0 0
    %151 = vmatpush1.bf16.msra.mxu0 %v120
    %152 = vmatprep.subr.bf16.mxu0 0
    %153 = vmatpush1.bf16.msra.mxu0 0
    %154 = vmatprep.subr.bf16.mxu0 0
    %155 = vmatpush1.bf16.msra.mxu0 0
    %156 = vmatprep.subr.bf16.mxu0 0
    %157 = vmatpush1.bf16.msra.mxu0 0
    %158 = vmatprep.subr.bf16.mxu0 0
    %159 = vmatpush1.bf16.msra.mxu0 0
    %160 = vmatprep.subr.bf16.mxu0 0
    %161 = vmatpush1.bf16.msra.mxu0 0
    %162 = vmatprep.subr.bf16.mxu0 0
    %163 = vmatpush1.bf16.msra.mxu0 0
    %164 = vmatprep.subr.bf16.mxu0 0
    %165 = vmatpush1.bf16.msra.mxu0 0
    %166 = vmatprep.subr.bf16.mxu0 0
    %167 = vmatpush1.bf16.msra.mxu0 0
    %168 = vmatprep.subr.bf16.mxu0 0
    %169 = vmatpush1.bf16.msra.mxu0 0
    %170 = vmatprep.subr.bf16.mxu0 0
    %171 = vmatpush1.bf16.msra.mxu0 0
    %172 = vmatprep.subr.bf16.mxu0 0
    %173 = vmatpush1.bf16.msra.mxu0 0
    %174 = vmatprep.subr.bf16.mxu0 0
    %175 = vmatpush1.bf16.msra.mxu0 0
    %176 = vmatprep.subr.bf16.mxu0 0
    %177 = vmatpush1.bf16.msra.mxu0 0
    %178 = vmatprep.subr.bf16.mxu0 0
    %179 = vmatpush1.bf16.msra.mxu0 0
    %180 = vmatprep.mubr.bf16.mxu0 0
    %181 = vmatmul.mubr.bf16.gmra.mrb[0].mxu0 %v125
    %v182 = vpop.f32.mrb[0].mxu0
    %v183 = vadd.f32 %v70, %v182
    %v184 = vpop.f32.mrb[0].mxu0
    %v185 = vpop.f32.mrb[0].mxu0
    %v186 = vadd.f32 %v70, %v185
    %v187 = vpop.f32.mrb[0].mxu0
    %188 = vmatprep.mubr.bf16.mxu0 0
    %189 = vmatmul.mubr.bf16.gmra.mrb[0].mxu0 %v128
    %v190 = vpop.f32.mrb[0].mxu0
    %v191 = vadd.f32 %v70, %v190
    %v192 = vpop.f32.mrb[0].mxu0
    %v193 = vpop.f32.mrb[0].mxu0
    %v194 = vadd.f32 %v70, %v193
    %v195 = vpop.f32.mrb[0].mxu0
    %196 = vmatprep.mubr.bf16.mxu0 0
    %197 = vmatmul.mubr.bf16.gmra.mrb[0].mxu0 %v131
    %v198 = vpop.f32.mrb[0].mxu0
    %v199 = vadd.f32 %v70, %v198
    %v200 = vpop.f32.mrb[0].mxu0
    %v201 = vpop.f32.mrb[0].mxu0
    %v202 = vadd.f32 %v70, %v201
    %v203 = vpop.f32.mrb[0].mxu0
    %204 = vmatprep.mubr.bf16.mxu0 0
    %205 = vmatmul.mubr.bf16.gmra.mrb[0].mxu0 %v134
    %v206 = vpop.f32.mrb[0].mxu0
    %v207 = vadd.f32 %v70, %v206
    %v208 = vpop.f32.mrb[0].mxu0
    %v209 = vpop.f32.mrb[0].mxu0
    %v210 = vadd.f32 %v70, %v209
    %v211 = vpop.f32.mrb[0].mxu0
    %212 = vmatprep.mubr.bf16.mxu0 0
    %213 = vmatmul.mubr.bf16.gmra.mrb[0].mxu0 %v137
    %v214 = vpop.f32.mrb[0].mxu0
    %v215 = vadd.f32 %v70, %v214
    %v216 = vpop.f32.mrb[0].mxu0
    %v217 = vpop.f32.mrb[0].mxu0
    %v218 = vadd.f32 %v70, %v217
    %v219 = vpop.f32.mrb[0].mxu0
    %220 = vmatprep.mubr.bf16.mxu0 0
    %221 = vmatmul.mubr.bf16.gmra.mrb[0].mxu0 %v140
    %v222 = vpop.f32.mrb[0].mxu0
    %v223 = vadd.f32 %v70, %v222
    %v224 = vpop.f32.mrb[0].mxu0
    %v225 = vpop.f32.mrb[0].mxu0
    %v226 = vadd.f32 %v70, %v225
    %v227 = vpop.f32.mrb[0].mxu0
    %228 = vmatprep.mubr.bf16.mxu0 0
    %229 = vmatmul.mubr.bf16.gmra.mrb[0].mxu0 %v143
    %v230 = vpop.f32.mrb[0].mxu0
    %v231 = vadd.f32 %v70, %v230
    %v232 = vpop.f32.mrb[0].mxu0
    %v233 = vpop.f32.mrb[0].mxu0
    %v234 = vadd.f32 %v70, %v233
    %v235 = vpop.f32.mrb[0].mxu0
    %236 = vmatprep.mubr.bf16.mxu0 0
    %237 = vmatmul.mubr.bf16.gmra.mrb[0].mxu0 %v146
    %v238 = vpop.f32.mrb[0].mxu0
    %v239 = vadd.f32 %v70, %v238
    %v240 = vpop.f32.mrb[0].mxu0
    %v241 = vpop.f32.mrb[0].mxu0
    %v242 = vadd.f32 %v70, %v241
    %v243 = vpop.f32.mrb[0].mxu0
    %244 = vdwg.mxu0
    %v245 = vmax.f32 %v183, 0.0
    %v246 = vmax.f32 %v186, 0.0
    %v247 = vmax.f32 %v191, 0.0
    %v248 = vmax.f32 %v194, 0.0
    %v249 = vmax.f32 %v199, 0.0
    %v250 = vmax.f32 %v202, 0.0
    %v251 = vmax.f32 %v207, 0.0
    %v252 = vmax.f32 %v210, 0.0
    %v253 = vmax.f32 %v215, 0.0
    %v254 = vmax.f32 %v218, 0.0
    %v255 = vmax.f32 %v223, 0.0
    %v256 = vmax.f32 %v226, 0.0
    %v257 = vmax.f32 %v231, 0.0
    %v258 = vmax.f32 %v234, 0.0
    %v259 = vmax.f32 %v239, 0.0
    %v260 = vmax.f32 %v242, 0.0
    %v261 = vpack.c.bf16 %v246, %v245
    %v262 = vpack.c.bf16 %v248, %v247
    %v263 = vpack.c.bf16 %v250, %v249
    %v264 = vpack.c.bf16 %v252, %v251
    %v265 = vpack.c.bf16 %v254, %v253
    %v266 = vpack.c.bf16 %v256, %v255
    %v267 = vpack.c.bf16 %v258, %v257
    %v268 = vpack.c.bf16 %v260, %v259
    %v269 = vld [vmem:[#allocation2] sm:$0xf]
    %v270 = vld [vmem:[#allocation2 + $0x4] sm:$0xf]
    %v271 = vld [vmem:[#allocation2 + $0x8] sm:$0xf]
    %v272 = vld [vmem:[#allocation2 + $0xc] sm:$0xf]
    %v273 = vld [vmem:[#allocation2 + $0x10] sm:$0xf]
    %v274 = vld [vmem:[#allocation2 + $0x14] sm:$0xf]
    %v275 = vld [vmem:[#allocation2 + $0x18] sm:$0xf]
    %v276 = vld [vmem:[#allocation2 + $0x1c] sm:$0xf]
    %v277 = vld [vmem:[#allocation2 + $0x20] sm:$0xf]
    %v278 = vld [vmem:[#allocation2 + $0x24] sm:$0xf]
    %v279 = vld [vmem:[#allocation2 + $0x28] sm:$0xf]
    %v280 = vld [vmem:[#allocation2 + $0x2c] sm:$0xf]
    %v281 = vld [vmem:[#allocation2 + $0x30] sm:$0xf]
    %v282 = vld [vmem:[#allocation2 + $0x34] sm:$0xf]
    %v283 = vld [vmem:[#allocation2 + $0x38] sm:$0xf]
    %v284 = vld [vmem:[#allocation2 + $0x3c] sm:$0xf]
    %v285 = vld [vmem:[#allocation2 + $0x40] sm:$0xf]
    %v286 = vld [vmem:[#allocation2 + $0x44] sm:$0xf]
    %v287 = vld [vmem:[#allocation2 + $0x48] sm:$0xf]
    %v288 = vld [vmem:[#allocation2 + $0x4c] sm:$0xf]
    %v289 = vld [vmem:[#allocation2 + $0x50] sm:$0xf]
    %v290 = vld [vmem:[#allocation2 + $0x54] sm:$0xf]
    %v291 = vld [vmem:[#allocation2 + $0x58] sm:$0xf]
    %v292 = vld [vmem:[#allocation2 + $0x5c] sm:$0xf]
    %v293 = vld [vmem:[#allocation2 + $0x60] sm:$0xf]
    %v294 = vld [vmem:[#allocation2 + $0x64] sm:$0xf]
    %v295 = vld [vmem:[#allocation2 + $0x68] sm:$0xf]
    %v296 = vld [vmem:[#allocation2 + $0x6c] sm:$0xf]
    %v297 = vld [vmem:[#allocation2 + $0x70] sm:$0xf]
    %v298 = vld [vmem:[#allocation2 + $0x74] sm:$0xf]
    %v299 = vld [vmem:[#allocation2 + $0x78] sm:$0xf]
    %v300 = vld [vmem:[#allocation2 + $0x7c] sm:$0xf]
    %v301 = vld [vmem:[#allocation2 + $0x80] sm:$0xf]
    %v302 = vld [vmem:[#allocation2 + $0x84] sm:$0xf]
    %v303 = vld [vmem:[#allocation2 + $0x88] sm:$0xf]
    %v304 = vld [vmem:[#allocation2 + $0x8c] sm:$0xf]
    %v341 = vunpack.c.l.b16 %v269
    %v342 = vunpack.c.l.b16 %v270
    %v343 = vunpack.c.l.b16 %v271
    %v344 = vunpack.c.l.b16 %v272
    %v345 = vunpack.c.l.b16 %v273
    %v346 = vunpack.c.l.b16 %v274
    %v347 = vunpack.c.l.b16 %v275
    %v348 = vunpack.c.l.b16 %v276
    %v349 = vunpack.c.l.b16 %v277
    %v350 = vunpack.c.l.b16 %v278
    %v351 = vunpack.c.l.b16 %v279
    %v352 = vunpack.c.l.b16 %v280
    %v353 = vunpack.c.l.b16 %v281
    %v354 = vunpack.c.l.b16 %v282
    %v355 = vunpack.c.l.b16 %v283
    %v356 = vunpack.c.l.b16 %v284
    %v357 = vunpack.c.l.b16 %v285
    %v358 = vunpack.c.l.b16 %v286
    %v359 = vunpack.c.l.b16 %v287
    %v360 = vunpack.c.l.b16 %v288
    %v361 = vunpack.c.l.b16 %v289
    %v362 = vunpack.c.l.b16 %v290
    %v363 = vunpack.c.l.b16 %v291
    %v364 = vunpack.c.l.b16 %v292
    %v365 = vunpack.c.l.b16 %v293
    %v366 = vunpack.c.l.b16 %v294
    %v367 = vunpack.c.l.b16 %v295
    %v368 = vunpack.c.l.b16 %v296
    %v369 = vunpack.c.l.b16 %v297
    %v370 = vunpack.c.l.b16 %v298
    %v371 = vunpack.c.l.b16 %v299
    %v372 = vunpack.c.l.b16 %v300
    %v373 = vunpack.c.l.b16 %v301
    %v374 = vunpack.c.l.b16 %v302
    %v375 = vunpack.c.l.b16 %v303
    %v376 = vunpack.c.l.b16 %v304
    %v377 = vpack.c.b16 %v342, %v341
    %v378 = vpack.c.b16 %v344, %v343
    %v379 = vpack.c.b16 %v346, %v345
    %v380 = vpack.c.b16 %v348, %v347
    %v381 = vpack.c.b16 %v350, %v349
    %v382 = vpack.c.b16 %v352, %v351
    %v383 = vpack.c.b16 %v354, %v353
    %v384 = vpack.c.b16 %v356, %v355
    %v385 = vpack.c.b16 %v358, %v357
    %v386 = vpack.c.b16 %v360, %v359
    %v387 = vpack.c.b16 %v362, %v361
    %v388 = vpack.c.b16 %v364, %v363
    %v389 = vpack.c.b16 %v366, %v365
    %v390 = vpack.c.b16 %v368, %v367
    %v391 = vpack.c.b16 %v370, %v369
    %v392 = vpack.c.b16 %v372, %v371
    %v393 = vpack.c.b16 %v374, %v373
    %v394 = vpack.c.b16 %v376, %v375
    %413 = vmatprep.subr.bf16.mxu0 0
    %414 = vmatpush1.bf16.msra.mxu0 %v261
    %415 = vmatprep.subr.bf16.mxu0 0
    %416 = vmatpush1.bf16.msra.mxu0 %v262
    %417 = vmatprep.subr.bf16.mxu0 0
    %418 = vmatpush1.bf16.msra.mxu0 %v263
    %419 = vmatprep.subr.bf16.mxu0 0
    %420 = vmatpush1.bf16.msra.mxu0 %v264
    %421 = vmatprep.subr.bf16.mxu0 0
    %422 = vmatpush1.bf16.msra.mxu0 %v265
    %423 = vmatprep.subr.bf16.mxu0 0
    %424 = vmatpush1.bf16.msra.mxu0 %v266
    %425 = vmatprep.subr.bf16.mxu0 0
    %426 = vmatpush1.bf16.msra.mxu0 %v267
    %427 = vmatprep.subr.bf16.mxu0 0
    %428 = vmatpush1.bf16.msra.mxu0 %v268
    %429 = vmatprep.subr.bf16.mxu0 0
    %430 = vmatpush1.bf16.msra.mxu0 0
    %431 = vmatprep.subr.bf16.mxu0 0
    %432 = vmatpush1.bf16.msra.mxu0 0
    %433 = vmatprep.subr.bf16.mxu0 0
    %434 = vmatpush1.bf16.msra.mxu0 0
    %435 = vmatprep.subr.bf16.mxu0 0
    %436 = vmatpush1.bf16.msra.mxu0 0
    %437 = vmatprep.subr.bf16.mxu0 0
    %438 = vmatpush1.bf16.msra.mxu0 0
    %439 = vmatprep.subr.bf16.mxu0 0
    %440 = vmatpush1.bf16.msra.mxu0 0
    %441 = vmatprep.subr.bf16.mxu0 0
    %442 = vmatpush1.bf16.msra.mxu0 0
    %443 = vmatprep.subr.bf16.mxu0 0
    %444 = vmatpush1.bf16.msra.mxu0 0
    %445 = vmatprep.mubr.bf16.mxu0 0
    %446 = vmatmul.mubr.bf16.gmra.mrb[0].mxu0 %v377
    %v447 = vpop.f32.mrb[0].mxu0
    %v448 = vadd.f32 0.0, %v447
    %v449 = vpop.f32.mrb[0].mxu0
    %v450 = vpop.f32.mrb[0].mxu0
    %v451 = vadd.f32 0.0, %v450
    %v452 = vpop.f32.mrb[0].mxu0
    %453 = vmatprep.mubr.bf16.mxu0 0
    %454 = vmatmul.mubr.bf16.gmra.mrb[0].mxu0 %v378
    %v455 = vpop.f32.mrb[0].mxu0
    %v456 = vadd.f32 0.0, %v455
    %v457 = vpop.f32.mrb[0].mxu0
    %v458 = vpop.f32.mrb[0].mxu0
    %v459 = vadd.f32 0.0, %v458
    %v460 = vpop.f32.mrb[0].mxu0
    %461 = vmatprep.mubr.bf16.mxu0 0
    %462 = vmatmul.mubr.bf16.gmra.mrb[0].mxu0 %v379
    %v463 = vpop.f32.mrb[0].mxu0
    %v464 = vadd.f32 0.0, %v463
    %v465 = vpop.f32.mrb[0].mxu0
    %v466 = vpop.f32.mrb[0].mxu0
    %v467 = vadd.f32 0.0, %v466
    %v468 = vpop.f32.mrb[0].mxu0
    %469 = vmatprep.mubr.bf16.mxu0 0
    %470 = vmatmul.mubr.bf16.gmra.mrb[0].mxu0 %v380
    %v471 = vpop.f32.mrb[0].mxu0
    %v472 = vadd.f32 0.0, %v471
    %v473 = vpop.f32.mrb[0].mxu0
    %v474 = vpop.f32.mrb[0].mxu0
    %v475 = vadd.f32 0.0, %v474
    %v476 = vpop.f32.mrb[0].mxu0
    %477 = vmatprep.mubr.bf16.mxu0 0
    %478 = vmatmul.mubr.bf16.gmra.mrb[0].mxu0 %v381
    %v479 = vpop.f32.mrb[0].mxu0
    %v480 = vadd.f32 0.0, %v479
    %v481 = vpop.f32.mrb[0].mxu0
    %v482 = vpop.f32.mrb[0].mxu0
    %v483 = vadd.f32 0.0, %v482
    %v484 = vpop.f32.mrb[0].mxu0
    %485 = vmatprep.mubr.bf16.mxu0 0
    %486 = vmatmul.mubr.bf16.gmra.mrb[0].mxu0 %v382
    %v487 = vpop.f32.mrb[0].mxu0
    %v488 = vadd.f32 0.0, %v487
    %v489 = vpop.f32.mrb[0].mxu0
    %v490 = vpop.f32.mrb[0].mxu0
    %v491 = vadd.f32 0.0, %v490
    %v492 = vpop.f32.mrb[0].mxu0
    %493 = vmatprep.mubr.bf16.mxu0 0
    %494 = vmatmul.mubr.bf16.gmra.mrb[0].mxu0 %v383
    %v495 = vpop.f32.mrb[0].mxu0
    %v496 = vadd.f32 0.0, %v495
    %v497 = vpop.f32.mrb[0].mxu0
    %v498 = vpop.f32.mrb[0].mxu0
    %v499 = vadd.f32 0.0, %v498
    %v500 = vpop.f32.mrb[0].mxu0
    %501 = vmatprep.mubr.bf16.mxu0 0
    %502 = vmatmul.mubr.bf16.gmra.mrb[0].mxu0 %v384
    %v503 = vpop.f32.mrb[0].mxu0
    %v504 = vadd.f32 0.0, %v503
    %v505 = vpop.f32.mrb[0].mxu0
    %v506 = vpop.f32.mrb[0].mxu0
    %v507 = vadd.f32 0.0, %v506
    %v508 = vpop.f32.mrb[0].mxu0
    %509 = vmatprep.mubr.bf16.mxu0 0
    %510 = vmatmul.mubr.bf16.gmra.mrb[0].mxu0 %v385
    %v511 = vpop.f32.mrb[0].mxu0
    %v512 = vadd.f32 0.0, %v511
    %v513 = vpop.f32.mrb[0].mxu0
    %v514 = vpop.f32.mrb[0].mxu0
    %v515 = vadd.f32 0.0, %v514
    %v516 = vpop.f32.mrb[0].mxu0
    %517 = vmatprep.mubr.bf16.mxu0 0
    %518 = vmatmul.mubr.bf16.gmra.mrb[0].mxu0 %v386
    %v519 = vpop.f32.mrb[0].mxu0
    %v520 = vadd.f32 0.0, %v519
    %v521 = vpop.f32.mrb[0].mxu0
    %v522 = vpop.f32.mrb[0].mxu0
    %v523 = vadd.f32 0.0, %v522
    %v524 = vpop.f32.mrb[0].mxu0
    %525 = vmatprep.mubr.bf16.mxu0 0
    %526 = vmatmul.mubr.bf16.gmra.mrb[0].mxu0 %v387
    %v527 = vpop.f32.mrb[0].mxu0
    %v528 = vadd.f32 0.0, %v527
    %v529 = vpop.f32.mrb[0].mxu0
    %v530 = vpop.f32.mrb[0].mxu0
    %v531 = vadd.f32 0.0, %v530
    %v532 = vpop.f32.mrb[0].mxu0
    %533 = vmatprep.mubr.bf16.mxu0 0
    %534 = vmatmul.mubr.bf16.gmra.mrb[0].mxu0 %v388
    %v535 = vpop.f32.mrb[0].mxu0
    %v536 = vadd.f32 0.0, %v535
    %v537 = vpop.f32.mrb[0].mxu0
    %v538 = vpop.f32.mrb[0].mxu0
    %v539 = vadd.f32 0.0, %v538
    %v540 = vpop.f32.mrb[0].mxu0
    %541 = vmatprep.mubr.bf16.mxu0 0
    %542 = vmatmul.mubr.bf16.gmra.mrb[0].mxu0 %v389
    %v543 = vpop.f32.mrb[0].mxu0
    %v544 = vadd.f32 0.0, %v543
    %v545 = vpop.f32.mrb[0].mxu0
    %v546 = vpop.f32.mrb[0].mxu0
    %v547 = vadd.f32 0.0, %v546
    %v548 = vpop.f32.mrb[0].mxu0
    %549 = vmatprep.mubr.bf16.mxu0 0
    %550 = vmatmul.mubr.bf16.gmra.mrb[0].mxu0 %v390
    %v551 = vpop.f32.mrb[0].mxu0
    %v552 = vadd.f32 0.0, %v551
    %v553 = vpop.f32.mrb[0].mxu0
    %v554 = vpop.f32.mrb[0].mxu0
    %v555 = vadd.f32 0.0, %v554
    %v556 = vpop.f32.mrb[0].mxu0
    %557 = vmatprep.mubr.bf16.mxu0 0
    %558 = vmatmul.mubr.bf16.gmra.mrb[0].mxu0 %v391
    %v559 = vpop.f32.mrb[0].mxu0
    %v560 = vadd.f32 0.0, %v559
    %v561 = vpop.f32.mrb[0].mxu0
    %v562 = vpop.f32.mrb[0].mxu0
    %v563 = vadd.f32 0.0, %v562
    %v564 = vpop.f32.mrb[0].mxu0
    %565 = vmatprep.mubr.bf16.mxu0 0
    %566 = vmatmul.mubr.bf16.gmra.mrb[0].mxu0 %v392
    %v567 = vpop.f32.mrb[0].mxu0
    %v568 = vadd.f32 0.0, %v567
    %v569 = vpop.f32.mrb[0].mxu0
    %v570 = vpop.f32.mrb[0].mxu0
    %v571 = vadd.f32 0.0, %v570
    %v572 = vpop.f32.mrb[0].mxu0
    %573 = vmatprep.mubr.bf16.mxu0 0
    %574 = vmatmul.mubr.bf16.gmra.mrb[0].mxu0 %v393
    %v575 = vpop.f32.mrb[0].mxu0
    %v576 = vadd.f32 0.0, %v575
    %v577 = vpop.f32.mrb[0].mxu0
    %v578 = vpop.f32.mrb[0].mxu0
    %v579 = vadd.f32 0.0, %v578
    %v580 = vpop.f32.mrb[0].mxu0
    %581 = vmatprep.mubr.bf16.mxu0 0
    %582 = vmatmul.mubr.bf16.gmra.mrb[0].mxu0 %v394
    %v583 = vpop.f32.mrb[0].mxu0
    %v584 = vadd.f32 0.0, %v583
    %v585 = vpop.f32.mrb[0].mxu0
    %v586 = vpop.f32.mrb[0].mxu0
    %v587 = vadd.f32 0.0, %v586
    %v588 = vpop.f32.mrb[0].mxu0
    %589 = vdwg.mxu0
    %v590 = vpack.c.bf16 %v451, %v448
    %v591 = vpack.c.bf16 %v459, %v456
    %v592 = vpack.c.bf16 %v467, %v464
    %v593 = vpack.c.bf16 %v475, %v472
    %v594 = vpack.c.bf16 %v483, %v480
    %v595 = vpack.c.bf16 %v491, %v488
    %v596 = vpack.c.bf16 %v499, %v496
    %v597 = vpack.c.bf16 %v507, %v504
    %v598 = vpack.c.bf16 %v515, %v512
    %v599 = vpack.c.bf16 %v523, %v520
    %v600 = vpack.c.bf16 %v531, %v528
    %v601 = vpack.c.bf16 %v539, %v536
    %v602 = vpack.c.bf16 %v547, %v544
    %v603 = vpack.c.bf16 %v555, %v552
    %v604 = vpack.c.bf16 %v563, %v560
    %v605 = vpack.c.bf16 %v571, %v568
    %v606 = vpack.c.bf16 %v579, %v576
    %v607 = vpack.c.bf16 %v587, %v584
    %v608 = vld [vmem:[%s2 + $0x10] sm:$0xf]
    %v609 = vld [vmem:[%s2 + $0x14] sm:$0xf]
    %v610 = vld [vmem:[%s2 + $0x18] sm:$0xf]
    %v611 = vld [vmem:[%s2 + $0x1c] sm:$0xf]
    %v614 = vunpack.c.l.b16 %v610
    %v615 = vunpack.c.l.b16 %v611
    %v616 = vpack.c.b16 %v615, %v614
    %vm618 = vcmask 130048
    %v620 = vsel %vm618, %v592, 0
    %v623 = vsel %vm618, %v593, 0
    %625 = vmatprep.subr.bf16.mxu0 0
    %626 = vmatpush1.bf16.msra.mxu0 %v616
    %627 = vmatprep.subr.bf16.mxu0 0
    %628 = vmatpush1.bf16.msra.mxu0 0
    %629 = vmatprep.subr.bf16.mxu0 0
    %630 = vmatpush1.bf16.msra.mxu0 0
    %631 = vmatprep.subr.bf16.mxu0 0
    %632 = vmatpush1.bf16.msra.mxu0 0
    %633 = vmatprep.subr.bf16.mxu0 0
    %634 = vmatpush1.bf16.msra.mxu0 0
    %635 = vmatprep.subr.bf16.mxu0 0
    %636 = vmatpush1.bf16.msra.mxu0 0
    %637 = vmatprep.subr.bf16.mxu0 0
    %638 = vmatpush1.bf16.msra.mxu0 0
    %639 = vmatprep.subr.bf16.mxu0 0
    %640 = vmatpush1.bf16.msra.mxu0 0
    %641 = vmatprep.subr.bf16.mxu0 0
    %642 = vmatpush1.bf16.msra.mxu0 0
    %643 = vmatprep.subr.bf16.mxu0 0
    %644 = vmatpush1.bf16.msra.mxu0 0
    %645 = vmatprep.subr.bf16.mxu0 0
    %646 = vmatpush1.bf16.msra.mxu0 0
    %647 = vmatprep.subr.bf16.mxu0 0
    %648 = vmatpush1.bf16.msra.mxu0 0
    %649 = vmatprep.subr.bf16.mxu0 0
    %650 = vmatpush1.bf16.msra.mxu0 0
    %651 = vmatprep.subr.bf16.mxu0 0
    %652 = vmatpush1.bf16.msra.mxu0 0
    %653 = vmatprep.subr.bf16.mxu0 0
    %654 = vmatpush1.bf16.msra.mxu0 0
    %655 = vmatprep.subr.bf16.mxu0 0
    %656 = vmatpush1.bf16.msra.mxu0 0
    %657 = vmatprep.mubr.bf16.mxu0 0
    %658 = vmatmul.mubr.bf16.gmra.mrb[0].mxu0 %v620
    %v659 = vpop.f32.mrb[0].mxu0
    %v660 = vadd.f32 0.0, %v659
    %v661 = vpop.f32.mrb[0].mxu0
    %v662 = vpop.f32.mrb[0].mxu0
    %v663 = vadd.f32 0.0, %v662
    %v664 = vpop.f32.mrb[0].mxu0
    %665 = vmatprep.mubr.bf16.mxu0 0
    %666 = vmatmul.mubr.bf16.gmra.mrb[0].mxu0 %v623
    %v667 = vpop.f32.mrb[0].mxu0
    %v668 = vadd.f32 0.0, %v667
    %v669 = vpop.f32.mrb[0].mxu0
    %v670 = vpop.f32.mrb[0].mxu0
    %v671 = vadd.f32 0.0, %v670
    %v672 = vpop.f32.mrb[0].mxu0
    %673 = vdwg.mxu0
    %v676 = vunpack.c.l.b16 %v608
    %v677 = vunpack.c.l.b16 %v609
    %v678 = vpack.c.b16 %v677, %v676
    %v681 = vsel %vm618, %v590, 0
    %v684 = vsel %vm618, %v591, 0
    %686 = vmatprep.subr.bf16.mxu0 0
    %687 = vmatpush1.bf16.msra.mxu0 %v678
    %688 = vmatprep.subr.bf16.mxu0 0
    %689 = vmatpush1.bf16.msra.mxu0 0
    %690 = vmatprep.subr.bf16.mxu0 0
    %691 = vmatpush1.bf16.msra.mxu0 0
    %692 = vmatprep.subr.bf16.mxu0 0
    %693 = vmatpush1.bf16.msra.mxu0 0
    %694 = vmatprep.subr.bf16.mxu0 0
    %695 = vmatpush1.bf16.msra.mxu0 0
    %696 = vmatprep.subr.bf16.mxu0 0
    %697 = vmatpush1.bf16.msra.mxu0 0
    %698 = vmatprep.subr.bf16.mxu0 0
    %699 = vmatpush1.bf16.msra.mxu0 0
    %700 = vmatprep.subr.bf16.mxu0 0
    %701 = vmatpush1.bf16.msra.mxu0 0
    %702 = vmatprep.subr.bf16.mxu0 0
    %703 = vmatpush1.bf16.msra.mxu0 0
    %704 = vmatprep.subr.bf16.mxu0 0
    %705 = vmatpush1.bf16.msra.mxu0 0
    %706 = vmatprep.subr.bf16.mxu0 0
    %707 = vmatpush1.bf16.msra.mxu0 0
    %708 = vmatprep.subr.bf16.mxu0 0
    %709 = vmatpush1.bf16.msra.mxu0 0
    %710 = vmatprep.subr.bf16.mxu0 0
    %711 = vmatpush1.bf16.msra.mxu0 0
    %712 = vmatprep.subr.bf16.mxu0 0
    %713 = vmatpush1.bf16.msra.mxu0 0
    %714 = vmatprep.subr.bf16.mxu0 0
    %715 = vmatpush1.bf16.msra.mxu0 0
    %716 = vmatprep.subr.bf16.mxu0 0
    %717 = vmatpush1.bf16.msra.mxu0 0
    %718 = vmatprep.mubr.bf16.mxu0 0
    %719 = vmatmul.mubr.bf16.gmra.mrb[0].mxu0 %v681
    %v720 = vpop.f32.mrb[0].mxu0
    %v721 = vadd.f32 %v660, %v720
    %v722 = vpop.f32.mrb[0].mxu0
    %v723 = vpop.f32.mrb[0].mxu0
    %v724 = vadd.f32 %v663, %v723
    %v725 = vpop.f32.mrb[0].mxu0
    %726 = vmatprep.mubr.bf16.mxu0 0
    %727 = vmatmul.mubr.bf16.gmra.mrb[0].mxu0 %v684
    %v728 = vpop.f32.mrb[0].mxu0
    %v729 = vadd.f32 %v668, %v728
    %v730 = vpop.f32.mrb[0].mxu0
    %v731 = vpop.f32.mrb[0].mxu0
    %v732 = vadd.f32 %v671, %v731
    %v733 = vpop.f32.mrb[0].mxu0
    %734 = vdwg.mxu0
    %v735 = vld [vmem:[%s2 + $0x20] sm:$0xf]
    %v736 = vld [vmem:[%s2 + $0x24] sm:$0xf]
    %v737 = vld [vmem:[%s2 + $0x28] sm:$0xf]
    %v738 = vld [vmem:[%s2 + $0x2c] sm:$0xf]
    %v741 = vunpack.c.l.b16 %v737
    %v742 = vunpack.c.l.b16 %v738
    %v743 = vpack.c.b16 %v742, %v741
    %v746 = vsel %vm618, %v596, 0
    %v749 = vsel %vm618, %v597, 0
    %751 = vmatprep.subr.bf16.mxu0 0
    %752 = vmatpush1.bf16.msra.mxu0 %v743
    %753 = vmatprep.subr.bf16.mxu0 0
    %754 = vmatpush1.bf16.msra.mxu0 0
    %755 = vmatprep.subr.bf16.mxu0 0
    %756 = vmatpush1.bf16.msra.mxu0 0
    %757 = vmatprep.subr.bf16.mxu0 0
    %758 = vmatpush1.bf16.msra.mxu0 0
    %759 = vmatprep.subr.bf16.mxu0 0
    %760 = vmatpush1.bf16.msra.mxu0 0
    %761 = vmatprep.subr.bf16.mxu0 0
    %762 = vmatpush1.bf16.msra.mxu0 0
    %763 = vmatprep.subr.bf16.mxu0 0
    %764 = vmatpush1.bf16.msra.mxu0 0
    %765 = vmatprep.subr.bf16.mxu0 0
    %766 = vmatpush1.bf16.msra.mxu0 0
    %767 = vmatprep.subr.bf16.mxu0 0
    %768 = vmatpush1.bf16.msra.mxu0 0
    %769 = vmatprep.subr.bf16.mxu0 0
    %770 = vmatpush1.bf16.msra.mxu0 0
    %771 = vmatprep.subr.bf16.mxu0 0
    %772 = vmatpush1.bf16.msra.mxu0 0
    %773 = vmatprep.subr.bf16.mxu0 0
    %774 = vmatpush1.bf16.msra.mxu0 0
    %775 = vmatprep.subr.bf16.mxu0 0
    %776 = vmatpush1.bf16.msra.mxu0 0
    %777 = vmatprep.subr.bf16.mxu0 0
    %778 = vmatpush1.bf16.msra.mxu0 0
    %779 = vmatprep.subr.bf16.mxu0 0
    %780 = vmatpush1.bf16.msra.mxu0 0
    %781 = vmatprep.subr.bf16.mxu0 0
    %782 = vmatpush1.bf16.msra.mxu0 0
    %783 = vmatprep.mubr.bf16.mxu0 0
    %784 = vmatmul.mubr.bf16.gmra.mrb[0].mxu0 %v746
    %v785 = vpop.f32.mrb[0].mxu0
    %v786 = vadd.f32 0.0, %v785
    %v787 = vpop.f32.mrb[0].mxu0
    %v788 = vpop.f32.mrb[0].mxu0
    %v789 = vadd.f32 0.0, %v788
    %v790 = vpop.f32.mrb[0].mxu0
    %791 = vmatprep.mubr.bf16.mxu0 0
    %792 = vmatmul.mubr.bf16.gmra.mrb[0].mxu0 %v749
    %v793 = vpop.f32.mrb[0].mxu0
    %v794 = vadd.f32 0.0, %v793
    %v795 = vpop.f32.mrb[0].mxu0
    %v796 = vpop.f32.mrb[0].mxu0
    %v797 = vadd.f32 0.0, %v796
    %v798 = vpop.f32.mrb[0].mxu0
    %799 = vdwg.mxu0
    %v802 = vunpack.c.l.b16 %v735
    %v803 = vunpack.c.l.b16 %v736
    %v804 = vpack.c.b16 %v803, %v802
    %v807 = vsel %vm618, %v594, 0
    %v810 = vsel %vm618, %v595, 0
    %812 = vmatprep.subr.bf16.mxu0 0
    %813 = vmatpush1.bf16.msra.mxu0 %v804
    %814 = vmatprep.subr.bf16.mxu0 0
    %815 = vmatpush1.bf16.msra.mxu0 0
    %816 = vmatprep.subr.bf16.mxu0 0
    %817 = vmatpush1.bf16.msra.mxu0 0
    %818 = vmatprep.subr.bf16.mxu0 0
    %819 = vmatpush1.bf16.msra.mxu0 0
    %820 = vmatprep.subr.bf16.mxu0 0
    %821 = vmatpush1.bf16.msra.mxu0 0
    %822 = vmatprep.subr.bf16.mxu0 0
    %823 = vmatpush1.bf16.msra.mxu0 0
    %824 = vmatprep.subr.bf16.mxu0 0
    %825 = vmatpush1.bf16.msra.mxu0 0
    %826 = vmatprep.subr.bf16.mxu0 0
    %827 = vmatpush1.bf16.msra.mxu0 0
    %828 = vmatprep.subr.bf16.mxu0 0
    %829 = vmatpush1.bf16.msra.mxu0 0
    %830 = vmatprep.subr.bf16.mxu0 0
    %831 = vmatpush1.bf16.msra.mxu0 0
    %832 = vmatprep.subr.bf16.mxu0 0
    %833 = vmatpush1.bf16.msra.mxu0 0
    %834 = vmatprep.subr.bf16.mxu0 0
    %835 = vmatpush1.bf16.msra.mxu0 0
    %836 = vmatprep.subr.bf16.mxu0 0
    %837 = vmatpush1.bf16.msra.mxu0 0
    %838 = vmatprep.subr.bf16.mxu0 0
    %839 = vmatpush1.bf16.msra.mxu0 0
    %840 = vmatprep.subr.bf16.mxu0 0
    %841 = vmatpush1.bf16.msra.mxu0 0
    %842 = vmatprep.subr.bf16.mxu0 0
    %843 = vmatpush1.bf16.msra.mxu0 0
    %844 = vmatprep.mubr.bf16.mxu0 0
    %845 = vmatmul.mubr.bf16.gmra.mrb[0].mxu0 %v807
    %v846 = vpop.f32.mrb[0].mxu0
    %v847 = vadd.f32 %v786, %v846
    %v848 = vpop.f32.mrb[0].mxu0
    %v849 = vpop.f32.mrb[0].mxu0
    %v850 = vadd.f32 %v789, %v849
    %v851 = vpop.f32.mrb[0].mxu0
    %852 = vmatprep.mubr.bf16.mxu0 0
    %853 = vmatmul.mubr.bf16.gmra.mrb[0].mxu0 %v810
    %v854 = vpop.f32.mrb[0].mxu0
    %v855 = vadd.f32 %v794, %v854
    %v856 = vpop.f32.mrb[0].mxu0
    %v857 = vpop.f32.mrb[0].mxu0
    %v858 = vadd.f32 %v797, %v857
    %v859 = vpop.f32.mrb[0].mxu0
    %860 = vdwg.mxu0
    %v861 = vld [vmem:[%s2 + $0x30] sm:$0xf]
    %v862 = vld [vmem:[%s2 + $0x34] sm:$0xf]
    %v863 = vld [vmem:[%s2 + $0x38] sm:$0xf]
    %v864 = vld [vmem:[%s2 + $0x3c] sm:$0xf]
    %v867 = vunpack.c.l.b16 %v863
    %v868 = vunpack.c.l.b16 %v864
    %v869 = vpack.c.b16 %v868, %v867
    %v872 = vsel %vm618, %v600, 0
    %v875 = vsel %vm618, %v601, 0
    %877 = vmatprep.subr.bf16.mxu0 0
    %878 = vmatpush1.bf16.msra.mxu0 %v869
    %879 = vmatprep.subr.bf16.mxu0 0
    %880 = vmatpush1.bf16.msra.mxu0 0
    %881 = vmatprep.subr.bf16.mxu0 0
    %882 = vmatpush1.bf16.msra.mxu0 0
    %883 = vmatprep.subr.bf16.mxu0 0
    %884 = vmatpush1.bf16.msra.mxu0 0
    %885 = vmatprep.subr.bf16.mxu0 0
    %886 = vmatpush1.bf16.msra.mxu0 0
    %887 = vmatprep.subr.bf16.mxu0 0
    %888 = vmatpush1.bf16.msra.mxu0 0
    %889 = vmatprep.subr.bf16.mxu0 0
    %890 = vmatpush1.bf16.msra.mxu0 0
    %891 = vmatprep.subr.bf16.mxu0 0
    %892 = vmatpush1.bf16.msra.mxu0 0
    %893 = vmatprep.subr.bf16.mxu0 0
    %894 = vmatpush1.bf16.msra.mxu0 0
    %895 = vmatprep.subr.bf16.mxu0 0
    %896 = vmatpush1.bf16.msra.mxu0 0
    %897 = vmatprep.subr.bf16.mxu0 0
    %898 = vmatpush1.bf16.msra.mxu0 0
    %899 = vmatprep.subr.bf16.mxu0 0
    %900 = vmatpush1.bf16.msra.mxu0 0
    %901 = vmatprep.subr.bf16.mxu0 0
    %902 = vmatpush1.bf16.msra.mxu0 0
    %903 = vmatprep.subr.bf16.mxu0 0
    %904 = vmatpush1.bf16.msra.mxu0 0
    %905 = vmatprep.subr.bf16.mxu0 0
    %906 = vmatpush1.bf16.msra.mxu0 0
    %907 = vmatprep.subr.bf16.mxu0 0
    %908 = vmatpush1.bf16.msra.mxu0 0
    %909 = vmatprep.mubr.bf16.mxu0 0
    %910 = vmatmul.mubr.bf16.gmra.mrb[0].mxu0 %v872
    %v911 = vpop.f32.mrb[0].mxu0
    %v912 = vadd.f32 0.0, %v911
    %v913 = vpop.f32.mrb[0].mxu0
    %v914 = vpop.f32.mrb[0].mxu0
    %v915 = vadd.f32 0.0, %v914
    %v916 = vpop.f32.mrb[0].mxu0
    %917 = vmatprep.mubr.bf16.mxu0 0
    %918 = vmatmul.mubr.bf16.gmra.mrb[0].mxu0 %v875
    %v919 = vpop.f32.mrb[0].mxu0
    %v920 = vadd.f32 0.0, %v919
    %v921 = vpop.f32.mrb[0].mxu0
    %v922 = vpop.f32.mrb[0].mxu0
    %v923 = vadd.f32 0.0, %v922
    %v924 = vpop.f32.mrb[0].mxu0
    %925 = vdwg.mxu0
    %v928 = vunpack.c.l.b16 %v861
    %v929 = vunpack.c.l.b16 %v862
    %v930 = vpack.c.b16 %v929, %v928
    %v933 = vsel %vm618, %v598, 0
    %v936 = vsel %vm618, %v599, 0
    %938 = vmatprep.subr.bf16.mxu0 0
    %939 = vmatpush1.bf16.msra.mxu0 %v930
    %940 = vmatprep.subr.bf16.mxu0 0
    %941 = vmatpush1.bf16.msra.mxu0 0
    %942 = vmatprep.subr.bf16.mxu0 0
    %943 = vmatpush1.bf16.msra.mxu0 0
    %944 = vmatprep.subr.bf16.mxu0 0
    %945 = vmatpush1.bf16.msra.mxu0 0
    %946 = vmatprep.subr.bf16.mxu0 0
    %947 = vmatpush1.bf16.msra.mxu0 0
    %948 = vmatprep.subr.bf16.mxu0 0
    %949 = vmatpush1.bf16.msra.mxu0 0
    %950 = vmatprep.subr.bf16.mxu0 0
    %951 = vmatpush1.bf16.msra.mxu0 0
    %952 = vmatprep.subr.bf16.mxu0 0
    %953 = vmatpush1.bf16.msra.mxu0 0
    %954 = vmatprep.subr.bf16.mxu0 0
    %955 = vmatpush1.bf16.msra.mxu0 0
    %956 = vmatprep.subr.bf16.mxu0 0
    %957 = vmatpush1.bf16.msra.mxu0 0
    %958 = vmatprep.subr.bf16.mxu0 0
    %959 = vmatpush1.bf16.msra.mxu0 0
    %960 = vmatprep.subr.bf16.mxu0 0
    %961 = vmatpush1.bf16.msra.mxu0 0
    %962 = vmatprep.subr.bf16.mxu0 0
    %963 = vmatpush1.bf16.msra.mxu0 0
    %964 = vmatprep.subr.bf16.mxu0 0
    %965 = vmatpush1.bf16.msra.mxu0 0
    %966 = vmatprep.subr.bf16.mxu0 0
    %967 = vmatpush1.bf16.msra.mxu0 0
    %968 = vmatprep.subr.bf16.mxu0 0
    %969 = vmatpush1.bf16.msra.mxu0 0
    %970 = vmatprep.mubr.bf16.mxu0 0
    %971 = vmatmul.mubr.bf16.gmra.mrb[0].mxu0 %v933
    %v972 = vpop.f32.mrb[0].mxu0
    %v973 = vadd.f32 %v912, %v972
    %v974 = vpop.f32.mrb[0].mxu0
    %v975 = vpop.f32.mrb[0].mxu0
    %v976 = vadd.f32 %v915, %v975
    %v977 = vpop.f32.mrb[0].mxu0
    %978 = vmatprep.mubr.bf16.mxu0 0
    %979 = vmatmul.mubr.bf16.gmra.mrb[0].mxu0 %v936
    %v980 = vpop.f32.mrb[0].mxu0
    %v981 = vadd.f32 %v920, %v980
    %v982 = vpop.f32.mrb[0].mxu0
    %v983 = vpop.f32.mrb[0].mxu0
    %v984 = vadd.f32 %v923, %v983
    %v985 = vpop.f32.mrb[0].mxu0
    %986 = vdwg.mxu0
    %v987 = vld [vmem:[%s2 + $0x40] sm:$0xf]
    %v988 = vld [vmem:[%s2 + $0x44] sm:$0xf]
    %v989 = vld [vmem:[%s2 + $0x48] sm:$0xf]
    %v990 = vld [vmem:[%s2 + $0x4c] sm:$0xf]
    %v993 = vunpack.c.l.b16 %v989
    %v994 = vunpack.c.l.b16 %v990
    %v995 = vpack.c.b16 %v994, %v993
    %v998 = vsel %vm618, %v604, 0
    %v1001 = vsel %vm618, %v605, 0
    %1003 = vmatprep.subr.bf16.mxu0 0
    %1004 = vmatpush1.bf16.msra.mxu0 %v995
    %1005 = vmatprep.subr.bf16.mxu0 0
    %1006 = vmatpush1.bf16.msra.mxu0 0
    %1007 = vmatprep.subr.bf16.mxu0 0
    %1008 = vmatpush1.bf16.msra.mxu0 0
    %1009 = vmatprep.subr.bf16.mxu0 0
    %1010 = vmatpush1.bf16.msra.mxu0 0
    %1011 = vmatprep.subr.bf16.mxu0 0
    %1012 = vmatpush1.bf16.msra.mxu0 0
    %1013 = vmatprep.subr.bf16.mxu0 0
    %1014 = vmatpush1.bf16.msra.mxu0 0
    %1015 = vmatprep.subr.bf16.mxu0 0
    %1016 = vmatpush1.bf16.msra.mxu0 0
    %1017 = vmatprep.subr.bf16.mxu0 0
    %1018 = vmatpush1.bf16.msra.mxu0 0
    %1019 = vmatprep.subr.bf16.mxu0 0
    %1020 = vmatpush1.bf16.msra.mxu0 0
    %1021 = vmatprep.subr.bf16.mxu0 0
    %1022 = vmatpush1.bf16.msra.mxu0 0
    %1023 = vmatprep.subr.bf16.mxu0 0
    %1024 = vmatpush1.bf16.msra.mxu0 0
    %1025 = vmatprep.subr.bf16.mxu0 0
    %1026 = vmatpush1.bf16.msra.mxu0 0
    %1027 = vmatprep.subr.bf16.mxu0 0
    %1028 = vmatpush1.bf16.msra.mxu0 0
    %1029 = vmatprep.subr.bf16.mxu0 0
    %1030 = vmatpush1.bf16.msra.mxu0 0
    %1031 = vmatprep.subr.bf16.mxu0 0
    %1032 = vmatpush1.bf16.msra.mxu0 0
    %1033 = vmatprep.subr.bf16.mxu0 0
    %1034 = vmatpush1.bf16.msra.mxu0 0
    %1035 = vmatprep.mubr.bf16.mxu0 0
    %1036 = vmatmul.mubr.bf16.gmra.mrb[0].mxu0 %v998
    %v1037 = vpop.f32.mrb[0].mxu0
    %v1038 = vadd.f32 0.0, %v1037
    %v1039 = vpop.f32.mrb[0].mxu0
    %v1040 = vpop.f32.mrb[0].mxu0
    %v1041 = vadd.f32 0.0, %v1040
    %v1042 = vpop.f32.mrb[0].mxu0
    %1043 = vmatprep.mubr.bf16.mxu0 0
    %1044 = vmatmul.mubr.bf16.gmra.mrb[0].mxu0 %v1001
    %v1045 = vpop.f32.mrb[0].mxu0
    %v1046 = vadd.f32 0.0, %v1045
    %v1047 = vpop.f32.mrb[0].mxu0
    %v1048 = vpop.f32.mrb[0].mxu0
    %v1049 = vadd.f32 0.0, %v1048
    %v1050 = vpop.f32.mrb[0].mxu0
    %1051 = vdwg.mxu0
    %v1054 = vunpack.c.l.b16 %v987
    %v1055 = vunpack.c.l.b16 %v988
    %v1056 = vpack.c.b16 %v1055, %v1054
    %v1059 = vsel %vm618, %v602, 0
    %v1062 = vsel %vm618, %v603, 0
    %1064 = vmatprep.subr.bf16.mxu0 0
    %1065 = vmatpush1.bf16.msra.mxu0 %v1056
    %1066 = vmatprep.subr.bf16.mxu0 0
    %1067 = vmatpush1.bf16.msra.mxu0 0
    %1068 = vmatprep.subr.bf16.mxu0 0
    %1069 = vmatpush1.bf16.msra.mxu0 0
    %1070 = vmatprep.subr.bf16.mxu0 0
    %1071 = vmatpush1.bf16.msra.mxu0 0
    %1072 = vmatprep.subr.bf16.mxu0 0
    %1073 = vmatpush1.bf16.msra.mxu0 0
    %1074 = vmatprep.subr.bf16.mxu0 0
    %1075 = vmatpush1.bf16.msra.mxu0 0
    %1076 = vmatprep.subr.bf16.mxu0 0
    %1077 = vmatpush1.bf16.msra.mxu0 0
    %1078 = vmatprep.subr.bf16.mxu0 0
    %1079 = vmatpush1.bf16.msra.mxu0 0
    %1080 = vmatprep.subr.bf16.mxu0 0
    %1081 = vmatpush1.bf16.msra.mxu0 0
    %1082 = vmatprep.subr.bf16.mxu0 0
    %1083 = vmatpush1.bf16.msra.mxu0 0
    %1084 = vmatprep.subr.bf16.mxu0 0
    %1085 = vmatpush1.bf16.msra.mxu0 0
    %1086 = vmatprep.subr.bf16.mxu0 0
    %1087 = vmatpush1.bf16.msra.mxu0 0
    %1088 = vmatprep.subr.bf16.mxu0 0
    %1089 = vmatpush1.bf16.msra.mxu0 0
    %1090 = vmatprep.subr.bf16.mxu0 0
    %1091 = vmatpush1.bf16.msra.mxu0 0
    %1092 = vmatprep.subr.bf16.mxu0 0
    %1093 = vmatpush1.bf16.msra.mxu0 0
    %1094 = vmatprep.subr.bf16.mxu0 0
    %1095 = vmatpush1.bf16.msra.mxu0 0
    %1096 = vmatprep.mubr.bf16.mxu0 0
    %1097 = vmatmul.mubr.bf16.gmra.mrb[0].mxu0 %v1059
    %v1098 = vpop.f32.mrb[0].mxu0
    %v1099 = vadd.f32 %v1038, %v1098
    %v1100 = vpop.f32.mrb[0].mxu0
    %v1101 = vpop.f32.mrb[0].mxu0
    %v1102 = vadd.f32 %v1041, %v1101
    %v1103 = vpop.f32.mrb[0].mxu0
    %1104 = vmatprep.mubr.bf16.mxu0 0
    %1105 = vmatmul.mubr.bf16.gmra.mrb[0].mxu0 %v1062
    %v1106 = vpop.f32.mrb[0].mxu0
    %v1107 = vadd.f32 %v1046, %v1106
    %v1108 = vpop.f32.mrb[0].mxu0
    %v1109 = vpop.f32.mrb[0].mxu0
    %v1110 = vadd.f32 %v1049, %v1109
    %v1111 = vpop.f32.mrb[0].mxu0
    %1112 = vdwg.mxu0
    %v1113 = vadd.f32 %v721, %v847
    %v1114 = vadd.f32 %v724, %v850
    %v1115 = vadd.f32 %v729, %v855
    %v1116 = vadd.f32 %v732, %v858
    %v1117 = vadd.f32 %v973, %v1099
    %v1118 = vadd.f32 %v976, %v1102
    %v1119 = vadd.f32 %v981, %v1107
    %v1120 = vadd.f32 %v984, %v1110
    %v1121 = vadd.f32 %v1113, %v1117
    %v1122 = vadd.f32 %v1114, %v1118
    %v1123 = vadd.f32 %v1115, %v1119
    %v1124 = vadd.f32 %v1116, %v1120
    %v1125 = vld [vmem:[%s2 + $0x50] sm:$0xf]
    %v1126 = vld [vmem:[%s2 + $0x54] sm:$0xf]
    %v1129 = vunpack.c.l.b16 %v1125
    %v1130 = vunpack.c.l.b16 %v1126
    %v1131 = vpack.c.b16 %v1130, %v1129
    %v1134 = vsel %vm618, %v606, 0
    %v1137 = vsel %vm618, %v607, 0
    %1139 = vmatprep.subr.bf16.mxu0 0
    %1140 = vmatpush1.bf16.msra.mxu0 %v1131
    %1141 = vmatprep.subr.bf16.mxu0 0
    %1142 = vmatpush1.bf16.msra.mxu0 0
    %1143 = vmatprep.subr.bf16.mxu0 0
    %1144 = vmatpush1.bf16.msra.mxu0 0
    %1145 = vmatprep.subr.bf16.mxu0 0
    %1146 = vmatpush1.bf16.msra.mxu0 0
    %1147 = vmatprep.subr.bf16.mxu0 0
    %1148 = vmatpush1.bf16.msra.mxu0 0
    %1149 = vmatprep.subr.bf16.mxu0 0
    %1150 = vmatpush1.bf16.msra.mxu0 0
    %1151 = vmatprep.subr.bf16.mxu0 0
    %1152 = vmatpush1.bf16.msra.mxu0 0
    %1153 = vmatprep.subr.bf16.mxu0 0
    %1154 = vmatpush1.bf16.msra.mxu0 0
    %1155 = vmatprep.subr.bf16.mxu0 0
    %1156 = vmatpush1.bf16.msra.mxu0 0
    %1157 = vmatprep.subr.bf16.mxu0 0
    %1158 = vmatpush1.bf16.msra.mxu0 0
    %1159 = vmatprep.subr.bf16.mxu0 0
    %1160 = vmatpush1.bf16.msra.mxu0 0
    %1161 = vmatprep.subr.bf16.mxu0 0
    %1162 = vmatpush1.bf16.msra.mxu0 0
    %1163 = vmatprep.subr.bf16.mxu0 0
    %1164 = vmatpush1.bf16.msra.mxu0 0
    %1165 = vmatprep.subr.bf16.mxu0 0
    %1166 = vmatpush1.bf16.msra.mxu0 0
    %1167 = vmatprep.subr.bf16.mxu0 0
    %1168 = vmatpush1.bf16.msra.mxu0 0
    %1169 = vmatprep.subr.bf16.mxu0 0
    %1170 = vmatpush1.bf16.msra.mxu0 0
    %1171 = vmatprep.mubr.bf16.mxu0 0
    %1172 = vmatmul.mubr.bf16.gmra.mrb[0].mxu0 %v1134
    %v1173 = vpop.f32.mrb[0].mxu0
    %v1174 = vadd.f32 0.0, %v1173
    %v1175 = vpop.f32.mrb[0].mxu0
    %v1176 = vpop.f32.mrb[0].mxu0
    %v1177 = vadd.f32 0.0, %v1176
    %v1178 = vpop.f32.mrb[0].mxu0
    %1179 = vmatprep.mubr.bf16.mxu0 0
    %1180 = vmatmul.mubr.bf16.gmra.mrb[0].mxu0 %v1137
    %v1181 = vpop.f32.mrb[0].mxu0
    %v1182 = vadd.f32 0.0, %v1181
    %v1183 = vpop.f32.mrb[0].mxu0
    %v1184 = vpop.f32.mrb[0].mxu0
    %v1185 = vadd.f32 0.0, %v1184
    %v1186 = vpop.f32.mrb[0].mxu0
    %1187 = vdwg.mxu0
    %v1188 = vadd.f32 %v1121, %v1174
    %v1189 = vadd.f32 %v1122, %v1177
    %v1190 = vadd.f32 %v1123, %v1182
    %v1191 = vadd.f32 %v1124, %v1185
    %v1192 = vld [vmem:[%s4 + $0x1] ss:$0 sm:$0xff]
    %v1193 = vadd.f32 %v1188, %v1192
    %v1194 = vadd.f32 %v1189, %v1192
    %v1195 = vadd.f32 %v1190, %v1192
    %v1196 = vadd.f32 %v1191, %v1192
    %v1197 = vmax.f32 %v1193, 0.0
    %v1198 = vmax.f32 %v1194, 0.0
    %v1199 = vmax.f32 %v1195, 0.0
    %v1200 = vmax.f32 %v1196, 0.0
    %v1201 = vpack.c.bf16 %v1198, %v1197
    %v1202 = vpack.c.bf16 %v1200, %v1199
    %v1203 = vld [vmem:[#allocation2 + $0x90] sm:$0xf]
    %v1204 = vld [vmem:[#allocation2 + $0x94] sm:$0xf]
    %v1205 = vld [vmem:[#allocation2 + $0x98] sm:$0xf]
    %v1206 = vld [vmem:[#allocation2 + $0x9c] sm:$0xf]
    %v1207 = vld [vmem:[#allocation2 + $0xa0] sm:$0xf]
    %v1208 = vld [vmem:[#allocation2 + $0xa4] sm:$0xf]
    %v1209 = vld [vmem:[#allocation2 + $0xa8] sm:$0xf]
    %v1210 = vld [vmem:[#allocation2 + $0xac] sm:$0xf]
    %v1211 = vld [vmem:[#allocation2 + $0xb0] sm:$0xf]
    %v1212 = vld [vmem:[#allocation2 + $0xb4] sm:$0xf]
    %v1213 = vld [vmem:[#allocation2 + $0xb8] sm:$0xf]
    %v1214 = vld [vmem:[#allocation2 + $0xbc] sm:$0xf]
    %v1215 = vld [vmem:[#allocation2 + $0xc0] sm:$0xf]
    %v1216 = vld [vmem:[#allocation2 + $0xc4] sm:$0xf]
    %v1217 = vld [vmem:[#allocation2 + $0xc8] sm:$0xf]
    %v1218 = vld [vmem:[#allocation2 + $0xcc] sm:$0xf]
    %v1219 = vld [vmem:[#allocation2 + $0xd0] sm:$0xf]
    %v1220 = vld [vmem:[#allocation2 + $0xd4] sm:$0xf]
    %v1221 = vld [vmem:[#allocation2 + $0xd8] sm:$0xf]
    %v1222 = vld [vmem:[#allocation2 + $0xdc] sm:$0xf]
    %v1223 = vld [vmem:[#allocation2 + $0xe0] sm:$0xf]
    %v1224 = vld [vmem:[#allocation2 + $0xe4] sm:$0xf]
    %v1225 = vld [vmem:[#allocation2 + $0xe8] sm:$0xf]
    %v1226 = vld [vmem:[#allocation2 + $0xec] sm:$0xf]
    %v1227 = vld [vmem:[#allocation2 + $0xf0] sm:$0xf]
    %v1228 = vld [vmem:[#allocation2 + $0xf4] sm:$0xf]
    %v1229 = vld [vmem:[#allocation2 + $0xf8] sm:$0xf]
    %v1230 = vld [vmem:[#allocation2 + $0xfc] sm:$0xf]
    %v1231 = vld [vmem:[#allocation2 + $0x100] sm:$0xf]
    %v1232 = vld [vmem:[#allocation2 + $0x104] sm:$0xf]
    %v1233 = vld [vmem:[#allocation2 + $0x108] sm:$0xf]
    %v1234 = vld [vmem:[#allocation2 + $0x10c] sm:$0xf]
    %v1235 = vld [vmem:[#allocation2 + $0x110] sm:$0xf]
    %v1236 = vld [vmem:[#allocation2 + $0x114] sm:$0xf]
    %v1237 = vld [vmem:[#allocation2 + $0x118] sm:$0xf]
    %v1238 = vld [vmem:[#allocation2 + $0x11c] sm:$0xf]
    %v1275 = vunpack.c.l.b16 %v1203
    %v1276 = vunpack.c.l.b16 %v1204
    %v1277 = vunpack.c.l.b16 %v1205
    %v1278 = vunpack.c.l.b16 %v1206
    %v1279 = vunpack.c.l.b16 %v1207
    %v1280 = vunpack.c.l.b16 %v1208
    %v1281 = vunpack.c.l.b16 %v1209
    %v1282 = vunpack.c.l.b16 %v1210
    %v1283 = vunpack.c.l.b16 %v1211
    %v1284 = vunpack.c.l.b16 %v1212
    %v1285 = vunpack.c.l.b16 %v1213
    %v1286 = vunpack.c.l.b16 %v1214
    %v1287 = vunpack.c.l.b16 %v1215
    %v1288 = vunpack.c.l.b16 %v1216
    %v1289 = vunpack.c.l.b16 %v1217
    %v1290 = vunpack.c.l.b16 %v1218
    %v1291 = vunpack.c.l.b16 %v1219
    %v1292 = vunpack.c.l.b16 %v1220
    %v1293 = vunpack.c.l.b16 %v1221
    %v1294 = vunpack.c.l.b16 %v1222
    %v1295 = vunpack.c.l.b16 %v1223
    %v1296 = vunpack.c.l.b16 %v1224
    %v1297 = vunpack.c.l.b16 %v1225
    %v1298 = vunpack.c.l.b16 %v1226
    %v1299 = vunpack.c.l.b16 %v1227
    %v1300 = vunpack.c.l.b16 %v1228
    %v1301 = vunpack.c.l.b16 %v1229
    %v1302 = vunpack.c.l.b16 %v1230
    %v1303 = vunpack.c.l.b16 %v1231
    %v1304 = vunpack.c.l.b16 %v1232
    %v1305 = vunpack.c.l.b16 %v1233
    %v1306 = vunpack.c.l.b16 %v1234
    %v1307 = vunpack.c.l.b16 %v1235
    %v1308 = vunpack.c.l.b16 %v1236
    %v1309 = vunpack.c.l.b16 %v1237
    %v1310 = vunpack.c.l.b16 %v1238
    %v1311 = vpack.c.b16 %v1276, %v1275
    %v1312 = vpack.c.b16 %v1278, %v1277
    %v1313 = vpack.c.b16 %v1280, %v1279
    %v1314 = vpack.c.b16 %v1282, %v1281
    %v1315 = vpack.c.b16 %v1284, %v1283
    %v1316 = vpack.c.b16 %v1286, %v1285
    %v1317 = vpack.c.b16 %v1288, %v1287
    %v1318 = vpack.c.b16 %v1290, %v1289
    %v1319 = vpack.c.b16 %v1292, %v1291
    %v1320 = vpack.c.b16 %v1294, %v1293
    %v1321 = vpack.c.b16 %v1296, %v1295
    %v1322 = vpack.c.b16 %v1298, %v1297
    %v1323 = vpack.c.b16 %v1300, %v1299
    %v1324 = vpack.c.b16 %v1302, %v1301
    %v1325 = vpack.c.b16 %v1304, %v1303
    %v1326 = vpack.c.b16 %v1306, %v1305
    %v1327 = vpack.c.b16 %v1308, %v1307
    %v1328 = vpack.c.b16 %v1310, %v1309
    %v1330 = vsel %vm123, %v1311, 0
    %v1333 = vsel %vm123, %v1312, 0
    %v1336 = vsel %vm123, %v1313, 0
    %v1339 = vsel %vm123, %v1314, 0
    %v1342 = vsel %vm123, %v1315, 0
    %v1345 = vsel %vm123, %v1316, 0
    %v1348 = vsel %vm123, %v1317, 0
    %v1351 = vsel %vm123, %v1318, 0
    %v1354 = vsel %vm123, %v1319, 0
    %v1357 = vsel %vm123, %v1320, 0
    %v1360 = vsel %vm123, %v1321, 0
    %v1363 = vsel %vm123, %v1322, 0
    %v1366 = vsel %vm123, %v1323, 0
    %v1369 = vsel %vm123, %v1324, 0
    %v1372 = vsel %vm123, %v1325, 0
    %v1375 = vsel %vm123, %v1326, 0
    %v1378 = vsel %vm123, %v1327, 0
    %v1381 = vsel %vm123, %v1328, 0
    %1383 = vmatprep.subr.bf16.mxu0 0
    %1384 = vmatpush1.bf16.msra.mxu0 %v1201
    %1385 = vmatprep.subr.bf16.mxu0 0
    %1386 = vmatpush1.bf16.msra.mxu0 %v1202
    %1387 = vmatprep.subr.bf16.mxu0 0
    %1388 = vmatpush1.bf16.msra.mxu0 0
    %1389 = vmatprep.subr.bf16.mxu0 0
    %1390 = vmatpush1.bf16.msra.mxu0 0
    %1391 = vmatprep.subr.bf16.mxu0 0
    %1392 = vmatpush1.bf16.msra.mxu0 0
    %1393 = vmatprep.subr.bf16.mxu0 0
    %1394 = vmatpush1.bf16.msra.mxu0 0
    %1395 = vmatprep.subr.bf16.mxu0 0
    %1396 = vmatpush1.bf16.msra.mxu0 0
    %1397 = vmatprep.subr.bf16.mxu0 0
    %1398 = vmatpush1.bf16.msra.mxu0 0
    %1399 = vmatprep.subr.bf16.mxu0 0
    %1400 = vmatpush1.bf16.msra.mxu0 0
    %1401 = vmatprep.subr.bf16.mxu0 0
    %1402 = vmatpush1.bf16.msra.mxu0 0
    %1403 = vmatprep.subr.bf16.mxu0 0
    %1404 = vmatpush1.bf16.msra.mxu0 0
    %1405 = vmatprep.subr.bf16.mxu0 0
    %1406 = vmatpush1.bf16.msra.mxu0 0
    %1407 = vmatprep.subr.bf16.mxu0 0
    %1408 = vmatpush1.bf16.msra.mxu0 0
    %1409 = vmatprep.subr.bf16.mxu0 0
    %1410 = vmatpush1.bf16.msra.mxu0 0
    %1411 = vmatprep.subr.bf16.mxu0 0
    %1412 = vmatpush1.bf16.msra.mxu0 0
    %1413 = vmatprep.subr.bf16.mxu0 0
    %1414 = vmatpush1.bf16.msra.mxu0 0
    %1415 = vmatprep.mubr.bf16.mxu0 0
    %1416 = vmatmul.mubr.bf16.gmra.mrb[0].mxu0 %v1330
    %v1417 = vpop.f32.mrb[0].mxu0
    %v1418 = vadd.f32 0.0, %v1417
    %v1419 = vpop.f32.mrb[0].mxu0
    %v1420 = vpop.f32.mrb[0].mxu0
    %v1421 = vadd.f32 0.0, %v1420
    %v1422 = vpop.f32.mrb[0].mxu0
    %1423 = vmatprep.mubr.bf16.mxu0 0
    %1424 = vmatmul.mubr.bf16.gmra.mrb[0].mxu0 %v1333
    %v1425 = vpop.f32.mrb[0].mxu0
    %v1426 = vadd.f32 0.0, %v1425
    %v1427 = vpop.f32.mrb[0].mxu0
    %v1428 = vpop.f32.mrb[0].mxu0
    %v1429 = vadd.f32 0.0, %v1428
    %v1430 = vpop.f32.mrb[0].mxu0
    %1431 = vmatprep.mubr.bf16.mxu0 0
    %1432 = vmatmul.mubr.bf16.gmra.mrb[0].mxu0 %v1336
    %v1433 = vpop.f32.mrb[0].mxu0
    %v1434 = vadd.f32 0.0, %v1433
    %v1435 = vpop.f32.mrb[0].mxu0
    %v1436 = vpop.f32.mrb[0].mxu0
    %v1437 = vadd.f32 0.0, %v1436
    %v1438 = vpop.f32.mrb[0].mxu0
    %1439 = vmatprep.mubr.bf16.mxu0 0
    %1440 = vmatmul.mubr.bf16.gmra.mrb[0].mxu0 %v1339
    %v1441 = vpop.f32.mrb[0].mxu0
    %v1442 = vadd.f32 0.0, %v1441
    %v1443 = vpop.f32.mrb[0].mxu0
    %v1444 = vpop.f32.mrb[0].mxu0
    %v1445 = vadd.f32 0.0, %v1444
    %v1446 = vpop.f32.mrb[0].mxu0
    %1447 = vmatprep.mubr.bf16.mxu0 0
    %1448 = vmatmul.mubr.bf16.gmra.mrb[0].mxu0 %v1342
    %v1449 = vpop.f32.mrb[0].mxu0
    %v1450 = vadd.f32 0.0, %v1449
    %v1451 = vpop.f32.mrb[0].mxu0
    %v1452 = vpop.f32.mrb[0].mxu0
    %v1453 = vadd.f32 0.0, %v1452
    %v1454 = vpop.f32.mrb[0].mxu0
    %1455 = vmatprep.mubr.bf16.mxu0 0
    %1456 = vmatmul.mubr.bf16.gmra.mrb[0].mxu0 %v1345
    %v1457 = vpop.f32.mrb[0].mxu0
    %v1458 = vadd.f32 0.0, %v1457
    %v1459 = vpop.f32.mrb[0].mxu0
    %v1460 = vpop.f32.mrb[0].mxu0
    %v1461 = vadd.f32 0.0, %v1460
    %v1462 = vpop.f32.mrb[0].mxu0
    %1463 = vmatprep.mubr.bf16.mxu0 0
    %1464 = vmatmul.mubr.bf16.gmra.mrb[0].mxu0 %v1348
    %v1465 = vpop.f32.mrb[0].mxu0
    %v1466 = vadd.f32 0.0, %v1465
    %v1467 = vpop.f32.mrb[0].mxu0
    %v1468 = vpop.f32.mrb[0].mxu0
    %v1469 = vadd.f32 0.0, %v1468
    %v1470 = vpop.f32.mrb[0].mxu0
    %1471 = vmatprep.mubr.bf16.mxu0 0
    %1472 = vmatmul.mubr.bf16.gmra.mrb[0].mxu0 %v1351
    %v1473 = vpop.f32.mrb[0].mxu0
    %v1474 = vadd.f32 0.0, %v1473
    %v1475 = vpop.f32.mrb[0].mxu0
    %v1476 = vpop.f32.mrb[0].mxu0
    %v1477 = vadd.f32 0.0, %v1476
    %v1478 = vpop.f32.mrb[0].mxu0
    %1479 = vmatprep.mubr.bf16.mxu0 0
    %1480 = vmatmul.mubr.bf16.gmra.mrb[0].mxu0 %v1354
    %v1481 = vpop.f32.mrb[0].mxu0
    %v1482 = vadd.f32 0.0, %v1481
    %v1483 = vpop.f32.mrb[0].mxu0
    %v1484 = vpop.f32.mrb[0].mxu0
    %v1485 = vadd.f32 0.0, %v1484
    %v1486 = vpop.f32.mrb[0].mxu0
    %1487 = vmatprep.mubr.bf16.mxu0 0
    %1488 = vmatmul.mubr.bf16.gmra.mrb[0].mxu0 %v1357
    %v1489 = vpop.f32.mrb[0].mxu0
    %v1490 = vadd.f32 0.0, %v1489
    %v1491 = vpop.f32.mrb[0].mxu0
    %v1492 = vpop.f32.mrb[0].mxu0
    %v1493 = vadd.f32 0.0, %v1492
    %v1494 = vpop.f32.mrb[0].mxu0
    %1495 = vmatprep.mubr.bf16.mxu0 0
    %1496 = vmatmul.mubr.bf16.gmra.mrb[0].mxu0 %v1360
    %v1497 = vpop.f32.mrb[0].mxu0
    %v1498 = vadd.f32 0.0, %v1497
    %v1499 = vpop.f32.mrb[0].mxu0
    %v1500 = vpop.f32.mrb[0].mxu0
    %v1501 = vadd.f32 0.0, %v1500
    %v1502 = vpop.f32.mrb[0].mxu0
    %1503 = vmatprep.mubr.bf16.mxu0 0
    %1504 = vmatmul.mubr.bf16.gmra.mrb[0].mxu0 %v1363
    %v1505 = vpop.f32.mrb[0].mxu0
    %v1506 = vadd.f32 0.0, %v1505
    %v1507 = vpop.f32.mrb[0].mxu0
    %v1508 = vpop.f32.mrb[0].mxu0
    %v1509 = vadd.f32 0.0, %v1508
    %v1510 = vpop.f32.mrb[0].mxu0
    %1511 = vmatprep.mubr.bf16.mxu0 0
    %1512 = vmatmul.mubr.bf16.gmra.mrb[0].mxu0 %v1366
    %v1513 = vpop.f32.mrb[0].mxu0
    %v1514 = vadd.f32 0.0, %v1513
    %v1515 = vpop.f32.mrb[0].mxu0
    %v1516 = vpop.f32.mrb[0].mxu0
    %v1517 = vadd.f32 0.0, %v1516
    %v1518 = vpop.f32.mrb[0].mxu0
    %1519 = vmatprep.mubr.bf16.mxu0 0
    %1520 = vmatmul.mubr.bf16.gmra.mrb[0].mxu0 %v1369
    %v1521 = vpop.f32.mrb[0].mxu0
    %v1522 = vadd.f32 0.0, %v1521
    %v1523 = vpop.f32.mrb[0].mxu0
    %v1524 = vpop.f32.mrb[0].mxu0
    %v1525 = vadd.f32 0.0, %v1524
    %v1526 = vpop.f32.mrb[0].mxu0
    %1527 = vmatprep.mubr.bf16.mxu0 0
    %1528 = vmatmul.mubr.bf16.gmra.mrb[0].mxu0 %v1372
    %v1529 = vpop.f32.mrb[0].mxu0
    %v1530 = vadd.f32 0.0, %v1529
    %v1531 = vpop.f32.mrb[0].mxu0
    %v1532 = vpop.f32.mrb[0].mxu0
    %v1533 = vadd.f32 0.0, %v1532
    %v1534 = vpop.f32.mrb[0].mxu0
    %1535 = vmatprep.mubr.bf16.mxu0 0
    %1536 = vmatmul.mubr.bf16.gmra.mrb[0].mxu0 %v1375
    %v1537 = vpop.f32.mrb[0].mxu0
    %v1538 = vadd.f32 0.0, %v1537
    %v1539 = vpop.f32.mrb[0].mxu0
    %v1540 = vpop.f32.mrb[0].mxu0
    %v1541 = vadd.f32 0.0, %v1540
    %v1542 = vpop.f32.mrb[0].mxu0
    %1543 = vmatprep.mubr.bf16.mxu0 0
    %1544 = vmatmul.mubr.bf16.gmra.mrb[0].mxu0 %v1378
    %v1545 = vpop.f32.mrb[0].mxu0
    %v1546 = vadd.f32 0.0, %v1545
    %v1547 = vpop.f32.mrb[0].mxu0
    %v1548 = vpop.f32.mrb[0].mxu0
    %v1549 = vadd.f32 0.0, %v1548
    %v1550 = vpop.f32.mrb[0].mxu0
    %1551 = vmatprep.mubr.bf16.mxu0 0
    %1552 = vmatmul.mubr.bf16.gmra.mrb[0].mxu0 %v1381
    %v1553 = vpop.f32.mrb[0].mxu0
    %v1554 = vadd.f32 0.0, %v1553
    %v1555 = vpop.f32.mrb[0].mxu0
    %v1556 = vpop.f32.mrb[0].mxu0
    %v1557 = vadd.f32 0.0, %v1556
    %v1558 = vpop.f32.mrb[0].mxu0
    %1559 = vdwg.mxu0
    %v1560 = vpack.c.bf16 %v1421, %v1418
    %v1561 = vpack.c.bf16 %v1429, %v1426
    %v1562 = vpack.c.bf16 %v1437, %v1434
    %v1563 = vpack.c.bf16 %v1445, %v1442
    %v1564 = vpack.c.bf16 %v1453, %v1450
    %v1565 = vpack.c.bf16 %v1461, %v1458
    %v1566 = vpack.c.bf16 %v1469, %v1466
    %v1567 = vpack.c.bf16 %v1477, %v1474
    %v1568 = vpack.c.bf16 %v1485, %v1482
    %v1569 = vpack.c.bf16 %v1493, %v1490
    %v1570 = vpack.c.bf16 %v1501, %v1498
    %v1571 = vpack.c.bf16 %v1509, %v1506
    %v1572 = vpack.c.bf16 %v1517, %v1514
    %v1573 = vpack.c.bf16 %v1525, %v1522
    %v1574 = vpack.c.bf16 %v1533, %v1530
    %v1575 = vpack.c.bf16 %v1541, %v1538
    %v1576 = vpack.c.bf16 %v1549, %v1546
    %v1577 = vpack.c.bf16 %v1557, %v1554
    %v1578 = vld [vmem:[%s2 + $0x58] sm:$0xf]
    %v1579 = vld [vmem:[%s2 + $0x5c] sm:$0xf]
    %v1580 = vld [vmem:[%s2 + $0x60] sm:$0xf]
    %v1581 = vld [vmem:[%s2 + $0x64] sm:$0xf]
    %v1584 = vunpack.c.l.b16 %v1580
    %v1585 = vunpack.c.l.b16 %v1581
    %v1586 = vpack.c.b16 %v1585, %v1584
    %v1589 = vsel %vm618, %v1562, 0
    %v1592 = vsel %vm618, %v1563, 0
    %1594 = vmatprep.subr.bf16.mxu0 0
    %1595 = vmatpush1.bf16.msra.mxu0 %v1586
    %1596 = vmatprep.subr.bf16.mxu0 0
    %1597 = vmatpush1.bf16.msra.mxu0 0
    %1598 = vmatprep.subr.bf16.mxu0 0
    %1599 = vmatpush1.bf16.msra.mxu0 0
    %1600 = vmatprep.subr.bf16.mxu0 0
    %1601 = vmatpush1.bf16.msra.mxu0 0
    %1602 = vmatprep.subr.bf16.mxu0 0
    %1603 = vmatpush1.bf16.msra.mxu0 0
    %1604 = vmatprep.subr.bf16.mxu0 0
    %1605 = vmatpush1.bf16.msra.mxu0 0
    %1606 = vmatprep.subr.bf16.mxu0 0
    %1607 = vmatpush1.bf16.msra.mxu0 0
    %1608 = vmatprep.subr.bf16.mxu0 0
    %1609 = vmatpush1.bf16.msra.mxu0 0
    %1610 = vmatprep.subr.bf16.mxu0 0
    %1611 = vmatpush1.bf16.msra.mxu0 0
    %1612 = vmatprep.subr.bf16.mxu0 0
    %1613 = vmatpush1.bf16.msra.mxu0 0
    %1614 = vmatprep.subr.bf16.mxu0 0
    %1615 = vmatpush1.bf16.msra.mxu0 0
    %1616 = vmatprep.subr.bf16.mxu0 0
    %1617 = vmatpush1.bf16.msra.mxu0 0
    %1618 = vmatprep.subr.bf16.mxu0 0
    %1619 = vmatpush1.bf16.msra.mxu0 0
    %1620 = vmatprep.subr.bf16.mxu0 0
    %1621 = vmatpush1.bf16.msra.mxu0 0
    %1622 = vmatprep.subr.bf16.mxu0 0
    %1623 = vmatpush1.bf16.msra.mxu0 0
    %1624 = vmatprep.subr.bf16.mxu0 0
    %1625 = vmatpush1.bf16.msra.mxu0 0
    %1626 = vmatprep.mubr.bf16.mxu0 0
    %1627 = vmatmul.mubr.bf16.gmra.mrb[0].mxu0 %v1589
    %v1628 = vpop.f32.mrb[0].mxu0
    %v1629 = vadd.f32 0.0, %v1628
    %v1630 = vpop.f32.mrb[0].mxu0
    %v1631 = vpop.f32.mrb[0].mxu0
    %v1632 = vadd.f32 0.0, %v1631
    %v1633 = vpop.f32.mrb[0].mxu0
    %1634 = vmatprep.mubr.bf16.mxu0 0
    %1635 = vmatmul.mubr.bf16.gmra.mrb[0].mxu0 %v1592
    %v1636 = vpop.f32.mrb[0].mxu0
    %v1637 = vadd.f32 0.0, %v1636
    %v1638 = vpop.f32.mrb[0].mxu0
    %v1639 = vpop.f32.mrb[0].mxu0
    %v1640 = vadd.f32 0.0, %v1639
    %v1641 = vpop.f32.mrb[0].mxu0
    %1642 = vdwg.mxu0
    %v1645 = vunpack.c.l.b16 %v1578
    %v1646 = vunpack.c.l.b16 %v1579
    %v1647 = vpack.c.b16 %v1646, %v1645
    %v1650 = vsel %vm618, %v1560, 0
    %v1653 = vsel %vm618, %v1561, 0
    %1655 = vmatprep.subr.bf16.mxu0 0
    %1656 = vmatpush1.bf16.msra.mxu0 %v1647
    %1657 = vmatprep.subr.bf16.mxu0 0
    %1658 = vmatpush1.bf16.msra.mxu0 0
    %1659 = vmatprep.subr.bf16.mxu0 0
    %1660 = vmatpush1.bf16.msra.mxu0 0
    %1661 = vmatprep.subr.bf16.mxu0 0
    %1662 = vmatpush1.bf16.msra.mxu0 0
    %1663 = vmatprep.subr.bf16.mxu0 0
    %1664 = vmatpush1.bf16.msra.mxu0 0
    %1665 = vmatprep.subr.bf16.mxu0 0
    %1666 = vmatpush1.bf16.msra.mxu0 0
    %1667 = vmatprep.subr.bf16.mxu0 0
    %1668 = vmatpush1.bf16.msra.mxu0 0
    %1669 = vmatprep.subr.bf16.mxu0 0
    %1670 = vmatpush1.bf16.msra.mxu0 0
    %1671 = vmatprep.subr.bf16.mxu0 0
    %1672 = vmatpush1.bf16.msra.mxu0 0
    %1673 = vmatprep.subr.bf16.mxu0 0
    %1674 = vmatpush1.bf16.msra.mxu0 0
    %1675 = vmatprep.subr.bf16.mxu0 0
    %1676 = vmatpush1.bf16.msra.mxu0 0
    %1677 = vmatprep.subr.bf16.mxu0 0
    %1678 = vmatpush1.bf16.msra.mxu0 0
    %1679 = vmatprep.subr.bf16.mxu0 0
    %1680 = vmatpush1.bf16.msra.mxu0 0
    %1681 = vmatprep.subr.bf16.mxu0 0
    %1682 = vmatpush1.bf16.msra.mxu0 0
    %1683 = vmatprep.subr.bf16.mxu0 0
    %1684 = vmatpush1.bf16.msra.mxu0 0
    %1685 = vmatprep.subr.bf16.mxu0 0
    %1686 = vmatpush1.bf16.msra.mxu0 0
    %1687 = vmatprep.mubr.bf16.mxu0 0
    %1688 = vmatmul.mubr.bf16.gmra.mrb[0].mxu0 %v1650
    %v1689 = vpop.f32.mrb[0].mxu0
    %v1690 = vadd.f32 %v1629, %v1689
    %v1691 = vpop.f32.mrb[0].mxu0
    %v1692 = vpop.f32.mrb[0].mxu0
    %v1693 = vadd.f32 %v1632, %v1692
    %v1694 = vpop.f32.mrb[0].mxu0
    %1695 = vmatprep.mubr.bf16.mxu0 0
    %1696 = vmatmul.mubr.bf16.gmra.mrb[0].mxu0 %v1653
    %v1697 = vpop.f32.mrb[0].mxu0
    %v1698 = vadd.f32 %v1637, %v1697
    %v1699 = vpop.f32.mrb[0].mxu0
    %v1700 = vpop.f32.mrb[0].mxu0
    %v1701 = vadd.f32 %v1640, %v1700
    %v1702 = vpop.f32.mrb[0].mxu0
    %1703 = vdwg.mxu0
    %v1704 = vld [vmem:[%s2 + $0x68] sm:$0xf]
    %v1705 = vld [vmem:[%s2 + $0x6c] sm:$0xf]
    %v1706 = vld [vmem:[%s2 + $0x70] sm:$0xf]
    %v1707 = vld [vmem:[%s2 + $0x74] sm:$0xf]
    %v1710 = vunpack.c.l.b16 %v1706
    %v1711 = vunpack.c.l.b16 %v1707
    %v1712 = vpack.c.b16 %v1711, %v1710
    %v1715 = vsel %vm618, %v1566, 0
    %v1718 = vsel %vm618, %v1567, 0
    %1720 = vmatprep.subr.bf16.mxu0 0
    %1721 = vmatpush1.bf16.msra.mxu0 %v1712
    %1722 = vmatprep.subr.bf16.mxu0 0
    %1723 = vmatpush1.bf16.msra.mxu0 0
    %1724 = vmatprep.subr.bf16.mxu0 0
    %1725 = vmatpush1.bf16.msra.mxu0 0
    %1726 = vmatprep.subr.bf16.mxu0 0
    %1727 = vmatpush1.bf16.msra.mxu0 0
    %1728 = vmatprep.subr.bf16.mxu0 0
    %1729 = vmatpush1.bf16.msra.mxu0 0
    %1730 = vmatprep.subr.bf16.mxu0 0
    %1731 = vmatpush1.bf16.msra.mxu0 0
    %1732 = vmatprep.subr.bf16.mxu0 0
    %1733 = vmatpush1.bf16.msra.mxu0 0
    %1734 = vmatprep.subr.bf16.mxu0 0
    %1735 = vmatpush1.bf16.msra.mxu0 0
    %1736 = vmatprep.subr.bf16.mxu0 0
    %1737 = vmatpush1.bf16.msra.mxu0 0
    %1738 = vmatprep.subr.bf16.mxu0 0
    %1739 = vmatpush1.bf16.msra.mxu0 0
    %1740 = vmatprep.subr.bf16.mxu0 0
    %1741 = vmatpush1.bf16.msra.mxu0 0
    %1742 = vmatprep.subr.bf16.mxu0 0
    %1743 = vmatpush1.bf16.msra.mxu0 0
    %1744 = vmatprep.subr.bf16.mxu0 0
    %1745 = vmatpush1.bf16.msra.mxu0 0
    %1746 = vmatprep.subr.bf16.mxu0 0
    %1747 = vmatpush1.bf16.msra.mxu0 0
    %1748 = vmatprep.subr.bf16.mxu0 0
    %1749 = vmatpush1.bf16.msra.mxu0 0
    %1750 = vmatprep.subr.bf16.mxu0 0
    %1751 = vmatpush1.bf16.msra.mxu0 0
    %1752 = vmatprep.mubr.bf16.mxu0 0
    %1753 = vmatmul.mubr.bf16.gmra.mrb[0].mxu0 %v1715
    %v1754 = vpop.f32.mrb[0].mxu0
    %v1755 = vadd.f32 0.0, %v1754
    %v1756 = vpop.f32.mrb[0].mxu0
    %v1757 = vpop.f32.mrb[0].mxu0
    %v1758 = vadd.f32 0.0, %v1757
    %v1759 = vpop.f32.mrb[0].mxu0
    %1760 = vmatprep.mubr.bf16.mxu0 0
    %1761 = vmatmul.mubr.bf16.gmra.mrb[0].mxu0 %v1718
    %v1762 = vpop.f32.mrb[0].mxu0
    %v1763 = vadd.f32 0.0, %v1762
    %v1764 = vpop.f32.mrb[0].mxu0
    %v1765 = vpop.f32.mrb[0].mxu0
    %v1766 = vadd.f32 0.0, %v1765
    %v1767 = vpop.f32.mrb[0].mxu0
    %1768 = vdwg.mxu0
    %v1771 = vunpack.c.l.b16 %v1704
    %v1772 = vunpack.c.l.b16 %v1705
    %v1773 = vpack.c.b16 %v1772, %v1771
    %v1776 = vsel %vm618, %v1564, 0
    %v1779 = vsel %vm618, %v1565, 0
    %1781 = vmatprep.subr.bf16.mxu0 0
    %1782 = vmatpush1.bf16.msra.mxu0 %v1773
    %1783 = vmatprep.subr.bf16.mxu0 0
    %1784 = vmatpush1.bf16.msra.mxu0 0
    %1785 = vmatprep.subr.bf16.mxu0 0
    %1786 = vmatpush1.bf16.msra.mxu0 0
    %1787 = vmatprep.subr.bf16.mxu0 0
    %1788 = vmatpush1.bf16.msra.mxu0 0
    %1789 = vmatprep.subr.bf16.mxu0 0
    %1790 = vmatpush1.bf16.msra.mxu0 0
    %1791 = vmatprep.subr.bf16.mxu0 0
    %1792 = vmatpush1.bf16.msra.mxu0 0
    %1793 = vmatprep.subr.bf16.mxu0 0
    %1794 = vmatpush1.bf16.msra.mxu0 0
    %1795 = vmatprep.subr.bf16.mxu0 0
    %1796 = vmatpush1.bf16.msra.mxu0 0
    %1797 = vmatprep.subr.bf16.mxu0 0
    %1798 = vmatpush1.bf16.msra.mxu0 0
    %1799 = vmatprep.subr.bf16.mxu0 0
    %1800 = vmatpush1.bf16.msra.mxu0 0
    %1801 = vmatprep.subr.bf16.mxu0 0
    %1802 = vmatpush1.bf16.msra.mxu0 0
    %1803 = vmatprep.subr.bf16.mxu0 0
    %1804 = vmatpush1.bf16.msra.mxu0 0
    %1805 = vmatprep.subr.bf16.mxu0 0
    %1806 = vmatpush1.bf16.msra.mxu0 0
    %1807 = vmatprep.subr.bf16.mxu0 0
    %1808 = vmatpush1.bf16.msra.mxu0 0
    %1809 = vmatprep.subr.bf16.mxu0 0
    %1810 = vmatpush1.bf16.msra.mxu0 0
    %1811 = vmatprep.subr.bf16.mxu0 0
    %1812 = vmatpush1.bf16.msra.mxu0 0
    %1813 = vmatprep.mubr.bf16.mxu0 0
    %1814 = vmatmul.mubr.bf16.gmra.mrb[0].mxu0 %v1776
    %v1815 = vpop.f32.mrb[0].mxu0
    %v1816 = vadd.f32 %v1755, %v1815
    %v1817 = vpop.f32.mrb[0].mxu0
    %v1818 = vpop.f32.mrb[0].mxu0
    %v1819 = vadd.f32 %v1758, %v1818
    %v1820 = vpop.f32.mrb[0].mxu0
    %1821 = vmatprep.mubr.bf16.mxu0 0
    %1822 = vmatmul.mubr.bf16.gmra.mrb[0].mxu0 %v1779
    %v1823 = vpop.f32.mrb[0].mxu0
    %v1824 = vadd.f32 %v1763, %v1823
    %v1825 = vpop.f32.mrb[0].mxu0
    %v1826 = vpop.f32.mrb[0].mxu0
    %v1827 = vadd.f32 %v1766, %v1826
    %v1828 = vpop.f32.mrb[0].mxu0
    %1829 = vdwg.mxu0
    %v1830 = vld [vmem:[%s2 + $0x78] sm:$0xf]
    %v1831 = vld [vmem:[%s2 + $0x7c] sm:$0xf]
    %v1832 = vld [vmem:[%s2 + $0x80] sm:$0xf]
    %v1833 = vld [vmem:[%s2 + $0x84] sm:$0xf]
    %v1836 = vunpack.c.l.b16 %v1832
    %v1837 = vunpack.c.l.b16 %v1833
    %v1838 = vpack.c.b16 %v1837, %v1836
    %v1841 = vsel %vm618, %v1570, 0
    %v1844 = vsel %vm618, %v1571, 0
    %1846 = vmatprep.subr.bf16.mxu0 0
    %1847 = vmatpush1.bf16.msra.mxu0 %v1838
    %1848 = vmatprep.subr.bf16.mxu0 0
    %1849 = vmatpush1.bf16.msra.mxu0 0
    %1850 = vmatprep.subr.bf16.mxu0 0
    %1851 = vmatpush1.bf16.msra.mxu0 0
    %1852 = vmatprep.subr.bf16.mxu0 0
    %1853 = vmatpush1.bf16.msra.mxu0 0
    %1854 = vmatprep.subr.bf16.mxu0 0
    %1855 = vmatpush1.bf16.msra.mxu0 0
    %1856 = vmatprep.subr.bf16.mxu0 0
    %1857 = vmatpush1.bf16.msra.mxu0 0
    %1858 = vmatprep.subr.bf16.mxu0 0
    %1859 = vmatpush1.bf16.msra.mxu0 0
    %1860 = vmatprep.subr.bf16.mxu0 0
    %1861 = vmatpush1.bf16.msra.mxu0 0
    %1862 = vmatprep.subr.bf16.mxu0 0
    %1863 = vmatpush1.bf16.msra.mxu0 0
    %1864 = vmatprep.subr.bf16.mxu0 0
    %1865 = vmatpush1.bf16.msra.mxu0 0
    %1866 = vmatprep.subr.bf16.mxu0 0
    %1867 = vmatpush1.bf16.msra.mxu0 0
    %1868 = vmatprep.subr.bf16.mxu0 0
    %1869 = vmatpush1.bf16.msra.mxu0 0
    %1870 = vmatprep.subr.bf16.mxu0 0
    %1871 = vmatpush1.bf16.msra.mxu0 0
    %1872 = vmatprep.subr.bf16.mxu0 0
    %1873 = vmatpush1.bf16.msra.mxu0 0
    %1874 = vmatprep.subr.bf16.mxu0 0
    %1875 = vmatpush1.bf16.msra.mxu0 0
    %1876 = vmatprep.subr.bf16.mxu0 0
    %1877 = vmatpush1.bf16.msra.mxu0 0
    %1878 = vmatprep.mubr.bf16.mxu0 0
    %1879 = vmatmul.mubr.bf16.gmra.mrb[0].mxu0 %v1841
    %v1880 = vpop.f32.mrb[0].mxu0
    %v1881 = vadd.f32 0.0, %v1880
    %v1882 = vpop.f32.mrb[0].mxu0
    %v1883 = vpop.f32.mrb[0].mxu0
    %v1884 = vadd.f32 0.0, %v1883
    %v1885 = vpop.f32.mrb[0].mxu0
    %1886 = vmatprep.mubr.bf16.mxu0 0
    %1887 = vmatmul.mubr.bf16.gmra.mrb[0].mxu0 %v1844
    %v1888 = vpop.f32.mrb[0].mxu0
    %v1889 = vadd.f32 0.0, %v1888
    %v1890 = vpop.f32.mrb[0].mxu0
    %v1891 = vpop.f32.mrb[0].mxu0
    %v1892 = vadd.f32 0.0, %v1891
    %v1893 = vpop.f32.mrb[0].mxu0
    %1894 = vdwg.mxu0
    %v1897 = vunpack.c.l.b16 %v1830
    %v1898 = vunpack.c.l.b16 %v1831
    %v1899 = vpack.c.b16 %v1898, %v1897
    %v1902 = vsel %vm618, %v1568, 0
    %v1905 = vsel %vm618, %v1569, 0
    %1907 = vmatprep.subr.bf16.mxu0 0
    %1908 = vmatpush1.bf16.msra.mxu0 %v1899
    %1909 = vmatprep.subr.bf16.mxu0 0
    %1910 = vmatpush1.bf16.msra.mxu0 0
    %1911 = vmatprep.subr.bf16.mxu0 0
    %1912 = vmatpush1.bf16.msra.mxu0 0
    %1913 = vmatprep.subr.bf16.mxu0 0
    %1914 = vmatpush1.bf16.msra.mxu0 0
    %1915 = vmatprep.subr.bf16.mxu0 0
    %1916 = vmatpush1.bf16.msra.mxu0 0
    %1917 = vmatprep.subr.bf16.mxu0 0
    %1918 = vmatpush1.bf16.msra.mxu0 0
    %1919 = vmatprep.subr.bf16.mxu0 0
    %1920 = vmatpush1.bf16.msra.mxu0 0
    %1921 = vmatprep.subr.bf16.mxu0 0
    %1922 = vmatpush1.bf16.msra.mxu0 0
    %1923 = vmatprep.subr.bf16.mxu0 0
    %1924 = vmatpush1.bf16.msra.mxu0 0
    %1925 = vmatprep.subr.bf16.mxu0 0
    %1926 = vmatpush1.bf16.msra.mxu0 0
    %1927 = vmatprep.subr.bf16.mxu0 0
    %1928 = vmatpush1.bf16.msra.mxu0 0
    %1929 = vmatprep.subr.bf16.mxu0 0
    %1930 = vmatpush1.bf16.msra.mxu0 0
    %1931 = vmatprep.subr.bf16.mxu0 0
    %1932 = vmatpush1.bf16.msra.mxu0 0
    %1933 = vmatprep.subr.bf16.mxu0 0
    %1934 = vmatpush1.bf16.msra.mxu0 0
    %1935 = vmatprep.subr.bf16.mxu0 0
    %1936 = vmatpush1.bf16.msra.mxu0 0
    %1937 = vmatprep.subr.bf16.mxu0 0
    %1938 = vmatpush1.bf16.msra.mxu0 0
    %1939 = vmatprep.mubr.bf16.mxu0 0
    %1940 = vmatmul.mubr.bf16.gmra.mrb[0].mxu0 %v1902
    %v1941 = vpop.f32.mrb[0].mxu0
    %v1942 = vadd.f32 %v1881, %v1941
    %v1943 = vpop.f32.mrb[0].mxu0
    %v1944 = vpop.f32.mrb[0].mxu0
    %v1945 = vadd.f32 %v1884, %v1944
    %v1946 = vpop.f32.mrb[0].mxu0
    %1947 = vmatprep.mubr.bf16.mxu0 0
    %1948 = vmatmul.mubr.bf16.gmra.mrb[0].mxu0 %v1905
    %v1949 = vpop.f32.mrb[0].mxu0
    %v1950 = vadd.f32 %v1889, %v1949
    %v1951 = vpop.f32.mrb[0].mxu0
    %v1952 = vpop.f32.mrb[0].mxu0
    %v1953 = vadd.f32 %v1892, %v1952
    %v1954 = vpop.f32.mrb[0].mxu0
    %1955 = vdwg.mxu0
    %v1956 = vld [vmem:[%s2 + $0x88] sm:$0xf]
    %v1957 = vld [vmem:[%s2 + $0x8c] sm:$0xf]
    %v1958 = vld [vmem:[%s2 + $0x90] sm:$0xf]
    %v1959 = vld [vmem:[%s2 + $0x94] sm:$0xf]
    %v1962 = vunpack.c.l.b16 %v1958
    %v1963 = vunpack.c.l.b16 %v1959
    %v1964 = vpack.c.b16 %v1963, %v1962
    %v1967 = vsel %vm618, %v1574, 0
    %v1970 = vsel %vm618, %v1575, 0
    %1972 = vmatprep.subr.bf16.mxu0 0
    %1973 = vmatpush1.bf16.msra.mxu0 %v1964
    %1974 = vmatprep.subr.bf16.mxu0 0
    %1975 = vmatpush1.bf16.msra.mxu0 0
    %1976 = vmatprep.subr.bf16.mxu0 0
    %1977 = vmatpush1.bf16.msra.mxu0 0
    %1978 = vmatprep.subr.bf16.mxu0 0
    %1979 = vmatpush1.bf16.msra.mxu0 0
    %1980 = vmatprep.subr.bf16.mxu0 0
    %1981 = vmatpush1.bf16.msra.mxu0 0
    %1982 = vmatprep.subr.bf16.mxu0 0
    %1983 = vmatpush1.bf16.msra.mxu0 0
    %1984 = vmatprep.subr.bf16.mxu0 0
    %1985 = vmatpush1.bf16.msra.mxu0 0
    %1986 = vmatprep.subr.bf16.mxu0 0
    %1987 = vmatpush1.bf16.msra.mxu0 0
    %1988 = vmatprep.subr.bf16.mxu0 0
    %1989 = vmatpush1.bf16.msra.mxu0 0
    %1990 = vmatprep.subr.bf16.mxu0 0
    %1991 = vmatpush1.bf16.msra.mxu0 0
    %1992 = vmatprep.subr.bf16.mxu0 0
    %1993 = vmatpush1.bf16.msra.mxu0 0
    %1994 = vmatprep.subr.bf16.mxu0 0
    %1995 = vmatpush1.bf16.msra.mxu0 0
    %1996 = vmatprep.subr.bf16.mxu0 0
    %1997 = vmatpush1.bf16.msra.mxu0 0
    %1998 = vmatprep.subr.bf16.mxu0 0
    %1999 = vmatpush1.bf16.msra.mxu0 0
    %2000 = vmatprep.subr.bf16.mxu0 0
    %2001 = vmatpush1.bf16.msra.mxu0 0
    %2002 = vmatprep.subr.bf16.mxu0 0
    %2003 = vmatpush1.bf16.msra.mxu0 0
    %2004 = vmatprep.mubr.bf16.mxu0 0
    %2005 = vmatmul.mubr.bf16.gmra.mrb[0].mxu0 %v1967
    %v2006 = vpop.f32.mrb[0].mxu0
    %v2007 = vadd.f32 0.0, %v2006
    %v2008 = vpop.f32.mrb[0].mxu0
    %v2009 = vpop.f32.mrb[0].mxu0
    %v2010 = vadd.f32 0.0, %v2009
    %v2011 = vpop.f32.mrb[0].mxu0
    %2012 = vmatprep.mubr.bf16.mxu0 0
    %2013 = vmatmul.mubr.bf16.gmra.mrb[0].mxu0 %v1970
    %v2014 = vpop.f32.mrb[0].mxu0
    %v2015 = vadd.f32 0.0, %v2014
    %v2016 = vpop.f32.mrb[0].mxu0
    %v2017 = vpop.f32.mrb[0].mxu0
    %v2018 = vadd.f32 0.0, %v2017
    %v2019 = vpop.f32.mrb[0].mxu0
    %2020 = vdwg.mxu0
    %v2023 = vunpack.c.l.b16 %v1956
    %v2024 = vunpack.c.l.b16 %v1957
    %v2025 = vpack.c.b16 %v2024, %v2023
    %v2028 = vsel %vm618, %v1572, 0
    %v2031 = vsel %vm618, %v1573, 0
    %2033 = vmatprep.subr.bf16.mxu0 0
    %2034 = vmatpush1.bf16.msra.mxu0 %v2025
    %2035 = vmatprep.subr.bf16.mxu0 0
    %2036 = vmatpush1.bf16.msra.mxu0 0
    %2037 = vmatprep.subr.bf16.mxu0 0
    %2038 = vmatpush1.bf16.msra.mxu0 0
    %2039 = vmatprep.subr.bf16.mxu0 0
    %2040 = vmatpush1.bf16.msra.mxu0 0
    %2041 = vmatprep.subr.bf16.mxu0 0
    %2042 = vmatpush1.bf16.msra.mxu0 0
    %2043 = vmatprep.subr.bf16.mxu0 0
    %2044 = vmatpush1.bf16.msra.mxu0 0
    %2045 = vmatprep.subr.bf16.mxu0 0
    %2046 = vmatpush1.bf16.msra.mxu0 0
    %2047 = vmatprep.subr.bf16.mxu0 0
    %2048 = vmatpush1.bf16.msra.mxu0 0
    %2049 = vmatprep.subr.bf16.mxu0 0
    %2050 = vmatpush1.bf16.msra.mxu0 0
    %2051 = vmatprep.subr.bf16.mxu0 0
    %2052 = vmatpush1.bf16.msra.mxu0 0
    %2053 = vmatprep.subr.bf16.mxu0 0
    %2054 = vmatpush1.bf16.msra.mxu0 0
    %2055 = vmatprep.subr.bf16.mxu0 0
    %2056 = vmatpush1.bf16.msra.mxu0 0
    %2057 = vmatprep.subr.bf16.mxu0 0
    %2058 = vmatpush1.bf16.msra.mxu0 0
    %2059 = vmatprep.subr.bf16.mxu0 0
    %2060 = vmatpush1.bf16.msra.mxu0 0
    %2061 = vmatprep.subr.bf16.mxu0 0
    %2062 = vmatpush1.bf16.msra.mxu0 0
    %2063 = vmatprep.subr.bf16.mxu0 0
    %2064 = vmatpush1.bf16.msra.mxu0 0
    %2065 = vmatprep.mubr.bf16.mxu0 0
    %2066 = vmatmul.mubr.bf16.gmra.mrb[0].mxu0 %v2028
    %v2067 = vpop.f32.mrb[0].mxu0
    %v2068 = vadd.f32 %v2007, %v2067
    %v2069 = vpop.f32.mrb[0].mxu0
    %v2070 = vpop.f32.mrb[0].mxu0
    %v2071 = vadd.f32 %v2010, %v2070
    %v2072 = vpop.f32.mrb[0].mxu0
    %2073 = vmatprep.mubr.bf16.mxu0 0
    %2074 = vmatmul.mubr.bf16.gmra.mrb[0].mxu0 %v2031
    %v2075 = vpop.f32.mrb[0].mxu0
    %v2076 = vadd.f32 %v2015, %v2075
    %v2077 = vpop.f32.mrb[0].mxu0
    %v2078 = vpop.f32.mrb[0].mxu0
    %v2079 = vadd.f32 %v2018, %v2078
    %v2080 = vpop.f32.mrb[0].mxu0
    %2081 = vdwg.mxu0
    %v2082 = vadd.f32 %v1690, %v1816
    %v2083 = vadd.f32 %v1693, %v1819
    %v2084 = vadd.f32 %v1698, %v1824
    %v2085 = vadd.f32 %v1701, %v1827
    %v2086 = vadd.f32 %v1942, %v2068
    %v2087 = vadd.f32 %v1945, %v2071
    %v2088 = vadd.f32 %v1950, %v2076
    %v2089 = vadd.f32 %v1953, %v2079
    %v2090 = vadd.f32 %v2082, %v2086
    %v2091 = vadd.f32 %v2083, %v2087
    %v2092 = vadd.f32 %v2084, %v2088
    %v2093 = vadd.f32 %v2085, %v2089
    %v2094 = vld [vmem:[%s2 + $0x98] sm:$0xf]
    %v2095 = vld [vmem:[%s2 + $0x9c] sm:$0xf]
    %v2098 = vunpack.c.l.b16 %v2094
    %v2099 = vunpack.c.l.b16 %v2095
    %v2100 = vpack.c.b16 %v2099, %v2098
    %v2103 = vsel %vm618, %v1576, 0
    %v2106 = vsel %vm618, %v1577, 0
    %2108 = vmatprep.subr.bf16.mxu0 0
    %2109 = vmatpush1.bf16.msra.mxu0 %v2100
    %2110 = vmatprep.subr.bf16.mxu0 0
    %2111 = vmatpush1.bf16.msra.mxu0 0
    %2112 = vmatprep.subr.bf16.mxu0 0
    %2113 = vmatpush1.bf16.msra.mxu0 0
    %2114 = vmatprep.subr.bf16.mxu0 0
    %2115 = vmatpush1.bf16.msra.mxu0 0
    %2116 = vmatprep.subr.bf16.mxu0 0
    %2117 = vmatpush1.bf16.msra.mxu0 0
    %2118 = vmatprep.subr.bf16.mxu0 0
    %2119 = vmatpush1.bf16.msra.mxu0 0
    %2120 = vmatprep.subr.bf16.mxu0 0
    %2121 = vmatpush1.bf16.msra.mxu0 0
    %2122 = vmatprep.subr.bf16.mxu0 0
    %2123 = vmatpush1.bf16.msra.mxu0 0
    %2124 = vmatprep.subr.bf16.mxu0 0
    %2125 = vmatpush1.bf16.msra.mxu0 0
    %2126 = vmatprep.subr.bf16.mxu0 0
    %2127 = vmatpush1.bf16.msra.mxu0 0
    %2128 = vmatprep.subr.bf16.mxu0 0
    %2129 = vmatpush1.bf16.msra.mxu0 0
    %2130 = vmatprep.subr.bf16.mxu0 0
    %2131 = vmatpush1.bf16.msra.mxu0 0
    %2132 = vmatprep.subr.bf16.mxu0 0
    %2133 = vmatpush1.bf16.msra.mxu0 0
    %2134 = vmatprep.subr.bf16.mxu0 0
    %2135 = vmatpush1.bf16.msra.mxu0 0
    %2136 = vmatprep.subr.bf16.mxu0 0
    %2137 = vmatpush1.bf16.msra.mxu0 0
    %2138 = vmatprep.subr.bf16.mxu0 0
    %2139 = vmatpush1.bf16.msra.mxu0 0
    %2140 = vmatprep.mubr.bf16.mxu0 0
    %2141 = vmatmul.mubr.bf16.gmra.mrb[0].mxu0 %v2103
    %v2142 = vpop.f32.mrb[0].mxu0
    %v2143 = vadd.f32 0.0, %v2142
    %v2144 = vpop.f32.mrb[0].mxu0
    %v2145 = vpop.f32.mrb[0].mxu0
    %v2146 = vadd.f32 0.0, %v2145
    %v2147 = vpop.f32.mrb[0].mxu0
    %2148 = vmatprep.mubr.bf16.mxu0 0
    %2149 = vmatmul.mubr.bf16.gmra.mrb[0].mxu0 %v2106
    %v2150 = vpop.f32.mrb[0].mxu0
    %v2151 = vadd.f32 0.0, %v2150
    %v2152 = vpop.f32.mrb[0].mxu0
    %v2153 = vpop.f32.mrb[0].mxu0
    %v2154 = vadd.f32 0.0, %v2153
    %v2155 = vpop.f32.mrb[0].mxu0
    %2156 = vdwg.mxu0
    %v2157 = vadd.f32 %v2090, %v2143
    %v2158 = vadd.f32 %v2091, %v2146
    %v2159 = vadd.f32 %v2092, %v2151
    %v2160 = vadd.f32 %v2093, %v2154
    %v2161 = vld [vmem:[%s4 + $0x2] ss:$0 sm:$0xff]
    %v2162 = vadd.f32 %v2157, %v2161
    %v2163 = vadd.f32 %v2158, %v2161
    %v2164 = vadd.f32 %v2159, %v2161
    %v2165 = vadd.f32 %v2160, %v2161
    %2170 = vrot.lane.b32.xlu0 %v1193, 112
    %v2171 = vpop.permute.xlu0 %2170
    %2172 = vrot.lane.b32.xlu0 %v1194, 112
    %v2173 = vpop.permute.xlu0 %2172
    %2174 = vrot.lane.b32.xlu0 %v1195, 112
    %v2175 = vpop.permute.xlu0 %2174
    %2176 = vrot.lane.b32.xlu0 %v1196, 112
    %v2177 = vpop.permute.xlu0 %2176
    %v2182 = vadd.f32 %v2162, %v2171
    %v2183 = vadd.f32 %v2163, %v2173
    %v2184 = vadd.f32 %v2164, %v2175
    %v2185 = vadd.f32 %v2165, %v2177
    %v2186 = vmax.f32 %v2182, 0.0
    %v2187 = vmax.f32 %v2183, 0.0
    %v2188 = vmax.f32 %v2184, 0.0
    %v2189 = vmax.f32 %v2185, 0.0
    %v2190 = vpack.c.bf16 %v2187, %v2186
    %v2191 = vpack.c.bf16 %v2189, %v2188
    %2192 = vmatprep.subr.bf16.mxu0 0
    %2193 = vmatpush1.bf16.msra.mxu0 %v2190
    %2194 = vmatprep.subr.bf16.mxu0 0
    %2195 = vmatpush1.bf16.msra.mxu0 %v2191
    %2196 = vmatprep.subr.bf16.mxu0 0
    %2197 = vmatpush1.bf16.msra.mxu0 0
    %2198 = vmatprep.subr.bf16.mxu0 0
    %2199 = vmatpush1.bf16.msra.mxu0 0
    %2200 = vmatprep.subr.bf16.mxu0 0
    %2201 = vmatpush1.bf16.msra.mxu0 0
    %2202 = vmatprep.subr.bf16.mxu0 0
    %2203 = vmatpush1.bf16.msra.mxu0 0
    %2204 = vmatprep.subr.bf16.mxu0 0
    %2205 = vmatpush1.bf16.msra.mxu0 0
    %2206 = vmatprep.subr.bf16.mxu0 0
    %2207 = vmatpush1.bf16.msra.mxu0 0
    %2208 = vmatprep.subr.bf16.mxu0 0
    %2209 = vmatpush1.bf16.msra.mxu0 0
    %2210 = vmatprep.subr.bf16.mxu0 0
    %2211 = vmatpush1.bf16.msra.mxu0 0
    %2212 = vmatprep.subr.bf16.mxu0 0
    %2213 = vmatpush1.bf16.msra.mxu0 0
    %2214 = vmatprep.subr.bf16.mxu0 0
    %2215 = vmatpush1.bf16.msra.mxu0 0
    %2216 = vmatprep.subr.bf16.mxu0 0
    %2217 = vmatpush1.bf16.msra.mxu0 0
    %2218 = vmatprep.subr.bf16.mxu0 0
    %2219 = vmatpush1.bf16.msra.mxu0 0
    %2220 = vmatprep.subr.bf16.mxu0 0
    %2221 = vmatpush1.bf16.msra.mxu0 0
    %2222 = vmatprep.subr.bf16.mxu0 0
    %2223 = vmatpush1.bf16.msra.mxu0 0
    %2224 = vmatprep.mubr.bf16.mxu0 0
    %2225 = vmatmul.mubr.bf16.gmra.mrb[0].mxu0 %v1330
    %v2226 = vpop.f32.mrb[0].mxu0
    %v2227 = vadd.f32 0.0, %v2226
    %v2228 = vpop.f32.mrb[0].mxu0
    %v2229 = vpop.f32.mrb[0].mxu0
    %v2230 = vadd.f32 0.0, %v2229
    %v2231 = vpop.f32.mrb[0].mxu0
    %2232 = vmatprep.mubr.bf16.mxu0 0
    %2233 = vmatmul.mubr.bf16.gmra.mrb[0].mxu0 %v1333
    %v2234 = vpop.f32.mrb[0].mxu0
    %v2235 = vadd.f32 0.0, %v2234
    %v2236 = vpop.f32.mrb[0].mxu0
    %v2237 = vpop.f32.mrb[0].mxu0
    %v2238 = vadd.f32 0.0, %v2237
    %v2239 = vpop.f32.mrb[0].mxu0
    %2240 = vmatprep.mubr.bf16.mxu0 0
    %2241 = vmatmul.mubr.bf16.gmra.mrb[0].mxu0 %v1336
    %v2242 = vpop.f32.mrb[0].mxu0
    %v2243 = vadd.f32 0.0, %v2242
    %v2244 = vpop.f32.mrb[0].mxu0
    %v2245 = vpop.f32.mrb[0].mxu0
    %v2246 = vadd.f32 0.0, %v2245
    %v2247 = vpop.f32.mrb[0].mxu0
    %2248 = vmatprep.mubr.bf16.mxu0 0
    %2249 = vmatmul.mubr.bf16.gmra.mrb[0].mxu0 %v1339
    %v2250 = vpop.f32.mrb[0].mxu0
    %v2251 = vadd.f32 0.0, %v2250
    %v2252 = vpop.f32.mrb[0].mxu0
    %v2253 = vpop.f32.mrb[0].mxu0
    %v2254 = vadd.f32 0.0, %v2253
    %v2255 = vpop.f32.mrb[0].mxu0
    %2256 = vmatprep.mubr.bf16.mxu0 0
    %2257 = vmatmul.mubr.bf16.gmra.mrb[0].mxu0 %v1342
    %v2258 = vpop.f32.mrb[0].mxu0
    %v2259 = vadd.f32 0.0, %v2258
    %v2260 = vpop.f32.mrb[0].mxu0
    %v2261 = vpop.f32.mrb[0].mxu0
    %v2262 = vadd.f32 0.0, %v2261
    %v2263 = vpop.f32.mrb[0].mxu0
    %2264 = vmatprep.mubr.bf16.mxu0 0
    %2265 = vmatmul.mubr.bf16.gmra.mrb[0].mxu0 %v1345
    %v2266 = vpop.f32.mrb[0].mxu0
    %v2267 = vadd.f32 0.0, %v2266
    %v2268 = vpop.f32.mrb[0].mxu0
    %v2269 = vpop.f32.mrb[0].mxu0
    %v2270 = vadd.f32 0.0, %v2269
    %v2271 = vpop.f32.mrb[0].mxu0
    %2272 = vmatprep.mubr.bf16.mxu0 0
    %2273 = vmatmul.mubr.bf16.gmra.mrb[0].mxu0 %v1348
    %v2274 = vpop.f32.mrb[0].mxu0
    %v2275 = vadd.f32 0.0, %v2274
    %v2276 = vpop.f32.mrb[0].mxu0
    %v2277 = vpop.f32.mrb[0].mxu0
    %v2278 = vadd.f32 0.0, %v2277
    %v2279 = vpop.f32.mrb[0].mxu0
    %2280 = vmatprep.mubr.bf16.mxu0 0
    %2281 = vmatmul.mubr.bf16.gmra.mrb[0].mxu0 %v1351
    %v2282 = vpop.f32.mrb[0].mxu0
    %v2283 = vadd.f32 0.0, %v2282
    %v2284 = vpop.f32.mrb[0].mxu0
    %v2285 = vpop.f32.mrb[0].mxu0
    %v2286 = vadd.f32 0.0, %v2285
    %v2287 = vpop.f32.mrb[0].mxu0
    %2288 = vmatprep.mubr.bf16.mxu0 0
    %2289 = vmatmul.mubr.bf16.gmra.mrb[0].mxu0 %v1354
    %v2290 = vpop.f32.mrb[0].mxu0
    %v2291 = vadd.f32 0.0, %v2290
    %v2292 = vpop.f32.mrb[0].mxu0
    %v2293 = vpop.f32.mrb[0].mxu0
    %v2294 = vadd.f32 0.0, %v2293
    %v2295 = vpop.f32.mrb[0].mxu0
    %2296 = vmatprep.mubr.bf16.mxu0 0
    %2297 = vmatmul.mubr.bf16.gmra.mrb[0].mxu0 %v1357
    %v2298 = vpop.f32.mrb[0].mxu0
    %v2299 = vadd.f32 0.0, %v2298
    %v2300 = vpop.f32.mrb[0].mxu0
    %v2301 = vpop.f32.mrb[0].mxu0
    %v2302 = vadd.f32 0.0, %v2301
    %v2303 = vpop.f32.mrb[0].mxu0
    %2304 = vmatprep.mubr.bf16.mxu0 0
    %2305 = vmatmul.mubr.bf16.gmra.mrb[0].mxu0 %v1360
    %v2306 = vpop.f32.mrb[0].mxu0
    %v2307 = vadd.f32 0.0, %v2306
    %v2308 = vpop.f32.mrb[0].mxu0
    %v2309 = vpop.f32.mrb[0].mxu0
    %v2310 = vadd.f32 0.0, %v2309
    %v2311 = vpop.f32.mrb[0].mxu0
    %2312 = vmatprep.mubr.bf16.mxu0 0
    %2313 = vmatmul.mubr.bf16.gmra.mrb[0].mxu0 %v1363
    %v2314 = vpop.f32.mrb[0].mxu0
    %v2315 = vadd.f32 0.0, %v2314
    %v2316 = vpop.f32.mrb[0].mxu0
    %v2317 = vpop.f32.mrb[0].mxu0
    %v2318 = vadd.f32 0.0, %v2317
    %v2319 = vpop.f32.mrb[0].mxu0
    %2320 = vmatprep.mubr.bf16.mxu0 0
    %2321 = vmatmul.mubr.bf16.gmra.mrb[0].mxu0 %v1366
    %v2322 = vpop.f32.mrb[0].mxu0
    %v2323 = vadd.f32 0.0, %v2322
    %v2324 = vpop.f32.mrb[0].mxu0
    %v2325 = vpop.f32.mrb[0].mxu0
    %v2326 = vadd.f32 0.0, %v2325
    %v2327 = vpop.f32.mrb[0].mxu0
    %2328 = vmatprep.mubr.bf16.mxu0 0
    %2329 = vmatmul.mubr.bf16.gmra.mrb[0].mxu0 %v1369
    %v2330 = vpop.f32.mrb[0].mxu0
    %v2331 = vadd.f32 0.0, %v2330
    %v2332 = vpop.f32.mrb[0].mxu0
    %v2333 = vpop.f32.mrb[0].mxu0
    %v2334 = vadd.f32 0.0, %v2333
    %v2335 = vpop.f32.mrb[0].mxu0
    %2336 = vmatprep.mubr.bf16.mxu0 0
    %2337 = vmatmul.mubr.bf16.gmra.mrb[0].mxu0 %v1372
    %v2338 = vpop.f32.mrb[0].mxu0
    %v2339 = vadd.f32 0.0, %v2338
    %v2340 = vpop.f32.mrb[0].mxu0
    %v2341 = vpop.f32.mrb[0].mxu0
    %v2342 = vadd.f32 0.0, %v2341
    %v2343 = vpop.f32.mrb[0].mxu0
    %2344 = vmatprep.mubr.bf16.mxu0 0
    %2345 = vmatmul.mubr.bf16.gmra.mrb[0].mxu0 %v1375
    %v2346 = vpop.f32.mrb[0].mxu0
    %v2347 = vadd.f32 0.0, %v2346
    %v2348 = vpop.f32.mrb[0].mxu0
    %v2349 = vpop.f32.mrb[0].mxu0
    %v2350 = vadd.f32 0.0, %v2349
    %v2351 = vpop.f32.mrb[0].mxu0
    %2352 = vmatprep.mubr.bf16.mxu0 0
    %2353 = vmatmul.mubr.bf16.gmra.mrb[0].mxu0 %v1378
    %v2354 = vpop.f32.mrb[0].mxu0
    %v2355 = vadd.f32 0.0, %v2354
    %v2356 = vpop.f32.mrb[0].mxu0
    %v2357 = vpop.f32.mrb[0].mxu0
    %v2358 = vadd.f32 0.0, %v2357
    %v2359 = vpop.f32.mrb[0].mxu0
    %2360 = vmatprep.mubr.bf16.mxu0 0
    %2361 = vmatmul.mubr.bf16.gmra.mrb[0].mxu0 %v1381
    %v2362 = vpop.f32.mrb[0].mxu0
    %v2363 = vadd.f32 0.0, %v2362
    %v2364 = vpop.f32.mrb[0].mxu0
    %v2365 = vpop.f32.mrb[0].mxu0
    %v2366 = vadd.f32 0.0, %v2365
    %v2367 = vpop.f32.mrb[0].mxu0
    %2368 = vdwg.mxu0
    %v2369 = vpack.c.bf16 %v2230, %v2227
    %v2370 = vpack.c.bf16 %v2238, %v2235
    %v2371 = vpack.c.bf16 %v2246, %v2243
    %v2372 = vpack.c.bf16 %v2254, %v2251
    %v2373 = vpack.c.bf16 %v2262, %v2259
    %v2374 = vpack.c.bf16 %v2270, %v2267
    %v2375 = vpack.c.bf16 %v2278, %v2275
    %v2376 = vpack.c.bf16 %v2286, %v2283
    %v2377 = vpack.c.bf16 %v2294, %v2291
    %v2378 = vpack.c.bf16 %v2302, %v2299
    %v2379 = vpack.c.bf16 %v2310, %v2307
    %v2380 = vpack.c.bf16 %v2318, %v2315
    %v2381 = vpack.c.bf16 %v2326, %v2323
    %v2382 = vpack.c.bf16 %v2334, %v2331
    %v2383 = vpack.c.bf16 %v2342, %v2339
    %v2384 = vpack.c.bf16 %v2350, %v2347
    %v2385 = vpack.c.bf16 %v2358, %v2355
    %v2386 = vpack.c.bf16 %v2366, %v2363
    %v2387 = vld [vmem:[%s2 + $0xa0] sm:$0xf]
    %v2388 = vld [vmem:[%s2 + $0xa4] sm:$0xf]
    %v2389 = vld [vmem:[%s2 + $0xa8] sm:$0xf]
    %v2390 = vld [vmem:[%s2 + $0xac] sm:$0xf]
    %v2393 = vunpack.c.l.b16 %v2389
    %v2394 = vunpack.c.l.b16 %v2390
    %v2395 = vpack.c.b16 %v2394, %v2393
    %v2398 = vsel %vm618, %v2371, 0
    %v2401 = vsel %vm618, %v2372, 0
    %2403 = vmatprep.subr.bf16.mxu0 0
    %2404 = vmatpush1.bf16.msra.mxu0 %v2395
    %2405 = vmatprep.subr.bf16.mxu0 0
    %2406 = vmatpush1.bf16.msra.mxu0 0
    %2407 = vmatprep.subr.bf16.mxu0 0
    %2408 = vmatpush1.bf16.msra.mxu0 0
    %2409 = vmatprep.subr.bf16.mxu0 0
    %2410 = vmatpush1.bf16.msra.mxu0 0
    %2411 = vmatprep.subr.bf16.mxu0 0
    %2412 = vmatpush1.bf16.msra.mxu0 0
    %2413 = vmatprep.subr.bf16.mxu0 0
    %2414 = vmatpush1.bf16.msra.mxu0 0
    %2415 = vmatprep.subr.bf16.mxu0 0
    %2416 = vmatpush1.bf16.msra.mxu0 0
    %2417 = vmatprep.subr.bf16.mxu0 0
    %2418 = vmatpush1.bf16.msra.mxu0 0
    %2419 = vmatprep.subr.bf16.mxu0 0
    %2420 = vmatpush1.bf16.msra.mxu0 0
    %2421 = vmatprep.subr.bf16.mxu0 0
    %2422 = vmatpush1.bf16.msra.mxu0 0
    %2423 = vmatprep.subr.bf16.mxu0 0
    %2424 = vmatpush1.bf16.msra.mxu0 0
    %2425 = vmatprep.subr.bf16.mxu0 0
    %2426 = vmatpush1.bf16.msra.mxu0 0
    %2427 = vmatprep.subr.bf16.mxu0 0
    %2428 = vmatpush1.bf16.msra.mxu0 0
    %2429 = vmatprep.subr.bf16.mxu0 0
    %2430 = vmatpush1.bf16.msra.mxu0 0
    %2431 = vmatprep.subr.bf16.mxu0 0
    %2432 = vmatpush1.bf16.msra.mxu0 0
    %2433 = vmatprep.subr.bf16.mxu0 0
    %2434 = vmatpush1.bf16.msra.mxu0 0
    %2435 = vmatprep.mubr.bf16.mxu0 0
    %2436 = vmatmul.mubr.bf16.gmra.mrb[0].mxu0 %v2398
    %v2437 = vpop.f32.mrb[0].mxu0
    %v2438 = vadd.f32 0.0, %v2437
    %v2439 = vpop.f32.mrb[0].mxu0
    %v2440 = vpop.f32.mrb[0].mxu0
    %v2441 = vadd.f32 0.0, %v2440
    %v2442 = vpop.f32.mrb[0].mxu0
    %2443 = vmatprep.mubr.bf16.mxu0 0
    %2444 = vmatmul.mubr.bf16.gmra.mrb[0].mxu0 %v2401
    %v2445 = vpop.f32.mrb[0].mxu0
    %v2446 = vadd.f32 0.0, %v2445
    %v2447 = vpop.f32.mrb[0].mxu0
    %v2448 = vpop.f32.mrb[0].mxu0
    %v2449 = vadd.f32 0.0, %v2448
    %v2450 = vpop.f32.mrb[0].mxu0
    %2451 = vdwg.mxu0
    %v2454 = vunpack.c.l.b16 %v2387
    %v2455 = vunpack.c.l.b16 %v2388
    %v2456 = vpack.c.b16 %v2455, %v2454
    %v2459 = vsel %vm618, %v2369, 0
    %v2462 = vsel %vm618, %v2370, 0
    %2464 = vmatprep.subr.bf16.mxu0 0
    %2465 = vmatpush1.bf16.msra.mxu0 %v2456
    %2466 = vmatprep.subr.bf16.mxu0 0
    %2467 = vmatpush1.bf16.msra.mxu0 0
    %2468 = vmatprep.subr.bf16.mxu0 0
    %2469 = vmatpush1.bf16.msra.mxu0 0
    %2470 = vmatprep.subr.bf16.mxu0 0
    %2471 = vmatpush1.bf16.msra.mxu0 0
    %2472 = vmatprep.subr.bf16.mxu0 0
    %2473 = vmatpush1.bf16.msra.mxu0 0
    %2474 = vmatprep.subr.bf16.mxu0 0
    %2475 = vmatpush1.bf16.msra.mxu0 0
    %2476 = vmatprep.subr.bf16.mxu0 0
    %2477 = vmatpush1.bf16.msra.mxu0 0
    %2478 = vmatprep.subr.bf16.mxu0 0
    %2479 = vmatpush1.bf16.msra.mxu0 0
    %2480 = vmatprep.subr.bf16.mxu0 0
    %2481 = vmatpush1.bf16.msra.mxu0 0
    %2482 = vmatprep.subr.bf16.mxu0 0
    %2483 = vmatpush1.bf16.msra.mxu0 0
    %2484 = vmatprep.subr.bf16.mxu0 0
    %2485 = vmatpush1.bf16.msra.mxu0 0
    %2486 = vmatprep.subr.bf16.mxu0 0
    %2487 = vmatpush1.bf16.msra.mxu0 0
    %2488 = vmatprep.subr.bf16.mxu0 0
    %2489 = vmatpush1.bf16.msra.mxu0 0
    %2490 = vmatprep.subr.bf16.mxu0 0
    %2491 = vmatpush1.bf16.msra.mxu0 0
    %2492 = vmatprep.subr.bf16.mxu0 0
    %2493 = vmatpush1.bf16.msra.mxu0 0
    %2494 = vmatprep.subr.bf16.mxu0 0
    %2495 = vmatpush1.bf16.msra.mxu0 0
    %2496 = vmatprep.mubr.bf16.mxu0 0
    %2497 = vmatmul.mubr.bf16.gmra.mrb[0].mxu0 %v2459
    %v2498 = vpop.f32.mrb[0].mxu0
    %v2499 = vadd.f32 %v2438, %v2498
    %v2500 = vpop.f32.mrb[0].mxu0
    %v2501 = vpop.f32.mrb[0].mxu0
    %v2502 = vadd.f32 %v2441, %v2501
    %v2503 = vpop.f32.mrb[0].mxu0
    %2504 = vmatprep.mubr.bf16.mxu0 0
    %2505 = vmatmul.mubr.bf16.gmra.mrb[0].mxu0 %v2462
    %v2506 = vpop.f32.mrb[0].mxu0
    %v2507 = vadd.f32 %v2446, %v2506
    %v2508 = vpop.f32.mrb[0].mxu0
    %v2509 = vpop.f32.mrb[0].mxu0
    %v2510 = vadd.f32 %v2449, %v2509
    %v2511 = vpop.f32.mrb[0].mxu0
    %2512 = vdwg.mxu0
    %v2513 = vld [vmem:[%s2 + $0xb0] sm:$0xf]
    %v2514 = vld [vmem:[%s2 + $0xb4] sm:$0xf]
    %v2515 = vld [vmem:[%s2 + $0xb8] sm:$0xf]
    %v2516 = vld [vmem:[%s2 + $0xbc] sm:$0xf]
    %v2519 = vunpack.c.l.b16 %v2515
    %v2520 = vunpack.c.l.b16 %v2516
    %v2521 = vpack.c.b16 %v2520, %v2519
    %v2524 = vsel %vm618, %v2375, 0
    %v2527 = vsel %vm618, %v2376, 0
    %2529 = vmatprep.subr.bf16.mxu0 0
    %2530 = vmatpush1.bf16.msra.mxu0 %v2521
    %2531 = vmatprep.subr.bf16.mxu0 0
    %2532 = vmatpush1.bf16.msra.mxu0 0
    %2533 = vmatprep.subr.bf16.mxu0 0
    %2534 = vmatpush1.bf16.msra.mxu0 0
    %2535 = vmatprep.subr.bf16.mxu0 0
    %2536 = vmatpush1.bf16.msra.mxu0 0
    %2537 = vmatprep.subr.bf16.mxu0 0
    %2538 = vmatpush1.bf16.msra.mxu0 0
    %2539 = vmatprep.subr.bf16.mxu0 0
    %2540 = vmatpush1.bf16.msra.mxu0 0
    %2541 = vmatprep.subr.bf16.mxu0 0
    %2542 = vmatpush1.bf16.msra.mxu0 0
    %2543 = vmatprep.subr.bf16.mxu0 0
    %2544 = vmatpush1.bf16.msra.mxu0 0
    %2545 = vmatprep.subr.bf16.mxu0 0
    %2546 = vmatpush1.bf16.msra.mxu0 0
    %2547 = vmatprep.subr.bf16.mxu0 0
    %2548 = vmatpush1.bf16.msra.mxu0 0
    %2549 = vmatprep.subr.bf16.mxu0 0
    %2550 = vmatpush1.bf16.msra.mxu0 0
    %2551 = vmatprep.subr.bf16.mxu0 0
    %2552 = vmatpush1.bf16.msra.mxu0 0
    %2553 = vmatprep.subr.bf16.mxu0 0
    %2554 = vmatpush1.bf16.msra.mxu0 0
    %2555 = vmatprep.subr.bf16.mxu0 0
    %2556 = vmatpush1.bf16.msra.mxu0 0
    %2557 = vmatprep.subr.bf16.mxu0 0
    %2558 = vmatpush1.bf16.msra.mxu0 0
    %2559 = vmatprep.subr.bf16.mxu0 0
    %2560 = vmatpush1.bf16.msra.mxu0 0
    %2561 = vmatprep.mubr.bf16.mxu0 0
    %2562 = vmatmul.mubr.bf16.gmra.mrb[0].mxu0 %v2524
    %v2563 = vpop.f32.mrb[0].mxu0
    %v2564 = vadd.f32 0.0, %v2563
    %v2565 = vpop.f32.mrb[0].mxu0
    %v2566 = vpop.f32.mrb[0].mxu0
    %v2567 = vadd.f32 0.0, %v2566
    %v2568 = vpop.f32.mrb[0].mxu0
    %2569 = vmatprep.mubr.bf16.mxu0 0
    %2570 = vmatmul.mubr.bf16.gmra.mrb[0].mxu0 %v2527
    %v2571 = vpop.f32.mrb[0].mxu0
    %v2572 = vadd.f32 0.0, %v2571
    %v2573 = vpop.f32.mrb[0].mxu0
    %v2574 = vpop.f32.mrb[0].mxu0
    %v2575 = vadd.f32 0.0, %v2574
    %v2576 = vpop.f32.mrb[0].mxu0
    %2577 = vdwg.mxu0
    %v2580 = vunpack.c.l.b16 %v2513
    %v2581 = vunpack.c.l.b16 %v2514
    %v2582 = vpack.c.b16 %v2581, %v2580
    %v2585 = vsel %vm618, %v2373, 0
    %v2588 = vsel %vm618, %v2374, 0
    %2590 = vmatprep.subr.bf16.mxu0 0
    %2591 = vmatpush1.bf16.msra.mxu0 %v2582
    %2592 = vmatprep.subr.bf16.mxu0 0
    %2593 = vmatpush1.bf16.msra.mxu0 0
    %2594 = vmatprep.subr.bf16.mxu0 0
    %2595 = vmatpush1.bf16.msra.mxu0 0
    %2596 = vmatprep.subr.bf16.mxu0 0
    %2597 = vmatpush1.bf16.msra.mxu0 0
    %2598 = vmatprep.subr.bf16.mxu0 0
    %2599 = vmatpush1.bf16.msra.mxu0 0
    %2600 = vmatprep.subr.bf16.mxu0 0
    %2601 = vmatpush1.bf16.msra.mxu0 0
    %2602 = vmatprep.subr.bf16.mxu0 0
    %2603 = vmatpush1.bf16.msra.mxu0 0
    %2604 = vmatprep.subr.bf16.mxu0 0
    %2605 = vmatpush1.bf16.msra.mxu0 0
    %2606 = vmatprep.subr.bf16.mxu0 0
    %2607 = vmatpush1.bf16.msra.mxu0 0
    %2608 = vmatprep.subr.bf16.mxu0 0
    %2609 = vmatpush1.bf16.msra.mxu0 0
    %2610 = vmatprep.subr.bf16.mxu0 0
    %2611 = vmatpush1.bf16.msra.mxu0 0
    %2612 = vmatprep.subr.bf16.mxu0 0
    %2613 = vmatpush1.bf16.msra.mxu0 0
    %2614 = vmatprep.subr.bf16.mxu0 0
    %2615 = vmatpush1.bf16.msra.mxu0 0
    %2616 = vmatprep.subr.bf16.mxu0 0
    %2617 = vmatpush1.bf16.msra.mxu0 0
    %2618 = vmatprep.subr.bf16.mxu0 0
    %2619 = vmatpush1.bf16.msra.mxu0 0
    %2620 = vmatprep.subr.bf16.mxu0 0
    %2621 = vmatpush1.bf16.msra.mxu0 0
    %2622 = vmatprep.mubr.bf16.mxu0 0
    %2623 = vmatmul.mubr.bf16.gmra.mrb[0].mxu0 %v2585
    %v2624 = vpop.f32.mrb[0].mxu0
    %v2625 = vadd.f32 %v2564, %v2624
    %v2626 = vpop.f32.mrb[0].mxu0
    %v2627 = vpop.f32.mrb[0].mxu0
    %v2628 = vadd.f32 %v2567, %v2627
    %v2629 = vpop.f32.mrb[0].mxu0
    %2630 = vmatprep.mubr.bf16.mxu0 0
    %2631 = vmatmul.mubr.bf16.gmra.mrb[0].mxu0 %v2588
    %v2632 = vpop.f32.mrb[0].mxu0
    %v2633 = vadd.f32 %v2572, %v2632
    %v2634 = vpop.f32.mrb[0].mxu0
    %v2635 = vpop.f32.mrb[0].mxu0
    %v2636 = vadd.f32 %v2575, %v2635
    %v2637 = vpop.f32.mrb[0].mxu0
    %2638 = vdwg.mxu0
    %v2639 = vld [vmem:[%s2 + $0xc0] sm:$0xf]
    %v2640 = vld [vmem:[%s2 + $0xc4] sm:$0xf]
    %v2641 = vld [vmem:[%s2 + $0xc8] sm:$0xf]
    %v2642 = vld [vmem:[%s2 + $0xcc] sm:$0xf]
    %v2645 = vunpack.c.l.b16 %v2641
    %v2646 = vunpack.c.l.b16 %v2642
    %v2647 = vpack.c.b16 %v2646, %v2645
    %v2650 = vsel %vm618, %v2379, 0
    %v2653 = vsel %vm618, %v2380, 0
    %2655 = vmatprep.subr.bf16.mxu0 0
    %2656 = vmatpush1.bf16.msra.mxu0 %v2647
    %2657 = vmatprep.subr.bf16.mxu0 0
    %2658 = vmatpush1.bf16.msra.mxu0 0
    %2659 = vmatprep.subr.bf16.mxu0 0
    %2660 = vmatpush1.bf16.msra.mxu0 0
    %2661 = vmatprep.subr.bf16.mxu0 0
    %2662 = vmatpush1.bf16.msra.mxu0 0
    %2663 = vmatprep.subr.bf16.mxu0 0
    %2664 = vmatpush1.bf16.msra.mxu0 0
    %2665 = vmatprep.subr.bf16.mxu0 0
    %2666 = vmatpush1.bf16.msra.mxu0 0
    %2667 = vmatprep.subr.bf16.mxu0 0
    %2668 = vmatpush1.bf16.msra.mxu0 0
    %2669 = vmatprep.subr.bf16.mxu0 0
    %2670 = vmatpush1.bf16.msra.mxu0 0
    %2671 = vmatprep.subr.bf16.mxu0 0
    %2672 = vmatpush1.bf16.msra.mxu0 0
    %2673 = vmatprep.subr.bf16.mxu0 0
    %2674 = vmatpush1.bf16.msra.mxu0 0
    %2675 = vmatprep.subr.bf16.mxu0 0
    %2676 = vmatpush1.bf16.msra.mxu0 0
    %2677 = vmatprep.subr.bf16.mxu0 0
    %2678 = vmatpush1.bf16.msra.mxu0 0
    %2679 = vmatprep.subr.bf16.mxu0 0
    %2680 = vmatpush1.bf16.msra.mxu0 0
    %2681 = vmatprep.subr.bf16.mxu0 0
    %2682 = vmatpush1.bf16.msra.mxu0 0
    %2683 = vmatprep.subr.bf16.mxu0 0
    %2684 = vmatpush1.bf16.msra.mxu0 0
    %2685 = vmatprep.subr.bf16.mxu0 0
    %2686 = vmatpush1.bf16.msra.mxu0 0
    %2687 = vmatprep.mubr.bf16.mxu0 0
    %2688 = vmatmul.mubr.bf16.gmra.mrb[0].mxu0 %v2650
    %v2689 = vpop.f32.mrb[0].mxu0
    %v2690 = vadd.f32 0.0, %v2689
    %v2691 = vpop.f32.mrb[0].mxu0
    %v2692 = vpop.f32.mrb[0].mxu0
    %v2693 = vadd.f32 0.0, %v2692
    %v2694 = vpop.f32.mrb[0].mxu0
    %2695 = vmatprep.mubr.bf16.mxu0 0
    %2696 = vmatmul.mubr.bf16.gmra.mrb[0].mxu0 %v2653
    %v2697 = vpop.f32.mrb[0].mxu0
    %v2698 = vadd.f32 0.0, %v2697
    %v2699 = vpop.f32.mrb[0].mxu0
    %v2700 = vpop.f32.mrb[0].mxu0
    %v2701 = vadd.f32 0.0, %v2700
    %v2702 = vpop.f32.mrb[0].mxu0
    %2703 = vdwg.mxu0
    %v2706 = vunpack.c.l.b16 %v2639
    %v2707 = vunpack.c.l.b16 %v2640
    %v2708 = vpack.c.b16 %v2707, %v2706
    %v2711 = vsel %vm618, %v2377, 0
    %v2714 = vsel %vm618, %v2378, 0
    %2716 = vmatprep.subr.bf16.mxu0 0
    %2717 = vmatpush1.bf16.msra.mxu0 %v2708
    %2718 = vmatprep.subr.bf16.mxu0 0
    %2719 = vmatpush1.bf16.msra.mxu0 0
    %2720 = vmatprep.subr.bf16.mxu0 0
    %2721 = vmatpush1.bf16.msra.mxu0 0
    %2722 = vmatprep.subr.bf16.mxu0 0
    %2723 = vmatpush1.bf16.msra.mxu0 0
    %2724 = vmatprep.subr.bf16.mxu0 0
    %2725 = vmatpush1.bf16.msra.mxu0 0
    %2726 = vmatprep.subr.bf16.mxu0 0
    %2727 = vmatpush1.bf16.msra.mxu0 0
    %2728 = vmatprep.subr.bf16.mxu0 0
    %2729 = vmatpush1.bf16.msra.mxu0 0
    %2730 = vmatprep.subr.bf16.mxu0 0
    %2731 = vmatpush1.bf16.msra.mxu0 0
    %2732 = vmatprep.subr.bf16.mxu0 0
    %2733 = vmatpush1.bf16.msra.mxu0 0
    %2734 = vmatprep.subr.bf16.mxu0 0
    %2735 = vmatpush1.bf16.msra.mxu0 0
    %2736 = vmatprep.subr.bf16.mxu0 0
    %2737 = vmatpush1.bf16.msra.mxu0 0
    %2738 = vmatprep.subr.bf16.mxu0 0
    %2739 = vmatpush1.bf16.msra.mxu0 0
    %2740 = vmatprep.subr.bf16.mxu0 0
    %2741 = vmatpush1.bf16.msra.mxu0 0
    %2742 = vmatprep.subr.bf16.mxu0 0
    %2743 = vmatpush1.bf16.msra.mxu0 0
    %2744 = vmatprep.subr.bf16.mxu0 0
    %2745 = vmatpush1.bf16.msra.mxu0 0
    %2746 = vmatprep.subr.bf16.mxu0 0
    %2747 = vmatpush1.bf16.msra.mxu0 0
    %2748 = vmatprep.mubr.bf16.mxu0 0
    %2749 = vmatmul.mubr.bf16.gmra.mrb[0].mxu0 %v2711
    %v2750 = vpop.f32.mrb[0].mxu0
    %v2751 = vadd.f32 %v2690, %v2750
    %v2752 = vpop.f32.mrb[0].mxu0
    %v2753 = vpop.f32.mrb[0].mxu0
    %v2754 = vadd.f32 %v2693, %v2753
    %v2755 = vpop.f32.mrb[0].mxu0
    %2756 = vmatprep.mubr.bf16.mxu0 0
    %2757 = vmatmul.mubr.bf16.gmra.mrb[0].mxu0 %v2714
    %v2758 = vpop.f32.mrb[0].mxu0
    %v2759 = vadd.f32 %v2698, %v2758
    %v2760 = vpop.f32.mrb[0].mxu0
    %v2761 = vpop.f32.mrb[0].mxu0
    %v2762 = vadd.f32 %v2701, %v2761
    %v2763 = vpop.f32.mrb[0].mxu0
    %2764 = vdwg.mxu0
    %v2765 = vld [vmem:[%s2 + $0xd0] sm:$0xf]
    %v2766 = vld [vmem:[%s2 + $0xd4] sm:$0xf]
    %v2767 = vld [vmem:[%s2 + $0xd8] sm:$0xf]
    %v2768 = vld [vmem:[%s2 + $0xdc] sm:$0xf]
    %v2771 = vunpack.c.l.b16 %v2767
    %v2772 = vunpack.c.l.b16 %v2768
    %v2773 = vpack.c.b16 %v2772, %v2771
    %v2776 = vsel %vm618, %v2383, 0
    %v2779 = vsel %vm618, %v2384, 0
    %2781 = vmatprep.subr.bf16.mxu0 0
    %2782 = vmatpush1.bf16.msra.mxu0 %v2773
    %2783 = vmatprep.subr.bf16.mxu0 0
    %2784 = vmatpush1.bf16.msra.mxu0 0
    %2785 = vmatprep.subr.bf16.mxu0 0
    %2786 = vmatpush1.bf16.msra.mxu0 0
    %2787 = vmatprep.subr.bf16.mxu0 0
    %2788 = vmatpush1.bf16.msra.mxu0 0
    %2789 = vmatprep.subr.bf16.mxu0 0
    %2790 = vmatpush1.bf16.msra.mxu0 0
    %2791 = vmatprep.subr.bf16.mxu0 0
    %2792 = vmatpush1.bf16.msra.mxu0 0
    %2793 = vmatprep.subr.bf16.mxu0 0
    %2794 = vmatpush1.bf16.msra.mxu0 0
    %2795 = vmatprep.subr.bf16.mxu0 0
    %2796 = vmatpush1.bf16.msra.mxu0 0
    %2797 = vmatprep.subr.bf16.mxu0 0
    %2798 = vmatpush1.bf16.msra.mxu0 0
    %2799 = vmatprep.subr.bf16.mxu0 0
    %2800 = vmatpush1.bf16.msra.mxu0 0
    %2801 = vmatprep.subr.bf16.mxu0 0
    %2802 = vmatpush1.bf16.msra.mxu0 0
    %2803 = vmatprep.subr.bf16.mxu0 0
    %2804 = vmatpush1.bf16.msra.mxu0 0
    %2805 = vmatprep.subr.bf16.mxu0 0
    %2806 = vmatpush1.bf16.msra.mxu0 0
    %2807 = vmatprep.subr.bf16.mxu0 0
    %2808 = vmatpush1.bf16.msra.mxu0 0
    %2809 = vmatprep.subr.bf16.mxu0 0
    %2810 = vmatpush1.bf16.msra.mxu0 0
    %2811 = vmatprep.subr.bf16.mxu0 0
    %2812 = vmatpush1.bf16.msra.mxu0 0
    %2813 = vmatprep.mubr.bf16.mxu0 0
    %2814 = vmatmul.mubr.bf16.gmra.mrb[0].mxu0 %v2776
    %v2815 = vpop.f32.mrb[0].mxu0
    %v2816 = vadd.f32 0.0, %v2815
    %v2817 = vpop.f32.mrb[0].mxu0
    %v2818 = vpop.f32.mrb[0].mxu0
    %v2819 = vadd.f32 0.0, %v2818
    %v2820 = vpop.f32.mrb[0].mxu0
    %2821 = vmatprep.mubr.bf16.mxu0 0
    %2822 = vmatmul.mubr.bf16.gmra.mrb[0].mxu0 %v2779
    %v2823 = vpop.f32.mrb[0].mxu0
    %v2824 = vadd.f32 0.0, %v2823
    %v2825 = vpop.f32.mrb[0].mxu0
    %v2826 = vpop.f32.mrb[0].mxu0
    %v2827 = vadd.f32 0.0, %v2826
    %v2828 = vpop.f32.mrb[0].mxu0
    %2829 = vdwg.mxu0
    %v2832 = vunpack.c.l.b16 %v2765
    %v2833 = vunpack.c.l.b16 %v2766
    %v2834 = vpack.c.b16 %v2833, %v2832
    %v2837 = vsel %vm618, %v2381, 0
    %v2840 = vsel %vm618, %v2382, 0
    %2842 = vmatprep.subr.bf16.mxu0 0
    %2843 = vmatpush1.bf16.msra.mxu0 %v2834
    %2844 = vmatprep.subr.bf16.mxu0 0
    %2845 = vmatpush1.bf16.msra.mxu0 0
    %2846 = vmatprep.subr.bf16.mxu0 0
    %2847 = vmatpush1.bf16.msra.mxu0 0
    %2848 = vmatprep.subr.bf16.mxu0 0
    %2849 = vmatpush1.bf16.msra.mxu0 0
    %2850 = vmatprep.subr.bf16.mxu0 0
    %2851 = vmatpush1.bf16.msra.mxu0 0
    %2852 = vmatprep.subr.bf16.mxu0 0
    %2853 = vmatpush1.bf16.msra.mxu0 0
    %2854 = vmatprep.subr.bf16.mxu0 0
    %2855 = vmatpush1.bf16.msra.mxu0 0
    %2856 = vmatprep.subr.bf16.mxu0 0
    %2857 = vmatpush1.bf16.msra.mxu0 0
    %2858 = vmatprep.subr.bf16.mxu0 0
    %2859 = vmatpush1.bf16.msra.mxu0 0
    %2860 = vmatprep.subr.bf16.mxu0 0
    %2861 = vmatpush1.bf16.msra.mxu0 0
    %2862 = vmatprep.subr.bf16.mxu0 0
    %2863 = vmatpush1.bf16.msra.mxu0 0
    %2864 = vmatprep.subr.bf16.mxu0 0
    %2865 = vmatpush1.bf16.msra.mxu0 0
    %2866 = vmatprep.subr.bf16.mxu0 0
    %2867 = vmatpush1.bf16.msra.mxu0 0
    %2868 = vmatprep.subr.bf16.mxu0 0
    %2869 = vmatpush1.bf16.msra.mxu0 0
    %2870 = vmatprep.subr.bf16.mxu0 0
    %2871 = vmatpush1.bf16.msra.mxu0 0
    %2872 = vmatprep.subr.bf16.mxu0 0
    %2873 = vmatpush1.bf16.msra.mxu0 0
    %2874 = vmatprep.mubr.bf16.mxu0 0
    %2875 = vmatmul.mubr.bf16.gmra.mrb[0].mxu0 %v2837
    %v2876 = vpop.f32.mrb[0].mxu0
    %v2877 = vadd.f32 %v2816, %v2876
    %v2878 = vpop.f32.mrb[0].mxu0
    %v2879 = vpop.f32.mrb[0].mxu0
    %v2880 = vadd.f32 %v2819, %v2879
    %v2881 = vpop.f32.mrb[0].mxu0
    %2882 = vmatprep.mubr.bf16.mxu0 0
    %2883 = vmatmul.mubr.bf16.gmra.mrb[0].mxu0 %v2840
    %v2884 = vpop.f32.mrb[0].mxu0
    %v2885 = vadd.f32 %v2824, %v2884
    %v2886 = vpop.f32.mrb[0].mxu0
    %v2887 = vpop.f32.mrb[0].mxu0
    %v2888 = vadd.f32 %v2827, %v2887
    %v2889 = vpop.f32.mrb[0].mxu0
    %2890 = vdwg.mxu0
    %v2891 = vadd.f32 %v2499, %v2625
    %v2892 = vadd.f32 %v2502, %v2628
    %v2893 = vadd.f32 %v2507, %v2633
    %v2894 = vadd.f32 %v2510, %v2636
    %v2895 = vadd.f32 %v2751, %v2877
    %v2896 = vadd.f32 %v2754, %v2880
    %v2897 = vadd.f32 %v2759, %v2885
    %v2898 = vadd.f32 %v2762, %v2888
    %v2899 = vadd.f32 %v2891, %v2895
    %v2900 = vadd.f32 %v2892, %v2896
    %v2901 = vadd.f32 %v2893, %v2897
    %v2902 = vadd.f32 %v2894, %v2898
    %v2903 = vld [vmem:[%s2 + $0xe0] sm:$0xf]
    %v2904 = vld [vmem:[%s2 + $0xe4] sm:$0xf]
    %v2907 = vunpack.c.l.b16 %v2903
    %v2908 = vunpack.c.l.b16 %v2904
    %v2909 = vpack.c.b16 %v2908, %v2907
    %v2912 = vsel %vm618, %v2385, 0
    %v2915 = vsel %vm618, %v2386, 0
    %2917 = vmatprep.subr.bf16.mxu0 0
    %2918 = vmatpush1.bf16.msra.mxu0 %v2909
    %2919 = vmatprep.subr.bf16.mxu0 0
    %2920 = vmatpush1.bf16.msra.mxu0 0
    %2921 = vmatprep.subr.bf16.mxu0 0
    %2922 = vmatpush1.bf16.msra.mxu0 0
    %2923 = vmatprep.subr.bf16.mxu0 0
    %2924 = vmatpush1.bf16.msra.mxu0 0
    %2925 = vmatprep.subr.bf16.mxu0 0
    %2926 = vmatpush1.bf16.msra.mxu0 0
    %2927 = vmatprep.subr.bf16.mxu0 0
    %2928 = vmatpush1.bf16.msra.mxu0 0
    %2929 = vmatprep.subr.bf16.mxu0 0
    %2930 = vmatpush1.bf16.msra.mxu0 0
    %2931 = vmatprep.subr.bf16.mxu0 0
    %2932 = vmatpush1.bf16.msra.mxu0 0
    %2933 = vmatprep.subr.bf16.mxu0 0
    %2934 = vmatpush1.bf16.msra.mxu0 0
    %2935 = vmatprep.subr.bf16.mxu0 0
    %2936 = vmatpush1.bf16.msra.mxu0 0
    %2937 = vmatprep.subr.bf16.mxu0 0
    %2938 = vmatpush1.bf16.msra.mxu0 0
    %2939 = vmatprep.subr.bf16.mxu0 0
    %2940 = vmatpush1.bf16.msra.mxu0 0
    %2941 = vmatprep.subr.bf16.mxu0 0
    %2942 = vmatpush1.bf16.msra.mxu0 0
    %2943 = vmatprep.subr.bf16.mxu0 0
    %2944 = vmatpush1.bf16.msra.mxu0 0
    %2945 = vmatprep.subr.bf16.mxu0 0
    %2946 = vmatpush1.bf16.msra.mxu0 0
    %2947 = vmatprep.subr.bf16.mxu0 0
    %2948 = vmatpush1.bf16.msra.mxu0 0
    %2949 = vmatprep.mubr.bf16.mxu0 0
    %2950 = vmatmul.mubr.bf16.gmra.mrb[0].mxu0 %v2912
    %v2951 = vpop.f32.mrb[0].mxu0
    %v2952 = vadd.f32 0.0, %v2951
    %v2953 = vpop.f32.mrb[0].mxu0
    %v2954 = vpop.f32.mrb[0].mxu0
    %v2955 = vadd.f32 0.0, %v2954
    %v2956 = vpop.f32.mrb[0].mxu0
    %2957 = vmatprep.mubr.bf16.mxu0 0
    %2958 = vmatmul.mubr.bf16.gmra.mrb[0].mxu0 %v2915
    %v2959 = vpop.f32.mrb[0].mxu0
    %v2960 = vadd.f32 0.0, %v2959
    %v2961 = vpop.f32.mrb[0].mxu0
    %v2962 = vpop.f32.mrb[0].mxu0
    %v2963 = vadd.f32 0.0, %v2962
    %v2964 = vpop.f32.mrb[0].mxu0
    %2965 = vdwg.mxu0
    %v2966 = vadd.f32 %v2899, %v2952
    %v2967 = vadd.f32 %v2900, %v2955
    %v2968 = vadd.f32 %v2901, %v2960
    %v2969 = vadd.f32 %v2902, %v2963
    %v2970 = vld [vmem:[%s4 + $0x3] ss:$0 sm:$0xff]
    %v2971 = vadd.f32 %v2966, %v2970
    %v2972 = vadd.f32 %v2967, %v2970
    %v2973 = vadd.f32 %v2968, %v2970
    %v2974 = vadd.f32 %v2969, %v2970
    %v2975 = vmax.f32 %v2971, 0.0
    %v2976 = vmax.f32 %v2972, 0.0
    %v2977 = vmax.f32 %v2973, 0.0
    %v2978 = vmax.f32 %v2974, 0.0
    %v2979 = vpack.c.bf16 %v2976, %v2975
    %v2980 = vpack.c.bf16 %v2978, %v2977
    %v2981 = vunpack.c.l.bf16 %v2190
    %v2982 = vunpack.c.h.bf16 %v2190
    %v2983 = vunpack.c.l.bf16 %v2191
    %v2984 = vunpack.c.h.bf16 %v2191
    %2985 = vmatprep.subr.bf16.mxu0 0
    %2986 = vmatpush1.bf16.msra.mxu0 %v2979
    %2987 = vmatprep.subr.bf16.mxu0 0
    %2988 = vmatpush1.bf16.msra.mxu0 %v2980
    %2989 = vmatprep.subr.bf16.mxu0 0
    %2990 = vmatpush1.bf16.msra.mxu0 0
    %2991 = vmatprep.subr.bf16.mxu0 0
    %2992 = vmatpush1.bf16.msra.mxu0 0
    %2993 = vmatprep.subr.bf16.mxu0 0
    %2994 = vmatpush1.bf16.msra.mxu0 0
    %2995 = vmatprep.subr.bf16.mxu0 0
    %2996 = vmatpush1.bf16.msra.mxu0 0
    %2997 = vmatprep.subr.bf16.mxu0 0
    %2998 = vmatpush1.bf16.msra.mxu0 0
    %2999 = vmatprep.subr.bf16.mxu0 0
    %3000 = vmatpush1.bf16.msra.mxu0 0
    %3001 = vmatprep.subr.bf16.mxu0 0
    %3002 = vmatpush1.bf16.msra.mxu0 0
    %3003 = vmatprep.subr.bf16.mxu0 0
    %3004 = vmatpush1.bf16.msra.mxu0 0
    %3005 = vmatprep.subr.bf16.mxu0 0
    %3006 = vmatpush1.bf16.msra.mxu0 0
    %3007 = vmatprep.subr.bf16.mxu0 0
    %3008 = vmatpush1.bf16.msra.mxu0 0
    %3009 = vmatprep.subr.bf16.mxu0 0
    %3010 = vmatpush1.bf16.msra.mxu0 0
    %3011 = vmatprep.subr.bf16.mxu0 0
    %3012 = vmatpush1.bf16.msra.mxu0 0
    %3013 = vmatprep.subr.bf16.mxu0 0
    %3014 = vmatpush1.bf16.msra.mxu0 0
    %3015 = vmatprep.subr.bf16.mxu0 0
    %3016 = vmatpush1.bf16.msra.mxu0 0
    %3017 = vmatprep.mubr.bf16.mxu0 0
    %3018 = vmatmul.mubr.bf16.gmra.mrb[0].mxu0 %v1330
    %v3019 = vpop.f32.mrb[0].mxu0
    %v3020 = vadd.f32 0.0, %v3019
    %v3021 = vpop.f32.mrb[0].mxu0
    %v3022 = vpop.f32.mrb[0].mxu0
    %v3023 = vadd.f32 0.0, %v3022
    %v3024 = vpop.f32.mrb[0].mxu0
    %3025 = vmatprep.mubr.bf16.mxu0 0
    %3026 = vmatmul.mubr.bf16.gmra.mrb[0].mxu0 %v1333
    %v3027 = vpop.f32.mrb[0].mxu0
    %v3028 = vadd.f32 0.0, %v3027
    %v3029 = vpop.f32.mrb[0].mxu0
    %v3030 = vpop.f32.mrb[0].mxu0
    %v3031 = vadd.f32 0.0, %v3030
    %v3032 = vpop.f32.mrb[0].mxu0
    %3033 = vmatprep.mubr.bf16.mxu0 0
    %3034 = vmatmul.mubr.bf16.gmra.mrb[0].mxu0 %v1336
    %v3035 = vpop.f32.mrb[0].mxu0
    %v3036 = vadd.f32 0.0, %v3035
    %v3037 = vpop.f32.mrb[0].mxu0
    %v3038 = vpop.f32.mrb[0].mxu0
    %v3039 = vadd.f32 0.0, %v3038
    %v3040 = vpop.f32.mrb[0].mxu0
    %3041 = vmatprep.mubr.bf16.mxu0 0
    %3042 = vmatmul.mubr.bf16.gmra.mrb[0].mxu0 %v1339
    %v3043 = vpop.f32.mrb[0].mxu0
    %v3044 = vadd.f32 0.0, %v3043
    %v3045 = vpop.f32.mrb[0].mxu0
    %v3046 = vpop.f32.mrb[0].mxu0
    %v3047 = vadd.f32 0.0, %v3046
    %v3048 = vpop.f32.mrb[0].mxu0
    %3049 = vmatprep.mubr.bf16.mxu0 0
    %3050 = vmatmul.mubr.bf16.gmra.mrb[0].mxu0 %v1342
    %v3051 = vpop.f32.mrb[0].mxu0
    %v3052 = vadd.f32 0.0, %v3051
    %v3053 = vpop.f32.mrb[0].mxu0
    %v3054 = vpop.f32.mrb[0].mxu0
    %v3055 = vadd.f32 0.0, %v3054
    %v3056 = vpop.f32.mrb[0].mxu0
    %3057 = vmatprep.mubr.bf16.mxu0 0
    %3058 = vmatmul.mubr.bf16.gmra.mrb[0].mxu0 %v1345
    %v3059 = vpop.f32.mrb[0].mxu0
    %v3060 = vadd.f32 0.0, %v3059
    %v3061 = vpop.f32.mrb[0].mxu0
    %v3062 = vpop.f32.mrb[0].mxu0
    %v3063 = vadd.f32 0.0, %v3062
    %v3064 = vpop.f32.mrb[0].mxu0
    %3065 = vmatprep.mubr.bf16.mxu0 0
    %3066 = vmatmul.mubr.bf16.gmra.mrb[0].mxu0 %v1348
    %v3067 = vpop.f32.mrb[0].mxu0
    %v3068 = vadd.f32 0.0, %v3067
    %v3069 = vpop.f32.mrb[0].mxu0
    %v3070 = vpop.f32.mrb[0].mxu0
    %v3071 = vadd.f32 0.0, %v3070
    %v3072 = vpop.f32.mrb[0].mxu0
    %3073 = vmatprep.mubr.bf16.mxu0 0
    %3074 = vmatmul.mubr.bf16.gmra.mrb[0].mxu0 %v1351
    %v3075 = vpop.f32.mrb[0].mxu0
    %v3076 = vadd.f32 0.0, %v3075
    %v3077 = vpop.f32.mrb[0].mxu0
    %v3078 = vpop.f32.mrb[0].mxu0
    %v3079 = vadd.f32 0.0, %v3078
    %v3080 = vpop.f32.mrb[0].mxu0
    %3081 = vmatprep.mubr.bf16.mxu0 0
    %3082 = vmatmul.mubr.bf16.gmra.mrb[0].mxu0 %v1354
    %v3083 = vpop.f32.mrb[0].mxu0
    %v3084 = vadd.f32 0.0, %v3083
    %v3085 = vpop.f32.mrb[0].mxu0
    %v3086 = vpop.f32.mrb[0].mxu0
    %v3087 = vadd.f32 0.0, %v3086
    %v3088 = vpop.f32.mrb[0].mxu0
    %3089 = vmatprep.mubr.bf16.mxu0 0
    %3090 = vmatmul.mubr.bf16.gmra.mrb[0].mxu0 %v1357
    %v3091 = vpop.f32.mrb[0].mxu0
    %v3092 = vadd.f32 0.0, %v3091
    %v3093 = vpop.f32.mrb[0].mxu0
    %v3094 = vpop.f32.mrb[0].mxu0
    %v3095 = vadd.f32 0.0, %v3094
    %v3096 = vpop.f32.mrb[0].mxu0
    %3097 = vmatprep.mubr.bf16.mxu0 0
    %3098 = vmatmul.mubr.bf16.gmra.mrb[0].mxu0 %v1360
    %v3099 = vpop.f32.mrb[0].mxu0
    %v3100 = vadd.f32 0.0, %v3099
    %v3101 = vpop.f32.mrb[0].mxu0
    %v3102 = vpop.f32.mrb[0].mxu0
    %v3103 = vadd.f32 0.0, %v3102
    %v3104 = vpop.f32.mrb[0].mxu0
    %3105 = vmatprep.mubr.bf16.mxu0 0
    %3106 = vmatmul.mubr.bf16.gmra.mrb[0].mxu0 %v1363
    %v3107 = vpop.f32.mrb[0].mxu0
    %v3108 = vadd.f32 0.0, %v3107
    %v3109 = vpop.f32.mrb[0].mxu0
    %v3110 = vpop.f32.mrb[0].mxu0
    %v3111 = vadd.f32 0.0, %v3110
    %v3112 = vpop.f32.mrb[0].mxu0
    %3113 = vmatprep.mubr.bf16.mxu0 0
    %3114 = vmatmul.mubr.bf16.gmra.mrb[0].mxu0 %v1366
    %v3115 = vpop.f32.mrb[0].mxu0
    %v3116 = vadd.f32 0.0, %v3115
    %v3117 = vpop.f32.mrb[0].mxu0
    %v3118 = vpop.f32.mrb[0].mxu0
    %v3119 = vadd.f32 0.0, %v3118
    %v3120 = vpop.f32.mrb[0].mxu0
    %3121 = vmatprep.mubr.bf16.mxu0 0
    %3122 = vmatmul.mubr.bf16.gmra.mrb[0].mxu0 %v1369
    %v3123 = vpop.f32.mrb[0].mxu0
    %v3124 = vadd.f32 0.0, %v3123
    %v3125 = vpop.f32.mrb[0].mxu0
    %v3126 = vpop.f32.mrb[0].mxu0
    %v3127 = vadd.f32 0.0, %v3126
    %v3128 = vpop.f32.mrb[0].mxu0
    %3129 = vmatprep.mubr.bf16.mxu0 0
    %3130 = vmatmul.mubr.bf16.gmra.mrb[0].mxu0 %v1372
    %v3131 = vpop.f32.mrb[0].mxu0
    %v3132 = vadd.f32 0.0, %v3131
    %v3133 = vpop.f32.mrb[0].mxu0
    %v3134 = vpop.f32.mrb[0].mxu0
    %v3135 = vadd.f32 0.0, %v3134
    %v3136 = vpop.f32.mrb[0].mxu0
    %3137 = vmatprep.mubr.bf16.mxu0 0
    %3138 = vmatmul.mubr.bf16.gmra.mrb[0].mxu0 %v1375
    %v3139 = vpop.f32.mrb[0].mxu0
    %v3140 = vadd.f32 0.0, %v3139
    %v3141 = vpop.f32.mrb[0].mxu0
    %v3142 = vpop.f32.mrb[0].mxu0
    %v3143 = vadd.f32 0.0, %v3142
    %v3144 = vpop.f32.mrb[0].mxu0
    %3145 = vmatprep.mubr.bf16.mxu0 0
    %3146 = vmatmul.mubr.bf16.gmra.mrb[0].mxu0 %v1378
    %v3147 = vpop.f32.mrb[0].mxu0
    %v3148 = vadd.f32 0.0, %v3147
    %v3149 = vpop.f32.mrb[0].mxu0
    %v3150 = vpop.f32.mrb[0].mxu0
    %v3151 = vadd.f32 0.0, %v3150
    %v3152 = vpop.f32.mrb[0].mxu0
    %3153 = vmatprep.mubr.bf16.mxu0 0
    %3154 = vmatmul.mubr.bf16.gmra.mrb[0].mxu0 %v1381
    %v3155 = vpop.f32.mrb[0].mxu0
    %v3156 = vadd.f32 0.0, %v3155
    %v3157 = vpop.f32.mrb[0].mxu0
    %v3158 = vpop.f32.mrb[0].mxu0
    %v3159 = vadd.f32 0.0, %v3158
    %v3160 = vpop.f32.mrb[0].mxu0
    %3161 = vdwg.mxu0
    %v3162 = vpack.c.bf16 %v3023, %v3020
    %v3163 = vpack.c.bf16 %v3031, %v3028
    %v3164 = vpack.c.bf16 %v3039, %v3036
    %v3165 = vpack.c.bf16 %v3047, %v3044
    %v3166 = vpack.c.bf16 %v3055, %v3052
    %v3167 = vpack.c.bf16 %v3063, %v3060
    %v3168 = vpack.c.bf16 %v3071, %v3068
    %v3169 = vpack.c.bf16 %v3079, %v3076
    %v3170 = vpack.c.bf16 %v3087, %v3084
    %v3171 = vpack.c.bf16 %v3095, %v3092
    %v3172 = vpack.c.bf16 %v3103, %v3100
    %v3173 = vpack.c.bf16 %v3111, %v3108
    %v3174 = vpack.c.bf16 %v3119, %v3116
    %v3175 = vpack.c.bf16 %v3127, %v3124
    %v3176 = vpack.c.bf16 %v3135, %v3132
    %v3177 = vpack.c.bf16 %v3143, %v3140
    %v3178 = vpack.c.bf16 %v3151, %v3148
    %v3179 = vpack.c.bf16 %v3159, %v3156
    %v3180 = vld [vmem:[%s2 + $0xe8] sm:$0xf]
    %v3181 = vld [vmem:[%s2 + $0xec] sm:$0xf]
    %v3182 = vld [vmem:[%s2 + $0xf0] sm:$0xf]
    %v3183 = vld [vmem:[%s2 + $0xf4] sm:$0xf]
    %v3186 = vunpack.c.l.b16 %v3182
    %v3187 = vunpack.c.l.b16 %v3183
    %v3188 = vpack.c.b16 %v3187, %v3186
    %v3191 = vsel %vm618, %v3164, 0
    %v3194 = vsel %vm618, %v3165, 0
    %3196 = vmatprep.subr.bf16.mxu0 0
    %3197 = vmatpush1.bf16.msra.mxu0 %v3188
    %3198 = vmatprep.subr.bf16.mxu0 0
    %3199 = vmatpush1.bf16.msra.mxu0 0
    %3200 = vmatprep.subr.bf16.mxu0 0
    %3201 = vmatpush1.bf16.msra.mxu0 0
    %3202 = vmatprep.subr.bf16.mxu0 0
    %3203 = vmatpush1.bf16.msra.mxu0 0
    %3204 = vmatprep.subr.bf16.mxu0 0
    %3205 = vmatpush1.bf16.msra.mxu0 0
    %3206 = vmatprep.subr.bf16.mxu0 0
    %3207 = vmatpush1.bf16.msra.mxu0 0
    %3208 = vmatprep.subr.bf16.mxu0 0
    %3209 = vmatpush1.bf16.msra.mxu0 0
    %3210 = vmatprep.subr.bf16.mxu0 0
    %3211 = vmatpush1.bf16.msra.mxu0 0
    %3212 = vmatprep.subr.bf16.mxu0 0
    %3213 = vmatpush1.bf16.msra.mxu0 0
    %3214 = vmatprep.subr.bf16.mxu0 0
    %3215 = vmatpush1.bf16.msra.mxu0 0
    %3216 = vmatprep.subr.bf16.mxu0 0
    %3217 = vmatpush1.bf16.msra.mxu0 0
    %3218 = vmatprep.subr.bf16.mxu0 0
    %3219 = vmatpush1.bf16.msra.mxu0 0
    %3220 = vmatprep.subr.bf16.mxu0 0
    %3221 = vmatpush1.bf16.msra.mxu0 0
    %3222 = vmatprep.subr.bf16.mxu0 0
    %3223 = vmatpush1.bf16.msra.mxu0 0
    %3224 = vmatprep.subr.bf16.mxu0 0
    %3225 = vmatpush1.bf16.msra.mxu0 0
    %3226 = vmatprep.subr.bf16.mxu0 0
    %3227 = vmatpush1.bf16.msra.mxu0 0
    %3228 = vmatprep.mubr.bf16.mxu0 0
    %3229 = vmatmul.mubr.bf16.gmra.mrb[0].mxu0 %v3191
    %v3230 = vpop.f32.mrb[0].mxu0
    %v3231 = vadd.f32 0.0, %v3230
    %v3232 = vpop.f32.mrb[0].mxu0
    %v3233 = vpop.f32.mrb[0].mxu0
    %v3234 = vadd.f32 0.0, %v3233
    %v3235 = vpop.f32.mrb[0].mxu0
    %3236 = vmatprep.mubr.bf16.mxu0 0
    %3237 = vmatmul.mubr.bf16.gmra.mrb[0].mxu0 %v3194
    %v3238 = vpop.f32.mrb[0].mxu0
    %v3239 = vadd.f32 0.0, %v3238
    %v3240 = vpop.f32.mrb[0].mxu0
    %v3241 = vpop.f32.mrb[0].mxu0
    %v3242 = vadd.f32 0.0, %v3241
    %v3243 = vpop.f32.mrb[0].mxu0
    %3244 = vdwg.mxu0
    %v3247 = vunpack.c.l.b16 %v3180
    %v3248 = vunpack.c.l.b16 %v3181
    %v3249 = vpack.c.b16 %v3248, %v3247
    %v3252 = vsel %vm618, %v3162, 0
    %v3255 = vsel %vm618, %v3163, 0
    %3257 = vmatprep.subr.bf16.mxu0 0
    %3258 = vmatpush1.bf16.msra.mxu0 %v3249
    %3259 = vmatprep.subr.bf16.mxu0 0
    %3260 = vmatpush1.bf16.msra.mxu0 0
    %3261 = vmatprep.subr.bf16.mxu0 0
    %3262 = vmatpush1.bf16.msra.mxu0 0
    %3263 = vmatprep.subr.bf16.mxu0 0
    %3264 = vmatpush1.bf16.msra.mxu0 0
    %3265 = vmatprep.subr.bf16.mxu0 0
    %3266 = vmatpush1.bf16.msra.mxu0 0
    %3267 = vmatprep.subr.bf16.mxu0 0
    %3268 = vmatpush1.bf16.msra.mxu0 0
    %3269 = vmatprep.subr.bf16.mxu0 0
    %3270 = vmatpush1.bf16.msra.mxu0 0
    %3271 = vmatprep.subr.bf16.mxu0 0
    %3272 = vmatpush1.bf16.msra.mxu0 0
    %3273 = vmatprep.subr.bf16.mxu0 0
    %3274 = vmatpush1.bf16.msra.mxu0 0
    %3275 = vmatprep.subr.bf16.mxu0 0
    %3276 = vmatpush1.bf16.msra.mxu0 0
    %3277 = vmatprep.subr.bf16.mxu0 0
    %3278 = vmatpush1.bf16.msra.mxu0 0
    %3279 = vmatprep.subr.bf16.mxu0 0
    %3280 = vmatpush1.bf16.msra.mxu0 0
    %3281 = vmatprep.subr.bf16.mxu0 0
    %3282 = vmatpush1.bf16.msra.mxu0 0
    %3283 = vmatprep.subr.bf16.mxu0 0
    %3284 = vmatpush1.bf16.msra.mxu0 0
    %3285 = vmatprep.subr.bf16.mxu0 0
    %3286 = vmatpush1.bf16.msra.mxu0 0
    %3287 = vmatprep.subr.bf16.mxu0 0
    %3288 = vmatpush1.bf16.msra.mxu0 0
    %3289 = vmatprep.mubr.bf16.mxu0 0
    %3290 = vmatmul.mubr.bf16.gmra.mrb[0].mxu0 %v3252
    %v3291 = vpop.f32.mrb[0].mxu0
    %v3292 = vadd.f32 %v3231, %v3291
    %v3293 = vpop.f32.mrb[0].mxu0
    %v3294 = vpop.f32.mrb[0].mxu0
    %v3295 = vadd.f32 %v3234, %v3294
    %v3296 = vpop.f32.mrb[0].mxu0
    %3297 = vmatprep.mubr.bf16.mxu0 0
    %3298 = vmatmul.mubr.bf16.gmra.mrb[0].mxu0 %v3255
    %v3299 = vpop.f32.mrb[0].mxu0
    %v3300 = vadd.f32 %v3239, %v3299
    %v3301 = vpop.f32.mrb[0].mxu0
    %v3302 = vpop.f32.mrb[0].mxu0
    %v3303 = vadd.f32 %v3242, %v3302
    %v3304 = vpop.f32.mrb[0].mxu0
    %3305 = vdwg.mxu0
    %v3306 = vld [vmem:[%s2 + $0xf8] sm:$0xf]
    %v3307 = vld [vmem:[%s2 + $0xfc] sm:$0xf]
    %v3308 = vld [vmem:[%s2 + $0x100] sm:$0xf]
    %v3309 = vld [vmem:[%s2 + $0x104] sm:$0xf]
    %v3312 = vunpack.c.l.b16 %v3308
    %v3313 = vunpack.c.l.b16 %v3309
    %v3314 = vpack.c.b16 %v3313, %v3312
    %v3317 = vsel %vm618, %v3168, 0
    %v3320 = vsel %vm618, %v3169, 0
    %3322 = vmatprep.subr.bf16.mxu0 0
    %3323 = vmatpush1.bf16.msra.mxu0 %v3314
    %3324 = vmatprep.subr.bf16.mxu0 0
    %3325 = vmatpush1.bf16.msra.mxu0 0
    %3326 = vmatprep.subr.bf16.mxu0 0
    %3327 = vmatpush1.bf16.msra.mxu0 0
    %3328 = vmatprep.subr.bf16.mxu0 0
    %3329 = vmatpush1.bf16.msra.mxu0 0
    %3330 = vmatprep.subr.bf16.mxu0 0
    %3331 = vmatpush1.bf16.msra.mxu0 0
    %3332 = vmatprep.subr.bf16.mxu0 0
    %3333 = vmatpush1.bf16.msra.mxu0 0
    %3334 = vmatprep.subr.bf16.mxu0 0
    %3335 = vmatpush1.bf16.msra.mxu0 0
    %3336 = vmatprep.subr.bf16.mxu0 0
    %3337 = vmatpush1.bf16.msra.mxu0 0
    %3338 = vmatprep.subr.bf16.mxu0 0
    %3339 = vmatpush1.bf16.msra.mxu0 0
    %3340 = vmatprep.subr.bf16.mxu0 0
    %3341 = vmatpush1.bf16.msra.mxu0 0
    %3342 = vmatprep.subr.bf16.mxu0 0
    %3343 = vmatpush1.bf16.msra.mxu0 0
    %3344 = vmatprep.subr.bf16.mxu0 0
    %3345 = vmatpush1.bf16.msra.mxu0 0
    %3346 = vmatprep.subr.bf16.mxu0 0
    %3347 = vmatpush1.bf16.msra.mxu0 0
    %3348 = vmatprep.subr.bf16.mxu0 0
    %3349 = vmatpush1.bf16.msra.mxu0 0
    %3350 = vmatprep.subr.bf16.mxu0 0
    %3351 = vmatpush1.bf16.msra.mxu0 0
    %3352 = vmatprep.subr.bf16.mxu0 0
    %3353 = vmatpush1.bf16.msra.mxu0 0
    %3354 = vmatprep.mubr.bf16.mxu0 0
    %3355 = vmatmul.mubr.bf16.gmra.mrb[0].mxu0 %v3317
    %v3356 = vpop.f32.mrb[0].mxu0
    %v3357 = vadd.f32 0.0, %v3356
    %v3358 = vpop.f32.mrb[0].mxu0
    %v3359 = vpop.f32.mrb[0].mxu0
    %v3360 = vadd.f32 0.0, %v3359
    %v3361 = vpop.f32.mrb[0].mxu0
    %3362 = vmatprep.mubr.bf16.mxu0 0
    %3363 = vmatmul.mubr.bf16.gmra.mrb[0].mxu0 %v3320
    %v3364 = vpop.f32.mrb[0].mxu0
    %v3365 = vadd.f32 0.0, %v3364
    %v3366 = vpop.f32.mrb[0].mxu0
    %v3367 = vpop.f32.mrb[0].mxu0
    %v3368 = vadd.f32 0.0, %v3367
    %v3369 = vpop.f32.mrb[0].mxu0
    %3370 = vdwg.mxu0
    %v3373 = vunpack.c.l.b16 %v3306
    %v3374 = vunpack.c.l.b16 %v3307
    %v3375 = vpack.c.b16 %v3374, %v3373
    %v3378 = vsel %vm618, %v3166, 0
    %v3381 = vsel %vm618, %v3167, 0
    %3383 = vmatprep.subr.bf16.mxu0 0
    %3384 = vmatpush1.bf16.msra.mxu0 %v3375
    %3385 = vmatprep.subr.bf16.mxu0 0
    %3386 = vmatpush1.bf16.msra.mxu0 0
    %3387 = vmatprep.subr.bf16.mxu0 0
    %3388 = vmatpush1.bf16.msra.mxu0 0
    %3389 = vmatprep.subr.bf16.mxu0 0
    %3390 = vmatpush1.bf16.msra.mxu0 0
    %3391 = vmatprep.subr.bf16.mxu0 0
    %3392 = vmatpush1.bf16.msra.mxu0 0
    %3393 = vmatprep.subr.bf16.mxu0 0
    %3394 = vmatpush1.bf16.msra.mxu0 0
    %3395 = vmatprep.subr.bf16.mxu0 0
    %3396 = vmatpush1.bf16.msra.mxu0 0
    %3397 = vmatprep.subr.bf16.mxu0 0
    %3398 = vmatpush1.bf16.msra.mxu0 0
    %3399 = vmatprep.subr.bf16.mxu0 0
    %3400 = vmatpush1.bf16.msra.mxu0 0
    %3401 = vmatprep.subr.bf16.mxu0 0
    %3402 = vmatpush1.bf16.msra.mxu0 0
    %3403 = vmatprep.subr.bf16.mxu0 0
    %3404 = vmatpush1.bf16.msra.mxu0 0
    %3405 = vmatprep.subr.bf16.mxu0 0
    %3406 = vmatpush1.bf16.msra.mxu0 0
    %3407 = vmatprep.subr.bf16.mxu0 0
    %3408 = vmatpush1.bf16.msra.mxu0 0
    %3409 = vmatprep.subr.bf16.mxu0 0
    %3410 = vmatpush1.bf16.msra.mxu0 0
    %3411 = vmatprep.subr.bf16.mxu0 0
    %3412 = vmatpush1.bf16.msra.mxu0 0
    %3413 = vmatprep.subr.bf16.mxu0 0
    %3414 = vmatpush1.bf16.msra.mxu0 0
    %3415 = vmatprep.mubr.bf16.mxu0 0
    %3416 = vmatmul.mubr.bf16.gmra.mrb[0].mxu0 %v3378
    %v3417 = vpop.f32.mrb[0].mxu0
    %v3418 = vadd.f32 %v3357, %v3417
    %v3419 = vpop.f32.mrb[0].mxu0
    %v3420 = vpop.f32.mrb[0].mxu0
    %v3421 = vadd.f32 %v3360, %v3420
    %v3422 = vpop.f32.mrb[0].mxu0
    %3423 = vmatprep.mubr.bf16.mxu0 0
    %3424 = vmatmul.mubr.bf16.gmra.mrb[0].mxu0 %v3381
    %v3425 = vpop.f32.mrb[0].mxu0
    %v3426 = vadd.f32 %v3365, %v3425
    %v3427 = vpop.f32.mrb[0].mxu0
    %v3428 = vpop.f32.mrb[0].mxu0
    %v3429 = vadd.f32 %v3368, %v3428
    %v3430 = vpop.f32.mrb[0].mxu0
    %3431 = vdwg.mxu0
    %v3432 = vld [vmem:[%s2 + $0x108] sm:$0xf]
    %v3433 = vld [vmem:[%s2 + $0x10c] sm:$0xf]
    %v3434 = vld [vmem:[%s2 + $0x110] sm:$0xf]
    %v3435 = vld [vmem:[%s2 + $0x114] sm:$0xf]
    %v3438 = vunpack.c.l.b16 %v3434
    %v3439 = vunpack.c.l.b16 %v3435
    %v3440 = vpack.c.b16 %v3439, %v3438
    %v3443 = vsel %vm618, %v3172, 0
    %v3446 = vsel %vm618, %v3173, 0
    %3448 = vmatprep.subr.bf16.mxu0 0
    %3449 = vmatpush1.bf16.msra.mxu0 %v3440
    %3450 = vmatprep.subr.bf16.mxu0 0
    %3451 = vmatpush1.bf16.msra.mxu0 0
    %3452 = vmatprep.subr.bf16.mxu0 0
    %3453 = vmatpush1.bf16.msra.mxu0 0
    %3454 = vmatprep.subr.bf16.mxu0 0
    %3455 = vmatpush1.bf16.msra.mxu0 0
    %3456 = vmatprep.subr.bf16.mxu0 0
    %3457 = vmatpush1.bf16.msra.mxu0 0
    %3458 = vmatprep.subr.bf16.mxu0 0
    %3459 = vmatpush1.bf16.msra.mxu0 0
    %3460 = vmatprep.subr.bf16.mxu0 0
    %3461 = vmatpush1.bf16.msra.mxu0 0
    %3462 = vmatprep.subr.bf16.mxu0 0
    %3463 = vmatpush1.bf16.msra.mxu0 0
    %3464 = vmatprep.subr.bf16.mxu0 0
    %3465 = vmatpush1.bf16.msra.mxu0 0
    %3466 = vmatprep.subr.bf16.mxu0 0
    %3467 = vmatpush1.bf16.msra.mxu0 0
    %3468 = vmatprep.subr.bf16.mxu0 0
    %3469 = vmatpush1.bf16.msra.mxu0 0
    %3470 = vmatprep.subr.bf16.mxu0 0
    %3471 = vmatpush1.bf16.msra.mxu0 0
    %3472 = vmatprep.subr.bf16.mxu0 0
    %3473 = vmatpush1.bf16.msra.mxu0 0
    %3474 = vmatprep.subr.bf16.mxu0 0
    %3475 = vmatpush1.bf16.msra.mxu0 0
    %3476 = vmatprep.subr.bf16.mxu0 0
    %3477 = vmatpush1.bf16.msra.mxu0 0
    %3478 = vmatprep.subr.bf16.mxu0 0
    %3479 = vmatpush1.bf16.msra.mxu0 0
    %3480 = vmatprep.mubr.bf16.mxu0 0
    %3481 = vmatmul.mubr.bf16.gmra.mrb[0].mxu0 %v3443
    %v3482 = vpop.f32.mrb[0].mxu0
    %v3483 = vadd.f32 0.0, %v3482
    %v3484 = vpop.f32.mrb[0].mxu0
    %v3485 = vpop.f32.mrb[0].mxu0
    %v3486 = vadd.f32 0.0, %v3485
    %v3487 = vpop.f32.mrb[0].mxu0
    %3488 = vmatprep.mubr.bf16.mxu0 0
    %3489 = vmatmul.mubr.bf16.gmra.mrb[0].mxu0 %v3446
    %v3490 = vpop.f32.mrb[0].mxu0
    %v3491 = vadd.f32 0.0, %v3490
    %v3492 = vpop.f32.mrb[0].mxu0
    %v3493 = vpop.f32.mrb[0].mxu0
    %v3494 = vadd.f32 0.0, %v3493
    %v3495 = vpop.f32.mrb[0].mxu0
    %3496 = vdwg.mxu0
    %v3499 = vunpack.c.l.b16 %v3432
    %v3500 = vunpack.c.l.b16 %v3433
    %v3501 = vpack.c.b16 %v3500, %v3499
    %v3504 = vsel %vm618, %v3170, 0
    %v3507 = vsel %vm618, %v3171, 0
    %3509 = vmatprep.subr.bf16.mxu0 0
    %3510 = vmatpush1.bf16.msra.mxu0 %v3501
    %3511 = vmatprep.subr.bf16.mxu0 0
    %3512 = vmatpush1.bf16.msra.mxu0 0
    %3513 = vmatprep.subr.bf16.mxu0 0
    %3514 = vmatpush1.bf16.msra.mxu0 0
    %3515 = vmatprep.subr.bf16.mxu0 0
    %3516 = vmatpush1.bf16.msra.mxu0 0
    %3517 = vmatprep.subr.bf16.mxu0 0
    %3518 = vmatpush1.bf16.msra.mxu0 0
    %3519 = vmatprep.subr.bf16.mxu0 0
    %3520 = vmatpush1.bf16.msra.mxu0 0
    %3521 = vmatprep.subr.bf16.mxu0 0
    %3522 = vmatpush1.bf16.msra.mxu0 0
    %3523 = vmatprep.subr.bf16.mxu0 0
    %3524 = vmatpush1.bf16.msra.mxu0 0
    %3525 = vmatprep.subr.bf16.mxu0 0
    %3526 = vmatpush1.bf16.msra.mxu0 0
    %3527 = vmatprep.subr.bf16.mxu0 0
    %3528 = vmatpush1.bf16.msra.mxu0 0
    %3529 = vmatprep.subr.bf16.mxu0 0
    %3530 = vmatpush1.bf16.msra.mxu0 0
    %3531 = vmatprep.subr.bf16.mxu0 0
    %3532 = vmatpush1.bf16.msra.mxu0 0
    %3533 = vmatprep.subr.bf16.mxu0 0
    %3534 = vmatpush1.bf16.msra.mxu0 0
    %3535 = vmatprep.subr.bf16.mxu0 0
    %3536 = vmatpush1.bf16.msra.mxu0 0
    %3537 = vmatprep.subr.bf16.mxu0 0
    %3538 = vmatpush1.bf16.msra.mxu0 0
    %3539 = vmatprep.subr.bf16.mxu0 0
    %3540 = vmatpush1.bf16.msra.mxu0 0
    %3541 = vmatprep.mubr.bf16.mxu0 0
    %3542 = vmatmul.mubr.bf16.gmra.mrb[0].mxu0 %v3504
    %v3543 = vpop.f32.mrb[0].mxu0
    %v3544 = vadd.f32 %v3483, %v3543
    %v3545 = vpop.f32.mrb[0].mxu0
    %v3546 = vpop.f32.mrb[0].mxu0
    %v3547 = vadd.f32 %v3486, %v3546
    %v3548 = vpop.f32.mrb[0].mxu0
    %3549 = vmatprep.mubr.bf16.mxu0 0
    %3550 = vmatmul.mubr.bf16.gmra.mrb[0].mxu0 %v3507
    %v3551 = vpop.f32.mrb[0].mxu0
    %v3552 = vadd.f32 %v3491, %v3551
    %v3553 = vpop.f32.mrb[0].mxu0
    %v3554 = vpop.f32.mrb[0].mxu0
    %v3555 = vadd.f32 %v3494, %v3554
    %v3556 = vpop.f32.mrb[0].mxu0
    %3557 = vdwg.mxu0
    %v3558 = vld [vmem:[%s2 + $0x118] sm:$0xf]
    %v3559 = vld [vmem:[%s2 + $0x11c] sm:$0xf]
    %v3560 = vld [vmem:[%s2 + $0x120] sm:$0xf]
    %v3561 = vld [vmem:[%s2 + $0x124] sm:$0xf]
    %v3564 = vunpack.c.l.b16 %v3560
    %v3565 = vunpack.c.l.b16 %v3561
    %v3566 = vpack.c.b16 %v3565, %v3564
    %v3569 = vsel %vm618, %v3176, 0
    %v3572 = vsel %vm618, %v3177, 0
    %3574 = vmatprep.subr.bf16.mxu0 0
    %3575 = vmatpush1.bf16.msra.mxu0 %v3566
    %3576 = vmatprep.subr.bf16.mxu0 0
    %3577 = vmatpush1.bf16.msra.mxu0 0
    %3578 = vmatprep.subr.bf16.mxu0 0
    %3579 = vmatpush1.bf16.msra.mxu0 0
    %3580 = vmatprep.subr.bf16.mxu0 0
    %3581 = vmatpush1.bf16.msra.mxu0 0
    %3582 = vmatprep.subr.bf16.mxu0 0
    %3583 = vmatpush1.bf16.msra.mxu0 0
    %3584 = vmatprep.subr.bf16.mxu0 0
    %3585 = vmatpush1.bf16.msra.mxu0 0
    %3586 = vmatprep.subr.bf16.mxu0 0
    %3587 = vmatpush1.bf16.msra.mxu0 0
    %3588 = vmatprep.subr.bf16.mxu0 0
    %3589 = vmatpush1.bf16.msra.mxu0 0
    %3590 = vmatprep.subr.bf16.mxu0 0
    %3591 = vmatpush1.bf16.msra.mxu0 0
    %3592 = vmatprep.subr.bf16.mxu0 0
    %3593 = vmatpush1.bf16.msra.mxu0 0
    %3594 = vmatprep.subr.bf16.mxu0 0
    %3595 = vmatpush1.bf16.msra.mxu0 0
    %3596 = vmatprep.subr.bf16.mxu0 0
    %3597 = vmatpush1.bf16.msra.mxu0 0
    %3598 = vmatprep.subr.bf16.mxu0 0
    %3599 = vmatpush1.bf16.msra.mxu0 0
    %3600 = vmatprep.subr.bf16.mxu0 0
    %3601 = vmatpush1.bf16.msra.mxu0 0
    %3602 = vmatprep.subr.bf16.mxu0 0
    %3603 = vmatpush1.bf16.msra.mxu0 0
    %3604 = vmatprep.subr.bf16.mxu0 0
    %3605 = vmatpush1.bf16.msra.mxu0 0
    %3606 = vmatprep.mubr.bf16.mxu0 0
    %3607 = vmatmul.mubr.bf16.gmra.mrb[0].mxu0 %v3569
    %v3608 = vpop.f32.mrb[0].mxu0
    %v3609 = vadd.f32 0.0, %v3608
    %v3610 = vpop.f32.mrb[0].mxu0
    %v3611 = vpop.f32.mrb[0].mxu0
    %v3612 = vadd.f32 0.0, %v3611
    %v3613 = vpop.f32.mrb[0].mxu0
    %3614 = vmatprep.mubr.bf16.mxu0 0
    %3615 = vmatmul.mubr.bf16.gmra.mrb[0].mxu0 %v3572
    %v3616 = vpop.f32.mrb[0].mxu0
    %v3617 = vadd.f32 0.0, %v3616
    %v3618 = vpop.f32.mrb[0].mxu0
    %v3619 = vpop.f32.mrb[0].mxu0
    %v3620 = vadd.f32 0.0, %v3619
    %v3621 = vpop.f32.mrb[0].mxu0
    %3622 = vdwg.mxu0
    %v3625 = vunpack.c.l.b16 %v3558
    %v3626 = vunpack.c.l.b16 %v3559
    %v3627 = vpack.c.b16 %v3626, %v3625
    %v3630 = vsel %vm618, %v3174, 0
    %v3633 = vsel %vm618, %v3175, 0
    %3635 = vmatprep.subr.bf16.mxu0 0
    %3636 = vmatpush1.bf16.msra.mxu0 %v3627
    %3637 = vmatprep.subr.bf16.mxu0 0
    %3638 = vmatpush1.bf16.msra.mxu0 0
    %3639 = vmatprep.subr.bf16.mxu0 0
    %3640 = vmatpush1.bf16.msra.mxu0 0
    %3641 = vmatprep.subr.bf16.mxu0 0
    %3642 = vmatpush1.bf16.msra.mxu0 0
    %3643 = vmatprep.subr.bf16.mxu0 0
    %3644 = vmatpush1.bf16.msra.mxu0 0
    %3645 = vmatprep.subr.bf16.mxu0 0
    %3646 = vmatpush1.bf16.msra.mxu0 0
    %3647 = vmatprep.subr.bf16.mxu0 0
    %3648 = vmatpush1.bf16.msra.mxu0 0
    %3649 = vmatprep.subr.bf16.mxu0 0
    %3650 = vmatpush1.bf16.msra.mxu0 0
    %3651 = vmatprep.subr.bf16.mxu0 0
    %3652 = vmatpush1.bf16.msra.mxu0 0
    %3653 = vmatprep.subr.bf16.mxu0 0
    %3654 = vmatpush1.bf16.msra.mxu0 0
    %3655 = vmatprep.subr.bf16.mxu0 0
    %3656 = vmatpush1.bf16.msra.mxu0 0
    %3657 = vmatprep.subr.bf16.mxu0 0
    %3658 = vmatpush1.bf16.msra.mxu0 0
    %3659 = vmatprep.subr.bf16.mxu0 0
    %3660 = vmatpush1.bf16.msra.mxu0 0
    %3661 = vmatprep.subr.bf16.mxu0 0
    %3662 = vmatpush1.bf16.msra.mxu0 0
    %3663 = vmatprep.subr.bf16.mxu0 0
    %3664 = vmatpush1.bf16.msra.mxu0 0
    %3665 = vmatprep.subr.bf16.mxu0 0
    %3666 = vmatpush1.bf16.msra.mxu0 0
    %3667 = vmatprep.mubr.bf16.mxu0 0
    %3668 = vmatmul.mubr.bf16.gmra.mrb[0].mxu0 %v3630
    %v3669 = vpop.f32.mrb[0].mxu0
    %v3670 = vadd.f32 %v3609, %v3669
    %v3671 = vpop.f32.mrb[0].mxu0
    %v3672 = vpop.f32.mrb[0].mxu0
    %v3673 = vadd.f32 %v3612, %v3672
    %v3674 = vpop.f32.mrb[0].mxu0
    %3675 = vmatprep.mubr.bf16.mxu0 0
    %3676 = vmatmul.mubr.bf16.gmra.mrb[0].mxu0 %v3633
    %v3677 = vpop.f32.mrb[0].mxu0
    %v3678 = vadd.f32 %v3617, %v3677
    %v3679 = vpop.f32.mrb[0].mxu0
    %v3680 = vpop.f32.mrb[0].mxu0
    %v3681 = vadd.f32 %v3620, %v3680
    %v3682 = vpop.f32.mrb[0].mxu0
    %3683 = vdwg.mxu0
    %v3684 = vadd.f32 %v3292, %v3418
    %v3685 = vadd.f32 %v3295, %v3421
    %v3686 = vadd.f32 %v3300, %v3426
    %v3687 = vadd.f32 %v3303, %v3429
    %v3688 = vadd.f32 %v3544, %v3670
    %v3689 = vadd.f32 %v3547, %v3673
    %v3690 = vadd.f32 %v3552, %v3678
    %v3691 = vadd.f32 %v3555, %v3681
    %v3692 = vadd.f32 %v3684, %v3688
    %v3693 = vadd.f32 %v3685, %v3689
    %v3694 = vadd.f32 %v3686, %v3690
    %v3695 = vadd.f32 %v3687, %v3691
    %v3696 = vld [vmem:[%s2 + $0x128] sm:$0xf]
    %v3697 = vld [vmem:[%s2 + $0x12c] sm:$0xf]
    %v3700 = vunpack.c.l.b16 %v3696
    %v3701 = vunpack.c.l.b16 %v3697
    %v3702 = vpack.c.b16 %v3701, %v3700
    %v3705 = vsel %vm618, %v3178, 0
    %v3708 = vsel %vm618, %v3179, 0
    %3710 = vmatprep.subr.bf16.mxu0 0
    %3711 = vmatpush1.bf16.msra.mxu0 %v3702
    %3712 = vmatprep.subr.bf16.mxu0 0
    %3713 = vmatpush1.bf16.msra.mxu0 0
    %3714 = vmatprep.subr.bf16.mxu0 0
    %3715 = vmatpush1.bf16.msra.mxu0 0
    %3716 = vmatprep.subr.bf16.mxu0 0
    %3717 = vmatpush1.bf16.msra.mxu0 0
    %3718 = vmatprep.subr.bf16.mxu0 0
    %3719 = vmatpush1.bf16.msra.mxu0 0
    %3720 = vmatprep.subr.bf16.mxu0 0
    %3721 = vmatpush1.bf16.msra.mxu0 0
    %3722 = vmatprep.subr.bf16.mxu0 0
    %3723 = vmatpush1.bf16.msra.mxu0 0
    %3724 = vmatprep.subr.bf16.mxu0 0
    %3725 = vmatpush1.bf16.msra.mxu0 0
    %3726 = vmatprep.subr.bf16.mxu0 0
    %3727 = vmatpush1.bf16.msra.mxu0 0
    %3728 = vmatprep.subr.bf16.mxu0 0
    %3729 = vmatpush1.bf16.msra.mxu0 0
    %3730 = vmatprep.subr.bf16.mxu0 0
    %3731 = vmatpush1.bf16.msra.mxu0 0
    %3732 = vmatprep.subr.bf16.mxu0 0
    %3733 = vmatpush1.bf16.msra.mxu0 0
    %3734 = vmatprep.subr.bf16.mxu0 0
    %3735 = vmatpush1.bf16.msra.mxu0 0
    %3736 = vmatprep.subr.bf16.mxu0 0
    %3737 = vmatpush1.bf16.msra.mxu0 0
    %3738 = vmatprep.subr.bf16.mxu0 0
    %3739 = vmatpush1.bf16.msra.mxu0 0
    %3740 = vmatprep.subr.bf16.mxu0 0
    %3741 = vmatpush1.bf16.msra.mxu0 0
    %3742 = vmatprep.mubr.bf16.mxu0 0
    %3743 = vmatmul.mubr.bf16.gmra.mrb[0].mxu0 %v3705
    %v3744 = vpop.f32.mrb[0].mxu0
    %v3745 = vadd.f32 0.0, %v3744
    %v3746 = vpop.f32.mrb[0].mxu0
    %v3747 = vpop.f32.mrb[0].mxu0
    %v3748 = vadd.f32 0.0, %v3747
    %v3749 = vpop.f32.mrb[0].mxu0
    %3750 = vmatprep.mubr.bf16.mxu0 0
    %3751 = vmatmul.mubr.bf16.gmra.mrb[0].mxu0 %v3708
    %v3752 = vpop.f32.mrb[0].mxu0
    %v3753 = vadd.f32 0.0, %v3752
    %v3754 = vpop.f32.mrb[0].mxu0
    %v3755 = vpop.f32.mrb[0].mxu0
    %v3756 = vadd.f32 0.0, %v3755
    %v3757 = vpop.f32.mrb[0].mxu0
    %3758 = vdwg.mxu0
    %v3759 = vadd.f32 %v3692, %v3745
    %v3760 = vadd.f32 %v3693, %v3748
    %v3761 = vadd.f32 %v3694, %v3753
    %v3762 = vadd.f32 %v3695, %v3756
    %v3763 = vld [vmem:[%s4 + $0x4] ss:$0 sm:$0xff]
    %v3764 = vadd.f32 %v3759, %v3763
    %v3765 = vadd.f32 %v3760, %v3763
    %v3766 = vadd.f32 %v3761, %v3763
    %v3767 = vadd.f32 %v3762, %v3763
    %v3768 = vadd.f32 %v3764, %v2981
    %v3769 = vadd.f32 %v3765, %v2982
    %v3770 = vadd.f32 %v3766, %v2983
    %v3771 = vadd.f32 %v3767, %v2984
    %v3772 = vmax.f32 %v3768, 0.0
    %v3773 = vmax.f32 %v3769, 0.0
    %v3774 = vmax.f32 %v3770, 0.0
    %v3775 = vmax.f32 %v3771, 0.0
    %v3776 = vpack.c.bf16 %v3773, %v3772
    %v3777 = vpack.c.bf16 %v3775, %v3774
    %3778 = vmatprep.subr.bf16.mxu0 0
    %3779 = vmatpush1.bf16.msra.mxu0 %v3776
    %3780 = vmatprep.subr.bf16.mxu0 0
    %3781 = vmatpush1.bf16.msra.mxu0 %v3777
    %3782 = vmatprep.subr.bf16.mxu0 0
    %3783 = vmatpush1.bf16.msra.mxu0 0
    %3784 = vmatprep.subr.bf16.mxu0 0
    %3785 = vmatpush1.bf16.msra.mxu0 0
    %3786 = vmatprep.subr.bf16.mxu0 0
    %3787 = vmatpush1.bf16.msra.mxu0 0
    %3788 = vmatprep.subr.bf16.mxu0 0
    %3789 = vmatpush1.bf16.msra.mxu0 0
    %3790 = vmatprep.subr.bf16.mxu0 0
    %3791 = vmatpush1.bf16.msra.mxu0 0
    %3792 = vmatprep.subr.bf16.mxu0 0
    %3793 = vmatpush1.bf16.msra.mxu0 0
    %3794 = vmatprep.subr.bf16.mxu0 0
    %3795 = vmatpush1.bf16.msra.mxu0 0
    %3796 = vmatprep.subr.bf16.mxu0 0
    %3797 = vmatpush1.bf16.msra.mxu0 0
    %3798 = vmatprep.subr.bf16.mxu0 0
    %3799 = vmatpush1.bf16.msra.mxu0 0
    %3800 = vmatprep.subr.bf16.mxu0 0
    %3801 = vmatpush1.bf16.msra.mxu0 0
    %3802 = vmatprep.subr.bf16.mxu0 0
    %3803 = vmatpush1.bf16.msra.mxu0 0
    %3804 = vmatprep.subr.bf16.mxu0 0
    %3805 = vmatpush1.bf16.msra.mxu0 0
    %3806 = vmatprep.subr.bf16.mxu0 0
    %3807 = vmatpush1.bf16.msra.mxu0 0
    %3808 = vmatprep.subr.bf16.mxu0 0
    %3809 = vmatpush1.bf16.msra.mxu0 0
    %3810 = vmatprep.mubr.bf16.mxu0 0
    %3811 = vmatmul.mubr.bf16.gmra.mrb[0].mxu0 %v1330
    %v3812 = vpop.f32.mrb[0].mxu0
    %v3813 = vadd.f32 0.0, %v3812
    %v3814 = vpop.f32.mrb[0].mxu0
    %v3815 = vpop.f32.mrb[0].mxu0
    %v3816 = vadd.f32 0.0, %v3815
    %v3817 = vpop.f32.mrb[0].mxu0
    %3818 = vmatprep.mubr.bf16.mxu0 0
    %3819 = vmatmul.mubr.bf16.gmra.mrb[0].mxu0 %v1333
    %v3820 = vpop.f32.mrb[0].mxu0
    %v3821 = vadd.f32 0.0, %v3820
    %v3822 = vpop.f32.mrb[0].mxu0
    %v3823 = vpop.f32.mrb[0].mxu0
    %v3824 = vadd.f32 0.0, %v3823
    %v3825 = vpop.f32.mrb[0].mxu0
    %3826 = vmatprep.mubr.bf16.mxu0 0
    %3827 = vmatmul.mubr.bf16.gmra.mrb[0].mxu0 %v1336
    %v3828 = vpop.f32.mrb[0].mxu0
    %v3829 = vadd.f32 0.0, %v3828
    %v3830 = vpop.f32.mrb[0].mxu0
    %v3831 = vpop.f32.mrb[0].mxu0
    %v3832 = vadd.f32 0.0, %v3831
    %v3833 = vpop.f32.mrb[0].mxu0
    %3834 = vmatprep.mubr.bf16.mxu0 0
    %3835 = vmatmul.mubr.bf16.gmra.mrb[0].mxu0 %v1339
    %v3836 = vpop.f32.mrb[0].mxu0
    %v3837 = vadd.f32 0.0, %v3836
    %v3838 = vpop.f32.mrb[0].mxu0
    %v3839 = vpop.f32.mrb[0].mxu0
    %v3840 = vadd.f32 0.0, %v3839
    %v3841 = vpop.f32.mrb[0].mxu0
    %3842 = vmatprep.mubr.bf16.mxu0 0
    %3843 = vmatmul.mubr.bf16.gmra.mrb[0].mxu0 %v1342
    %v3844 = vpop.f32.mrb[0].mxu0
    %v3845 = vadd.f32 0.0, %v3844
    %v3846 = vpop.f32.mrb[0].mxu0
    %v3847 = vpop.f32.mrb[0].mxu0
    %v3848 = vadd.f32 0.0, %v3847
    %v3849 = vpop.f32.mrb[0].mxu0
    %3850 = vmatprep.mubr.bf16.mxu0 0
    %3851 = vmatmul.mubr.bf16.gmra.mrb[0].mxu0 %v1345
    %v3852 = vpop.f32.mrb[0].mxu0
    %v3853 = vadd.f32 0.0, %v3852
    %v3854 = vpop.f32.mrb[0].mxu0
    %v3855 = vpop.f32.mrb[0].mxu0
    %v3856 = vadd.f32 0.0, %v3855
    %v3857 = vpop.f32.mrb[0].mxu0
    %3858 = vmatprep.mubr.bf16.mxu0 0
    %3859 = vmatmul.mubr.bf16.gmra.mrb[0].mxu0 %v1348
    %v3860 = vpop.f32.mrb[0].mxu0
    %v3861 = vadd.f32 0.0, %v3860
    %v3862 = vpop.f32.mrb[0].mxu0
    %v3863 = vpop.f32.mrb[0].mxu0
    %v3864 = vadd.f32 0.0, %v3863
    %v3865 = vpop.f32.mrb[0].mxu0
    %3866 = vmatprep.mubr.bf16.mxu0 0
    %3867 = vmatmul.mubr.bf16.gmra.mrb[0].mxu0 %v1351
    %v3868 = vpop.f32.mrb[0].mxu0
    %v3869 = vadd.f32 0.0, %v3868
    %v3870 = vpop.f32.mrb[0].mxu0
    %v3871 = vpop.f32.mrb[0].mxu0
    %v3872 = vadd.f32 0.0, %v3871
    %v3873 = vpop.f32.mrb[0].mxu0
    %3874 = vmatprep.mubr.bf16.mxu0 0
    %3875 = vmatmul.mubr.bf16.gmra.mrb[0].mxu0 %v1354
    %v3876 = vpop.f32.mrb[0].mxu0
    %v3877 = vadd.f32 0.0, %v3876
    %v3878 = vpop.f32.mrb[0].mxu0
    %v3879 = vpop.f32.mrb[0].mxu0
    %v3880 = vadd.f32 0.0, %v3879
    %v3881 = vpop.f32.mrb[0].mxu0
    %3882 = vmatprep.mubr.bf16.mxu0 0
    %3883 = vmatmul.mubr.bf16.gmra.mrb[0].mxu0 %v1357
    %v3884 = vpop.f32.mrb[0].mxu0
    %v3885 = vadd.f32 0.0, %v3884
    %v3886 = vpop.f32.mrb[0].mxu0
    %v3887 = vpop.f32.mrb[0].mxu0
    %v3888 = vadd.f32 0.0, %v3887
    %v3889 = vpop.f32.mrb[0].mxu0
    %3890 = vmatprep.mubr.bf16.mxu0 0
    %3891 = vmatmul.mubr.bf16.gmra.mrb[0].mxu0 %v1360
    %v3892 = vpop.f32.mrb[0].mxu0
    %v3893 = vadd.f32 0.0, %v3892
    %v3894 = vpop.f32.mrb[0].mxu0
    %v3895 = vpop.f32.mrb[0].mxu0
    %v3896 = vadd.f32 0.0, %v3895
    %v3897 = vpop.f32.mrb[0].mxu0
    %3898 = vmatprep.mubr.bf16.mxu0 0
    %3899 = vmatmul.mubr.bf16.gmra.mrb[0].mxu0 %v1363
    %v3900 = vpop.f32.mrb[0].mxu0
    %v3901 = vadd.f32 0.0, %v3900
    %v3902 = vpop.f32.mrb[0].mxu0
    %v3903 = vpop.f32.mrb[0].mxu0
    %v3904 = vadd.f32 0.0, %v3903
    %v3905 = vpop.f32.mrb[0].mxu0
    %3906 = vmatprep.mubr.bf16.mxu0 0
    %3907 = vmatmul.mubr.bf16.gmra.mrb[0].mxu0 %v1366
    %v3908 = vpop.f32.mrb[0].mxu0
    %v3909 = vadd.f32 0.0, %v3908
    %v3910 = vpop.f32.mrb[0].mxu0
    %v3911 = vpop.f32.mrb[0].mxu0
    %v3912 = vadd.f32 0.0, %v3911
    %v3913 = vpop.f32.mrb[0].mxu0
    %3914 = vmatprep.mubr.bf16.mxu0 0
    %3915 = vmatmul.mubr.bf16.gmra.mrb[0].mxu0 %v1369
    %v3916 = vpop.f32.mrb[0].mxu0
    %v3917 = vadd.f32 0.0, %v3916
    %v3918 = vpop.f32.mrb[0].mxu0
    %v3919 = vpop.f32.mrb[0].mxu0
    %v3920 = vadd.f32 0.0, %v3919
    %v3921 = vpop.f32.mrb[0].mxu0
    %3922 = vmatprep.mubr.bf16.mxu0 0
    %3923 = vmatmul.mubr.bf16.gmra.mrb[0].mxu0 %v1372
    %v3924 = vpop.f32.mrb[0].mxu0
    %v3925 = vadd.f32 0.0, %v3924
    %v3926 = vpop.f32.mrb[0].mxu0
    %v3927 = vpop.f32.mrb[0].mxu0
    %v3928 = vadd.f32 0.0, %v3927
    %v3929 = vpop.f32.mrb[0].mxu0
    %3930 = vmatprep.mubr.bf16.mxu0 0
    %3931 = vmatmul.mubr.bf16.gmra.mrb[0].mxu0 %v1375
    %v3932 = vpop.f32.mrb[0].mxu0
    %v3933 = vadd.f32 0.0, %v3932
    %v3934 = vpop.f32.mrb[0].mxu0
    %v3935 = vpop.f32.mrb[0].mxu0
    %v3936 = vadd.f32 0.0, %v3935
    %v3937 = vpop.f32.mrb[0].mxu0
    %3938 = vmatprep.mubr.bf16.mxu0 0
    %3939 = vmatmul.mubr.bf16.gmra.mrb[0].mxu0 %v1378
    %v3940 = vpop.f32.mrb[0].mxu0
    %v3941 = vadd.f32 0.0, %v3940
    %v3942 = vpop.f32.mrb[0].mxu0
    %v3943 = vpop.f32.mrb[0].mxu0
    %v3944 = vadd.f32 0.0, %v3943
    %v3945 = vpop.f32.mrb[0].mxu0
    %3946 = vmatprep.mubr.bf16.mxu0 0
    %3947 = vmatmul.mubr.bf16.gmra.mrb[0].mxu0 %v1381
    %v3948 = vpop.f32.mrb[0].mxu0
    %v3949 = vadd.f32 0.0, %v3948
    %v3950 = vpop.f32.mrb[0].mxu0
    %v3951 = vpop.f32.mrb[0].mxu0
    %v3952 = vadd.f32 0.0, %v3951
    %v3953 = vpop.f32.mrb[0].mxu0
    %3954 = vdwg.mxu0
    %v3955 = vpack.c.bf16 %v3816, %v3813
    %v3956 = vpack.c.bf16 %v3824, %v3821
    %v3957 = vpack.c.bf16 %v3832, %v3829
    %v3958 = vpack.c.bf16 %v3840, %v3837
    %v3959 = vpack.c.bf16 %v3848, %v3845
    %v3960 = vpack.c.bf16 %v3856, %v3853
    %v3961 = vpack.c.bf16 %v3864, %v3861
    %v3962 = vpack.c.bf16 %v3872, %v3869
    %v3963 = vpack.c.bf16 %v3880, %v3877
    %v3964 = vpack.c.bf16 %v3888, %v3885
    %v3965 = vpack.c.bf16 %v3896, %v3893
    %v3966 = vpack.c.bf16 %v3904, %v3901
    %v3967 = vpack.c.bf16 %v3912, %v3909
    %v3968 = vpack.c.bf16 %v3920, %v3917
    %v3969 = vpack.c.bf16 %v3928, %v3925
    %v3970 = vpack.c.bf16 %v3936, %v3933
    %v3971 = vpack.c.bf16 %v3944, %v3941
    %v3972 = vpack.c.bf16 %v3952, %v3949
    %v3973 = vld [vmem:[%s2 + $0x130] sm:$0xf]
    %v3974 = vld [vmem:[%s2 + $0x134] sm:$0xf]
    %v3975 = vld [vmem:[%s2 + $0x138] sm:$0xf]
    %v3976 = vld [vmem:[%s2 + $0x13c] sm:$0xf]
    %v3979 = vunpack.c.l.b16 %v3975
    %v3980 = vunpack.c.l.b16 %v3976
    %v3981 = vpack.c.b16 %v3980, %v3979
    %v3984 = vsel %vm618, %v3957, 0
    %v3987 = vsel %vm618, %v3958, 0
    %3989 = vmatprep.subr.bf16.mxu0 0
    %3990 = vmatpush1.bf16.msra.mxu0 %v3981
    %3991 = vmatprep.subr.bf16.mxu0 0
    %3992 = vmatpush1.bf16.msra.mxu0 0
    %3993 = vmatprep.subr.bf16.mxu0 0
    %3994 = vmatpush1.bf16.msra.mxu0 0
    %3995 = vmatprep.subr.bf16.mxu0 0
    %3996 = vmatpush1.bf16.msra.mxu0 0
    %3997 = vmatprep.subr.bf16.mxu0 0
    %3998 = vmatpush1.bf16.msra.mxu0 0
    %3999 = vmatprep.subr.bf16.mxu0 0
    %4000 = vmatpush1.bf16.msra.mxu0 0
    %4001 = vmatprep.subr.bf16.mxu0 0
    %4002 = vmatpush1.bf16.msra.mxu0 0
    %4003 = vmatprep.subr.bf16.mxu0 0
    %4004 = vmatpush1.bf16.msra.mxu0 0
    %4005 = vmatprep.subr.bf16.mxu0 0
    %4006 = vmatpush1.bf16.msra.mxu0 0
    %4007 = vmatprep.subr.bf16.mxu0 0
    %4008 = vmatpush1.bf16.msra.mxu0 0
    %4009 = vmatprep.subr.bf16.mxu0 0
    %4010 = vmatpush1.bf16.msra.mxu0 0
    %4011 = vmatprep.subr.bf16.mxu0 0
    %4012 = vmatpush1.bf16.msra.mxu0 0
    %4013 = vmatprep.subr.bf16.mxu0 0
    %4014 = vmatpush1.bf16.msra.mxu0 0
    %4015 = vmatprep.subr.bf16.mxu0 0
    %4016 = vmatpush1.bf16.msra.mxu0 0
    %4017 = vmatprep.subr.bf16.mxu0 0
    %4018 = vmatpush1.bf16.msra.mxu0 0
    %4019 = vmatprep.subr.bf16.mxu0 0
    %4020 = vmatpush1.bf16.msra.mxu0 0
    %4021 = vmatprep.mubr.bf16.mxu0 0
    %4022 = vmatmul.mubr.bf16.gmra.mrb[0].mxu0 %v3984
    %v4023 = vpop.f32.mrb[0].mxu0
    %v4024 = vadd.f32 0.0, %v4023
    %v4025 = vpop.f32.mrb[0].mxu0
    %v4026 = vpop.f32.mrb[0].mxu0
    %v4027 = vadd.f32 0.0, %v4026
    %v4028 = vpop.f32.mrb[0].mxu0
    %4029 = vmatprep.mubr.bf16.mxu0 0
    %4030 = vmatmul.mubr.bf16.gmra.mrb[0].mxu0 %v3987
    %v4031 = vpop.f32.mrb[0].mxu0
    %v4032 = vadd.f32 0.0, %v4031
    %v4033 = vpop.f32.mrb[0].mxu0
    %v4034 = vpop.f32.mrb[0].mxu0
    %v4035 = vadd.f32 0.0, %v4034
    %v4036 = vpop.f32.mrb[0].mxu0
    %4037 = vdwg.mxu0
    %v4040 = vunpack.c.l.b16 %v3973
    %v4041 = vunpack.c.l.b16 %v3974
    %v4042 = vpack.c.b16 %v4041, %v4040
    %v4045 = vsel %vm618, %v3955, 0
    %v4048 = vsel %vm618, %v3956, 0
    %4050 = vmatprep.subr.bf16.mxu0 0
    %4051 = vmatpush1.bf16.msra.mxu0 %v4042
    %4052 = vmatprep.subr.bf16.mxu0 0
    %4053 = vmatpush1.bf16.msra.mxu0 0
    %4054 = vmatprep.subr.bf16.mxu0 0
    %4055 = vmatpush1.bf16.msra.mxu0 0
    %4056 = vmatprep.subr.bf16.mxu0 0
    %4057 = vmatpush1.bf16.msra.mxu0 0
    %4058 = vmatprep.subr.bf16.mxu0 0
    %4059 = vmatpush1.bf16.msra.mxu0 0
    %4060 = vmatprep.subr.bf16.mxu0 0
    %4061 = vmatpush1.bf16.msra.mxu0 0
    %4062 = vmatprep.subr.bf16.mxu0 0
    %4063 = vmatpush1.bf16.msra.mxu0 0
    %4064 = vmatprep.subr.bf16.mxu0 0
    %4065 = vmatpush1.bf16.msra.mxu0 0
    %4066 = vmatprep.subr.bf16.mxu0 0
    %4067 = vmatpush1.bf16.msra.mxu0 0
    %4068 = vmatprep.subr.bf16.mxu0 0
    %4069 = vmatpush1.bf16.msra.mxu0 0
    %4070 = vmatprep.subr.bf16.mxu0 0
    %4071 = vmatpush1.bf16.msra.mxu0 0
    %4072 = vmatprep.subr.bf16.mxu0 0
    %4073 = vmatpush1.bf16.msra.mxu0 0
    %4074 = vmatprep.subr.bf16.mxu0 0
    %4075 = vmatpush1.bf16.msra.mxu0 0
    %4076 = vmatprep.subr.bf16.mxu0 0
    %4077 = vmatpush1.bf16.msra.mxu0 0
    %4078 = vmatprep.subr.bf16.mxu0 0
    %4079 = vmatpush1.bf16.msra.mxu0 0
    %4080 = vmatprep.subr.bf16.mxu0 0
    %4081 = vmatpush1.bf16.msra.mxu0 0
    %4082 = vmatprep.mubr.bf16.mxu0 0
    %4083 = vmatmul.mubr.bf16.gmra.mrb[0].mxu0 %v4045
    %v4084 = vpop.f32.mrb[0].mxu0
    %v4085 = vadd.f32 %v4024, %v4084
    %v4086 = vpop.f32.mrb[0].mxu0
    %v4087 = vpop.f32.mrb[0].mxu0
    %v4088 = vadd.f32 %v4027, %v4087
    %v4089 = vpop.f32.mrb[0].mxu0
    %4090 = vmatprep.mubr.bf16.mxu0 0
    %4091 = vmatmul.mubr.bf16.gmra.mrb[0].mxu0 %v4048
    %v4092 = vpop.f32.mrb[0].mxu0
    %v4093 = vadd.f32 %v4032, %v4092
    %v4094 = vpop.f32.mrb[0].mxu0
    %v4095 = vpop.f32.mrb[0].mxu0
    %v4096 = vadd.f32 %v4035, %v4095
    %v4097 = vpop.f32.mrb[0].mxu0
    %4098 = vdwg.mxu0
    %v4099 = vld [vmem:[%s2 + $0x140] sm:$0xf]
    %v4100 = vld [vmem:[%s2 + $0x144] sm:$0xf]
    %v4101 = vld [vmem:[%s2 + $0x148] sm:$0xf]
    %v4102 = vld [vmem:[%s2 + $0x14c] sm:$0xf]
    %v4105 = vunpack.c.l.b16 %v4101
    %v4106 = vunpack.c.l.b16 %v4102
    %v4107 = vpack.c.b16 %v4106, %v4105
    %v4110 = vsel %vm618, %v3961, 0
    %v4113 = vsel %vm618, %v3962, 0
    %4115 = vmatprep.subr.bf16.mxu0 0
    %4116 = vmatpush1.bf16.msra.mxu0 %v4107
    %4117 = vmatprep.subr.bf16.mxu0 0
    %4118 = vmatpush1.bf16.msra.mxu0 0
    %4119 = vmatprep.subr.bf16.mxu0 0
    %4120 = vmatpush1.bf16.msra.mxu0 0
    %4121 = vmatprep.subr.bf16.mxu0 0
    %4122 = vmatpush1.bf16.msra.mxu0 0
    %4123 = vmatprep.subr.bf16.mxu0 0
    %4124 = vmatpush1.bf16.msra.mxu0 0
    %4125 = vmatprep.subr.bf16.mxu0 0
    %4126 = vmatpush1.bf16.msra.mxu0 0
    %4127 = vmatprep.subr.bf16.mxu0 0
    %4128 = vmatpush1.bf16.msra.mxu0 0
    %4129 = vmatprep.subr.bf16.mxu0 0
    %4130 = vmatpush1.bf16.msra.mxu0 0
    %4131 = vmatprep.subr.bf16.mxu0 0
    %4132 = vmatpush1.bf16.msra.mxu0 0
    %4133 = vmatprep.subr.bf16.mxu0 0
    %4134 = vmatpush1.bf16.msra.mxu0 0
    %4135 = vmatprep.subr.bf16.mxu0 0
    %4136 = vmatpush1.bf16.msra.mxu0 0
    %4137 = vmatprep.subr.bf16.mxu0 0
    %4138 = vmatpush1.bf16.msra.mxu0 0
    %4139 = vmatprep.subr.bf16.mxu0 0
    %4140 = vmatpush1.bf16.msra.mxu0 0
    %4141 = vmatprep.subr.bf16.mxu0 0
    %4142 = vmatpush1.bf16.msra.mxu0 0
    %4143 = vmatprep.subr.bf16.mxu0 0
    %4144 = vmatpush1.bf16.msra.mxu0 0
    %4145 = vmatprep.subr.bf16.mxu0 0
    %4146 = vmatpush1.bf16.msra.mxu0 0
    %4147 = vmatprep.mubr.bf16.mxu0 0
    %4148 = vmatmul.mubr.bf16.gmra.mrb[0].mxu0 %v4110
    %v4149 = vpop.f32.mrb[0].mxu0
    %v4150 = vadd.f32 0.0, %v4149
    %v4151 = vpop.f32.mrb[0].mxu0
    %v4152 = vpop.f32.mrb[0].mxu0
    %v4153 = vadd.f32 0.0, %v4152
    %v4154 = vpop.f32.mrb[0].mxu0
    %4155 = vmatprep.mubr.bf16.mxu0 0
    %4156 = vmatmul.mubr.bf16.gmra.mrb[0].mxu0 %v4113
    %v4157 = vpop.f32.mrb[0].mxu0
    %v4158 = vadd.f32 0.0, %v4157
    %v4159 = vpop.f32.mrb[0].mxu0
    %v4160 = vpop.f32.mrb[0].mxu0
    %v4161 = vadd.f32 0.0, %v4160
    %v4162 = vpop.f32.mrb[0].mxu0
    %4163 = vdwg.mxu0
    %v4166 = vunpack.c.l.b16 %v4099
    %v4167 = vunpack.c.l.b16 %v4100
    %v4168 = vpack.c.b16 %v4167, %v4166
    %v4171 = vsel %vm618, %v3959, 0
    %v4174 = vsel %vm618, %v3960, 0
    %4176 = vmatprep.subr.bf16.mxu0 0
    %4177 = vmatpush1.bf16.msra.mxu0 %v4168
    %4178 = vmatprep.subr.bf16.mxu0 0
    %4179 = vmatpush1.bf16.msra.mxu0 0
    %4180 = vmatprep.subr.bf16.mxu0 0
    %4181 = vmatpush1.bf16.msra.mxu0 0
    %4182 = vmatprep.subr.bf16.mxu0 0
    %4183 = vmatpush1.bf16.msra.mxu0 0
    %4184 = vmatprep.subr.bf16.mxu0 0
    %4185 = vmatpush1.bf16.msra.mxu0 0
    %4186 = vmatprep.subr.bf16.mxu0 0
    %4187 = vmatpush1.bf16.msra.mxu0 0
    %4188 = vmatprep.subr.bf16.mxu0 0
    %4189 = vmatpush1.bf16.msra.mxu0 0
    %4190 = vmatprep.subr.bf16.mxu0 0
    %4191 = vmatpush1.bf16.msra.mxu0 0
    %4192 = vmatprep.subr.bf16.mxu0 0
    %4193 = vmatpush1.bf16.msra.mxu0 0
    %4194 = vmatprep.subr.bf16.mxu0 0
    %4195 = vmatpush1.bf16.msra.mxu0 0
    %4196 = vmatprep.subr.bf16.mxu0 0
    %4197 = vmatpush1.bf16.msra.mxu0 0
    %4198 = vmatprep.subr.bf16.mxu0 0
    %4199 = vmatpush1.bf16.msra.mxu0 0
    %4200 = vmatprep.subr.bf16.mxu0 0
    %4201 = vmatpush1.bf16.msra.mxu0 0
    %4202 = vmatprep.subr.bf16.mxu0 0
    %4203 = vmatpush1.bf16.msra.mxu0 0
    %4204 = vmatprep.subr.bf16.mxu0 0
    %4205 = vmatpush1.bf16.msra.mxu0 0
    %4206 = vmatprep.subr.bf16.mxu0 0
    %4207 = vmatpush1.bf16.msra.mxu0 0
    %4208 = vmatprep.mubr.bf16.mxu0 0
    %4209 = vmatmul.mubr.bf16.gmra.mrb[0].mxu0 %v4171
    %v4210 = vpop.f32.mrb[0].mxu0
    %v4211 = vadd.f32 %v4150, %v4210
    %v4212 = vpop.f32.mrb[0].mxu0
    %v4213 = vpop.f32.mrb[0].mxu0
    %v4214 = vadd.f32 %v4153, %v4213
    %v4215 = vpop.f32.mrb[0].mxu0
    %4216 = vmatprep.mubr.bf16.mxu0 0
    %4217 = vmatmul.mubr.bf16.gmra.mrb[0].mxu0 %v4174
    %v4218 = vpop.f32.mrb[0].mxu0
    %v4219 = vadd.f32 %v4158, %v4218
    %v4220 = vpop.f32.mrb[0].mxu0
    %v4221 = vpop.f32.mrb[0].mxu0
    %v4222 = vadd.f32 %v4161, %v4221
    %v4223 = vpop.f32.mrb[0].mxu0
    %4224 = vdwg.mxu0
    %v4225 = vld [vmem:[%s2 + $0x150] sm:$0xf]
    %v4226 = vld [vmem:[%s2 + $0x154] sm:$0xf]
    %v4227 = vld [vmem:[%s2 + $0x158] sm:$0xf]
    %v4228 = vld [vmem:[%s2 + $0x15c] sm:$0xf]
    %v4231 = vunpack.c.l.b16 %v4227
    %v4232 = vunpack.c.l.b16 %v4228
    %v4233 = vpack.c.b16 %v4232, %v4231
    %v4236 = vsel %vm618, %v3965, 0
    %v4239 = vsel %vm618, %v3966, 0
    %4241 = vmatprep.subr.bf16.mxu0 0
    %4242 = vmatpush1.bf16.msra.mxu0 %v4233
    %4243 = vmatprep.subr.bf16.mxu0 0
    %4244 = vmatpush1.bf16.msra.mxu0 0
    %4245 = vmatprep.subr.bf16.mxu0 0
    %4246 = vmatpush1.bf16.msra.mxu0 0
    %4247 = vmatprep.subr.bf16.mxu0 0
    %4248 = vmatpush1.bf16.msra.mxu0 0
    %4249 = vmatprep.subr.bf16.mxu0 0
    %4250 = vmatpush1.bf16.msra.mxu0 0
    %4251 = vmatprep.subr.bf16.mxu0 0
    %4252 = vmatpush1.bf16.msra.mxu0 0
    %4253 = vmatprep.subr.bf16.mxu0 0
    %4254 = vmatpush1.bf16.msra.mxu0 0
    %4255 = vmatprep.subr.bf16.mxu0 0
    %4256 = vmatpush1.bf16.msra.mxu0 0
    %4257 = vmatprep.subr.bf16.mxu0 0
    %4258 = vmatpush1.bf16.msra.mxu0 0
    %4259 = vmatprep.subr.bf16.mxu0 0
    %4260 = vmatpush1.bf16.msra.mxu0 0
    %4261 = vmatprep.subr.bf16.mxu0 0
    %4262 = vmatpush1.bf16.msra.mxu0 0
    %4263 = vmatprep.subr.bf16.mxu0 0
    %4264 = vmatpush1.bf16.msra.mxu0 0
    %4265 = vmatprep.subr.bf16.mxu0 0
    %4266 = vmatpush1.bf16.msra.mxu0 0
    %4267 = vmatprep.subr.bf16.mxu0 0
    %4268 = vmatpush1.bf16.msra.mxu0 0
    %4269 = vmatprep.subr.bf16.mxu0 0
    %4270 = vmatpush1.bf16.msra.mxu0 0
    %4271 = vmatprep.subr.bf16.mxu0 0
    %4272 = vmatpush1.bf16.msra.mxu0 0
    %4273 = vmatprep.mubr.bf16.mxu0 0
    %4274 = vmatmul.mubr.bf16.gmra.mrb[0].mxu0 %v4236
    %v4275 = vpop.f32.mrb[0].mxu0
    %v4276 = vadd.f32 0.0, %v4275
    %v4277 = vpop.f32.mrb[0].mxu0
    %v4278 = vpop.f32.mrb[0].mxu0
    %v4279 = vadd.f32 0.0, %v4278
    %v4280 = vpop.f32.mrb[0].mxu0
    %4281 = vmatprep.mubr.bf16.mxu0 0
    %4282 = vmatmul.mubr.bf16.gmra.mrb[0].mxu0 %v4239
    %v4283 = vpop.f32.mrb[0].mxu0
    %v4284 = vadd.f32 0.0, %v4283
    %v4285 = vpop.f32.mrb[0].mxu0
    %v4286 = vpop.f32.mrb[0].mxu0
    %v4287 = vadd.f32 0.0, %v4286
    %v4288 = vpop.f32.mrb[0].mxu0
    %4289 = vdwg.mxu0
    %v4292 = vunpack.c.l.b16 %v4225
    %v4293 = vunpack.c.l.b16 %v4226
    %v4294 = vpack.c.b16 %v4293, %v4292
    %v4297 = vsel %vm618, %v3963, 0
    %v4300 = vsel %vm618, %v3964, 0
    %4302 = vmatprep.subr.bf16.mxu0 0
    %4303 = vmatpush1.bf16.msra.mxu0 %v4294
    %4304 = vmatprep.subr.bf16.mxu0 0
    %4305 = vmatpush1.bf16.msra.mxu0 0
    %4306 = vmatprep.subr.bf16.mxu0 0
    %4307 = vmatpush1.bf16.msra.mxu0 0
    %4308 = vmatprep.subr.bf16.mxu0 0
    %4309 = vmatpush1.bf16.msra.mxu0 0
    %4310 = vmatprep.subr.bf16.mxu0 0
    %4311 = vmatpush1.bf16.msra.mxu0 0
    %4312 = vmatprep.subr.bf16.mxu0 0
    %4313 = vmatpush1.bf16.msra.mxu0 0
    %4314 = vmatprep.subr.bf16.mxu0 0
    %4315 = vmatpush1.bf16.msra.mxu0 0
    %4316 = vmatprep.subr.bf16.mxu0 0
    %4317 = vmatpush1.bf16.msra.mxu0 0
    %4318 = vmatprep.subr.bf16.mxu0 0
    %4319 = vmatpush1.bf16.msra.mxu0 0
    %4320 = vmatprep.subr.bf16.mxu0 0
    %4321 = vmatpush1.bf16.msra.mxu0 0
    %4322 = vmatprep.subr.bf16.mxu0 0
    %4323 = vmatpush1.bf16.msra.mxu0 0
    %4324 = vmatprep.subr.bf16.mxu0 0
    %4325 = vmatpush1.bf16.msra.mxu0 0
    %4326 = vmatprep.subr.bf16.mxu0 0
    %4327 = vmatpush1.bf16.msra.mxu0 0
    %4328 = vmatprep.subr.bf16.mxu0 0
    %4329 = vmatpush1.bf16.msra.mxu0 0
    %4330 = vmatprep.subr.bf16.mxu0 0
    %4331 = vmatpush1.bf16.msra.mxu0 0
    %4332 = vmatprep.subr.bf16.mxu0 0
    %4333 = vmatpush1.bf16.msra.mxu0 0
    %4334 = vmatprep.mubr.bf16.mxu0 0
    %4335 = vmatmul.mubr.bf16.gmra.mrb[0].mxu0 %v4297
    %v4336 = vpop.f32.mrb[0].mxu0
    %v4337 = vadd.f32 %v4276, %v4336
    %v4338 = vpop.f32.mrb[0].mxu0
    %v4339 = vpop.f32.mrb[0].mxu0
    %v4340 = vadd.f32 %v4279, %v4339
    %v4341 = vpop.f32.mrb[0].mxu0
    %4342 = vmatprep.mubr.bf16.mxu0 0
    %4343 = vmatmul.mubr.bf16.gmra.mrb[0].mxu0 %v4300
    %v4344 = vpop.f32.mrb[0].mxu0
    %v4345 = vadd.f32 %v4284, %v4344
    %v4346 = vpop.f32.mrb[0].mxu0
    %v4347 = vpop.f32.mrb[0].mxu0
    %v4348 = vadd.f32 %v4287, %v4347
    %v4349 = vpop.f32.mrb[0].mxu0
    %4350 = vdwg.mxu0
    %v4351 = vld [vmem:[%s2 + $0x160] sm:$0xf]
    %v4352 = vld [vmem:[%s2 + $0x164] sm:$0xf]
    %v4353 = vld [vmem:[%s2 + $0x168] sm:$0xf]
    %v4354 = vld [vmem:[%s2 + $0x16c] sm:$0xf]
    %v4357 = vunpack.c.l.b16 %v4353
    %v4358 = vunpack.c.l.b16 %v4354
    %v4359 = vpack.c.b16 %v4358, %v4357
    %v4362 = vsel %vm618, %v3969, 0
    %v4365 = vsel %vm618, %v3970, 0
    %4367 = vmatprep.subr.bf16.mxu0 0
    %4368 = vmatpush1.bf16.msra.mxu0 %v4359
    %4369 = vmatprep.subr.bf16.mxu0 0
    %4370 = vmatpush1.bf16.msra.mxu0 0
    %4371 = vmatprep.subr.bf16.mxu0 0
    %4372 = vmatpush1.bf16.msra.mxu0 0
    %4373 = vmatprep.subr.bf16.mxu0 0
    %4374 = vmatpush1.bf16.msra.mxu0 0
    %4375 = vmatprep.subr.bf16.mxu0 0
    %4376 = vmatpush1.bf16.msra.mxu0 0
    %4377 = vmatprep.subr.bf16.mxu0 0
    %4378 = vmatpush1.bf16.msra.mxu0 0
    %4379 = vmatprep.subr.bf16.mxu0 0
    %4380 = vmatpush1.bf16.msra.mxu0 0
    %4381 = vmatprep.subr.bf16.mxu0 0
    %4382 = vmatpush1.bf16.msra.mxu0 0
    %4383 = vmatprep.subr.bf16.mxu0 0
    %4384 = vmatpush1.bf16.msra.mxu0 0
    %4385 = vmatprep.subr.bf16.mxu0 0
    %4386 = vmatpush1.bf16.msra.mxu0 0
    %4387 = vmatprep.subr.bf16.mxu0 0
    %4388 = vmatpush1.bf16.msra.mxu0 0
    %4389 = vmatprep.subr.bf16.mxu0 0
    %4390 = vmatpush1.bf16.msra.mxu0 0
    %4391 = vmatprep.subr.bf16.mxu0 0
    %4392 = vmatpush1.bf16.msra.mxu0 0
    %4393 = vmatprep.subr.bf16.mxu0 0
    %4394 = vmatpush1.bf16.msra.mxu0 0
    %4395 = vmatprep.subr.bf16.mxu0 0
    %4396 = vmatpush1.bf16.msra.mxu0 0
    %4397 = vmatprep.subr.bf16.mxu0 0
    %4398 = vmatpush1.bf16.msra.mxu0 0
    %4399 = vmatprep.mubr.bf16.mxu0 0
    %4400 = vmatmul.mubr.bf16.gmra.mrb[0].mxu0 %v4362
    %v4401 = vpop.f32.mrb[0].mxu0
    %v4402 = vadd.f32 0.0, %v4401
    %v4403 = vpop.f32.mrb[0].mxu0
    %v4404 = vpop.f32.mrb[0].mxu0
    %v4405 = vadd.f32 0.0, %v4404
    %v4406 = vpop.f32.mrb[0].mxu0
    %4407 = vmatprep.mubr.bf16.mxu0 0
    %4408 = vmatmul.mubr.bf16.gmra.mrb[0].mxu0 %v4365
    %v4409 = vpop.f32.mrb[0].mxu0
    %v4410 = vadd.f32 0.0, %v4409
    %v4411 = vpop.f32.mrb[0].mxu0
    %v4412 = vpop.f32.mrb[0].mxu0
    %v4413 = vadd.f32 0.0, %v4412
    %v4414 = vpop.f32.mrb[0].mxu0
    %4415 = vdwg.mxu0
    %v4418 = vunpack.c.l.b16 %v4351
    %v4419 = vunpack.c.l.b16 %v4352
    %v4420 = vpack.c.b16 %v4419, %v4418
    %v4423 = vsel %vm618, %v3967, 0
    %v4426 = vsel %vm618, %v3968, 0
    %4428 = vmatprep.subr.bf16.mxu0 0
    %4429 = vmatpush1.bf16.msra.mxu0 %v4420
    %4430 = vmatprep.subr.bf16.mxu0 0
    %4431 = vmatpush1.bf16.msra.mxu0 0
    %4432 = vmatprep.subr.bf16.mxu0 0
    %4433 = vmatpush1.bf16.msra.mxu0 0
    %4434 = vmatprep.subr.bf16.mxu0 0
    %4435 = vmatpush1.bf16.msra.mxu0 0
    %4436 = vmatprep.subr.bf16.mxu0 0
    %4437 = vmatpush1.bf16.msra.mxu0 0
    %4438 = vmatprep.subr.bf16.mxu0 0
    %4439 = vmatpush1.bf16.msra.mxu0 0
    %4440 = vmatprep.subr.bf16.mxu0 0
    %4441 = vmatpush1.bf16.msra.mxu0 0
    %4442 = vmatprep.subr.bf16.mxu0 0
    %4443 = vmatpush1.bf16.msra.mxu0 0
    %4444 = vmatprep.subr.bf16.mxu0 0
    %4445 = vmatpush1.bf16.msra.mxu0 0
    %4446 = vmatprep.subr.bf16.mxu0 0
    %4447 = vmatpush1.bf16.msra.mxu0 0
    %4448 = vmatprep.subr.bf16.mxu0 0
    %4449 = vmatpush1.bf16.msra.mxu0 0
    %4450 = vmatprep.subr.bf16.mxu0 0
    %4451 = vmatpush1.bf16.msra.mxu0 0
    %4452 = vmatprep.subr.bf16.mxu0 0
    %4453 = vmatpush1.bf16.msra.mxu0 0
    %4454 = vmatprep.subr.bf16.mxu0 0
    %4455 = vmatpush1.bf16.msra.mxu0 0
    %4456 = vmatprep.subr.bf16.mxu0 0
    %4457 = vmatpush1.bf16.msra.mxu0 0
    %4458 = vmatprep.subr.bf16.mxu0 0
    %4459 = vmatpush1.bf16.msra.mxu0 0
    %4460 = vmatprep.mubr.bf16.mxu0 0
    %4461 = vmatmul.mubr.bf16.gmra.mrb[0].mxu0 %v4423
    %v4462 = vpop.f32.mrb[0].mxu0
    %v4463 = vadd.f32 %v4402, %v4462
    %v4464 = vpop.f32.mrb[0].mxu0
    %v4465 = vpop.f32.mrb[0].mxu0
    %v4466 = vadd.f32 %v4405, %v4465
    %v4467 = vpop.f32.mrb[0].mxu0
    %4468 = vmatprep.mubr.bf16.mxu0 0
    %4469 = vmatmul.mubr.bf16.gmra.mrb[0].mxu0 %v4426
    %v4470 = vpop.f32.mrb[0].mxu0
    %v4471 = vadd.f32 %v4410, %v4470
    %v4472 = vpop.f32.mrb[0].mxu0
    %v4473 = vpop.f32.mrb[0].mxu0
    %v4474 = vadd.f32 %v4413, %v4473
    %v4475 = vpop.f32.mrb[0].mxu0
    %4476 = vdwg.mxu0
    %v4477 = vadd.f32 %v4085, %v4211
    %v4478 = vadd.f32 %v4088, %v4214
    %v4479 = vadd.f32 %v4093, %v4219
    %v4480 = vadd.f32 %v4096, %v4222
    %v4481 = vadd.f32 %v4337, %v4463
    %v4482 = vadd.f32 %v4340, %v4466
    %v4483 = vadd.f32 %v4345, %v4471
    %v4484 = vadd.f32 %v4348, %v4474
    %v4485 = vadd.f32 %v4477, %v4481
    %v4486 = vadd.f32 %v4478, %v4482
    %v4487 = vadd.f32 %v4479, %v4483
    %v4488 = vadd.f32 %v4480, %v4484
    %v4489 = vld [vmem:[%s2 + $0x170] sm:$0xf]
    %v4490 = vld [vmem:[%s2 + $0x174] sm:$0xf]
    %v4493 = vunpack.c.l.b16 %v4489
    %v4494 = vunpack.c.l.b16 %v4490
    %v4495 = vpack.c.b16 %v4494, %v4493
    %v4498 = vsel %vm618, %v3971, 0
    %v4501 = vsel %vm618, %v3972, 0
    %4503 = vmatprep.subr.bf16.mxu0 0
    %4504 = vmatpush1.bf16.msra.mxu0 %v4495
    %4505 = vmatprep.subr.bf16.mxu0 0
    %4506 = vmatpush1.bf16.msra.mxu0 0
    %4507 = vmatprep.subr.bf16.mxu0 0
    %4508 = vmatpush1.bf16.msra.mxu0 0
    %4509 = vmatprep.subr.bf16.mxu0 0
    %4510 = vmatpush1.bf16.msra.mxu0 0
    %4511 = vmatprep.subr.bf16.mxu0 0
    %4512 = vmatpush1.bf16.msra.mxu0 0
    %4513 = vmatprep.subr.bf16.mxu0 0
    %4514 = vmatpush1.bf16.msra.mxu0 0
    %4515 = vmatprep.subr.bf16.mxu0 0
    %4516 = vmatpush1.bf16.msra.mxu0 0
    %4517 = vmatprep.subr.bf16.mxu0 0
    %4518 = vmatpush1.bf16.msra.mxu0 0
    %4519 = vmatprep.subr.bf16.mxu0 0
    %4520 = vmatpush1.bf16.msra.mxu0 0
    %4521 = vmatprep.subr.bf16.mxu0 0
    %4522 = vmatpush1.bf16.msra.mxu0 0
    %4523 = vmatprep.subr.bf16.mxu0 0
    %4524 = vmatpush1.bf16.msra.mxu0 0
    %4525 = vmatprep.subr.bf16.mxu0 0
    %4526 = vmatpush1.bf16.msra.mxu0 0
    %4527 = vmatprep.subr.bf16.mxu0 0
    %4528 = vmatpush1.bf16.msra.mxu0 0
    %4529 = vmatprep.subr.bf16.mxu0 0
    %4530 = vmatpush1.bf16.msra.mxu0 0
    %4531 = vmatprep.subr.bf16.mxu0 0
    %4532 = vmatpush1.bf16.msra.mxu0 0
    %4533 = vmatprep.subr.bf16.mxu0 0
    %4534 = vmatpush1.bf16.msra.mxu0 0
    %4535 = vmatprep.mubr.bf16.mxu0 0
    %4536 = vmatmul.mubr.bf16.gmra.mrb[0].mxu0 %v4498
    %v4537 = vpop.f32.mrb[0].mxu0
    %v4538 = vadd.f32 0.0, %v4537
    %v4539 = vpop.f32.mrb[0].mxu0
    %v4540 = vpop.f32.mrb[0].mxu0
    %v4541 = vadd.f32 0.0, %v4540
    %v4542 = vpop.f32.mrb[0].mxu0
    %4543 = vmatprep.mubr.bf16.mxu0 0
    %4544 = vmatmul.mubr.bf16.gmra.mrb[0].mxu0 %v4501
    %v4545 = vpop.f32.mrb[0].mxu0
    %v4546 = vadd.f32 0.0, %v4545
    %v4547 = vpop.f32.mrb[0].mxu0
    %v4548 = vpop.f32.mrb[0].mxu0
    %v4549 = vadd.f32 0.0, %v4548
    %v4550 = vpop.f32.mrb[0].mxu0
    %4551 = vdwg.mxu0
    %v4552 = vadd.f32 %v4485, %v4538
    %v4553 = vadd.f32 %v4486, %v4541
    %v4554 = vadd.f32 %v4487, %v4546
    %v4555 = vadd.f32 %v4488, %v4549
    %v4556 = vld [vmem:[%s4 + $0x5] ss:$0 sm:$0xff]
    %v4557 = vadd.f32 %v4552, %v4556
    %v4558 = vadd.f32 %v4553, %v4556
    %v4559 = vadd.f32 %v4554, %v4556
    %v4560 = vadd.f32 %v4555, %v4556
    %v4561 = vmax.f32 %v4557, 0.0
    %v4562 = vmax.f32 %v4558, 0.0
    %v4563 = vmax.f32 %v4559, 0.0
    %v4564 = vmax.f32 %v4560, 0.0
    %v4565 = vpack.c.bf16 %v4562, %v4561
    %v4566 = vpack.c.bf16 %v4564, %v4563
    %4567 = vmatprep.subr.bf16.mxu0 0
    %4568 = vmatpush1.bf16.msra.mxu0 %v4565
    %4569 = vmatprep.subr.bf16.mxu0 0
    %4570 = vmatpush1.bf16.msra.mxu0 %v4566
    %4571 = vmatprep.subr.bf16.mxu0 0
    %4572 = vmatpush1.bf16.msra.mxu0 0
    %4573 = vmatprep.subr.bf16.mxu0 0
    %4574 = vmatpush1.bf16.msra.mxu0 0
    %4575 = vmatprep.subr.bf16.mxu0 0
    %4576 = vmatpush1.bf16.msra.mxu0 0
    %4577 = vmatprep.subr.bf16.mxu0 0
    %4578 = vmatpush1.bf16.msra.mxu0 0
    %4579 = vmatprep.subr.bf16.mxu0 0
    %4580 = vmatpush1.bf16.msra.mxu0 0
    %4581 = vmatprep.subr.bf16.mxu0 0
    %4582 = vmatpush1.bf16.msra.mxu0 0
    %4583 = vmatprep.subr.bf16.mxu0 0
    %4584 = vmatpush1.bf16.msra.mxu0 0
    %4585 = vmatprep.subr.bf16.mxu0 0
    %4586 = vmatpush1.bf16.msra.mxu0 0
    %4587 = vmatprep.subr.bf16.mxu0 0
    %4588 = vmatpush1.bf16.msra.mxu0 0
    %4589 = vmatprep.subr.bf16.mxu0 0
    %4590 = vmatpush1.bf16.msra.mxu0 0
    %4591 = vmatprep.subr.bf16.mxu0 0
    %4592 = vmatpush1.bf16.msra.mxu0 0
    %4593 = vmatprep.subr.bf16.mxu0 0
    %4594 = vmatpush1.bf16.msra.mxu0 0
    %4595 = vmatprep.subr.bf16.mxu0 0
    %4596 = vmatpush1.bf16.msra.mxu0 0
    %4597 = vmatprep.subr.bf16.mxu0 0
    %4598 = vmatpush1.bf16.msra.mxu0 0
    %4599 = vmatprep.mubr.bf16.mxu0 0
    %4600 = vmatmul.mubr.bf16.gmra.mrb[0].mxu0 %v1330
    %v4601 = vpop.f32.mrb[0].mxu0
    %v4602 = vadd.f32 0.0, %v4601
    %v4603 = vpop.f32.mrb[0].mxu0
    %v4604 = vpop.f32.mrb[0].mxu0
    %v4605 = vadd.f32 0.0, %v4604
    %v4606 = vpop.f32.mrb[0].mxu0
    %4607 = vmatprep.mubr.bf16.mxu0 0
    %4608 = vmatmul.mubr.bf16.gmra.mrb[0].mxu0 %v1333
    %v4609 = vpop.f32.mrb[0].mxu0
    %v4610 = vadd.f32 0.0, %v4609
    %v4611 = vpop.f32.mrb[0].mxu0
    %v4612 = vpop.f32.mrb[0].mxu0
    %v4613 = vadd.f32 0.0, %v4612
    %v4614 = vpop.f32.mrb[0].mxu0
    %4615 = vmatprep.mubr.bf16.mxu0 0
    %4616 = vmatmul.mubr.bf16.gmra.mrb[0].mxu0 %v1336
    %v4617 = vpop.f32.mrb[0].mxu0
    %v4618 = vadd.f32 0.0, %v4617
    %v4619 = vpop.f32.mrb[0].mxu0
    %v4620 = vpop.f32.mrb[0].mxu0
    %v4621 = vadd.f32 0.0, %v4620
    %v4622 = vpop.f32.mrb[0].mxu0
    %4623 = vmatprep.mubr.bf16.mxu0 0
    %4624 = vmatmul.mubr.bf16.gmra.mrb[0].mxu0 %v1339
    %v4625 = vpop.f32.mrb[0].mxu0
    %v4626 = vadd.f32 0.0, %v4625
    %v4627 = vpop.f32.mrb[0].mxu0
    %v4628 = vpop.f32.mrb[0].mxu0
    %v4629 = vadd.f32 0.0, %v4628
    %v4630 = vpop.f32.mrb[0].mxu0
    %4631 = vmatprep.mubr.bf16.mxu0 0
    %4632 = vmatmul.mubr.bf16.gmra.mrb[0].mxu0 %v1342
    %v4633 = vpop.f32.mrb[0].mxu0
    %v4634 = vadd.f32 0.0, %v4633
    %v4635 = vpop.f32.mrb[0].mxu0
    %v4636 = vpop.f32.mrb[0].mxu0
    %v4637 = vadd.f32 0.0, %v4636
    %v4638 = vpop.f32.mrb[0].mxu0
    %4639 = vmatprep.mubr.bf16.mxu0 0
    %4640 = vmatmul.mubr.bf16.gmra.mrb[0].mxu0 %v1345
    %v4641 = vpop.f32.mrb[0].mxu0
    %v4642 = vadd.f32 0.0, %v4641
    %v4643 = vpop.f32.mrb[0].mxu0
    %v4644 = vpop.f32.mrb[0].mxu0
    %v4645 = vadd.f32 0.0, %v4644
    %v4646 = vpop.f32.mrb[0].mxu0
    %4647 = vmatprep.mubr.bf16.mxu0 0
    %4648 = vmatmul.mubr.bf16.gmra.mrb[0].mxu0 %v1348
    %v4649 = vpop.f32.mrb[0].mxu0
    %v4650 = vadd.f32 0.0, %v4649
    %v4651 = vpop.f32.mrb[0].mxu0
    %v4652 = vpop.f32.mrb[0].mxu0
    %v4653 = vadd.f32 0.0, %v4652
    %v4654 = vpop.f32.mrb[0].mxu0
    %4655 = vmatprep.mubr.bf16.mxu0 0
    %4656 = vmatmul.mubr.bf16.gmra.mrb[0].mxu0 %v1351
    %v4657 = vpop.f32.mrb[0].mxu0
    %v4658 = vadd.f32 0.0, %v4657
    %v4659 = vpop.f32.mrb[0].mxu0
    %v4660 = vpop.f32.mrb[0].mxu0
    %v4661 = vadd.f32 0.0, %v4660
    %v4662 = vpop.f32.mrb[0].mxu0
    %4663 = vmatprep.mubr.bf16.mxu0 0
    %4664 = vmatmul.mubr.bf16.gmra.mrb[0].mxu0 %v1354
    %v4665 = vpop.f32.mrb[0].mxu0
    %v4666 = vadd.f32 0.0, %v4665
    %v4667 = vpop.f32.mrb[0].mxu0
    %v4668 = vpop.f32.mrb[0].mxu0
    %v4669 = vadd.f32 0.0, %v4668
    %v4670 = vpop.f32.mrb[0].mxu0
    %4671 = vmatprep.mubr.bf16.mxu0 0
    %4672 = vmatmul.mubr.bf16.gmra.mrb[0].mxu0 %v1357
    %v4673 = vpop.f32.mrb[0].mxu0
    %v4674 = vadd.f32 0.0, %v4673
    %v4675 = vpop.f32.mrb[0].mxu0
    %v4676 = vpop.f32.mrb[0].mxu0
    %v4677 = vadd.f32 0.0, %v4676
    %v4678 = vpop.f32.mrb[0].mxu0
    %4679 = vmatprep.mubr.bf16.mxu0 0
    %4680 = vmatmul.mubr.bf16.gmra.mrb[0].mxu0 %v1360
    %v4681 = vpop.f32.mrb[0].mxu0
    %v4682 = vadd.f32 0.0, %v4681
    %v4683 = vpop.f32.mrb[0].mxu0
    %v4684 = vpop.f32.mrb[0].mxu0
    %v4685 = vadd.f32 0.0, %v4684
    %v4686 = vpop.f32.mrb[0].mxu0
    %4687 = vmatprep.mubr.bf16.mxu0 0
    %4688 = vmatmul.mubr.bf16.gmra.mrb[0].mxu0 %v1363
    %v4689 = vpop.f32.mrb[0].mxu0
    %v4690 = vadd.f32 0.0, %v4689
    %v4691 = vpop.f32.mrb[0].mxu0
    %v4692 = vpop.f32.mrb[0].mxu0
    %v4693 = vadd.f32 0.0, %v4692
    %v4694 = vpop.f32.mrb[0].mxu0
    %4695 = vmatprep.mubr.bf16.mxu0 0
    %4696 = vmatmul.mubr.bf16.gmra.mrb[0].mxu0 %v1366
    %v4697 = vpop.f32.mrb[0].mxu0
    %v4698 = vadd.f32 0.0, %v4697
    %v4699 = vpop.f32.mrb[0].mxu0
    %v4700 = vpop.f32.mrb[0].mxu0
    %v4701 = vadd.f32 0.0, %v4700
    %v4702 = vpop.f32.mrb[0].mxu0
    %4703 = vmatprep.mubr.bf16.mxu0 0
    %4704 = vmatmul.mubr.bf16.gmra.mrb[0].mxu0 %v1369
    %v4705 = vpop.f32.mrb[0].mxu0
    %v4706 = vadd.f32 0.0, %v4705
    %v4707 = vpop.f32.mrb[0].mxu0
    %v4708 = vpop.f32.mrb[0].mxu0
    %v4709 = vadd.f32 0.0, %v4708
    %v4710 = vpop.f32.mrb[0].mxu0
    %4711 = vmatprep.mubr.bf16.mxu0 0
    %4712 = vmatmul.mubr.bf16.gmra.mrb[0].mxu0 %v1372
    %v4713 = vpop.f32.mrb[0].mxu0
    %v4714 = vadd.f32 0.0, %v4713
    %v4715 = vpop.f32.mrb[0].mxu0
    %v4716 = vpop.f32.mrb[0].mxu0
    %v4717 = vadd.f32 0.0, %v4716
    %v4718 = vpop.f32.mrb[0].mxu0
    %4719 = vmatprep.mubr.bf16.mxu0 0
    %4720 = vmatmul.mubr.bf16.gmra.mrb[0].mxu0 %v1375
    %v4721 = vpop.f32.mrb[0].mxu0
    %v4722 = vadd.f32 0.0, %v4721
    %v4723 = vpop.f32.mrb[0].mxu0
    %v4724 = vpop.f32.mrb[0].mxu0
    %v4725 = vadd.f32 0.0, %v4724
    %v4726 = vpop.f32.mrb[0].mxu0
    %4727 = vmatprep.mubr.bf16.mxu0 0
    %4728 = vmatmul.mubr.bf16.gmra.mrb[0].mxu0 %v1378
    %v4729 = vpop.f32.mrb[0].mxu0
    %v4730 = vadd.f32 0.0, %v4729
    %v4731 = vpop.f32.mrb[0].mxu0
    %v4732 = vpop.f32.mrb[0].mxu0
    %v4733 = vadd.f32 0.0, %v4732
    %v4734 = vpop.f32.mrb[0].mxu0
    %4735 = vmatprep.mubr.bf16.mxu0 0
    %4736 = vmatmul.mubr.bf16.gmra.mrb[0].mxu0 %v1381
    %v4737 = vpop.f32.mrb[0].mxu0
    %v4738 = vadd.f32 0.0, %v4737
    %v4739 = vpop.f32.mrb[0].mxu0
    %v4740 = vpop.f32.mrb[0].mxu0
    %v4741 = vadd.f32 0.0, %v4740
    %v4742 = vpop.f32.mrb[0].mxu0
    %4743 = vdwg.mxu0
    %v4744 = vpack.c.bf16 %v4605, %v4602
    %v4745 = vpack.c.bf16 %v4613, %v4610
    %v4746 = vpack.c.bf16 %v4621, %v4618
    %v4747 = vpack.c.bf16 %v4629, %v4626
    %v4748 = vpack.c.bf16 %v4637, %v4634
    %v4749 = vpack.c.bf16 %v4645, %v4642
    %v4750 = vpack.c.bf16 %v4653, %v4650
    %v4751 = vpack.c.bf16 %v4661, %v4658
    %v4752 = vpack.c.bf16 %v4669, %v4666
    %v4753 = vpack.c.bf16 %v4677, %v4674
    %v4754 = vpack.c.bf16 %v4685, %v4682
    %v4755 = vpack.c.bf16 %v4693, %v4690
    %v4756 = vpack.c.bf16 %v4701, %v4698
    %v4757 = vpack.c.bf16 %v4709, %v4706
    %v4758 = vpack.c.bf16 %v4717, %v4714
    %v4759 = vpack.c.bf16 %v4725, %v4722
    %v4760 = vpack.c.bf16 %v4733, %v4730
    %v4761 = vpack.c.bf16 %v4741, %v4738
    %v4762 = vld [vmem:[%s2 + $0x178] sm:$0xf]
    %v4763 = vld [vmem:[%s2 + $0x17c] sm:$0xf]
    %v4764 = vld [vmem:[%s2 + $0x180] sm:$0xf]
    %v4765 = vld [vmem:[%s2 + $0x184] sm:$0xf]
    %v4766 = vld [vmem:[%s2 + $0x188] sm:$0xf]
    %v4767 = vld [vmem:[%s2 + $0x18c] sm:$0xf]
    %v4768 = vld [vmem:[%s2 + $0x190] sm:$0xf]
    %v4769 = vld [vmem:[%s2 + $0x194] sm:$0xf]
    %v4774 = vunpack.c.l.b16 %v4766
    %v4775 = vunpack.c.l.b16 %v4767
    %v4776 = vunpack.c.l.b16 %v4768
    %v4777 = vunpack.c.l.b16 %v4769
    %v4778 = vpack.c.b16 %v4775, %v4774
    %v4779 = vpack.c.b16 %v4777, %v4776
    %v4783 = vsel %vm123, %v4746, 0
    %v4786 = vsel %vm123, %v4747, 0
    %4788 = vmatprep.subr.bf16.mxu0 0
    %4789 = vmatpush1.bf16.msra.mxu0 %v4778
    %4790 = vmatprep.subr.bf16.mxu0 0
    %4791 = vmatpush1.bf16.msra.mxu0 %v4779
    %4792 = vmatprep.subr.bf16.mxu0 0
    %4793 = vmatpush1.bf16.msra.mxu0 0
    %4794 = vmatprep.subr.bf16.mxu0 0
    %4795 = vmatpush1.bf16.msra.mxu0 0
    %4796 = vmatprep.subr.bf16.mxu0 0
    %4797 = vmatpush1.bf16.msra.mxu0 0
    %4798 = vmatprep.subr.bf16.mxu0 0
    %4799 = vmatpush1.bf16.msra.mxu0 0
    %4800 = vmatprep.subr.bf16.mxu0 0
    %4801 = vmatpush1.bf16.msra.mxu0 0
    %4802 = vmatprep.subr.bf16.mxu0 0
    %4803 = vmatpush1.bf16.msra.mxu0 0
    %4804 = vmatprep.subr.bf16.mxu0 0
    %4805 = vmatpush1.bf16.msra.mxu0 0
    %4806 = vmatprep.subr.bf16.mxu0 0
    %4807 = vmatpush1.bf16.msra.mxu0 0
    %4808 = vmatprep.subr.bf16.mxu0 0
    %4809 = vmatpush1.bf16.msra.mxu0 0
    %4810 = vmatprep.subr.bf16.mxu0 0
    %4811 = vmatpush1.bf16.msra.mxu0 0
    %4812 = vmatprep.subr.bf16.mxu0 0
    %4813 = vmatpush1.bf16.msra.mxu0 0
    %4814 = vmatprep.subr.bf16.mxu0 0
    %4815 = vmatpush1.bf16.msra.mxu0 0
    %4816 = vmatprep.subr.bf16.mxu0 0
    %4817 = vmatpush1.bf16.msra.mxu0 0
    %4818 = vmatprep.subr.bf16.mxu0 0
    %4819 = vmatpush1.bf16.msra.mxu0 0
    %4820 = vmatprep.mubr.bf16.mxu0 0
    %4821 = vmatmul.mubr.bf16.gmra.mrb[0].mxu0 %v4783
    %v4822 = vpop.f32.mrb[0].mxu0
    %v4823 = vadd.f32 0.0, %v4822
    %v4824 = vpop.f32.mrb[0].mxu0
    %v4825 = vpop.f32.mrb[0].mxu0
    %v4826 = vadd.f32 0.0, %v4825
    %v4827 = vpop.f32.mrb[0].mxu0
    %4828 = vmatprep.mubr.bf16.mxu0 0
    %4829 = vmatmul.mubr.bf16.gmra.mrb[0].mxu0 %v4786
    %v4830 = vpop.f32.mrb[0].mxu0
    %v4831 = vadd.f32 0.0, %v4830
    %v4832 = vpop.f32.mrb[0].mxu0
    %v4833 = vpop.f32.mrb[0].mxu0
    %v4834 = vadd.f32 0.0, %v4833
    %v4835 = vpop.f32.mrb[0].mxu0
    %4836 = vdwg.mxu0
    %v4841 = vunpack.c.l.b16 %v4762
    %v4842 = vunpack.c.l.b16 %v4763
    %v4843 = vunpack.c.l.b16 %v4764
    %v4844 = vunpack.c.l.b16 %v4765
    %v4845 = vpack.c.b16 %v4842, %v4841
    %v4846 = vpack.c.b16 %v4844, %v4843
    %v4850 = vsel %vm123, %v4744, 0
    %v4853 = vsel %vm123, %v4745, 0
    %4855 = vmatprep.subr.bf16.mxu0 0
    %4856 = vmatpush1.bf16.msra.mxu0 %v4845
    %4857 = vmatprep.subr.bf16.mxu0 0
    %4858 = vmatpush1.bf16.msra.mxu0 %v4846
    %4859 = vmatprep.subr.bf16.mxu0 0
    %4860 = vmatpush1.bf16.msra.mxu0 0
    %4861 = vmatprep.subr.bf16.mxu0 0
    %4862 = vmatpush1.bf16.msra.mxu0 0
    %4863 = vmatprep.subr.bf16.mxu0 0
    %4864 = vmatpush1.bf16.msra.mxu0 0
    %4865 = vmatprep.subr.bf16.mxu0 0
    %4866 = vmatpush1.bf16.msra.mxu0 0
    %4867 = vmatprep.subr.bf16.mxu0 0
    %4868 = vmatpush1.bf16.msra.mxu0 0
    %4869 = vmatprep.subr.bf16.mxu0 0
    %4870 = vmatpush1.bf16.msra.mxu0 0
    %4871 = vmatprep.subr.bf16.mxu0 0
    %4872 = vmatpush1.bf16.msra.mxu0 0
    %4873 = vmatprep.subr.bf16.mxu0 0
    %4874 = vmatpush1.bf16.msra.mxu0 0
    %4875 = vmatprep.subr.bf16.mxu0 0
    %4876 = vmatpush1.bf16.msra.mxu0 0
    %4877 = vmatprep.subr.bf16.mxu0 0
    %4878 = vmatpush1.bf16.msra.mxu0 0
    %4879 = vmatprep.subr.bf16.mxu0 0
    %4880 = vmatpush1.bf16.msra.mxu0 0
    %4881 = vmatprep.subr.bf16.mxu0 0
    %4882 = vmatpush1.bf16.msra.mxu0 0
    %4883 = vmatprep.subr.bf16.mxu0 0
    %4884 = vmatpush1.bf16.msra.mxu0 0
    %4885 = vmatprep.subr.bf16.mxu0 0
    %4886 = vmatpush1.bf16.msra.mxu0 0
    %4887 = vmatprep.mubr.bf16.mxu0 0
    %4888 = vmatmul.mubr.bf16.gmra.mrb[0].mxu0 %v4850
    %v4889 = vpop.f32.mrb[0].mxu0
    %v4890 = vadd.f32 %v4823, %v4889
    %v4891 = vpop.f32.mrb[0].mxu0
    %v4892 = vpop.f32.mrb[0].mxu0
    %v4893 = vadd.f32 %v4826, %v4892
    %v4894 = vpop.f32.mrb[0].mxu0
    %4895 = vmatprep.mubr.bf16.mxu0 0
    %4896 = vmatmul.mubr.bf16.gmra.mrb[0].mxu0 %v4853
    %v4897 = vpop.f32.mrb[0].mxu0
    %v4898 = vadd.f32 %v4831, %v4897
    %v4899 = vpop.f32.mrb[0].mxu0
    %v4900 = vpop.f32.mrb[0].mxu0
    %v4901 = vadd.f32 %v4834, %v4900
    %v4902 = vpop.f32.mrb[0].mxu0
    %4903 = vdwg.mxu0
    %v4904 = vld [vmem:[%s2 + $0x198] sm:$0xf]
    %v4905 = vld [vmem:[%s2 + $0x19c] sm:$0xf]
    %v4906 = vld [vmem:[%s2 + $0x1a0] sm:$0xf]
    %v4907 = vld [vmem:[%s2 + $0x1a4] sm:$0xf]
    %v4908 = vld [vmem:[%s2 + $0x1a8] sm:$0xf]
    %v4909 = vld [vmem:[%s2 + $0x1ac] sm:$0xf]
    %v4910 = vld [vmem:[%s2 + $0x1b0] sm:$0xf]
    %v4911 = vld [vmem:[%s2 + $0x1b4] sm:$0xf]
    %v4916 = vunpack.c.l.b16 %v4908
    %v4917 = vunpack.c.l.b16 %v4909
    %v4918 = vunpack.c.l.b16 %v4910
    %v4919 = vunpack.c.l.b16 %v4911
    %v4920 = vpack.c.b16 %v4917, %v4916
    %v4921 = vpack.c.b16 %v4919, %v4918
    %v4925 = vsel %vm123, %v4750, 0
    %v4928 = vsel %vm123, %v4751, 0
    %4930 = vmatprep.subr.bf16.mxu0 0
    %4931 = vmatpush1.bf16.msra.mxu0 %v4920
    %4932 = vmatprep.subr.bf16.mxu0 0
    %4933 = vmatpush1.bf16.msra.mxu0 %v4921
    %4934 = vmatprep.subr.bf16.mxu0 0
    %4935 = vmatpush1.bf16.msra.mxu0 0
    %4936 = vmatprep.subr.bf16.mxu0 0
    %4937 = vmatpush1.bf16.msra.mxu0 0
    %4938 = vmatprep.subr.bf16.mxu0 0
    %4939 = vmatpush1.bf16.msra.mxu0 0
    %4940 = vmatprep.subr.bf16.mxu0 0
    %4941 = vmatpush1.bf16.msra.mxu0 0
    %4942 = vmatprep.subr.bf16.mxu0 0
    %4943 = vmatpush1.bf16.msra.mxu0 0
    %4944 = vmatprep.subr.bf16.mxu0 0
    %4945 = vmatpush1.bf16.msra.mxu0 0
    %4946 = vmatprep.subr.bf16.mxu0 0
    %4947 = vmatpush1.bf16.msra.mxu0 0
    %4948 = vmatprep.subr.bf16.mxu0 0
    %4949 = vmatpush1.bf16.msra.mxu0 0
    %4950 = vmatprep.subr.bf16.mxu0 0
    %4951 = vmatpush1.bf16.msra.mxu0 0
    %4952 = vmatprep.subr.bf16.mxu0 0
    %4953 = vmatpush1.bf16.msra.mxu0 0
    %4954 = vmatprep.subr.bf16.mxu0 0
    %4955 = vmatpush1.bf16.msra.mxu0 0
    %4956 = vmatprep.subr.bf16.mxu0 0
    %4957 = vmatpush1.bf16.msra.mxu0 0
    %4958 = vmatprep.subr.bf16.mxu0 0
    %4959 = vmatpush1.bf16.msra.mxu0 0
    %4960 = vmatprep.subr.bf16.mxu0 0
    %4961 = vmatpush1.bf16.msra.mxu0 0
    %4962 = vmatprep.mubr.bf16.mxu0 0
    %4963 = vmatmul.mubr.bf16.gmra.mrb[0].mxu0 %v4925
    %v4964 = vpop.f32.mrb[0].mxu0
    %v4965 = vadd.f32 0.0, %v4964
    %v4966 = vpop.f32.mrb[0].mxu0
    %v4967 = vpop.f32.mrb[0].mxu0
    %v4968 = vadd.f32 0.0, %v4967
    %v4969 = vpop.f32.mrb[0].mxu0
    %4970 = vmatprep.mubr.bf16.mxu0 0
    %4971 = vmatmul.mubr.bf16.gmra.mrb[0].mxu0 %v4928
    %v4972 = vpop.f32.mrb[0].mxu0
    %v4973 = vadd.f32 0.0, %v4972
    %v4974 = vpop.f32.mrb[0].mxu0
    %v4975 = vpop.f32.mrb[0].mxu0
    %v4976 = vadd.f32 0.0, %v4975
    %v4977 = vpop.f32.mrb[0].mxu0
    %4978 = vdwg.mxu0
    %v4983 = vunpack.c.l.b16 %v4904
    %v4984 = vunpack.c.l.b16 %v4905
    %v4985 = vunpack.c.l.b16 %v4906
    %v4986 = vunpack.c.l.b16 %v4907
    %v4987 = vpack.c.b16 %v4984, %v4983
    %v4988 = vpack.c.b16 %v4986, %v4985
    %v4992 = vsel %vm123, %v4748, 0
    %v4995 = vsel %vm123, %v4749, 0
    %4997 = vmatprep.subr.bf16.mxu0 0
    %4998 = vmatpush1.bf16.msra.mxu0 %v4987
    %4999 = vmatprep.subr.bf16.mxu0 0
    %5000 = vmatpush1.bf16.msra.mxu0 %v4988
    %5001 = vmatprep.subr.bf16.mxu0 0
    %5002 = vmatpush1.bf16.msra.mxu0 0
    %5003 = vmatprep.subr.bf16.mxu0 0
    %5004 = vmatpush1.bf16.msra.mxu0 0
    %5005 = vmatprep.subr.bf16.mxu0 0
    %5006 = vmatpush1.bf16.msra.mxu0 0
    %5007 = vmatprep.subr.bf16.mxu0 0
    %5008 = vmatpush1.bf16.msra.mxu0 0
    %5009 = vmatprep.subr.bf16.mxu0 0
    %5010 = vmatpush1.bf16.msra.mxu0 0
    %5011 = vmatprep.subr.bf16.mxu0 0
    %5012 = vmatpush1.bf16.msra.mxu0 0
    %5013 = vmatprep.subr.bf16.mxu0 0
    %5014 = vmatpush1.bf16.msra.mxu0 0
    %5015 = vmatprep.subr.bf16.mxu0 0
    %5016 = vmatpush1.bf16.msra.mxu0 0
    %5017 = vmatprep.subr.bf16.mxu0 0
    %5018 = vmatpush1.bf16.msra.mxu0 0
    %5019 = vmatprep.subr.bf16.mxu0 0
    %5020 = vmatpush1.bf16.msra.mxu0 0
    %5021 = vmatprep.subr.bf16.mxu0 0
    %5022 = vmatpush1.bf16.msra.mxu0 0
    %5023 = vmatprep.subr.bf16.mxu0 0
    %5024 = vmatpush1.bf16.msra.mxu0 0
    %5025 = vmatprep.subr.bf16.mxu0 0
    %5026 = vmatpush1.bf16.msra.mxu0 0
    %5027 = vmatprep.subr.bf16.mxu0 0
    %5028 = vmatpush1.bf16.msra.mxu0 0
    %5029 = vmatprep.mubr.bf16.mxu0 0
    %5030 = vmatmul.mubr.bf16.gmra.mrb[0].mxu0 %v4992
    %v5031 = vpop.f32.mrb[0].mxu0
    %v5032 = vadd.f32 %v4965, %v5031
    %v5033 = vpop.f32.mrb[0].mxu0
    %v5034 = vpop.f32.mrb[0].mxu0
    %v5035 = vadd.f32 %v4968, %v5034
    %v5036 = vpop.f32.mrb[0].mxu0
    %5037 = vmatprep.mubr.bf16.mxu0 0
    %5038 = vmatmul.mubr.bf16.gmra.mrb[0].mxu0 %v4995
    %v5039 = vpop.f32.mrb[0].mxu0
    %v5040 = vadd.f32 %v4973, %v5039
    %v5041 = vpop.f32.mrb[0].mxu0
    %v5042 = vpop.f32.mrb[0].mxu0
    %v5043 = vadd.f32 %v4976, %v5042
    %v5044 = vpop.f32.mrb[0].mxu0
    %5045 = vdwg.mxu0
    %v5046 = vld [vmem:[%s2 + $0x1b8] sm:$0xf]
    %v5047 = vld [vmem:[%s2 + $0x1bc] sm:$0xf]
    %v5048 = vld [vmem:[%s2 + $0x1c0] sm:$0xf]
    %v5049 = vld [vmem:[%s2 + $0x1c4] sm:$0xf]
    %v5050 = vld [vmem:[%s2 + $0x1c8] sm:$0xf]
    %v5051 = vld [vmem:[%s2 + $0x1cc] sm:$0xf]
    %v5052 = vld [vmem:[%s2 + $0x1d0] sm:$0xf]
    %v5053 = vld [vmem:[%s2 + $0x1d4] sm:$0xf]
    %v5058 = vunpack.c.l.b16 %v5050
    %v5059 = vunpack.c.l.b16 %v5051
    %v5060 = vunpack.c.l.b16 %v5052
    %v5061 = vunpack.c.l.b16 %v5053
    %v5062 = vpack.c.b16 %v5059, %v5058
    %v5063 = vpack.c.b16 %v5061, %v5060
    %v5067 = vsel %vm123, %v4754, 0
    %v5070 = vsel %vm123, %v4755, 0
    %5072 = vmatprep.subr.bf16.mxu0 0
    %5073 = vmatpush1.bf16.msra.mxu0 %v5062
    %5074 = vmatprep.subr.bf16.mxu0 0
    %5075 = vmatpush1.bf16.msra.mxu0 %v5063
    %5076 = vmatprep.subr.bf16.mxu0 0
    %5077 = vmatpush1.bf16.msra.mxu0 0
    %5078 = vmatprep.subr.bf16.mxu0 0
    %5079 = vmatpush1.bf16.msra.mxu0 0
    %5080 = vmatprep.subr.bf16.mxu0 0
    %5081 = vmatpush1.bf16.msra.mxu0 0
    %5082 = vmatprep.subr.bf16.mxu0 0
    %5083 = vmatpush1.bf16.msra.mxu0 0
    %5084 = vmatprep.subr.bf16.mxu0 0
    %5085 = vmatpush1.bf16.msra.mxu0 0
    %5086 = vmatprep.subr.bf16.mxu0 0
    %5087 = vmatpush1.bf16.msra.mxu0 0
    %5088 = vmatprep.subr.bf16.mxu0 0
    %5089 = vmatpush1.bf16.msra.mxu0 0
    %5090 = vmatprep.subr.bf16.mxu0 0
    %5091 = vmatpush1.bf16.msra.mxu0 0
    %5092 = vmatprep.subr.bf16.mxu0 0
    %5093 = vmatpush1.bf16.msra.mxu0 0
    %5094 = vmatprep.subr.bf16.mxu0 0
    %5095 = vmatpush1.bf16.msra.mxu0 0
    %5096 = vmatprep.subr.bf16.mxu0 0
    %5097 = vmatpush1.bf16.msra.mxu0 0
    %5098 = vmatprep.subr.bf16.mxu0 0
    %5099 = vmatpush1.bf16.msra.mxu0 0
    %5100 = vmatprep.subr.bf16.mxu0 0
    %5101 = vmatpush1.bf16.msra.mxu0 0
    %5102 = vmatprep.subr.bf16.mxu0 0
    %5103 = vmatpush1.bf16.msra.mxu0 0
    %5104 = vmatprep.mubr.bf16.mxu0 0
    %5105 = vmatmul.mubr.bf16.gmra.mrb[0].mxu0 %v5067
    %v5106 = vpop.f32.mrb[0].mxu0
    %v5107 = vadd.f32 0.0, %v5106
    %v5108 = vpop.f32.mrb[0].mxu0
    %v5109 = vpop.f32.mrb[0].mxu0
    %v5110 = vadd.f32 0.0, %v5109
    %v5111 = vpop.f32.mrb[0].mxu0
    %5112 = vmatprep.mubr.bf16.mxu0 0
    %5113 = vmatmul.mubr.bf16.gmra.mrb[0].mxu0 %v5070
    %v5114 = vpop.f32.mrb[0].mxu0
    %v5115 = vadd.f32 0.0, %v5114
    %v5116 = vpop.f32.mrb[0].mxu0
    %v5117 = vpop.f32.mrb[0].mxu0
    %v5118 = vadd.f32 0.0, %v5117
    %v5119 = vpop.f32.mrb[0].mxu0
    %5120 = vdwg.mxu0
    %v5125 = vunpack.c.l.b16 %v5046
    %v5126 = vunpack.c.l.b16 %v5047
    %v5127 = vunpack.c.l.b16 %v5048
    %v5128 = vunpack.c.l.b16 %v5049
    %v5129 = vpack.c.b16 %v5126, %v5125
    %v5130 = vpack.c.b16 %v5128, %v5127
    %v5134 = vsel %vm123, %v4752, 0
    %v5137 = vsel %vm123, %v4753, 0
    %5139 = vmatprep.subr.bf16.mxu0 0
    %5140 = vmatpush1.bf16.msra.mxu0 %v5129
    %5141 = vmatprep.subr.bf16.mxu0 0
    %5142 = vmatpush1.bf16.msra.mxu0 %v5130
    %5143 = vmatprep.subr.bf16.mxu0 0
    %5144 = vmatpush1.bf16.msra.mxu0 0
    %5145 = vmatprep.subr.bf16.mxu0 0
    %5146 = vmatpush1.bf16.msra.mxu0 0
    %5147 = vmatprep.subr.bf16.mxu0 0
    %5148 = vmatpush1.bf16.msra.mxu0 0
    %5149 = vmatprep.subr.bf16.mxu0 0
    %5150 = vmatpush1.bf16.msra.mxu0 0
    %5151 = vmatprep.subr.bf16.mxu0 0
    %5152 = vmatpush1.bf16.msra.mxu0 0
    %5153 = vmatprep.subr.bf16.mxu0 0
    %5154 = vmatpush1.bf16.msra.mxu0 0
    %5155 = vmatprep.subr.bf16.mxu0 0
    %5156 = vmatpush1.bf16.msra.mxu0 0
    %5157 = vmatprep.subr.bf16.mxu0 0
    %5158 = vmatpush1.bf16.msra.mxu0 0
    %5159 = vmatprep.subr.bf16.mxu0 0
    %5160 = vmatpush1.bf16.msra.mxu0 0
    %5161 = vmatprep.subr.bf16.mxu0 0
    %5162 = vmatpush1.bf16.msra.mxu0 0
    %5163 = vmatprep.subr.bf16.mxu0 0
    %5164 = vmatpush1.bf16.msra.mxu0 0
    %5165 = vmatprep.subr.bf16.mxu0 0
    %5166 = vmatpush1.bf16.msra.mxu0 0
    %5167 = vmatprep.subr.bf16.mxu0 0
    %5168 = vmatpush1.bf16.msra.mxu0 0
    %5169 = vmatprep.subr.bf16.mxu0 0
    %5170 = vmatpush1.bf16.msra.mxu0 0
    %5171 = vmatprep.mubr.bf16.mxu0 0
    %5172 = vmatmul.mubr.bf16.gmra.mrb[0].mxu0 %v5134
    %v5173 = vpop.f32.mrb[0].mxu0
    %v5174 = vadd.f32 %v5107, %v5173
    %v5175 = vpop.f32.mrb[0].mxu0
    %v5176 = vpop.f32.mrb[0].mxu0
    %v5177 = vadd.f32 %v5110, %v5176
    %v5178 = vpop.f32.mrb[0].mxu0
    %5179 = vmatprep.mubr.bf16.mxu0 0
    %5180 = vmatmul.mubr.bf16.gmra.mrb[0].mxu0 %v5137
    %v5181 = vpop.f32.mrb[0].mxu0
    %v5182 = vadd.f32 %v5115, %v5181
    %v5183 = vpop.f32.mrb[0].mxu0
    %v5184 = vpop.f32.mrb[0].mxu0
    %v5185 = vadd.f32 %v5118, %v5184
    %v5186 = vpop.f32.mrb[0].mxu0
    %5187 = vdwg.mxu0
    %v5188 = vld [vmem:[%s2 + $0x1d8] sm:$0xf]
    %v5189 = vld [vmem:[%s2 + $0x1dc] sm:$0xf]
    %v5190 = vld [vmem:[%s2 + $0x1e0] sm:$0xf]
    %v5191 = vld [vmem:[%s2 + $0x1e4] sm:$0xf]
    %v5192 = vld [vmem:[%s2 + $0x1e8] sm:$0xf]
    %v5193 = vld [vmem:[%s2 + $0x1ec] sm:$0xf]
    %v5194 = vld [vmem:[%s2 + $0x1f0] sm:$0xf]
    %v5195 = vld [vmem:[%s2 + $0x1f4] sm:$0xf]
    %v5200 = vunpack.c.l.b16 %v5192
    %v5201 = vunpack.c.l.b16 %v5193
    %v5202 = vunpack.c.l.b16 %v5194
    %v5203 = vunpack.c.l.b16 %v5195
    %v5204 = vpack.c.b16 %v5201, %v5200
    %v5205 = vpack.c.b16 %v5203, %v5202
    %v5209 = vsel %vm123, %v4758, 0
    %v5212 = vsel %vm123, %v4759, 0
    %5214 = vmatprep.subr.bf16.mxu0 0
    %5215 = vmatpush1.bf16.msra.mxu0 %v5204
    %5216 = vmatprep.subr.bf16.mxu0 0
    %5217 = vmatpush1.bf16.msra.mxu0 %v5205
    %5218 = vmatprep.subr.bf16.mxu0 0
    %5219 = vmatpush1.bf16.msra.mxu0 0
    %5220 = vmatprep.subr.bf16.mxu0 0
    %5221 = vmatpush1.bf16.msra.mxu0 0
    %5222 = vmatprep.subr.bf16.mxu0 0
    %5223 = vmatpush1.bf16.msra.mxu0 0
    %5224 = vmatprep.subr.bf16.mxu0 0
    %5225 = vmatpush1.bf16.msra.mxu0 0
    %5226 = vmatprep.subr.bf16.mxu0 0
    %5227 = vmatpush1.bf16.msra.mxu0 0
    %5228 = vmatprep.subr.bf16.mxu0 0
    %5229 = vmatpush1.bf16.msra.mxu0 0
    %5230 = vmatprep.subr.bf16.mxu0 0
    %5231 = vmatpush1.bf16.msra.mxu0 0
    %5232 = vmatprep.subr.bf16.mxu0 0
    %5233 = vmatpush1.bf16.msra.mxu0 0
    %5234 = vmatprep.subr.bf16.mxu0 0
    %5235 = vmatpush1.bf16.msra.mxu0 0
    %5236 = vmatprep.subr.bf16.mxu0 0
    %5237 = vmatpush1.bf16.msra.mxu0 0
    %5238 = vmatprep.subr.bf16.mxu0 0
    %5239 = vmatpush1.bf16.msra.mxu0 0
    %5240 = vmatprep.subr.bf16.mxu0 0
    %5241 = vmatpush1.bf16.msra.mxu0 0
    %5242 = vmatprep.subr.bf16.mxu0 0
    %5243 = vmatpush1.bf16.msra.mxu0 0
    %5244 = vmatprep.subr.bf16.mxu0 0
    %5245 = vmatpush1.bf16.msra.mxu0 0
    %5246 = vmatprep.mubr.bf16.mxu0 0
    %5247 = vmatmul.mubr.bf16.gmra.mrb[0].mxu0 %v5209
    %v5248 = vpop.f32.mrb[0].mxu0
    %v5249 = vadd.f32 0.0, %v5248
    %v5250 = vpop.f32.mrb[0].mxu0
    %v5251 = vpop.f32.mrb[0].mxu0
    %v5252 = vadd.f32 0.0, %v5251
    %v5253 = vpop.f32.mrb[0].mxu0
    %5254 = vmatprep.mubr.bf16.mxu0 0
    %5255 = vmatmul.mubr.bf16.gmra.mrb[0].mxu0 %v5212
    %v5256 = vpop.f32.mrb[0].mxu0
    %v5257 = vadd.f32 0.0, %v5256
    %v5258 = vpop.f32.mrb[0].mxu0
    %v5259 = vpop.f32.mrb[0].mxu0
    %v5260 = vadd.f32 0.0, %v5259
    %v5261 = vpop.f32.mrb[0].mxu0
    %5262 = vdwg.mxu0
    %v5267 = vunpack.c.l.b16 %v5188
    %v5268 = vunpack.c.l.b16 %v5189
    %v5269 = vunpack.c.l.b16 %v5190
    %v5270 = vunpack.c.l.b16 %v5191
    %v5271 = vpack.c.b16 %v5268, %v5267
    %v5272 = vpack.c.b16 %v5270, %v5269
    %v5276 = vsel %vm123, %v4756, 0
    %v5279 = vsel %vm123, %v4757, 0
    %5281 = vmatprep.subr.bf16.mxu0 0
    %5282 = vmatpush1.bf16.msra.mxu0 %v5271
    %5283 = vmatprep.subr.bf16.mxu0 0
    %5284 = vmatpush1.bf16.msra.mxu0 %v5272
    %5285 = vmatprep.subr.bf16.mxu0 0
    %5286 = vmatpush1.bf16.msra.mxu0 0
    %5287 = vmatprep.subr.bf16.mxu0 0
    %5288 = vmatpush1.bf16.msra.mxu0 0
    %5289 = vmatprep.subr.bf16.mxu0 0
    %5290 = vmatpush1.bf16.msra.mxu0 0
    %5291 = vmatprep.subr.bf16.mxu0 0
    %5292 = vmatpush1.bf16.msra.mxu0 0
    %5293 = vmatprep.subr.bf16.mxu0 0
    %5294 = vmatpush1.bf16.msra.mxu0 0
    %5295 = vmatprep.subr.bf16.mxu0 0
    %5296 = vmatpush1.bf16.msra.mxu0 0
    %5297 = vmatprep.subr.bf16.mxu0 0
    %5298 = vmatpush1.bf16.msra.mxu0 0
    %5299 = vmatprep.subr.bf16.mxu0 0
    %5300 = vmatpush1.bf16.msra.mxu0 0
    %5301 = vmatprep.subr.bf16.mxu0 0
    %5302 = vmatpush1.bf16.msra.mxu0 0
    %5303 = vmatprep.subr.bf16.mxu0 0
    %5304 = vmatpush1.bf16.msra.mxu0 0
    %5305 = vmatprep.subr.bf16.mxu0 0
    %5306 = vmatpush1.bf16.msra.mxu0 0
    %5307 = vmatprep.subr.bf16.mxu0 0
    %5308 = vmatpush1.bf16.msra.mxu0 0
    %5309 = vmatprep.subr.bf16.mxu0 0
    %5310 = vmatpush1.bf16.msra.mxu0 0
    %5311 = vmatprep.subr.bf16.mxu0 0
    %5312 = vmatpush1.bf16.msra.mxu0 0
    %5313 = vmatprep.mubr.bf16.mxu0 0
    %5314 = vmatmul.mubr.bf16.gmra.mrb[0].mxu0 %v5276
    %v5315 = vpop.f32.mrb[0].mxu0
    %v5316 = vadd.f32 %v5249, %v5315
    %v5317 = vpop.f32.mrb[0].mxu0
    %v5318 = vpop.f32.mrb[0].mxu0
    %v5319 = vadd.f32 %v5252, %v5318
    %v5320 = vpop.f32.mrb[0].mxu0
    %5321 = vmatprep.mubr.bf16.mxu0 0
    %5322 = vmatmul.mubr.bf16.gmra.mrb[0].mxu0 %v5279
    %v5323 = vpop.f32.mrb[0].mxu0
    %v5324 = vadd.f32 %v5257, %v5323
    %v5325 = vpop.f32.mrb[0].mxu0
    %v5326 = vpop.f32.mrb[0].mxu0
    %v5327 = vadd.f32 %v5260, %v5326
    %v5328 = vpop.f32.mrb[0].mxu0
    %5329 = vdwg.mxu0
    %v5330 = vadd.f32 %v4890, %v5032
    %v5331 = vadd.f32 %v4893, %v5035
    %v5332 = vadd.f32 %v4898, %v5040
    %v5333 = vadd.f32 %v4901, %v5043
    %v5334 = vadd.f32 %v5174, %v5316
    %v5335 = vadd.f32 %v5177, %v5319
    %v5336 = vadd.f32 %v5182, %v5324
    %v5337 = vadd.f32 %v5185, %v5327
    %v5338 = vadd.f32 %v5330, %v5334
    %v5339 = vadd.f32 %v5331, %v5335
    %v5340 = vadd.f32 %v5332, %v5336
    %v5341 = vadd.f32 %v5333, %v5337
    %v5342 = vld [vmem:[%s2 + $0x1f8] sm:$0xf]
    %v5343 = vld [vmem:[%s2 + $0x1fc] sm:$0xf]
    %v5344 = vld [vmem:[%s2 + $0x200] sm:$0xf]
    %v5345 = vld [vmem:[%s2 + $0x204] sm:$0xf]
    %v5350 = vunpack.c.l.b16 %v5342
    %v5351 = vunpack.c.l.b16 %v5343
    %v5352 = vunpack.c.l.b16 %v5344
    %v5353 = vunpack.c.l.b16 %v5345
    %v5354 = vpack.c.b16 %v5351, %v5350
    %v5355 = vpack.c.b16 %v5353, %v5352
    %v5359 = vsel %vm123, %v4760, 0
    %v5362 = vsel %vm123, %v4761, 0
    %5364 = vmatprep.subr.bf16.mxu0 0
    %5365 = vmatpush1.bf16.msra.mxu0 %v5354
    %5366 = vmatprep.subr.bf16.mxu0 0
    %5367 = vmatpush1.bf16.msra.mxu0 %v5355
    %5368 = vmatprep.subr.bf16.mxu0 0
    %5369 = vmatpush1.bf16.msra.mxu0 0
    %5370 = vmatprep.subr.bf16.mxu0 0
    %5371 = vmatpush1.bf16.msra.mxu0 0
    %5372 = vmatprep.subr.bf16.mxu0 0
    %5373 = vmatpush1.bf16.msra.mxu0 0
    %5374 = vmatprep.subr.bf16.mxu0 0
    %5375 = vmatpush1.bf16.msra.mxu0 0
    %5376 = vmatprep.subr.bf16.mxu0 0
    %5377 = vmatpush1.bf16.msra.mxu0 0
    %5378 = vmatprep.subr.bf16.mxu0 0
    %5379 = vmatpush1.bf16.msra.mxu0 0
    %5380 = vmatprep.subr.bf16.mxu0 0
    %5381 = vmatpush1.bf16.msra.mxu0 0
    %5382 = vmatprep.subr.bf16.mxu0 0
    %5383 = vmatpush1.bf16.msra.mxu0 0
    %5384 = vmatprep.subr.bf16.mxu0 0
    %5385 = vmatpush1.bf16.msra.mxu0 0
    %5386 = vmatprep.subr.bf16.mxu0 0
    %5387 = vmatpush1.bf16.msra.mxu0 0
    %5388 = vmatprep.subr.bf16.mxu0 0
    %5389 = vmatpush1.bf16.msra.mxu0 0
    %5390 = vmatprep.subr.bf16.mxu0 0
    %5391 = vmatpush1.bf16.msra.mxu0 0
    %5392 = vmatprep.subr.bf16.mxu0 0
    %5393 = vmatpush1.bf16.msra.mxu0 0
    %5394 = vmatprep.subr.bf16.mxu0 0
    %5395 = vmatpush1.bf16.msra.mxu0 0
    %5396 = vmatprep.mubr.bf16.mxu0 0
    %5397 = vmatmul.mubr.bf16.gmra.mrb[0].mxu0 %v5359
    %v5398 = vpop.f32.mrb[0].mxu0
    %v5399 = vadd.f32 0.0, %v5398
    %v5400 = vpop.f32.mrb[0].mxu0
    %v5401 = vpop.f32.mrb[0].mxu0
    %v5402 = vadd.f32 0.0, %v5401
    %v5403 = vpop.f32.mrb[0].mxu0
    %5404 = vmatprep.mubr.bf16.mxu0 0
    %5405 = vmatmul.mubr.bf16.gmra.mrb[0].mxu0 %v5362
    %v5406 = vpop.f32.mrb[0].mxu0
    %v5407 = vadd.f32 0.0, %v5406
    %v5408 = vpop.f32.mrb[0].mxu0
    %v5409 = vpop.f32.mrb[0].mxu0
    %v5410 = vadd.f32 0.0, %v5409
    %v5411 = vpop.f32.mrb[0].mxu0
    %5412 = vdwg.mxu0
    %v5413 = vadd.f32 %v5338, %v5399
    %v5414 = vadd.f32 %v5339, %v5402
    %v5415 = vadd.f32 %v5340, %v5407
    %v5416 = vadd.f32 %v5341, %v5410
    %v5417 = vld [vmem:[%s4 + $0x6] ss:$0 sm:$0xff]
    %v5418 = vadd.f32 %v5413, %v5417
    %v5419 = vadd.f32 %v5414, %v5417
    %v5420 = vadd.f32 %v5415, %v5417
    %v5421 = vadd.f32 %v5416, %v5417
    %5426 = vrot.lane.b32.xlu0 %v4557, 96
    %v5427 = vpop.permute.xlu0 %5426
    %5428 = vrot.lane.b32.xlu0 %v4558, 96
    %v5429 = vpop.permute.xlu0 %5428
    %5430 = vrot.lane.b32.xlu0 %v4559, 96
    %v5431 = vpop.permute.xlu0 %5430
    %5432 = vrot.lane.b32.xlu0 %v4560, 96
    %v5433 = vpop.permute.xlu0 %5432
    %v5438 = vadd.f32 %v5418, %v5427
    %v5439 = vadd.f32 %v5419, %v5429
    %v5440 = vadd.f32 %v5420, %v5431
    %v5441 = vadd.f32 %v5421, %v5433
    %v5442 = vmax.f32 %v5438, 0.0
    %v5443 = vmax.f32 %v5439, 0.0
    %v5444 = vmax.f32 %v5440, 0.0
    %v5445 = vmax.f32 %v5441, 0.0
    %v5446 = vpack.c.bf16 %v5443, %v5442
    %v5447 = vpack.c.bf16 %v5445, %v5444
    %v5448 = vld [vmem:[#allocation2 + $0x120] sm:$0xf]
    %v5449 = vld [vmem:[#allocation2 + $0x124] sm:$0xf]
    %v5450 = vld [vmem:[#allocation2 + $0x128] sm:$0xf]
    %v5451 = vld [vmem:[#allocation2 + $0x12c] sm:$0xf]
    %v5452 = vld [vmem:[#allocation2 + $0x130] sm:$0xf]
    %v5453 = vld [vmem:[#allocation2 + $0x134] sm:$0xf]
    %v5454 = vld [vmem:[#allocation2 + $0x138] sm:$0xf]
    %v5455 = vld [vmem:[#allocation2 + $0x13c] sm:$0xf]
    %v5456 = vld [vmem:[#allocation2 + $0x140] sm:$0xf]
    %v5466 = vunpack.c.l.b16 %v5448
    %v5467 = vunpack.c.l.b16 %v5449
    %v5468 = vunpack.c.l.b16 %v5450
    %v5469 = vunpack.c.l.b16 %v5451
    %v5470 = vunpack.c.l.b16 %v5452
    %v5471 = vunpack.c.l.b16 %v5453
    %v5472 = vunpack.c.l.b16 %v5454
    %v5473 = vunpack.c.l.b16 %v5455
    %v5474 = vunpack.c.l.b16 %v5456
    %v5475 = vpack.c.b16 %v5467, %v5466
    %v5476 = vpack.c.b16 %v5469, %v5468
    %v5477 = vpack.c.b16 %v5471, %v5470
    %v5478 = vpack.c.b16 %v5473, %v5472
    %v5479 = vpack.c.b16 %v5474, %v5474
    %v5481 = vsel %vm123, %v5475, 0
    %v5484 = vsel %vm123, %v5476, 0
    %v5487 = vsel %vm123, %v5477, 0
    %v5490 = vsel %vm123, %v5478, 0
    %v5493 = vsel %vm123, %v5479, 0
    %5495 = vmatprep.subr.bf16.mxu0 0
    %5496 = vmatpush1.bf16.msra.mxu0 %v5446
    %5497 = vmatprep.subr.bf16.mxu0 0
    %5498 = vmatpush1.bf16.msra.mxu0 %v5447
    %5499 = vmatprep.subr.bf16.mxu0 0
    %5500 = vmatpush1.bf16.msra.mxu0 0
    %5501 = vmatprep.subr.bf16.mxu0 0
    %5502 = vmatpush1.bf16.msra.mxu0 0
    %5503 = vmatprep.subr.bf16.mxu0 0
    %5504 = vmatpush1.bf16.msra.mxu0 0
    %5505 = vmatprep.subr.bf16.mxu0 0
    %5506 = vmatpush1.bf16.msra.mxu0 0
    %5507 = vmatprep.subr.bf16.mxu0 0
    %5508 = vmatpush1.bf16.msra.mxu0 0
    %5509 = vmatprep.subr.bf16.mxu0 0
    %5510 = vmatpush1.bf16.msra.mxu0 0
    %5511 = vmatprep.subr.bf16.mxu0 0
    %5512 = vmatpush1.bf16.msra.mxu0 0
    %5513 = vmatprep.subr.bf16.mxu0 0
    %5514 = vmatpush1.bf16.msra.mxu0 0
    %5515 = vmatprep.subr.bf16.mxu0 0
    %5516 = vmatpush1.bf16.msra.mxu0 0
    %5517 = vmatprep.subr.bf16.mxu0 0
    %5518 = vmatpush1.bf16.msra.mxu0 0
    %5519 = vmatprep.subr.bf16.mxu0 0
    %5520 = vmatpush1.bf16.msra.mxu0 0
    %5521 = vmatprep.subr.bf16.mxu0 0
    %5522 = vmatpush1.bf16.msra.mxu0 0
    %5523 = vmatprep.subr.bf16.mxu0 0
    %5524 = vmatpush1.bf16.msra.mxu0 0
    %5525 = vmatprep.subr.bf16.mxu0 0
    %5526 = vmatpush1.bf16.msra.mxu0 0
    %5527 = vmatprep.mubr.bf16.mxu0 0
    %5528 = vmatmul.mubr.bf16.gmra.mrb[0].mxu0 %v5481
    %v5529 = vpop.f32.mrb[0].mxu0
    %v5530 = vadd.f32 0.0, %v5529
    %v5531 = vpop.f32.mrb[0].mxu0
    %v5532 = vpop.f32.mrb[0].mxu0
    %v5533 = vadd.f32 0.0, %v5532
    %v5534 = vpop.f32.mrb[0].mxu0
    %5535 = vmatprep.mubr.bf16.mxu0 0
    %5536 = vmatmul.mubr.bf16.gmra.mrb[0].mxu0 %v5484
    %v5537 = vpop.f32.mrb[0].mxu0
    %v5538 = vadd.f32 0.0, %v5537
    %v5539 = vpop.f32.mrb[0].mxu0
    %v5540 = vpop.f32.mrb[0].mxu0
    %v5541 = vadd.f32 0.0, %v5540
    %v5542 = vpop.f32.mrb[0].mxu0
    %5543 = vmatprep.mubr.bf16.mxu0 0
    %5544 = vmatmul.mubr.bf16.gmra.mrb[0].mxu0 %v5487
    %v5545 = vpop.f32.mrb[0].mxu0
    %v5546 = vadd.f32 0.0, %v5545
    %v5547 = vpop.f32.mrb[0].mxu0
    %v5548 = vpop.f32.mrb[0].mxu0
    %v5549 = vadd.f32 0.0, %v5548
    %v5550 = vpop.f32.mrb[0].mxu0
    %5551 = vmatprep.mubr.bf16.mxu0 0
    %5552 = vmatmul.mubr.bf16.gmra.mrb[0].mxu0 %v5490
    %v5553 = vpop.f32.mrb[0].mxu0
    %v5554 = vadd.f32 0.0, %v5553
    %v5555 = vpop.f32.mrb[0].mxu0
    %v5556 = vpop.f32.mrb[0].mxu0
    %v5557 = vadd.f32 0.0, %v5556
    %v5558 = vpop.f32.mrb[0].mxu0
    %5559 = vmatprep.mubr.bf16.mxu0 0
    %5560 = vmatmul.mubr.bf16.gmra.mrb[0].mxu0 %v5493
    %v5561 = vpop.f32.mrb[0].mxu0
    %v5562 = vadd.f32 0.0, %v5561
    %v5563 = vpop.f32.mrb[0].mxu0
    %v5564 = vpop.f32.mrb[0].mxu0
    %v5565 = vpop.f32.mrb[0].mxu0
    %5566 = vdwg.mxu0
    %v5567 = vpack.c.bf16 %v5533, %v5530
    %v5568 = vpack.c.bf16 %v5541, %v5538
    %v5569 = vpack.c.bf16 %v5549, %v5546
    %v5570 = vpack.c.bf16 %v5557, %v5554
    %v5571 = vpack.c.bf16 %v5562, %v5562
    %v5572 = vld [vmem:[%s2 + $0x208] sm:$0xf]
    %v5573 = vld [vmem:[%s2 + $0x20c] sm:$0xf]
    %v5574 = vld [vmem:[%s2 + $0x210] sm:$0xf]
    %v5575 = vld [vmem:[%s2 + $0x214] sm:$0xf]
    %v5576 = vld [vmem:[%s2 + $0x218] sm:$0xf]
    %v5577 = vld [vmem:[%s2 + $0x21c] sm:$0xf]
    %v5578 = vld [vmem:[%s2 + $0x220] sm:$0xf]
    %v5579 = vld [vmem:[%s2 + $0x224] sm:$0xf]
    %v5581 = vrot.slane %v5567, 4
    %v5586 = vunpack.c.l.b16 %v5576
    %v5587 = vunpack.c.l.b16 %v5577
    %v5588 = vunpack.c.l.b16 %v5578
    %v5589 = vunpack.c.l.b16 %v5579
    %v5590 = vpack.c.b16 %v5587, %v5586
    %v5591 = vpack.c.b16 %v5589, %v5588
    %v5595 = vsel %vm123, %v5581, 0
    %5597 = vmatprep.subr.bf16.mxu0 0
    %5598 = vmatpush1.bf16.msra.mxu0 %v5590
    %5599 = vmatprep.subr.bf16.mxu0 0
    %5600 = vmatpush1.bf16.msra.mxu0 %v5591
    %5601 = vmatprep.subr.bf16.mxu0 0
    %5602 = vmatpush1.bf16.msra.mxu0 0
    %5603 = vmatprep.subr.bf16.mxu0 0
    %5604 = vmatpush1.bf16.msra.mxu0 0
    %5605 = vmatprep.subr.bf16.mxu0 0
    %5606 = vmatpush1.bf16.msra.mxu0 0
    %5607 = vmatprep.subr.bf16.mxu0 0
    %5608 = vmatpush1.bf16.msra.mxu0 0
    %5609 = vmatprep.subr.bf16.mxu0 0
    %5610 = vmatpush1.bf16.msra.mxu0 0
    %5611 = vmatprep.subr.bf16.mxu0 0
    %5612 = vmatpush1.bf16.msra.mxu0 0
    %5613 = vmatprep.subr.bf16.mxu0 0
    %5614 = vmatpush1.bf16.msra.mxu0 0
    %5615 = vmatprep.subr.bf16.mxu0 0
    %5616 = vmatpush1.bf16.msra.mxu0 0
    %5617 = vmatprep.subr.bf16.mxu0 0
    %5618 = vmatpush1.bf16.msra.mxu0 0
    %5619 = vmatprep.subr.bf16.mxu0 0
    %5620 = vmatpush1.bf16.msra.mxu0 0
    %5621 = vmatprep.subr.bf16.mxu0 0
    %5622 = vmatpush1.bf16.msra.mxu0 0
    %5623 = vmatprep.subr.bf16.mxu0 0
    %5624 = vmatpush1.bf16.msra.mxu0 0
    %5625 = vmatprep.subr.bf16.mxu0 0
    %5626 = vmatpush1.bf16.msra.mxu0 0
    %5627 = vmatprep.subr.bf16.mxu0 0
    %5628 = vmatpush1.bf16.msra.mxu0 0
    %5629 = vmatprep.mubr.bf16.mxu0 0
    %5630 = vmatmul.mubr.bf16.gmra.mrb[0].mxu0 %v5595
    %v5631 = vpop.f32.mrb[0].mxu0
    %v5632 = vadd.f32 0.0, %v5631
    %v5633 = vpop.f32.mrb[0].mxu0
    %v5634 = vpop.f32.mrb[0].mxu0
    %v5635 = vpop.f32.mrb[0].mxu0
    %5636 = vdwg.mxu0
    %v5641 = vunpack.c.l.b16 %v5572
    %v5642 = vunpack.c.l.b16 %v5573
    %v5643 = vunpack.c.l.b16 %v5574
    %v5644 = vunpack.c.l.b16 %v5575
    %v5645 = vpack.c.b16 %v5642, %v5641
    %v5646 = vpack.c.b16 %v5644, %v5643
    %v5650 = vsel %vm123, %v5567, 0
    %5652 = vmatprep.subr.bf16.mxu0 0
    %5653 = vmatpush1.bf16.msra.mxu0 %v5645
    %5654 = vmatprep.subr.bf16.mxu0 0
    %5655 = vmatpush1.bf16.msra.mxu0 %v5646
    %5656 = vmatprep.subr.bf16.mxu0 0
    %5657 = vmatpush1.bf16.msra.mxu0 0
    %5658 = vmatprep.subr.bf16.mxu0 0
    %5659 = vmatpush1.bf16.msra.mxu0 0
    %5660 = vmatprep.subr.bf16.mxu0 0
    %5661 = vmatpush1.bf16.msra.mxu0 0
    %5662 = vmatprep.subr.bf16.mxu0 0
    %5663 = vmatpush1.bf16.msra.mxu0 0
    %5664 = vmatprep.subr.bf16.mxu0 0
    %5665 = vmatpush1.bf16.msra.mxu0 0
    %5666 = vmatprep.subr.bf16.mxu0 0
    %5667 = vmatpush1.bf16.msra.mxu0 0
    %5668 = vmatprep.subr.bf16.mxu0 0
    %5669 = vmatpush1.bf16.msra.mxu0 0
    %5670 = vmatprep.subr.bf16.mxu0 0
    %5671 = vmatpush1.bf16.msra.mxu0 0
    %5672 = vmatprep.subr.bf16.mxu0 0
    %5673 = vmatpush1.bf16.msra.mxu0 0
    %5674 = vmatprep.subr.bf16.mxu0 0
    %5675 = vmatpush1.bf16.msra.mxu0 0
    %5676 = vmatprep.subr.bf16.mxu0 0
    %5677 = vmatpush1.bf16.msra.mxu0 0
    %5678 = vmatprep.subr.bf16.mxu0 0
    %5679 = vmatpush1.bf16.msra.mxu0 0
    %5680 = vmatprep.subr.bf16.mxu0 0
    %5681 = vmatpush1.bf16.msra.mxu0 0
    %5682 = vmatprep.subr.bf16.mxu0 0
    %5683 = vmatpush1.bf16.msra.mxu0 0
    %5684 = vmatprep.mubr.bf16.mxu0 0
    %5685 = vmatmul.mubr.bf16.gmra.mrb[0].mxu0 %v5650
    %v5686 = vpop.f32.mrb[0].mxu0
    %v5687 = vadd.f32 %v5632, %v5686
    %v5688 = vpop.f32.mrb[0].mxu0
    %v5689 = vpop.f32.mrb[0].mxu0
    %v5690 = vpop.f32.mrb[0].mxu0
    %5691 = vdwg.mxu0
    %v5692 = vld [vmem:[%s2 + $0x228] sm:$0xf]
    %v5693 = vld [vmem:[%s2 + $0x22c] sm:$0xf]
    %v5694 = vld [vmem:[%s2 + $0x230] sm:$0xf]
    %v5695 = vld [vmem:[%s2 + $0x234] sm:$0xf]
    %v5696 = vld [vmem:[%s2 + $0x238] sm:$0xf]
    %v5697 = vld [vmem:[%s2 + $0x23c] sm:$0xf]
    %v5698 = vld [vmem:[%s2 + $0x240] sm:$0xf]
    %v5699 = vld [vmem:[%s2 + $0x244] sm:$0xf]
    %v5701 = vrot.slane %v5568, 4
    %v5706 = vunpack.c.l.b16 %v5696
    %v5707 = vunpack.c.l.b16 %v5697
    %v5708 = vunpack.c.l.b16 %v5698
    %v5709 = vunpack.c.l.b16 %v5699
    %v5710 = vpack.c.b16 %v5707, %v5706
    %v5711 = vpack.c.b16 %v5709, %v5708
    %v5715 = vsel %vm123, %v5701, 0
    %5717 = vmatprep.subr.bf16.mxu0 0
    %5718 = vmatpush1.bf16.msra.mxu0 %v5710
    %5719 = vmatprep.subr.bf16.mxu0 0
    %5720 = vmatpush1.bf16.msra.mxu0 %v5711
    %5721 = vmatprep.subr.bf16.mxu0 0
    %5722 = vmatpush1.bf16.msra.mxu0 0
    %5723 = vmatprep.subr.bf16.mxu0 0
    %5724 = vmatpush1.bf16.msra.mxu0 0
    %5725 = vmatprep.subr.bf16.mxu0 0
    %5726 = vmatpush1.bf16.msra.mxu0 0
    %5727 = vmatprep.subr.bf16.mxu0 0
    %5728 = vmatpush1.bf16.msra.mxu0 0
    %5729 = vmatprep.subr.bf16.mxu0 0
    %5730 = vmatpush1.bf16.msra.mxu0 0
    %5731 = vmatprep.subr.bf16.mxu0 0
    %5732 = vmatpush1.bf16.msra.mxu0 0
    %5733 = vmatprep.subr.bf16.mxu0 0
    %5734 = vmatpush1.bf16.msra.mxu0 0
    %5735 = vmatprep.subr.bf16.mxu0 0
    %5736 = vmatpush1.bf16.msra.mxu0 0
    %5737 = vmatprep.subr.bf16.mxu0 0
    %5738 = vmatpush1.bf16.msra.mxu0 0
    %5739 = vmatprep.subr.bf16.mxu0 0
    %5740 = vmatpush1.bf16.msra.mxu0 0
    %5741 = vmatprep.subr.bf16.mxu0 0
    %5742 = vmatpush1.bf16.msra.mxu0 0
    %5743 = vmatprep.subr.bf16.mxu0 0
    %5744 = vmatpush1.bf16.msra.mxu0 0
    %5745 = vmatprep.subr.bf16.mxu0 0
    %5746 = vmatpush1.bf16.msra.mxu0 0
    %5747 = vmatprep.subr.bf16.mxu0 0
    %5748 = vmatpush1.bf16.msra.mxu0 0
    %5749 = vmatprep.mubr.bf16.mxu0 0
    %5750 = vmatmul.mubr.bf16.gmra.mrb[0].mxu0 %v5715
    %v5751 = vpop.f32.mrb[0].mxu0
    %v5752 = vadd.f32 0.0, %v5751
    %v5753 = vpop.f32.mrb[0].mxu0
    %v5754 = vpop.f32.mrb[0].mxu0
    %v5755 = vpop.f32.mrb[0].mxu0
    %5756 = vdwg.mxu0
    %v5761 = vunpack.c.l.b16 %v5692
    %v5762 = vunpack.c.l.b16 %v5693
    %v5763 = vunpack.c.l.b16 %v5694
    %v5764 = vunpack.c.l.b16 %v5695
    %v5765 = vpack.c.b16 %v5762, %v5761
    %v5766 = vpack.c.b16 %v5764, %v5763
    %v5770 = vsel %vm123, %v5568, 0
    %5772 = vmatprep.subr.bf16.mxu0 0
    %5773 = vmatpush1.bf16.msra.mxu0 %v5765
    %5774 = vmatprep.subr.bf16.mxu0 0
    %5775 = vmatpush1.bf16.msra.mxu0 %v5766
    %5776 = vmatprep.subr.bf16.mxu0 0
    %5777 = vmatpush1.bf16.msra.mxu0 0
    %5778 = vmatprep.subr.bf16.mxu0 0
    %5779 = vmatpush1.bf16.msra.mxu0 0
    %5780 = vmatprep.subr.bf16.mxu0 0
    %5781 = vmatpush1.bf16.msra.mxu0 0
    %5782 = vmatprep.subr.bf16.mxu0 0
    %5783 = vmatpush1.bf16.msra.mxu0 0
    %5784 = vmatprep.subr.bf16.mxu0 0
    %5785 = vmatpush1.bf16.msra.mxu0 0
    %5786 = vmatprep.subr.bf16.mxu0 0
    %5787 = vmatpush1.bf16.msra.mxu0 0
    %5788 = vmatprep.subr.bf16.mxu0 0
    %5789 = vmatpush1.bf16.msra.mxu0 0
    %5790 = vmatprep.subr.bf16.mxu0 0
    %5791 = vmatpush1.bf16.msra.mxu0 0
    %5792 = vmatprep.subr.bf16.mxu0 0
    %5793 = vmatpush1.bf16.msra.mxu0 0
    %5794 = vmatprep.subr.bf16.mxu0 0
    %5795 = vmatpush1.bf16.msra.mxu0 0
    %5796 = vmatprep.subr.bf16.mxu0 0
    %5797 = vmatpush1.bf16.msra.mxu0 0
    %5798 = vmatprep.subr.bf16.mxu0 0
    %5799 = vmatpush1.bf16.msra.mxu0 0
    %5800 = vmatprep.subr.bf16.mxu0 0
    %5801 = vmatpush1.bf16.msra.mxu0 0
    %5802 = vmatprep.subr.bf16.mxu0 0
    %5803 = vmatpush1.bf16.msra.mxu0 0
    %5804 = vmatprep.mubr.bf16.mxu0 0
    %5805 = vmatmul.mubr.bf16.gmra.mrb[0].mxu0 %v5770
    %v5806 = vpop.f32.mrb[0].mxu0
    %v5807 = vadd.f32 %v5752, %v5806
    %v5808 = vpop.f32.mrb[0].mxu0
    %v5809 = vpop.f32.mrb[0].mxu0
    %v5810 = vpop.f32.mrb[0].mxu0
    %5811 = vdwg.mxu0
    %v5812 = vld [vmem:[%s2 + $0x248] sm:$0xf]
    %v5813 = vld [vmem:[%s2 + $0x24c] sm:$0xf]
    %v5814 = vld [vmem:[%s2 + $0x250] sm:$0xf]
    %v5815 = vld [vmem:[%s2 + $0x254] sm:$0xf]
    %v5816 = vld [vmem:[%s2 + $0x258] sm:$0xf]
    %v5817 = vld [vmem:[%s2 + $0x25c] sm:$0xf]
    %v5818 = vld [vmem:[%s2 + $0x260] sm:$0xf]
    %v5819 = vld [vmem:[%s2 + $0x264] sm:$0xf]
    %v5821 = vrot.slane %v5569, 4
    %v5826 = vunpack.c.l.b16 %v5816
    %v5827 = vunpack.c.l.b16 %v5817
    %v5828 = vunpack.c.l.b16 %v5818
    %v5829 = vunpack.c.l.b16 %v5819
    %v5830 = vpack.c.b16 %v5827, %v5826
    %v5831 = vpack.c.b16 %v5829, %v5828
    %v5835 = vsel %vm123, %v5821, 0
    %5837 = vmatprep.subr.bf16.mxu0 0
    %5838 = vmatpush1.bf16.msra.mxu0 %v5830
    %5839 = vmatprep.subr.bf16.mxu0 0
    %5840 = vmatpush1.bf16.msra.mxu0 %v5831
    %5841 = vmatprep.subr.bf16.mxu0 0
    %5842 = vmatpush1.bf16.msra.mxu0 0
    %5843 = vmatprep.subr.bf16.mxu0 0
    %5844 = vmatpush1.bf16.msra.mxu0 0
    %5845 = vmatprep.subr.bf16.mxu0 0
    %5846 = vmatpush1.bf16.msra.mxu0 0
    %5847 = vmatprep.subr.bf16.mxu0 0
    %5848 = vmatpush1.bf16.msra.mxu0 0
    %5849 = vmatprep.subr.bf16.mxu0 0
    %5850 = vmatpush1.bf16.msra.mxu0 0
    %5851 = vmatprep.subr.bf16.mxu0 0
    %5852 = vmatpush1.bf16.msra.mxu0 0
    %5853 = vmatprep.subr.bf16.mxu0 0
    %5854 = vmatpush1.bf16.msra.mxu0 0
    %5855 = vmatprep.subr.bf16.mxu0 0
    %5856 = vmatpush1.bf16.msra.mxu0 0
    %5857 = vmatprep.subr.bf16.mxu0 0
    %5858 = vmatpush1.bf16.msra.mxu0 0
    %5859 = vmatprep.subr.bf16.mxu0 0
    %5860 = vmatpush1.bf16.msra.mxu0 0
    %5861 = vmatprep.subr.bf16.mxu0 0
    %5862 = vmatpush1.bf16.msra.mxu0 0
    %5863 = vmatprep.subr.bf16.mxu0 0
    %5864 = vmatpush1.bf16.msra.mxu0 0
    %5865 = vmatprep.subr.bf16.mxu0 0
    %5866 = vmatpush1.bf16.msra.mxu0 0
    %5867 = vmatprep.subr.bf16.mxu0 0
    %5868 = vmatpush1.bf16.msra.mxu0 0
    %5869 = vmatprep.mubr.bf16.mxu0 0
    %5870 = vmatmul.mubr.bf16.gmra.mrb[0].mxu0 %v5835
    %v5871 = vpop.f32.mrb[0].mxu0
    %v5872 = vadd.f32 0.0, %v5871
    %v5873 = vpop.f32.mrb[0].mxu0
    %v5874 = vpop.f32.mrb[0].mxu0
    %v5875 = vpop.f32.mrb[0].mxu0
    %5876 = vdwg.mxu0
    %v5881 = vunpack.c.l.b16 %v5812
    %v5882 = vunpack.c.l.b16 %v5813
    %v5883 = vunpack.c.l.b16 %v5814
    %v5884 = vunpack.c.l.b16 %v5815
    %v5885 = vpack.c.b16 %v5882, %v5881
    %v5886 = vpack.c.b16 %v5884, %v5883
    %v5890 = vsel %vm123, %v5569, 0
    %5892 = vmatprep.subr.bf16.mxu0 0
    %5893 = vmatpush1.bf16.msra.mxu0 %v5885
    %5894 = vmatprep.subr.bf16.mxu0 0
    %5895 = vmatpush1.bf16.msra.mxu0 %v5886
    %5896 = vmatprep.subr.bf16.mxu0 0
    %5897 = vmatpush1.bf16.msra.mxu0 0
    %5898 = vmatprep.subr.bf16.mxu0 0
    %5899 = vmatpush1.bf16.msra.mxu0 0
    %5900 = vmatprep.subr.bf16.mxu0 0
    %5901 = vmatpush1.bf16.msra.mxu0 0
    %5902 = vmatprep.subr.bf16.mxu0 0
    %5903 = vmatpush1.bf16.msra.mxu0 0
    %5904 = vmatprep.subr.bf16.mxu0 0
    %5905 = vmatpush1.bf16.msra.mxu0 0
    %5906 = vmatprep.subr.bf16.mxu0 0
    %5907 = vmatpush1.bf16.msra.mxu0 0
    %5908 = vmatprep.subr.bf16.mxu0 0
    %5909 = vmatpush1.bf16.msra.mxu0 0
    %5910 = vmatprep.subr.bf16.mxu0 0
    %5911 = vmatpush1.bf16.msra.mxu0 0
    %5912 = vmatprep.subr.bf16.mxu0 0
    %5913 = vmatpush1.bf16.msra.mxu0 0
    %5914 = vmatprep.subr.bf16.mxu0 0
    %5915 = vmatpush1.bf16.msra.mxu0 0
    %5916 = vmatprep.subr.bf16.mxu0 0
    %5917 = vmatpush1.bf16.msra.mxu0 0
    %5918 = vmatprep.subr.bf16.mxu0 0
    %5919 = vmatpush1.bf16.msra.mxu0 0
    %5920 = vmatprep.subr.bf16.mxu0 0
    %5921 = vmatpush1.bf16.msra.mxu0 0
    %5922 = vmatprep.subr.bf16.mxu0 0
    %5923 = vmatpush1.bf16.msra.mxu0 0
    %5924 = vmatprep.mubr.bf16.mxu0 0
    %5925 = vmatmul.mubr.bf16.gmra.mrb[0].mxu0 %v5890
    %v5926 = vpop.f32.mrb[0].mxu0
    %v5927 = vadd.f32 %v5872, %v5926
    %v5928 = vpop.f32.mrb[0].mxu0
    %v5929 = vpop.f32.mrb[0].mxu0
    %v5930 = vpop.f32.mrb[0].mxu0
    %5931 = vdwg.mxu0
    %v5932 = vld [vmem:[%s2 + $0x268] sm:$0xf]
    %v5933 = vld [vmem:[%s2 + $0x26c] sm:$0xf]
    %v5934 = vld [vmem:[%s2 + $0x270] sm:$0xf]
    %v5935 = vld [vmem:[%s2 + $0x274] sm:$0xf]
    %v5936 = vld [vmem:[%s2 + $0x278] sm:$0xf]
    %v5937 = vld [vmem:[%s2 + $0x27c] sm:$0xf]
    %v5938 = vld [vmem:[%s2 + $0x280] sm:$0xf]
    %v5939 = vld [vmem:[%s2 + $0x284] sm:$0xf]
    %v5941 = vrot.slane %v5570, 4
    %v5946 = vunpack.c.l.b16 %v5936
    %v5947 = vunpack.c.l.b16 %v5937
    %v5948 = vunpack.c.l.b16 %v5938
    %v5949 = vunpack.c.l.b16 %v5939
    %v5950 = vpack.c.b16 %v5947, %v5946
    %v5951 = vpack.c.b16 %v5949, %v5948
    %v5955 = vsel %vm123, %v5941, 0
    %5957 = vmatprep.subr.bf16.mxu0 0
    %5958 = vmatpush1.bf16.msra.mxu0 %v5950
    %5959 = vmatprep.subr.bf16.mxu0 0
    %5960 = vmatpush1.bf16.msra.mxu0 %v5951
    %5961 = vmatprep.subr.bf16.mxu0 0
    %5962 = vmatpush1.bf16.msra.mxu0 0
    %5963 = vmatprep.subr.bf16.mxu0 0
    %5964 = vmatpush1.bf16.msra.mxu0 0
    %5965 = vmatprep.subr.bf16.mxu0 0
    %5966 = vmatpush1.bf16.msra.mxu0 0
    %5967 = vmatprep.subr.bf16.mxu0 0
    %5968 = vmatpush1.bf16.msra.mxu0 0
    %5969 = vmatprep.subr.bf16.mxu0 0
    %5970 = vmatpush1.bf16.msra.mxu0 0
    %5971 = vmatprep.subr.bf16.mxu0 0
    %5972 = vmatpush1.bf16.msra.mxu0 0
    %5973 = vmatprep.subr.bf16.mxu0 0
    %5974 = vmatpush1.bf16.msra.mxu0 0
    %5975 = vmatprep.subr.bf16.mxu0 0
    %5976 = vmatpush1.bf16.msra.mxu0 0
    %5977 = vmatprep.subr.bf16.mxu0 0
    %5978 = vmatpush1.bf16.msra.mxu0 0
    %5979 = vmatprep.subr.bf16.mxu0 0
    %5980 = vmatpush1.bf16.msra.mxu0 0
    %5981 = vmatprep.subr.bf16.mxu0 0
    %5982 = vmatpush1.bf16.msra.mxu0 0
    %5983 = vmatprep.subr.bf16.mxu0 0
    %5984 = vmatpush1.bf16.msra.mxu0 0
    %5985 = vmatprep.subr.bf16.mxu0 0
    %5986 = vmatpush1.bf16.msra.mxu0 0
    %5987 = vmatprep.subr.bf16.mxu0 0
    %5988 = vmatpush1.bf16.msra.mxu0 0
    %5989 = vmatprep.mubr.bf16.mxu0 0
    %5990 = vmatmul.mubr.bf16.gmra.mrb[0].mxu0 %v5955
    %v5991 = vpop.f32.mrb[0].mxu0
    %v5992 = vadd.f32 0.0, %v5991
    %v5993 = vpop.f32.mrb[0].mxu0
    %v5994 = vpop.f32.mrb[0].mxu0
    %v5995 = vpop.f32.mrb[0].mxu0
    %5996 = vdwg.mxu0
    %v6001 = vunpack.c.l.b16 %v5932
    %v6002 = vunpack.c.l.b16 %v5933
    %v6003 = vunpack.c.l.b16 %v5934
    %v6004 = vunpack.c.l.b16 %v5935
    %v6005 = vpack.c.b16 %v6002, %v6001
    %v6006 = vpack.c.b16 %v6004, %v6003
    %v6010 = vsel %vm123, %v5570, 0
    %6012 = vmatprep.subr.bf16.mxu0 0
    %6013 = vmatpush1.bf16.msra.mxu0 %v6005
    %6014 = vmatprep.subr.bf16.mxu0 0
    %6015 = vmatpush1.bf16.msra.mxu0 %v6006
    %6016 = vmatprep.subr.bf16.mxu0 0
    %6017 = vmatpush1.bf16.msra.mxu0 0
    %6018 = vmatprep.subr.bf16.mxu0 0
    %6019 = vmatpush1.bf16.msra.mxu0 0
    %6020 = vmatprep.subr.bf16.mxu0 0
    %6021 = vmatpush1.bf16.msra.mxu0 0
    %6022 = vmatprep.subr.bf16.mxu0 0
    %6023 = vmatpush1.bf16.msra.mxu0 0
    %6024 = vmatprep.subr.bf16.mxu0 0
    %6025 = vmatpush1.bf16.msra.mxu0 0
    %6026 = vmatprep.subr.bf16.mxu0 0
    %6027 = vmatpush1.bf16.msra.mxu0 0
    %6028 = vmatprep.subr.bf16.mxu0 0
    %6029 = vmatpush1.bf16.msra.mxu0 0
    %6030 = vmatprep.subr.bf16.mxu0 0
    %6031 = vmatpush1.bf16.msra.mxu0 0
    %6032 = vmatprep.subr.bf16.mxu0 0
    %6033 = vmatpush1.bf16.msra.mxu0 0
    %6034 = vmatprep.subr.bf16.mxu0 0
    %6035 = vmatpush1.bf16.msra.mxu0 0
    %6036 = vmatprep.subr.bf16.mxu0 0
    %6037 = vmatpush1.bf16.msra.mxu0 0
    %6038 = vmatprep.subr.bf16.mxu0 0
    %6039 = vmatpush1.bf16.msra.mxu0 0
    %6040 = vmatprep.subr.bf16.mxu0 0
    %6041 = vmatpush1.bf16.msra.mxu0 0
    %6042 = vmatprep.subr.bf16.mxu0 0
    %6043 = vmatpush1.bf16.msra.mxu0 0
    %6044 = vmatprep.mubr.bf16.mxu0 0
    %6045 = vmatmul.mubr.bf16.gmra.mrb[0].mxu0 %v6010
    %v6046 = vpop.f32.mrb[0].mxu0
    %v6047 = vadd.f32 %v5992, %v6046
    %v6048 = vpop.f32.mrb[0].mxu0
    %v6049 = vpop.f32.mrb[0].mxu0
    %v6050 = vpop.f32.mrb[0].mxu0
    %6051 = vdwg.mxu0
    %v6052 = vadd.f32 %v5687, %v5807
    %v6053 = vadd.f32 %v5927, %v6047
    %v6054 = vadd.f32 %v6052, %v6053
    %v6055 = vld [vmem:[%s2 + $0x288] sm:$0xf]
    %v6056 = vld [vmem:[%s2 + $0x28c] sm:$0xf]
    %v6057 = vld [vmem:[%s2 + $0x290] sm:$0xf]
    %v6058 = vld [vmem:[%s2 + $0x294] sm:$0xf]
    %v6063 = vunpack.c.l.b16 %v6055
    %v6064 = vunpack.c.l.b16 %v6056
    %v6065 = vunpack.c.l.b16 %v6057
    %v6066 = vunpack.c.l.b16 %v6058
    %v6067 = vpack.c.b16 %v6064, %v6063
    %v6068 = vpack.c.b16 %v6066, %v6065
    %v6072 = vsel %vm123, %v5571, 0
    %6074 = vmatprep.subr.bf16.mxu0 0
    %6075 = vmatpush1.bf16.msra.mxu0 %v6067
    %6076 = vmatprep.subr.bf16.mxu0 0
    %6077 = vmatpush1.bf16.msra.mxu0 %v6068
    %6078 = vmatprep.subr.bf16.mxu0 0
    %6079 = vmatpush1.bf16.msra.mxu0 0
    %6080 = vmatprep.subr.bf16.mxu0 0
    %6081 = vmatpush1.bf16.msra.mxu0 0
    %6082 = vmatprep.subr.bf16.mxu0 0
    %6083 = vmatpush1.bf16.msra.mxu0 0
    %6084 = vmatprep.subr.bf16.mxu0 0
    %6085 = vmatpush1.bf16.msra.mxu0 0
    %6086 = vmatprep.subr.bf16.mxu0 0
    %6087 = vmatpush1.bf16.msra.mxu0 0
    %6088 = vmatprep.subr.bf16.mxu0 0
    %6089 = vmatpush1.bf16.msra.mxu0 0
    %6090 = vmatprep.subr.bf16.mxu0 0
    %6091 = vmatpush1.bf16.msra.mxu0 0
    %6092 = vmatprep.subr.bf16.mxu0 0
    %6093 = vmatpush1.bf16.msra.mxu0 0
    %6094 = vmatprep.subr.bf16.mxu0 0
    %6095 = vmatpush1.bf16.msra.mxu0 0
    %6096 = vmatprep.subr.bf16.mxu0 0
    %6097 = vmatpush1.bf16.msra.mxu0 0
    %6098 = vmatprep.subr.bf16.mxu0 0
    %6099 = vmatpush1.bf16.msra.mxu0 0
    %6100 = vmatprep.subr.bf16.mxu0 0
    %6101 = vmatpush1.bf16.msra.mxu0 0
    %6102 = vmatprep.subr.bf16.mxu0 0
    %6103 = vmatpush1.bf16.msra.mxu0 0
    %6104 = vmatprep.subr.bf16.mxu0 0
    %6105 = vmatpush1.bf16.msra.mxu0 0
    %6106 = vmatprep.mubr.bf16.mxu0 0
    %6107 = vmatmul.mubr.bf16.gmra.mrb[0].mxu0 %v6072
    %v6108 = vpop.f32.mrb[0].mxu0
    %v6109 = vadd.f32 0.0, %v6108
    %v6110 = vpop.f32.mrb[0].mxu0
    %v6111 = vpop.f32.mrb[0].mxu0
    %v6112 = vpop.f32.mrb[0].mxu0
    %6113 = vdwg.mxu0
    %v6114 = vadd.f32 %v6054, %v6109
    %v6115 = vld [vmem:[%s4 + $0x7] ss:$0 sm:$0xff]
    %v6116 = vadd.f32 %v6114, %v6115
    %v6117 = vmax.f32 %v6116, 0.0
    %v6118 = vpack.c.bf16 %v6117, %v6117
    %v6119 = vld [vmem:[#allocation2 + $0x144] sm:$0xf]
    %v6120 = vld [vmem:[#allocation2 + $0x148] sm:$0xf]
    %v6121 = vld [vmem:[#allocation2 + $0x14c] sm:$0xf]
    %v6122 = vld [vmem:[#allocation2 + $0x150] sm:$0xf]
    %v6123 = vld [vmem:[#allocation2 + $0x154] sm:$0xf]
    %v6124 = vld [vmem:[#allocation2 + $0x158] sm:$0xf]
    %v6125 = vld [vmem:[#allocation2 + $0x15c] sm:$0xf]
    %v6126 = vld [vmem:[#allocation2 + $0x160] sm:$0xf]
    %v6127 = vld [vmem:[#allocation2 + $0x164] sm:$0xf]
    %v6137 = vunpack.c.l.b16 %v6119
    %v6138 = vunpack.c.l.b16 %v6120
    %v6139 = vunpack.c.l.b16 %v6121
    %v6140 = vunpack.c.l.b16 %v6122
    %v6141 = vunpack.c.l.b16 %v6123
    %v6142 = vunpack.c.l.b16 %v6124
    %v6143 = vunpack.c.l.b16 %v6125
    %v6144 = vunpack.c.l.b16 %v6126
    %v6145 = vunpack.c.l.b16 %v6127
    %v6146 = vpack.c.b16 %v6138, %v6137
    %v6147 = vpack.c.b16 %v6140, %v6139
    %v6148 = vpack.c.b16 %v6142, %v6141
    %v6149 = vpack.c.b16 %v6144, %v6143
    %v6150 = vpack.c.b16 %v6145, %v6145
    %vm6151 = vcmask 64512
    %v6153 = vsel %vm6151, %v6146, 0
    %v6156 = vsel %vm6151, %v6147, 0
    %v6159 = vsel %vm6151, %v6148, 0
    %v6162 = vsel %vm6151, %v6149, 0
    %v6165 = vsel %vm6151, %v6150, 0
    %vm6167 = vcmask 1043456
    %v6169 = vsel %vm6167, %v6118, 0
    %6171 = vmatprep.subr.bf16.mxu0 0
    %6172 = vmatpush1.bf16.msra.mxu0 %v6169
    %6173 = vmatprep.subr.bf16.mxu0 0
    %6174 = vmatpush1.bf16.msra.mxu0 0
    %6175 = vmatprep.subr.bf16.mxu0 0
    %6176 = vmatpush1.bf16.msra.mxu0 0
    %6177 = vmatprep.subr.bf16.mxu0 0
    %6178 = vmatpush1.bf16.msra.mxu0 0
    %6179 = vmatprep.subr.bf16.mxu0 0
    %6180 = vmatpush1.bf16.msra.mxu0 0
    %6181 = vmatprep.subr.bf16.mxu0 0
    %6182 = vmatpush1.bf16.msra.mxu0 0
    %6183 = vmatprep.subr.bf16.mxu0 0
    %6184 = vmatpush1.bf16.msra.mxu0 0
    %6185 = vmatprep.subr.bf16.mxu0 0
    %6186 = vmatpush1.bf16.msra.mxu0 0
    %6187 = vmatprep.subr.bf16.mxu0 0
    %6188 = vmatpush1.bf16.msra.mxu0 0
    %6189 = vmatprep.subr.bf16.mxu0 0
    %6190 = vmatpush1.bf16.msra.mxu0 0
    %6191 = vmatprep.subr.bf16.mxu0 0
    %6192 = vmatpush1.bf16.msra.mxu0 0
    %6193 = vmatprep.subr.bf16.mxu0 0
    %6194 = vmatpush1.bf16.msra.mxu0 0
    %6195 = vmatprep.subr.bf16.mxu0 0
    %6196 = vmatpush1.bf16.msra.mxu0 0
    %6197 = vmatprep.subr.bf16.mxu0 0
    %6198 = vmatpush1.bf16.msra.mxu0 0
    %6199 = vmatprep.subr.bf16.mxu0 0
    %6200 = vmatpush1.bf16.msra.mxu0 0
    %6201 = vmatprep.subr.bf16.mxu0 0
    %6202 = vmatpush1.bf16.msra.mxu0 0
    %6203 = vmatprep.mubr.bf16.mxu0 0
    %6204 = vmatmul.mubr.bf16.gmra.mrb[0].mxu0 %v6153
    %v6205 = vpop.f32.mrb[0].mxu0
    %v6206 = vadd.f32 0.0, %v6205
    %v6207 = vpop.f32.mrb[0].mxu0
    %v6208 = vpop.f32.mrb[0].mxu0
    %v6209 = vadd.f32 0.0, %v6208
    %v6210 = vpop.f32.mrb[0].mxu0
    %6211 = vmatprep.mubr.bf16.mxu0 0
    %6212 = vmatmul.mubr.bf16.gmra.mrb[0].mxu0 %v6156
    %v6213 = vpop.f32.mrb[0].mxu0
    %v6214 = vadd.f32 0.0, %v6213
    %v6215 = vpop.f32.mrb[0].mxu0
    %v6216 = vpop.f32.mrb[0].mxu0
    %v6217 = vadd.f32 0.0, %v6216
    %v6218 = vpop.f32.mrb[0].mxu0
    %6219 = vmatprep.mubr.bf16.mxu0 0
    %6220 = vmatmul.mubr.bf16.gmra.mrb[0].mxu0 %v6159
    %v6221 = vpop.f32.mrb[0].mxu0
    %v6222 = vadd.f32 0.0, %v6221
    %v6223 = vpop.f32.mrb[0].mxu0
    %v6224 = vpop.f32.mrb[0].mxu0
    %v6225 = vadd.f32 0.0, %v6224
    %v6226 = vpop.f32.mrb[0].mxu0
    %6227 = vmatprep.mubr.bf16.mxu0 0
    %6228 = vmatmul.mubr.bf16.gmra.mrb[0].mxu0 %v6162
    %v6229 = vpop.f32.mrb[0].mxu0
    %v6230 = vadd.f32 0.0, %v6229
    %v6231 = vpop.f32.mrb[0].mxu0
    %v6232 = vpop.f32.mrb[0].mxu0
    %v6233 = vadd.f32 0.0, %v6232
    %v6234 = vpop.f32.mrb[0].mxu0
    %6235 = vmatprep.mubr.bf16.mxu0 0
    %6236 = vmatmul.mubr.bf16.gmra.mrb[0].mxu0 %v6165
    %v6237 = vpop.f32.mrb[0].mxu0
    %v6238 = vadd.f32 0.0, %v6237
    %v6239 = vpop.f32.mrb[0].mxu0
    %v6240 = vpop.f32.mrb[0].mxu0
    %v6241 = vpop.f32.mrb[0].mxu0
    %6242 = vdwg.mxu0
    %v6243 = vpack.c.bf16 %v6209, %v6206
    %v6244 = vpack.c.bf16 %v6217, %v6214
    %v6245 = vpack.c.bf16 %v6225, %v6222
    %v6246 = vpack.c.bf16 %v6233, %v6230
    %v6247 = vpack.c.bf16 %v6238, %v6238
    %v6248 = vld [vmem:[%s2 + $0x298] sm:$0xf]
    %v6249 = vld [vmem:[%s2 + $0x29c] sm:$0xf]
    %v6250 = vld [vmem:[%s2 + $0x2a0] sm:$0xf]
    %v6251 = vld [vmem:[%s2 + $0x2a4] sm:$0xf]
    %v6252 = vld [vmem:[%s2 + $0x2a8] sm:$0xf]
    %v6253 = vld [vmem:[%s2 + $0x2ac] sm:$0xf]
    %v6254 = vld [vmem:[%s2 + $0x2b0] sm:$0xf]
    %v6255 = vld [vmem:[%s2 + $0x2b4] sm:$0xf]
    %v6256 = vld [vmem:[%s2 + $0x2b8] sm:$0xf]
    %v6257 = vld [vmem:[%s2 + $0x2bc] sm:$0xf]
    %v6258 = vld [vmem:[%s2 + $0x2c0] sm:$0xf]
    %v6259 = vld [vmem:[%s2 + $0x2c4] sm:$0xf]
    %v6260 = vld [vmem:[%s2 + $0x2c8] sm:$0xf]
    %v6261 = vld [vmem:[%s2 + $0x2cc] sm:$0xf]
    %v6262 = vld [vmem:[%s2 + $0x2d0] sm:$0xf]
    %v6263 = vld [vmem:[%s2 + $0x2d4] sm:$0xf]
    %v6265 = vrot.slane %v6243, 4
    %v6274 = vunpack.c.l.b16 %v6256
    %v6275 = vunpack.c.l.b16 %v6257
    %v6276 = vunpack.c.l.b16 %v6258
    %v6277 = vunpack.c.l.b16 %v6259
    %v6278 = vunpack.c.l.b16 %v6260
    %v6279 = vunpack.c.l.b16 %v6261
    %v6280 = vunpack.c.l.b16 %v6262
    %v6281 = vunpack.c.l.b16 %v6263
    %v6282 = vpack.c.b16 %v6275, %v6274
    %v6283 = vpack.c.b16 %v6277, %v6276
    %v6284 = vpack.c.b16 %v6279, %v6278
    %v6285 = vpack.c.b16 %v6281, %v6280
    %vm6290 = vcmask 523264
    %v6292 = vsel %vm6290, %v6265, 0
    %6294 = vmatprep.subr.bf16.mxu0 0
    %6295 = vmatpush1.bf16.msra.mxu0 %v6282
    %6296 = vmatprep.subr.bf16.mxu0 0
    %6297 = vmatpush1.bf16.msra.mxu0 %v6283
    %6298 = vmatprep.subr.bf16.mxu0 0
    %6299 = vmatpush1.bf16.msra.mxu0 %v6284
    %6300 = vmatprep.subr.bf16.mxu0 0
    %6301 = vmatpush1.bf16.msra.mxu0 %v6285
    %6302 = vmatprep.subr.bf16.mxu0 0
    %6303 = vmatpush1.bf16.msra.mxu0 0
    %6304 = vmatprep.subr.bf16.mxu0 0
    %6305 = vmatpush1.bf16.msra.mxu0 0
    %6306 = vmatprep.subr.bf16.mxu0 0
    %6307 = vmatpush1.bf16.msra.mxu0 0
    %6308 = vmatprep.subr.bf16.mxu0 0
    %6309 = vmatpush1.bf16.msra.mxu0 0
    %6310 = vmatprep.subr.bf16.mxu0 0
    %6311 = vmatpush1.bf16.msra.mxu0 0
    %6312 = vmatprep.subr.bf16.mxu0 0
    %6313 = vmatpush1.bf16.msra.mxu0 0
    %6314 = vmatprep.subr.bf16.mxu0 0
    %6315 = vmatpush1.bf16.msra.mxu0 0
    %6316 = vmatprep.subr.bf16.mxu0 0
    %6317 = vmatpush1.bf16.msra.mxu0 0
    %6318 = vmatprep.subr.bf16.mxu0 0
    %6319 = vmatpush1.bf16.msra.mxu0 0
    %6320 = vmatprep.subr.bf16.mxu0 0
    %6321 = vmatpush1.bf16.msra.mxu0 0
    %6322 = vmatprep.subr.bf16.mxu0 0
    %6323 = vmatpush1.bf16.msra.mxu0 0
    %6324 = vmatprep.subr.bf16.mxu0 0
    %6325 = vmatpush1.bf16.msra.mxu0 0
    %6326 = vmatprep.mubr.bf16.mxu0 0
    %6327 = vmatmul.mubr.bf16.gmra.mrb[0].mxu0 %v6292
    %v6328 = vpop.f32.mrb[0].mxu0
    %v6329 = vadd.f32 0.0, %v6328
    %v6330 = vpop.f32.mrb[0].mxu0
    %v6331 = vpop.f32.mrb[0].mxu0
    %v6332 = vpop.f32.mrb[0].mxu0
    %6333 = vdwg.mxu0
    %v6342 = vunpack.c.l.b16 %v6248
    %v6343 = vunpack.c.l.b16 %v6249
    %v6344 = vunpack.c.l.b16 %v6250
    %v6345 = vunpack.c.l.b16 %v6251
    %v6346 = vunpack.c.l.b16 %v6252
    %v6347 = vunpack.c.l.b16 %v6253
    %v6348 = vunpack.c.l.b16 %v6254
    %v6349 = vunpack.c.l.b16 %v6255
    %v6350 = vpack.c.b16 %v6343, %v6342
    %v6351 = vpack.c.b16 %v6345, %v6344
    %v6352 = vpack.c.b16 %v6347, %v6346
    %v6353 = vpack.c.b16 %v6349, %v6348
    %v6359 = vsel %vm6290, %v6243, 0
    %6361 = vmatprep.subr.bf16.mxu0 0
    %6362 = vmatpush1.bf16.msra.mxu0 %v6350
    %6363 = vmatprep.subr.bf16.mxu0 0
    %6364 = vmatpush1.bf16.msra.mxu0 %v6351
    %6365 = vmatprep.subr.bf16.mxu0 0
    %6366 = vmatpush1.bf16.msra.mxu0 %v6352
    %6367 = vmatprep.subr.bf16.mxu0 0
    %6368 = vmatpush1.bf16.msra.mxu0 %v6353
    %6369 = vmatprep.subr.bf16.mxu0 0
    %6370 = vmatpush1.bf16.msra.mxu0 0
    %6371 = vmatprep.subr.bf16.mxu0 0
    %6372 = vmatpush1.bf16.msra.mxu0 0
    %6373 = vmatprep.subr.bf16.mxu0 0
    %6374 = vmatpush1.bf16.msra.mxu0 0
    %6375 = vmatprep.subr.bf16.mxu0 0
    %6376 = vmatpush1.bf16.msra.mxu0 0
    %6377 = vmatprep.subr.bf16.mxu0 0
    %6378 = vmatpush1.bf16.msra.mxu0 0
    %6379 = vmatprep.subr.bf16.mxu0 0
    %6380 = vmatpush1.bf16.msra.mxu0 0
    %6381 = vmatprep.subr.bf16.mxu0 0
    %6382 = vmatpush1.bf16.msra.mxu0 0
    %6383 = vmatprep.subr.bf16.mxu0 0
    %6384 = vmatpush1.bf16.msra.mxu0 0
    %6385 = vmatprep.subr.bf16.mxu0 0
    %6386 = vmatpush1.bf16.msra.mxu0 0
    %6387 = vmatprep.subr.bf16.mxu0 0
    %6388 = vmatpush1.bf16.msra.mxu0 0
    %6389 = vmatprep.subr.bf16.mxu0 0
    %6390 = vmatpush1.bf16.msra.mxu0 0
    %6391 = vmatprep.subr.bf16.mxu0 0
    %6392 = vmatpush1.bf16.msra.mxu0 0
    %6393 = vmatprep.mubr.bf16.mxu0 0
    %6394 = vmatmul.mubr.bf16.gmra.mrb[0].mxu0 %v6359
    %v6395 = vpop.f32.mrb[0].mxu0
    %v6396 = vadd.f32 %v6329, %v6395
    %v6397 = vpop.f32.mrb[0].mxu0
    %v6398 = vpop.f32.mrb[0].mxu0
    %v6399 = vpop.f32.mrb[0].mxu0
    %6400 = vdwg.mxu0
    %v6401 = vld [vmem:[%s2 + $0x2d8] sm:$0xf]
    %v6402 = vld [vmem:[%s2 + $0x2dc] sm:$0xf]
    %v6403 = vld [vmem:[%s2 + $0x2e0] sm:$0xf]
    %v6404 = vld [vmem:[%s2 + $0x2e4] sm:$0xf]
    %v6405 = vld [vmem:[%s2 + $0x2e8] sm:$0xf]
    %v6406 = vld [vmem:[%s2 + $0x2ec] sm:$0xf]
    %v6407 = vld [vmem:[%s2 + $0x2f0] sm:$0xf]
    %v6408 = vld [vmem:[%s2 + $0x2f4] sm:$0xf]
    %v6409 = vld [vmem:[%s2 + $0x2f8] sm:$0xf]
    %v6410 = vld [vmem:[%s2 + $0x2fc] sm:$0xf]
    %v6411 = vld [vmem:[%s2 + $0x300] sm:$0xf]
    %v6412 = vld [vmem:[%s2 + $0x304] sm:$0xf]
    %v6413 = vld [vmem:[%s2 + $0x308] sm:$0xf]
    %v6414 = vld [vmem:[%s2 + $0x30c] sm:$0xf]
    %v6415 = vld [vmem:[%s2 + $0x310] sm:$0xf]
    %v6416 = vld [vmem:[%s2 + $0x314] sm:$0xf]
    %v6418 = vrot.slane %v6244, 4
    %v6427 = vunpack.c.l.b16 %v6409
    %v6428 = vunpack.c.l.b16 %v6410
    %v6429 = vunpack.c.l.b16 %v6411
    %v6430 = vunpack.c.l.b16 %v6412
    %v6431 = vunpack.c.l.b16 %v6413
    %v6432 = vunpack.c.l.b16 %v6414
    %v6433 = vunpack.c.l.b16 %v6415
    %v6434 = vunpack.c.l.b16 %v6416
    %v6435 = vpack.c.b16 %v6428, %v6427
    %v6436 = vpack.c.b16 %v6430, %v6429
    %v6437 = vpack.c.b16 %v6432, %v6431
    %v6438 = vpack.c.b16 %v6434, %v6433
    %v6444 = vsel %vm6290, %v6418, 0
    %6446 = vmatprep.subr.bf16.mxu0 0
    %6447 = vmatpush1.bf16.msra.mxu0 %v6435
    %6448 = vmatprep.subr.bf16.mxu0 0
    %6449 = vmatpush1.bf16.msra.mxu0 %v6436
    %6450 = vmatprep.subr.bf16.mxu0 0
    %6451 = vmatpush1.bf16.msra.mxu0 %v6437
    %6452 = vmatprep.subr.bf16.mxu0 0
    %6453 = vmatpush1.bf16.msra.mxu0 %v6438
    %6454 = vmatprep.subr.bf16.mxu0 0
    %6455 = vmatpush1.bf16.msra.mxu0 0
    %6456 = vmatprep.subr.bf16.mxu0 0
    %6457 = vmatpush1.bf16.msra.mxu0 0
    %6458 = vmatprep.subr.bf16.mxu0 0
    %6459 = vmatpush1.bf16.msra.mxu0 0
    %6460 = vmatprep.subr.bf16.mxu0 0
    %6461 = vmatpush1.bf16.msra.mxu0 0
    %6462 = vmatprep.subr.bf16.mxu0 0
    %6463 = vmatpush1.bf16.msra.mxu0 0
    %6464 = vmatprep.subr.bf16.mxu0 0
    %6465 = vmatpush1.bf16.msra.mxu0 0
    %6466 = vmatprep.subr.bf16.mxu0 0
    %6467 = vmatpush1.bf16.msra.mxu0 0
    %6468 = vmatprep.subr.bf16.mxu0 0
    %6469 = vmatpush1.bf16.msra.mxu0 0
    %6470 = vmatprep.subr.bf16.mxu0 0
    %6471 = vmatpush1.bf16.msra.mxu0 0
    %6472 = vmatprep.subr.bf16.mxu0 0
    %6473 = vmatpush1.bf16.msra.mxu0 0
    %6474 = vmatprep.subr.bf16.mxu0 0
    %6475 = vmatpush1.bf16.msra.mxu0 0
    %6476 = vmatprep.subr.bf16.mxu0 0
    %6477 = vmatpush1.bf16.msra.mxu0 0
    %6478 = vmatprep.mubr.bf16.mxu0 0
    %6479 = vmatmul.mubr.bf16.gmra.mrb[0].mxu0 %v6444
    %v6480 = vpop.f32.mrb[0].mxu0
    %v6481 = vadd.f32 0.0, %v6480
    %v6482 = vpop.f32.mrb[0].mxu0
    %v6483 = vpop.f32.mrb[0].mxu0
    %v6484 = vpop.f32.mrb[0].mxu0
    %6485 = vdwg.mxu0
    %v6494 = vunpack.c.l.b16 %v6401
    %v6495 = vunpack.c.l.b16 %v6402
    %v6496 = vunpack.c.l.b16 %v6403
    %v6497 = vunpack.c.l.b16 %v6404
    %v6498 = vunpack.c.l.b16 %v6405
    %v6499 = vunpack.c.l.b16 %v6406
    %v6500 = vunpack.c.l.b16 %v6407
    %v6501 = vunpack.c.l.b16 %v6408
    %v6502 = vpack.c.b16 %v6495, %v6494
    %v6503 = vpack.c.b16 %v6497, %v6496
    %v6504 = vpack.c.b16 %v6499, %v6498
    %v6505 = vpack.c.b16 %v6501, %v6500
    %v6511 = vsel %vm6290, %v6244, 0
    %6513 = vmatprep.subr.bf16.mxu0 0
    %6514 = vmatpush1.bf16.msra.mxu0 %v6502
    %6515 = vmatprep.subr.bf16.mxu0 0
    %6516 = vmatpush1.bf16.msra.mxu0 %v6503
    %6517 = vmatprep.subr.bf16.mxu0 0
    %6518 = vmatpush1.bf16.msra.mxu0 %v6504
    %6519 = vmatprep.subr.bf16.mxu0 0
    %6520 = vmatpush1.bf16.msra.mxu0 %v6505
    %6521 = vmatprep.subr.bf16.mxu0 0
    %6522 = vmatpush1.bf16.msra.mxu0 0
    %6523 = vmatprep.subr.bf16.mxu0 0
    %6524 = vmatpush1.bf16.msra.mxu0 0
    %6525 = vmatprep.subr.bf16.mxu0 0
    %6526 = vmatpush1.bf16.msra.mxu0 0
    %6527 = vmatprep.subr.bf16.mxu0 0
    %6528 = vmatpush1.bf16.msra.mxu0 0
    %6529 = vmatprep.subr.bf16.mxu0 0
    %6530 = vmatpush1.bf16.msra.mxu0 0
    %6531 = vmatprep.subr.bf16.mxu0 0
    %6532 = vmatpush1.bf16.msra.mxu0 0
    %6533 = vmatprep.subr.bf16.mxu0 0
    %6534 = vmatpush1.bf16.msra.mxu0 0
    %6535 = vmatprep.subr.bf16.mxu0 0
    %6536 = vmatpush1.bf16.msra.mxu0 0
    %6537 = vmatprep.subr.bf16.mxu0 0
    %6538 = vmatpush1.bf16.msra.mxu0 0
    %6539 = vmatprep.subr.bf16.mxu0 0
    %6540 = vmatpush1.bf16.msra.mxu0 0
    %6541 = vmatprep.subr.bf16.mxu0 0
    %6542 = vmatpush1.bf16.msra.mxu0 0
    %6543 = vmatprep.subr.bf16.mxu0 0
    %6544 = vmatpush1.bf16.msra.mxu0 0
    %6545 = vmatprep.mubr.bf16.mxu0 0
    %6546 = vmatmul.mubr.bf16.gmra.mrb[0].mxu0 %v6511
    %v6547 = vpop.f32.mrb[0].mxu0
    %v6548 = vadd.f32 %v6481, %v6547
    %v6549 = vpop.f32.mrb[0].mxu0
    %v6550 = vpop.f32.mrb[0].mxu0
    %v6551 = vpop.f32.mrb[0].mxu0
    %6552 = vdwg.mxu0
    %v6553 = vld [vmem:[%s2 + $0x318] sm:$0xf]
    %v6554 = vld [vmem:[%s2 + $0x31c] sm:$0xf]
    %v6555 = vld [vmem:[%s2 + $0x320] sm:$0xf]
    %v6556 = vld [vmem:[%s2 + $0x324] sm:$0xf]
    %v6557 = vld [vmem:[%s2 + $0x328] sm:$0xf]
    %v6558 = vld [vmem:[%s2 + $0x32c] sm:$0xf]
    %v6559 = vld [vmem:[%s2 + $0x330] sm:$0xf]
    %v6560 = vld [vmem:[%s2 + $0x334] sm:$0xf]
    %v6561 = vld [vmem:[%s2 + $0x338] sm:$0xf]
    %v6562 = vld [vmem:[%s2 + $0x33c] sm:$0xf]
    %v6563 = vld [vmem:[%s2 + $0x340] sm:$0xf]
    %v6564 = vld [vmem:[%s2 + $0x344] sm:$0xf]
    %v6565 = vld [vmem:[%s2 + $0x348] sm:$0xf]
    %v6566 = vld [vmem:[%s2 + $0x34c] sm:$0xf]
    %v6567 = vld [vmem:[%s2 + $0x350] sm:$0xf]
    %v6568 = vld [vmem:[%s2 + $0x354] sm:$0xf]
    %v6570 = vrot.slane %v6245, 4
    %v6579 = vunpack.c.l.b16 %v6561
    %v6580 = vunpack.c.l.b16 %v6562
    %v6581 = vunpack.c.l.b16 %v6563
    %v6582 = vunpack.c.l.b16 %v6564
    %v6583 = vunpack.c.l.b16 %v6565
    %v6584 = vunpack.c.l.b16 %v6566
    %v6585 = vunpack.c.l.b16 %v6567
    %v6586 = vunpack.c.l.b16 %v6568
    %v6587 = vpack.c.b16 %v6580, %v6579
    %v6588 = vpack.c.b16 %v6582, %v6581
    %v6589 = vpack.c.b16 %v6584, %v6583
    %v6590 = vpack.c.b16 %v6586, %v6585
    %v6596 = vsel %vm6290, %v6570, 0
    %6598 = vmatprep.subr.bf16.mxu0 0
    %6599 = vmatpush1.bf16.msra.mxu0 %v6587
    %6600 = vmatprep.subr.bf16.mxu0 0
    %6601 = vmatpush1.bf16.msra.mxu0 %v6588
    %6602 = vmatprep.subr.bf16.mxu0 0
    %6603 = vmatpush1.bf16.msra.mxu0 %v6589
    %6604 = vmatprep.subr.bf16.mxu0 0
    %6605 = vmatpush1.bf16.msra.mxu0 %v6590
    %6606 = vmatprep.subr.bf16.mxu0 0
    %6607 = vmatpush1.bf16.msra.mxu0 0
    %6608 = vmatprep.subr.bf16.mxu0 0
    %6609 = vmatpush1.bf16.msra.mxu0 0
    %6610 = vmatprep.subr.bf16.mxu0 0
    %6611 = vmatpush1.bf16.msra.mxu0 0
    %6612 = vmatprep.subr.bf16.mxu0 0
    %6613 = vmatpush1.bf16.msra.mxu0 0
    %6614 = vmatprep.subr.bf16.mxu0 0
    %6615 = vmatpush1.bf16.msra.mxu0 0
    %6616 = vmatprep.subr.bf16.mxu0 0
    %6617 = vmatpush1.bf16.msra.mxu0 0
    %6618 = vmatprep.subr.bf16.mxu0 0
    %6619 = vmatpush1.bf16.msra.mxu0 0
    %6620 = vmatprep.subr.bf16.mxu0 0
    %6621 = vmatpush1.bf16.msra.mxu0 0
    %6622 = vmatprep.subr.bf16.mxu0 0
    %6623 = vmatpush1.bf16.msra.mxu0 0
    %6624 = vmatprep.subr.bf16.mxu0 0
    %6625 = vmatpush1.bf16.msra.mxu0 0
    %6626 = vmatprep.subr.bf16.mxu0 0
    %6627 = vmatpush1.bf16.msra.mxu0 0
    %6628 = vmatprep.subr.bf16.mxu0 0
    %6629 = vmatpush1.bf16.msra.mxu0 0
    %6630 = vmatprep.mubr.bf16.mxu0 0
    %6631 = vmatmul.mubr.bf16.gmra.mrb[0].mxu0 %v6596
    %v6632 = vpop.f32.mrb[0].mxu0
    %v6633 = vadd.f32 0.0, %v6632
    %v6634 = vpop.f32.mrb[0].mxu0
    %v6635 = vpop.f32.mrb[0].mxu0
    %v6636 = vpop.f32.mrb[0].mxu0
    %6637 = vdwg.mxu0
    %v6646 = vunpack.c.l.b16 %v6553
    %v6647 = vunpack.c.l.b16 %v6554
    %v6648 = vunpack.c.l.b16 %v6555
    %v6649 = vunpack.c.l.b16 %v6556
    %v6650 = vunpack.c.l.b16 %v6557
    %v6651 = vunpack.c.l.b16 %v6558
    %v6652 = vunpack.c.l.b16 %v6559
    %v6653 = vunpack.c.l.b16 %v6560
    %v6654 = vpack.c.b16 %v6647, %v6646
    %v6655 = vpack.c.b16 %v6649, %v6648
    %v6656 = vpack.c.b16 %v6651, %v6650
    %v6657 = vpack.c.b16 %v6653, %v6652
    %v6663 = vsel %vm6290, %v6245, 0
    %6665 = vmatprep.subr.bf16.mxu0 0
    %6666 = vmatpush1.bf16.msra.mxu0 %v6654
    %6667 = vmatprep.subr.bf16.mxu0 0
    %6668 = vmatpush1.bf16.msra.mxu0 %v6655
    %6669 = vmatprep.subr.bf16.mxu0 0
    %6670 = vmatpush1.bf16.msra.mxu0 %v6656
    %6671 = vmatprep.subr.bf16.mxu0 0
    %6672 = vmatpush1.bf16.msra.mxu0 %v6657
    %6673 = vmatprep.subr.bf16.mxu0 0
    %6674 = vmatpush1.bf16.msra.mxu0 0
    %6675 = vmatprep.subr.bf16.mxu0 0
    %6676 = vmatpush1.bf16.msra.mxu0 0
    %6677 = vmatprep.subr.bf16.mxu0 0
    %6678 = vmatpush1.bf16.msra.mxu0 0
    %6679 = vmatprep.subr.bf16.mxu0 0
    %6680 = vmatpush1.bf16.msra.mxu0 0
    %6681 = vmatprep.subr.bf16.mxu0 0
    %6682 = vmatpush1.bf16.msra.mxu0 0
    %6683 = vmatprep.subr.bf16.mxu0 0
    %6684 = vmatpush1.bf16.msra.mxu0 0
    %6685 = vmatprep.subr.bf16.mxu0 0
    %6686 = vmatpush1.bf16.msra.mxu0 0
    %6687 = vmatprep.subr.bf16.mxu0 0
    %6688 = vmatpush1.bf16.msra.mxu0 0
    %6689 = vmatprep.subr.bf16.mxu0 0
    %6690 = vmatpush1.bf16.msra.mxu0 0
    %6691 = vmatprep.subr.bf16.mxu0 0
    %6692 = vmatpush1.bf16.msra.mxu0 0
    %6693 = vmatprep.subr.bf16.mxu0 0
    %6694 = vmatpush1.bf16.msra.mxu0 0
    %6695 = vmatprep.subr.bf16.mxu0 0
    %6696 = vmatpush1.bf16.msra.mxu0 0
    %6697 = vmatprep.mubr.bf16.mxu0 0
    %6698 = vmatmul.mubr.bf16.gmra.mrb[0].mxu0 %v6663
    %v6699 = vpop.f32.mrb[0].mxu0
    %v6700 = vadd.f32 %v6633, %v6699
    %v6701 = vpop.f32.mrb[0].mxu0
    %v6702 = vpop.f32.mrb[0].mxu0
    %v6703 = vpop.f32.mrb[0].mxu0
    %6704 = vdwg.mxu0
    %v6705 = vld [vmem:[%s2 + $0x358] sm:$0xf]
    %v6706 = vld [vmem:[%s2 + $0x35c] sm:$0xf]
    %v6707 = vld [vmem:[%s2 + $0x360] sm:$0xf]
    %v6708 = vld [vmem:[%s2 + $0x364] sm:$0xf]
    %v6709 = vld [vmem:[%s2 + $0x368] sm:$0xf]
    %v6710 = vld [vmem:[%s2 + $0x36c] sm:$0xf]
    %v6711 = vld [vmem:[%s2 + $0x370] sm:$0xf]
    %v6712 = vld [vmem:[%s2 + $0x374] sm:$0xf]
    %v6713 = vld [vmem:[%s2 + $0x378] sm:$0xf]
    %v6714 = vld [vmem:[%s2 + $0x37c] sm:$0xf]
    %v6715 = vld [vmem:[%s2 + $0x380] sm:$0xf]
    %v6716 = vld [vmem:[%s2 + $0x384] sm:$0xf]
    %v6717 = vld [vmem:[%s2 + $0x388] sm:$0xf]
    %v6718 = vld [vmem:[%s2 + $0x38c] sm:$0xf]
    %v6719 = vld [vmem:[%s2 + $0x390] sm:$0xf]
    %v6720 = vld [vmem:[%s2 + $0x394] sm:$0xf]
    %v6722 = vrot.slane %v6246, 4
    %v6731 = vunpack.c.l.b16 %v6713
    %v6732 = vunpack.c.l.b16 %v6714
    %v6733 = vunpack.c.l.b16 %v6715
    %v6734 = vunpack.c.l.b16 %v6716
    %v6735 = vunpack.c.l.b16 %v6717
    %v6736 = vunpack.c.l.b16 %v6718
    %v6737 = vunpack.c.l.b16 %v6719
    %v6738 = vunpack.c.l.b16 %v6720
    %v6739 = vpack.c.b16 %v6732, %v6731
    %v6740 = vpack.c.b16 %v6734, %v6733
    %v6741 = vpack.c.b16 %v6736, %v6735
    %v6742 = vpack.c.b16 %v6738, %v6737
    %v6748 = vsel %vm6290, %v6722, 0
    %6750 = vmatprep.subr.bf16.mxu0 0
    %6751 = vmatpush1.bf16.msra.mxu0 %v6739
    %6752 = vmatprep.subr.bf16.mxu0 0
    %6753 = vmatpush1.bf16.msra.mxu0 %v6740
    %6754 = vmatprep.subr.bf16.mxu0 0
    %6755 = vmatpush1.bf16.msra.mxu0 %v6741
    %6756 = vmatprep.subr.bf16.mxu0 0
    %6757 = vmatpush1.bf16.msra.mxu0 %v6742
    %6758 = vmatprep.subr.bf16.mxu0 0
    %6759 = vmatpush1.bf16.msra.mxu0 0
    %6760 = vmatprep.subr.bf16.mxu0 0
    %6761 = vmatpush1.bf16.msra.mxu0 0
    %6762 = vmatprep.subr.bf16.mxu0 0
    %6763 = vmatpush1.bf16.msra.mxu0 0
    %6764 = vmatprep.subr.bf16.mxu0 0
    %6765 = vmatpush1.bf16.msra.mxu0 0
    %6766 = vmatprep.subr.bf16.mxu0 0
    %6767 = vmatpush1.bf16.msra.mxu0 0
    %6768 = vmatprep.subr.bf16.mxu0 0
    %6769 = vmatpush1.bf16.msra.mxu0 0
    %6770 = vmatprep.subr.bf16.mxu0 0
    %6771 = vmatpush1.bf16.msra.mxu0 0
    %6772 = vmatprep.subr.bf16.mxu0 0
    %6773 = vmatpush1.bf16.msra.mxu0 0
    %6774 = vmatprep.subr.bf16.mxu0 0
    %6775 = vmatpush1.bf16.msra.mxu0 0
    %6776 = vmatprep.subr.bf16.mxu0 0
    %6777 = vmatpush1.bf16.msra.mxu0 0
    %6778 = vmatprep.subr.bf16.mxu0 0
    %6779 = vmatpush1.bf16.msra.mxu0 0
    %6780 = vmatprep.subr.bf16.mxu0 0
    %6781 = vmatpush1.bf16.msra.mxu0 0
    %6782 = vmatprep.mubr.bf16.mxu0 0
    %6783 = vmatmul.mubr.bf16.gmra.mrb[0].mxu0 %v6748
    %v6784 = vpop.f32.mrb[0].mxu0
    %v6785 = vadd.f32 0.0, %v6784
    %v6786 = vpop.f32.mrb[0].mxu0
    %v6787 = vpop.f32.mrb[0].mxu0
    %v6788 = vpop.f32.mrb[0].mxu0
    %6789 = vdwg.mxu0
    %v6798 = vunpack.c.l.b16 %v6705
    %v6799 = vunpack.c.l.b16 %v6706
    %v6800 = vunpack.c.l.b16 %v6707
    %v6801 = vunpack.c.l.b16 %v6708
    %v6802 = vunpack.c.l.b16 %v6709
    %v6803 = vunpack.c.l.b16 %v6710
    %v6804 = vunpack.c.l.b16 %v6711
    %v6805 = vunpack.c.l.b16 %v6712
    %v6806 = vpack.c.b16 %v6799, %v6798
    %v6807 = vpack.c.b16 %v6801, %v6800
    %v6808 = vpack.c.b16 %v6803, %v6802
    %v6809 = vpack.c.b16 %v6805, %v6804
    %v6815 = vsel %vm6290, %v6246, 0
    %6817 = vmatprep.subr.bf16.mxu0 0
    %6818 = vmatpush1.bf16.msra.mxu0 %v6806
    %6819 = vmatprep.subr.bf16.mxu0 0
    %6820 = vmatpush1.bf16.msra.mxu0 %v6807
    %6821 = vmatprep.subr.bf16.mxu0 0
    %6822 = vmatpush1.bf16.msra.mxu0 %v6808
    %6823 = vmatprep.subr.bf16.mxu0 0
    %6824 = vmatpush1.bf16.msra.mxu0 %v6809
    %6825 = vmatprep.subr.bf16.mxu0 0
    %6826 = vmatpush1.bf16.msra.mxu0 0
    %6827 = vmatprep.subr.bf16.mxu0 0
    %6828 = vmatpush1.bf16.msra.mxu0 0
    %6829 = vmatprep.subr.bf16.mxu0 0
    %6830 = vmatpush1.bf16.msra.mxu0 0
    %6831 = vmatprep.subr.bf16.mxu0 0
    %6832 = vmatpush1.bf16.msra.mxu0 0
    %6833 = vmatprep.subr.bf16.mxu0 0
    %6834 = vmatpush1.bf16.msra.mxu0 0
    %6835 = vmatprep.subr.bf16.mxu0 0
    %6836 = vmatpush1.bf16.msra.mxu0 0
    %6837 = vmatprep.subr.bf16.mxu0 0
    %6838 = vmatpush1.bf16.msra.mxu0 0
    %6839 = vmatprep.subr.bf16.mxu0 0
    %6840 = vmatpush1.bf16.msra.mxu0 0
    %6841 = vmatprep.subr.bf16.mxu0 0
    %6842 = vmatpush1.bf16.msra.mxu0 0
    %6843 = vmatprep.subr.bf16.mxu0 0
    %6844 = vmatpush1.bf16.msra.mxu0 0
    %6845 = vmatprep.subr.bf16.mxu0 0
    %6846 = vmatpush1.bf16.msra.mxu0 0
    %6847 = vmatprep.subr.bf16.mxu0 0
    %6848 = vmatpush1.bf16.msra.mxu0 0
    %6849 = vmatprep.mubr.bf16.mxu0 0
    %6850 = vmatmul.mubr.bf16.gmra.mrb[0].mxu0 %v6815
    %v6851 = vpop.f32.mrb[0].mxu0
    %v6852 = vadd.f32 %v6785, %v6851
    %v6853 = vpop.f32.mrb[0].mxu0
    %v6854 = vpop.f32.mrb[0].mxu0
    %v6855 = vpop.f32.mrb[0].mxu0
    %6856 = vdwg.mxu0
    %v6857 = vadd.f32 %v6396, %v6548
    %v6858 = vadd.f32 %v6700, %v6852
    %v6859 = vadd.f32 %v6857, %v6858
    %v6860 = vld [vmem:[%s2 + $0x398] sm:$0xf]
    %v6861 = vld [vmem:[%s2 + $0x39c] sm:$0xf]
    %v6862 = vld [vmem:[%s2 + $0x3a0] sm:$0xf]
    %v6863 = vld [vmem:[%s2 + $0x3a4] sm:$0xf]
    %v6864 = vld [vmem:[%s2 + $0x3a8] sm:$0xf]
    %v6865 = vld [vmem:[%s2 + $0x3ac] sm:$0xf]
    %v6866 = vld [vmem:[%s2 + $0x3b0] sm:$0xf]
    %v6867 = vld [vmem:[%s2 + $0x3b4] sm:$0xf]
    %v6876 = vunpack.c.l.b16 %v6860
    %v6877 = vunpack.c.l.b16 %v6861
    %v6878 = vunpack.c.l.b16 %v6862
    %v6879 = vunpack.c.l.b16 %v6863
    %v6880 = vunpack.c.l.b16 %v6864
    %v6881 = vunpack.c.l.b16 %v6865
    %v6882 = vunpack.c.l.b16 %v6866
    %v6883 = vunpack.c.l.b16 %v6867
    %v6884 = vpack.c.b16 %v6877, %v6876
    %v6885 = vpack.c.b16 %v6879, %v6878
    %v6886 = vpack.c.b16 %v6881, %v6880
    %v6887 = vpack.c.b16 %v6883, %v6882
    %v6893 = vsel %vm6290, %v6247, 0
    %6895 = vmatprep.subr.bf16.mxu0 0
    %6896 = vmatpush1.bf16.msra.mxu0 %v6884
    %6897 = vmatprep.subr.bf16.mxu0 0
    %6898 = vmatpush1.bf16.msra.mxu0 %v6885
    %6899 = vmatprep.subr.bf16.mxu0 0
    %6900 = vmatpush1.bf16.msra.mxu0 %v6886
    %6901 = vmatprep.subr.bf16.mxu0 0
    %6902 = vmatpush1.bf16.msra.mxu0 %v6887
    %6903 = vmatprep.subr.bf16.mxu0 0
    %6904 = vmatpush1.bf16.msra.mxu0 0
    %6905 = vmatprep.subr.bf16.mxu0 0
    %6906 = vmatpush1.bf16.msra.mxu0 0
    %6907 = vmatprep.subr.bf16.mxu0 0
    %6908 = vmatpush1.bf16.msra.mxu0 0
    %6909 = vmatprep.subr.bf16.mxu0 0
    %6910 = vmatpush1.bf16.msra.mxu0 0
    %6911 = vmatprep.subr.bf16.mxu0 0
    %6912 = vmatpush1.bf16.msra.mxu0 0
    %6913 = vmatprep.subr.bf16.mxu0 0
    %6914 = vmatpush1.bf16.msra.mxu0 0
    %6915 = vmatprep.subr.bf16.mxu0 0
    %6916 = vmatpush1.bf16.msra.mxu0 0
    %6917 = vmatprep.subr.bf16.mxu0 0
    %6918 = vmatpush1.bf16.msra.mxu0 0
    %6919 = vmatprep.subr.bf16.mxu0 0
    %6920 = vmatpush1.bf16.msra.mxu0 0
    %6921 = vmatprep.subr.bf16.mxu0 0
    %6922 = vmatpush1.bf16.msra.mxu0 0
    %6923 = vmatprep.subr.bf16.mxu0 0
    %6924 = vmatpush1.bf16.msra.mxu0 0
    %6925 = vmatprep.subr.bf16.mxu0 0
    %6926 = vmatpush1.bf16.msra.mxu0 0
    %6927 = vmatprep.mubr.bf16.mxu0 0
    %6928 = vmatmul.mubr.bf16.gmra.mrb[0].mxu0 %v6893
    %v6929 = vpop.f32.mrb[0].mxu0
    %v6930 = vadd.f32 0.0, %v6929
    %v6931 = vpop.f32.mrb[0].mxu0
    %v6932 = vpop.f32.mrb[0].mxu0
    %v6933 = vpop.f32.mrb[0].mxu0
    %6934 = vdwg.mxu0
    %v6935 = vadd.f32 %v6859, %v6930
    %v6936 = vld [vmem:[%s4 + $0x10] ss:$0 sm:$0xff]
    %v6937 = vadd.f32 %v6935, %v6936
    %6939 = vrot.lane.b32.xlu0 %v6116, 64
    %v6940 = vpop.permute.xlu0 %6939
    %v6942 = vadd.f32 %v6937, %v6940
    %v6943 = vmax.f32 %v6942, 0.0
    %v6944 = vpack.c.bf16 %v6943, %v6943
    %v6946 = vsel %vm6167, %v6944, 0
    %6948 = vmatprep.subr.bf16.mxu0 0
    %6949 = vmatpush1.bf16.msra.mxu0 %v6946
    %6950 = vmatprep.subr.bf16.mxu0 0
    %6951 = vmatpush1.bf16.msra.mxu0 0
    %6952 = vmatprep.subr.bf16.mxu0 0
    %6953 = vmatpush1.bf16.msra.mxu0 0
    %6954 = vmatprep.subr.bf16.mxu0 0
    %6955 = vmatpush1.bf16.msra.mxu0 0
    %6956 = vmatprep.subr.bf16.mxu0 0
    %6957 = vmatpush1.bf16.msra.mxu0 0
    %6958 = vmatprep.subr.bf16.mxu0 0
    %6959 = vmatpush1.bf16.msra.mxu0 0
    %6960 = vmatprep.subr.bf16.mxu0 0
    %6961 = vmatpush1.bf16.msra.mxu0 0
    %6962 = vmatprep.subr.bf16.mxu0 0
    %6963 = vmatpush1.bf16.msra.mxu0 0
    %6964 = vmatprep.subr.bf16.mxu0 0
    %6965 = vmatpush1.bf16.msra.mxu0 0
    %6966 = vmatprep.subr.bf16.mxu0 0
    %6967 = vmatpush1.bf16.msra.mxu0 0
    %6968 = vmatprep.subr.bf16.mxu0 0
    %6969 = vmatpush1.bf16.msra.mxu0 0
    %6970 = vmatprep.subr.bf16.mxu0 0
    %6971 = vmatpush1.bf16.msra.mxu0 0
    %6972 = vmatprep.subr.bf16.mxu0 0
    %6973 = vmatpush1.bf16.msra.mxu0 0
    %6974 = vmatprep.subr.bf16.mxu0 0
    %6975 = vmatpush1.bf16.msra.mxu0 0
    %6976 = vmatprep.subr.bf16.mxu0 0
    %6977 = vmatpush1.bf16.msra.mxu0 0
    %6978 = vmatprep.subr.bf16.mxu0 0
    %6979 = vmatpush1.bf16.msra.mxu0 0
    %6980 = vmatprep.mubr.bf16.mxu0 0
    %6981 = vmatmul.mubr.bf16.gmra.mrb[0].mxu0 %v6153
    %v6982 = vpop.f32.mrb[0].mxu0
    %v6983 = vadd.f32 0.0, %v6982
    %v6984 = vpop.f32.mrb[0].mxu0
    %v6985 = vpop.f32.mrb[0].mxu0
    %v6986 = vadd.f32 0.0, %v6985
    %v6987 = vpop.f32.mrb[0].mxu0
    %6988 = vmatprep.mubr.bf16.mxu0 0
    %6989 = vmatmul.mubr.bf16.gmra.mrb[0].mxu0 %v6156
    %v6990 = vpop.f32.mrb[0].mxu0
    %v6991 = vadd.f32 0.0, %v6990
    %v6992 = vpop.f32.mrb[0].mxu0
    %v6993 = vpop.f32.mrb[0].mxu0
    %v6994 = vadd.f32 0.0, %v6993
    %v6995 = vpop.f32.mrb[0].mxu0
    %6996 = vmatprep.mubr.bf16.mxu0 0
    %6997 = vmatmul.mubr.bf16.gmra.mrb[0].mxu0 %v6159
    %v6998 = vpop.f32.mrb[0].mxu0
    %v6999 = vadd.f32 0.0, %v6998
    %v7000 = vpop.f32.mrb[0].mxu0
    %v7001 = vpop.f32.mrb[0].mxu0
    %v7002 = vadd.f32 0.0, %v7001
    %v7003 = vpop.f32.mrb[0].mxu0
    %7004 = vmatprep.mubr.bf16.mxu0 0
    %7005 = vmatmul.mubr.bf16.gmra.mrb[0].mxu0 %v6162
    %v7006 = vpop.f32.mrb[0].mxu0
    %v7007 = vadd.f32 0.0, %v7006
    %v7008 = vpop.f32.mrb[0].mxu0
    %v7009 = vpop.f32.mrb[0].mxu0
    %v7010 = vadd.f32 0.0, %v7009
    %v7011 = vpop.f32.mrb[0].mxu0
    %7012 = vmatprep.mubr.bf16.mxu0 0
    %7013 = vmatmul.mubr.bf16.gmra.mrb[0].mxu0 %v6165
    %v7014 = vpop.f32.mrb[0].mxu0
    %v7015 = vadd.f32 0.0, %v7014
    %v7016 = vpop.f32.mrb[0].mxu0
    %v7017 = vpop.f32.mrb[0].mxu0
    %v7018 = vpop.f32.mrb[0].mxu0
    %7019 = vdwg.mxu0
    %v7020 = vpack.c.bf16 %v6986, %v6983
    %v7021 = vpack.c.bf16 %v6994, %v6991
    %v7022 = vpack.c.bf16 %v7002, %v6999
    %v7023 = vpack.c.bf16 %v7010, %v7007
    %v7024 = vpack.c.bf16 %v7015, %v7015
    %v7025 = vld [vmem:[%s2 + $0x3b8] sm:$0xf]
    %v7026 = vld [vmem:[%s2 + $0x3bc] sm:$0xf]
    %v7027 = vld [vmem:[%s2 + $0x3c0] sm:$0xf]
    %v7028 = vld [vmem:[%s2 + $0x3c4] sm:$0xf]
    %v7029 = vld [vmem:[%s2 + $0x3c8] sm:$0xf]
    %v7030 = vld [vmem:[%s2 + $0x3cc] sm:$0xf]
    %v7031 = vld [vmem:[%s2 + $0x3d0] sm:$0xf]
    %v7032 = vld [vmem:[%s2 + $0x3d4] sm:$0xf]
    %v7033 = vld [vmem:[%s2 + $0x3d8] sm:$0xf]
    %v7034 = vld [vmem:[%s2 + $0x3dc] sm:$0xf]
    %v7035 = vld [vmem:[%s2 + $0x3e0] sm:$0xf]
    %v7036 = vld [vmem:[%s2 + $0x3e4] sm:$0xf]
    %v7037 = vld [vmem:[%s2 + $0x3e8] sm:$0xf]
    %v7038 = vld [vmem:[%s2 + $0x3ec] sm:$0xf]
    %v7039 = vld [vmem:[%s2 + $0x3f0] sm:$0xf]
    %v7040 = vld [vmem:[%s2 + $0x3f4] sm:$0xf]
    %v7042 = vrot.slane %v7020, 4
    %v7051 = vunpack.c.l.b16 %v7033
    %v7052 = vunpack.c.l.b16 %v7034
    %v7053 = vunpack.c.l.b16 %v7035
    %v7054 = vunpack.c.l.b16 %v7036
    %v7055 = vunpack.c.l.b16 %v7037
    %v7056 = vunpack.c.l.b16 %v7038
    %v7057 = vunpack.c.l.b16 %v7039
    %v7058 = vunpack.c.l.b16 %v7040
    %v7059 = vpack.c.b16 %v7052, %v7051
    %v7060 = vpack.c.b16 %v7054, %v7053
    %v7061 = vpack.c.b16 %v7056, %v7055
    %v7062 = vpack.c.b16 %v7058, %v7057
    %v7068 = vsel %vm6290, %v7042, 0
    %7070 = vmatprep.subr.bf16.mxu0 0
    %7071 = vmatpush1.bf16.msra.mxu0 %v7059
    %7072 = vmatprep.subr.bf16.mxu0 0
    %7073 = vmatpush1.bf16.msra.mxu0 %v7060
    %7074 = vmatprep.subr.bf16.mxu0 0
    %7075 = vmatpush1.bf16.msra.mxu0 %v7061
    %7076 = vmatprep.subr.bf16.mxu0 0
    %7077 = vmatpush1.bf16.msra.mxu0 %v7062
    %7078 = vmatprep.subr.bf16.mxu0 0
    %7079 = vmatpush1.bf16.msra.mxu0 0
    %7080 = vmatprep.subr.bf16.mxu0 0
    %7081 = vmatpush1.bf16.msra.mxu0 0
    %7082 = vmatprep.subr.bf16.mxu0 0
    %7083 = vmatpush1.bf16.msra.mxu0 0
    %7084 = vmatprep.subr.bf16.mxu0 0
    %7085 = vmatpush1.bf16.msra.mxu0 0
    %7086 = vmatprep.subr.bf16.mxu0 0
    %7087 = vmatpush1.bf16.msra.mxu0 0
    %7088 = vmatprep.subr.bf16.mxu0 0
    %7089 = vmatpush1.bf16.msra.mxu0 0
    %7090 = vmatprep.subr.bf16.mxu0 0
    %7091 = vmatpush1.bf16.msra.mxu0 0
    %7092 = vmatprep.subr.bf16.mxu0 0
    %7093 = vmatpush1.bf16.msra.mxu0 0
    %7094 = vmatprep.subr.bf16.mxu0 0
    %7095 = vmatpush1.bf16.msra.mxu0 0
    %7096 = vmatprep.subr.bf16.mxu0 0
    %7097 = vmatpush1.bf16.msra.mxu0 0
    %7098 = vmatprep.subr.bf16.mxu0 0
    %7099 = vmatpush1.bf16.msra.mxu0 0
    %7100 = vmatprep.subr.bf16.mxu0 0
    %7101 = vmatpush1.bf16.msra.mxu0 0
    %7102 = vmatprep.mubr.bf16.mxu0 0
    %7103 = vmatmul.mubr.bf16.gmra.mrb[0].mxu0 %v7068
    %v7104 = vpop.f32.mrb[0].mxu0
    %v7105 = vadd.f32 0.0, %v7104
    %v7106 = vpop.f32.mrb[0].mxu0
    %v7107 = vpop.f32.mrb[0].mxu0
    %v7108 = vpop.f32.mrb[0].mxu0
    %7109 = vdwg.mxu0
    %v7118 = vunpack.c.l.b16 %v7025
    %v7119 = vunpack.c.l.b16 %v7026
    %v7120 = vunpack.c.l.b16 %v7027
    %v7121 = vunpack.c.l.b16 %v7028
    %v7122 = vunpack.c.l.b16 %v7029
    %v7123 = vunpack.c.l.b16 %v7030
    %v7124 = vunpack.c.l.b16 %v7031
    %v7125 = vunpack.c.l.b16 %v7032
    %v7126 = vpack.c.b16 %v7119, %v7118
    %v7127 = vpack.c.b16 %v7121, %v7120
    %v7128 = vpack.c.b16 %v7123, %v7122
    %v7129 = vpack.c.b16 %v7125, %v7124
    %v7135 = vsel %vm6290, %v7020, 0
    %7137 = vmatprep.subr.bf16.mxu0 0
    %7138 = vmatpush1.bf16.msra.mxu0 %v7126
    %7139 = vmatprep.subr.bf16.mxu0 0
    %7140 = vmatpush1.bf16.msra.mxu0 %v7127
    %7141 = vmatprep.subr.bf16.mxu0 0
    %7142 = vmatpush1.bf16.msra.mxu0 %v7128
    %7143 = vmatprep.subr.bf16.mxu0 0
    %7144 = vmatpush1.bf16.msra.mxu0 %v7129
    %7145 = vmatprep.subr.bf16.mxu0 0
    %7146 = vmatpush1.bf16.msra.mxu0 0
    %7147 = vmatprep.subr.bf16.mxu0 0
    %7148 = vmatpush1.bf16.msra.mxu0 0
    %7149 = vmatprep.subr.bf16.mxu0 0
    %7150 = vmatpush1.bf16.msra.mxu0 0
    %7151 = vmatprep.subr.bf16.mxu0 0
    %7152 = vmatpush1.bf16.msra.mxu0 0
    %7153 = vmatprep.subr.bf16.mxu0 0
    %7154 = vmatpush1.bf16.msra.mxu0 0
    %7155 = vmatprep.subr.bf16.mxu0 0
    %7156 = vmatpush1.bf16.msra.mxu0 0
    %7157 = vmatprep.subr.bf16.mxu0 0
    %7158 = vmatpush1.bf16.msra.mxu0 0
    %7159 = vmatprep.subr.bf16.mxu0 0
    %7160 = vmatpush1.bf16.msra.mxu0 0
    %7161 = vmatprep.subr.bf16.mxu0 0
    %7162 = vmatpush1.bf16.msra.mxu0 0
    %7163 = vmatprep.subr.bf16.mxu0 0
    %7164 = vmatpush1.bf16.msra.mxu0 0
    %7165 = vmatprep.subr.bf16.mxu0 0
    %7166 = vmatpush1.bf16.msra.mxu0 0
    %7167 = vmatprep.subr.bf16.mxu0 0
    %7168 = vmatpush1.bf16.msra.mxu0 0
    %7169 = vmatprep.mubr.bf16.mxu0 0
    %7170 = vmatmul.mubr.bf16.gmra.mrb[0].mxu0 %v7135
    %v7171 = vpop.f32.mrb[0].mxu0
    %v7172 = vadd.f32 %v7105, %v7171
    %v7173 = vpop.f32.mrb[0].mxu0
    %v7174 = vpop.f32.mrb[0].mxu0
    %v7175 = vpop.f32.mrb[0].mxu0
    %7176 = vdwg.mxu0
    %v7177 = vld [vmem:[%s2 + $0x3f8] sm:$0xf]
    %v7178 = vld [vmem:[%s2 + $0x3fc] sm:$0xf]
    %v7179 = vld [vmem:[%s2 + $0x400] sm:$0xf]
    %v7180 = vld [vmem:[%s2 + $0x404] sm:$0xf]
    %v7181 = vld [vmem:[%s2 + $0x408] sm:$0xf]
    %v7182 = vld [vmem:[%s2 + $0x40c] sm:$0xf]
    %v7183 = vld [vmem:[%s2 + $0x410] sm:$0xf]
    %v7184 = vld [vmem:[%s2 + $0x414] sm:$0xf]
    %v7185 = vld [vmem:[%s2 + $0x418] sm:$0xf]
    %v7186 = vld [vmem:[%s2 + $0x41c] sm:$0xf]
    %v7187 = vld [vmem:[%s2 + $0x420] sm:$0xf]
    %v7188 = vld [vmem:[%s2 + $0x424] sm:$0xf]
    %v7189 = vld [vmem:[%s2 + $0x428] sm:$0xf]
    %v7190 = vld [vmem:[%s2 + $0x42c] sm:$0xf]
    %v7191 = vld [vmem:[%s2 + $0x430] sm:$0xf]
    %v7192 = vld [vmem:[%s2 + $0x434] sm:$0xf]
    %v7194 = vrot.slane %v7021, 4
    %v7203 = vunpack.c.l.b16 %v7185
    %v7204 = vunpack.c.l.b16 %v7186
    %v7205 = vunpack.c.l.b16 %v7187
    %v7206 = vunpack.c.l.b16 %v7188
    %v7207 = vunpack.c.l.b16 %v7189
    %v7208 = vunpack.c.l.b16 %v7190
    %v7209 = vunpack.c.l.b16 %v7191
    %v7210 = vunpack.c.l.b16 %v7192
    %v7211 = vpack.c.b16 %v7204, %v7203
    %v7212 = vpack.c.b16 %v7206, %v7205
    %v7213 = vpack.c.b16 %v7208, %v7207
    %v7214 = vpack.c.b16 %v7210, %v7209
    %v7220 = vsel %vm6290, %v7194, 0
    %7222 = vmatprep.subr.bf16.mxu0 0
    %7223 = vmatpush1.bf16.msra.mxu0 %v7211
    %7224 = vmatprep.subr.bf16.mxu0 0
    %7225 = vmatpush1.bf16.msra.mxu0 %v7212
    %7226 = vmatprep.subr.bf16.mxu0 0
    %7227 = vmatpush1.bf16.msra.mxu0 %v7213
    %7228 = vmatprep.subr.bf16.mxu0 0
    %7229 = vmatpush1.bf16.msra.mxu0 %v7214
    %7230 = vmatprep.subr.bf16.mxu0 0
    %7231 = vmatpush1.bf16.msra.mxu0 0
    %7232 = vmatprep.subr.bf16.mxu0 0
    %7233 = vmatpush1.bf16.msra.mxu0 0
    %7234 = vmatprep.subr.bf16.mxu0 0
    %7235 = vmatpush1.bf16.msra.mxu0 0
    %7236 = vmatprep.subr.bf16.mxu0 0
    %7237 = vmatpush1.bf16.msra.mxu0 0
    %7238 = vmatprep.subr.bf16.mxu0 0
    %7239 = vmatpush1.bf16.msra.mxu0 0
    %7240 = vmatprep.subr.bf16.mxu0 0
    %7241 = vmatpush1.bf16.msra.mxu0 0
    %7242 = vmatprep.subr.bf16.mxu0 0
    %7243 = vmatpush1.bf16.msra.mxu0 0
    %7244 = vmatprep.subr.bf16.mxu0 0
    %7245 = vmatpush1.bf16.msra.mxu0 0
    %7246 = vmatprep.subr.bf16.mxu0 0
    %7247 = vmatpush1.bf16.msra.mxu0 0
    %7248 = vmatprep.subr.bf16.mxu0 0
    %7249 = vmatpush1.bf16.msra.mxu0 0
    %7250 = vmatprep.subr.bf16.mxu0 0
    %7251 = vmatpush1.bf16.msra.mxu0 0
    %7252 = vmatprep.subr.bf16.mxu0 0
    %7253 = vmatpush1.bf16.msra.mxu0 0
    %7254 = vmatprep.mubr.bf16.mxu0 0
    %7255 = vmatmul.mubr.bf16.gmra.mrb[0].mxu0 %v7220
    %v7256 = vpop.f32.mrb[0].mxu0
    %v7257 = vadd.f32 0.0, %v7256
    %v7258 = vpop.f32.mrb[0].mxu0
    %v7259 = vpop.f32.mrb[0].mxu0
    %v7260 = vpop.f32.mrb[0].mxu0
    %7261 = vdwg.mxu0
    %v7270 = vunpack.c.l.b16 %v7177
    %v7271 = vunpack.c.l.b16 %v7178
    %v7272 = vunpack.c.l.b16 %v7179
    %v7273 = vunpack.c.l.b16 %v7180
    %v7274 = vunpack.c.l.b16 %v7181
    %v7275 = vunpack.c.l.b16 %v7182
    %v7276 = vunpack.c.l.b16 %v7183
    %v7277 = vunpack.c.l.b16 %v7184
    %v7278 = vpack.c.b16 %v7271, %v7270
    %v7279 = vpack.c.b16 %v7273, %v7272
    %v7280 = vpack.c.b16 %v7275, %v7274
    %v7281 = vpack.c.b16 %v7277, %v7276
    %v7287 = vsel %vm6290, %v7021, 0
    %7289 = vmatprep.subr.bf16.mxu0 0
    %7290 = vmatpush1.bf16.msra.mxu0 %v7278
    %7291 = vmatprep.subr.bf16.mxu0 0
    %7292 = vmatpush1.bf16.msra.mxu0 %v7279
    %7293 = vmatprep.subr.bf16.mxu0 0
    %7294 = vmatpush1.bf16.msra.mxu0 %v7280
    %7295 = vmatprep.subr.bf16.mxu0 0
    %7296 = vmatpush1.bf16.msra.mxu0 %v7281
    %7297 = vmatprep.subr.bf16.mxu0 0
    %7298 = vmatpush1.bf16.msra.mxu0 0
    %7299 = vmatprep.subr.bf16.mxu0 0
    %7300 = vmatpush1.bf16.msra.mxu0 0
    %7301 = vmatprep.subr.bf16.mxu0 0
    %7302 = vmatpush1.bf16.msra.mxu0 0
    %7303 = vmatprep.subr.bf16.mxu0 0
    %7304 = vmatpush1.bf16.msra.mxu0 0
    %7305 = vmatprep.subr.bf16.mxu0 0
    %7306 = vmatpush1.bf16.msra.mxu0 0
    %7307 = vmatprep.subr.bf16.mxu0 0
    %7308 = vmatpush1.bf16.msra.mxu0 0
    %7309 = vmatprep.subr.bf16.mxu0 0
    %7310 = vmatpush1.bf16.msra.mxu0 0
    %7311 = vmatprep.subr.bf16.mxu0 0
    %7312 = vmatpush1.bf16.msra.mxu0 0
    %7313 = vmatprep.subr.bf16.mxu0 0
    %7314 = vmatpush1.bf16.msra.mxu0 0
    %7315 = vmatprep.subr.bf16.mxu0 0
    %7316 = vmatpush1.bf16.msra.mxu0 0
    %7317 = vmatprep.subr.bf16.mxu0 0
    %7318 = vmatpush1.bf16.msra.mxu0 0
    %7319 = vmatprep.subr.bf16.mxu0 0
    %7320 = vmatpush1.bf16.msra.mxu0 0
    %7321 = vmatprep.mubr.bf16.mxu0 0
    %7322 = vmatmul.mubr.bf16.gmra.mrb[0].mxu0 %v7287
    %v7323 = vpop.f32.mrb[0].mxu0
    %v7324 = vadd.f32 %v7257, %v7323
    %v7325 = vpop.f32.mrb[0].mxu0
    %v7326 = vpop.f32.mrb[0].mxu0
    %v7327 = vpop.f32.mrb[0].mxu0
    %7328 = vdwg.mxu0
    %v7329 = vld [vmem:[%s2 + $0x438] sm:$0xf]
    %v7330 = vld [vmem:[%s2 + $0x43c] sm:$0xf]
    %v7331 = vld [vmem:[%s2 + $0x440] sm:$0xf]
    %v7332 = vld [vmem:[%s2 + $0x444] sm:$0xf]
    %v7333 = vld [vmem:[%s2 + $0x448] sm:$0xf]
    %v7334 = vld [vmem:[%s2 + $0x44c] sm:$0xf]
    %v7335 = vld [vmem:[%s2 + $0x450] sm:$0xf]
    %v7336 = vld [vmem:[%s2 + $0x454] sm:$0xf]
    %v7337 = vld [vmem:[%s2 + $0x458] sm:$0xf]
    %v7338 = vld [vmem:[%s2 + $0x45c] sm:$0xf]
    %v7339 = vld [vmem:[%s2 + $0x460] sm:$0xf]
    %v7340 = vld [vmem:[%s2 + $0x464] sm:$0xf]
    %v7341 = vld [vmem:[%s2 + $0x468] sm:$0xf]
    %v7342 = vld [vmem:[%s2 + $0x46c] sm:$0xf]
    %v7343 = vld [vmem:[%s2 + $0x470] sm:$0xf]
    %v7344 = vld [vmem:[%s2 + $0x474] sm:$0xf]
    %v7346 = vrot.slane %v7022, 4
    %v7355 = vunpack.c.l.b16 %v7337
    %v7356 = vunpack.c.l.b16 %v7338
    %v7357 = vunpack.c.l.b16 %v7339
    %v7358 = vunpack.c.l.b16 %v7340
    %v7359 = vunpack.c.l.b16 %v7341
    %v7360 = vunpack.c.l.b16 %v7342
    %v7361 = vunpack.c.l.b16 %v7343
    %v7362 = vunpack.c.l.b16 %v7344
    %v7363 = vpack.c.b16 %v7356, %v7355
    %v7364 = vpack.c.b16 %v7358, %v7357
    %v7365 = vpack.c.b16 %v7360, %v7359
    %v7366 = vpack.c.b16 %v7362, %v7361
    %v7372 = vsel %vm6290, %v7346, 0
    %7374 = vmatprep.subr.bf16.mxu0 0
    %7375 = vmatpush1.bf16.msra.mxu0 %v7363
    %7376 = vmatprep.subr.bf16.mxu0 0
    %7377 = vmatpush1.bf16.msra.mxu0 %v7364
    %7378 = vmatprep.subr.bf16.mxu0 0
    %7379 = vmatpush1.bf16.msra.mxu0 %v7365
    %7380 = vmatprep.subr.bf16.mxu0 0
    %7381 = vmatpush1.bf16.msra.mxu0 %v7366
    %7382 = vmatprep.subr.bf16.mxu0 0
    %7383 = vmatpush1.bf16.msra.mxu0 0
    %7384 = vmatprep.subr.bf16.mxu0 0
    %7385 = vmatpush1.bf16.msra.mxu0 0
    %7386 = vmatprep.subr.bf16.mxu0 0
    %7387 = vmatpush1.bf16.msra.mxu0 0
    %7388 = vmatprep.subr.bf16.mxu0 0
    %7389 = vmatpush1.bf16.msra.mxu0 0
    %7390 = vmatprep.subr.bf16.mxu0 0
    %7391 = vmatpush1.bf16.msra.mxu0 0
    %7392 = vmatprep.subr.bf16.mxu0 0
    %7393 = vmatpush1.bf16.msra.mxu0 0
    %7394 = vmatprep.subr.bf16.mxu0 0
    %7395 = vmatpush1.bf16.msra.mxu0 0
    %7396 = vmatprep.subr.bf16.mxu0 0
    %7397 = vmatpush1.bf16.msra.mxu0 0
    %7398 = vmatprep.subr.bf16.mxu0 0
    %7399 = vmatpush1.bf16.msra.mxu0 0
    %7400 = vmatprep.subr.bf16.mxu0 0
    %7401 = vmatpush1.bf16.msra.mxu0 0
    %7402 = vmatprep.subr.bf16.mxu0 0
    %7403 = vmatpush1.bf16.msra.mxu0 0
    %7404 = vmatprep.subr.bf16.mxu0 0
    %7405 = vmatpush1.bf16.msra.mxu0 0
    %7406 = vmatprep.mubr.bf16.mxu0 0
    %7407 = vmatmul.mubr.bf16.gmra.mrb[0].mxu0 %v7372
    %v7408 = vpop.f32.mrb[0].mxu0
    %v7409 = vadd.f32 0.0, %v7408
    %v7410 = vpop.f32.mrb[0].mxu0
    %v7411 = vpop.f32.mrb[0].mxu0
    %v7412 = vpop.f32.mrb[0].mxu0
    %7413 = vdwg.mxu0
    %v7422 = vunpack.c.l.b16 %v7329
    %v7423 = vunpack.c.l.b16 %v7330
    %v7424 = vunpack.c.l.b16 %v7331
    %v7425 = vunpack.c.l.b16 %v7332
    %v7426 = vunpack.c.l.b16 %v7333
    %v7427 = vunpack.c.l.b16 %v7334
    %v7428 = vunpack.c.l.b16 %v7335
    %v7429 = vunpack.c.l.b16 %v7336
    %v7430 = vpack.c.b16 %v7423, %v7422
    %v7431 = vpack.c.b16 %v7425, %v7424
    %v7432 = vpack.c.b16 %v7427, %v7426
    %v7433 = vpack.c.b16 %v7429, %v7428
    %v7439 = vsel %vm6290, %v7022, 0
    %7441 = vmatprep.subr.bf16.mxu0 0
    %7442 = vmatpush1.bf16.msra.mxu0 %v7430
    %7443 = vmatprep.subr.bf16.mxu0 0
    %7444 = vmatpush1.bf16.msra.mxu0 %v7431
    %7445 = vmatprep.subr.bf16.mxu0 0
    %7446 = vmatpush1.bf16.msra.mxu0 %v7432
    %7447 = vmatprep.subr.bf16.mxu0 0
    %7448 = vmatpush1.bf16.msra.mxu0 %v7433
    %7449 = vmatprep.subr.bf16.mxu0 0
    %7450 = vmatpush1.bf16.msra.mxu0 0
    %7451 = vmatprep.subr.bf16.mxu0 0
    %7452 = vmatpush1.bf16.msra.mxu0 0
    %7453 = vmatprep.subr.bf16.mxu0 0
    %7454 = vmatpush1.bf16.msra.mxu0 0
    %7455 = vmatprep.subr.bf16.mxu0 0
    %7456 = vmatpush1.bf16.msra.mxu0 0
    %7457 = vmatprep.subr.bf16.mxu0 0
    %7458 = vmatpush1.bf16.msra.mxu0 0
    %7459 = vmatprep.subr.bf16.mxu0 0
    %7460 = vmatpush1.bf16.msra.mxu0 0
    %7461 = vmatprep.subr.bf16.mxu0 0
    %7462 = vmatpush1.bf16.msra.mxu0 0
    %7463 = vmatprep.subr.bf16.mxu0 0
    %7464 = vmatpush1.bf16.msra.mxu0 0
    %7465 = vmatprep.subr.bf16.mxu0 0
    %7466 = vmatpush1.bf16.msra.mxu0 0
    %7467 = vmatprep.subr.bf16.mxu0 0
    %7468 = vmatpush1.bf16.msra.mxu0 0
    %7469 = vmatprep.subr.bf16.mxu0 0
    %7470 = vmatpush1.bf16.msra.mxu0 0
    %7471 = vmatprep.subr.bf16.mxu0 0
    %7472 = vmatpush1.bf16.msra.mxu0 0
    %7473 = vmatprep.mubr.bf16.mxu0 0
    %7474 = vmatmul.mubr.bf16.gmra.mrb[0].mxu0 %v7439
    %v7475 = vpop.f32.mrb[0].mxu0
    %v7476 = vadd.f32 %v7409, %v7475
    %v7477 = vpop.f32.mrb[0].mxu0
    %v7478 = vpop.f32.mrb[0].mxu0
    %v7479 = vpop.f32.mrb[0].mxu0
    %7480 = vdwg.mxu0
    %v7481 = vld [vmem:[%s2 + $0x478] sm:$0xf]
    %v7482 = vld [vmem:[%s2 + $0x47c] sm:$0xf]
    %v7483 = vld [vmem:[%s2 + $0x480] sm:$0xf]
    %v7484 = vld [vmem:[%s2 + $0x484] sm:$0xf]
    %v7485 = vld [vmem:[%s2 + $0x488] sm:$0xf]
    %v7486 = vld [vmem:[%s2 + $0x48c] sm:$0xf]
    %v7487 = vld [vmem:[%s2 + $0x490] sm:$0xf]
    %v7488 = vld [vmem:[%s2 + $0x494] sm:$0xf]
    %v7489 = vld [vmem:[%s2 + $0x498] sm:$0xf]
    %v7490 = vld [vmem:[%s2 + $0x49c] sm:$0xf]
    %v7491 = vld [vmem:[%s2 + $0x4a0] sm:$0xf]
    %v7492 = vld [vmem:[%s2 + $0x4a4] sm:$0xf]
    %v7493 = vld [vmem:[%s2 + $0x4a8] sm:$0xf]
    %v7494 = vld [vmem:[%s2 + $0x4ac] sm:$0xf]
    %v7495 = vld [vmem:[%s2 + $0x4b0] sm:$0xf]
    %v7496 = vld [vmem:[%s2 + $0x4b4] sm:$0xf]
    %v7498 = vrot.slane %v7023, 4
    %v7507 = vunpack.c.l.b16 %v7489
    %v7508 = vunpack.c.l.b16 %v7490
    %v7509 = vunpack.c.l.b16 %v7491
    %v7510 = vunpack.c.l.b16 %v7492
    %v7511 = vunpack.c.l.b16 %v7493
    %v7512 = vunpack.c.l.b16 %v7494
    %v7513 = vunpack.c.l.b16 %v7495
    %v7514 = vunpack.c.l.b16 %v7496
    %v7515 = vpack.c.b16 %v7508, %v7507
    %v7516 = vpack.c.b16 %v7510, %v7509
    %v7517 = vpack.c.b16 %v7512, %v7511
    %v7518 = vpack.c.b16 %v7514, %v7513
    %v7524 = vsel %vm6290, %v7498, 0
    %7526 = vmatprep.subr.bf16.mxu0 0
    %7527 = vmatpush1.bf16.msra.mxu0 %v7515
    %7528 = vmatprep.subr.bf16.mxu0 0
    %7529 = vmatpush1.bf16.msra.mxu0 %v7516
    %7530 = vmatprep.subr.bf16.mxu0 0
    %7531 = vmatpush1.bf16.msra.mxu0 %v7517
    %7532 = vmatprep.subr.bf16.mxu0 0
    %7533 = vmatpush1.bf16.msra.mxu0 %v7518
    %7534 = vmatprep.subr.bf16.mxu0 0
    %7535 = vmatpush1.bf16.msra.mxu0 0
    %7536 = vmatprep.subr.bf16.mxu0 0
    %7537 = vmatpush1.bf16.msra.mxu0 0
    %7538 = vmatprep.subr.bf16.mxu0 0
    %7539 = vmatpush1.bf16.msra.mxu0 0
    %7540 = vmatprep.subr.bf16.mxu0 0
    %7541 = vmatpush1.bf16.msra.mxu0 0
    %7542 = vmatprep.subr.bf16.mxu0 0
    %7543 = vmatpush1.bf16.msra.mxu0 0
    %7544 = vmatprep.subr.bf16.mxu0 0
    %7545 = vmatpush1.bf16.msra.mxu0 0
    %7546 = vmatprep.subr.bf16.mxu0 0
    %7547 = vmatpush1.bf16.msra.mxu0 0
    %7548 = vmatprep.subr.bf16.mxu0 0
    %7549 = vmatpush1.bf16.msra.mxu0 0
    %7550 = vmatprep.subr.bf16.mxu0 0
    %7551 = vmatpush1.bf16.msra.mxu0 0
    %7552 = vmatprep.subr.bf16.mxu0 0
    %7553 = vmatpush1.bf16.msra.mxu0 0
    %7554 = vmatprep.subr.bf16.mxu0 0
    %7555 = vmatpush1.bf16.msra.mxu0 0
    %7556 = vmatprep.subr.bf16.mxu0 0
    %7557 = vmatpush1.bf16.msra.mxu0 0
    %7558 = vmatprep.mubr.bf16.mxu0 0
    %7559 = vmatmul.mubr.bf16.gmra.mrb[0].mxu0 %v7524
    %v7560 = vpop.f32.mrb[0].mxu0
    %v7561 = vadd.f32 0.0, %v7560
    %v7562 = vpop.f32.mrb[0].mxu0
    %v7563 = vpop.f32.mrb[0].mxu0
    %v7564 = vpop.f32.mrb[0].mxu0
    %7565 = vdwg.mxu0
    %v7574 = vunpack.c.l.b16 %v7481
    %v7575 = vunpack.c.l.b16 %v7482
    %v7576 = vunpack.c.l.b16 %v7483
    %v7577 = vunpack.c.l.b16 %v7484
    %v7578 = vunpack.c.l.b16 %v7485
    %v7579 = vunpack.c.l.b16 %v7486
    %v7580 = vunpack.c.l.b16 %v7487
    %v7581 = vunpack.c.l.b16 %v7488
    %v7582 = vpack.c.b16 %v7575, %v7574
    %v7583 = vpack.c.b16 %v7577, %v7576
    %v7584 = vpack.c.b16 %v7579, %v7578
    %v7585 = vpack.c.b16 %v7581, %v7580
    %v7591 = vsel %vm6290, %v7023, 0
    %7593 = vmatprep.subr.bf16.mxu0 0
    %7594 = vmatpush1.bf16.msra.mxu0 %v7582
    %7595 = vmatprep.subr.bf16.mxu0 0
    %7596 = vmatpush1.bf16.msra.mxu0 %v7583
    %7597 = vmatprep.subr.bf16.mxu0 0
    %7598 = vmatpush1.bf16.msra.mxu0 %v7584
    %7599 = vmatprep.subr.bf16.mxu0 0
    %7600 = vmatpush1.bf16.msra.mxu0 %v7585
    %7601 = vmatprep.subr.bf16.mxu0 0
    %7602 = vmatpush1.bf16.msra.mxu0 0
    %7603 = vmatprep.subr.bf16.mxu0 0
    %7604 = vmatpush1.bf16.msra.mxu0 0
    %7605 = vmatprep.subr.bf16.mxu0 0
    %7606 = vmatpush1.bf16.msra.mxu0 0
    %7607 = vmatprep.subr.bf16.mxu0 0
    %7608 = vmatpush1.bf16.msra.mxu0 0
    %7609 = vmatprep.subr.bf16.mxu0 0
    %7610 = vmatpush1.bf16.msra.mxu0 0
    %7611 = vmatprep.subr.bf16.mxu0 0
    %7612 = vmatpush1.bf16.msra.mxu0 0
    %7613 = vmatprep.subr.bf16.mxu0 0
    %7614 = vmatpush1.bf16.msra.mxu0 0
    %7615 = vmatprep.subr.bf16.mxu0 0
    %7616 = vmatpush1.bf16.msra.mxu0 0
    %7617 = vmatprep.subr.bf16.mxu0 0
    %7618 = vmatpush1.bf16.msra.mxu0 0
    %7619 = vmatprep.subr.bf16.mxu0 0
    %7620 = vmatpush1.bf16.msra.mxu0 0
    %7621 = vmatprep.subr.bf16.mxu0 0
    %7622 = vmatpush1.bf16.msra.mxu0 0
    %7623 = vmatprep.subr.bf16.mxu0 0
    %7624 = vmatpush1.bf16.msra.mxu0 0
    %7625 = vmatprep.mubr.bf16.mxu0 0
    %7626 = vmatmul.mubr.bf16.gmra.mrb[0].mxu0 %v7591
    %v7627 = vpop.f32.mrb[0].mxu0
    %v7628 = vadd.f32 %v7561, %v7627
    %v7629 = vpop.f32.mrb[0].mxu0
    %v7630 = vpop.f32.mrb[0].mxu0
    %v7631 = vpop.f32.mrb[0].mxu0
    %7632 = vdwg.mxu0
    %v7633 = vadd.f32 %v7172, %v7324
    %v7634 = vadd.f32 %v7476, %v7628
    %v7635 = vadd.f32 %v7633, %v7634
    %v7636 = vld [vmem:[%s2 + $0x4b8] sm:$0xf]
    %v7637 = vld [vmem:[%s2 + $0x4bc] sm:$0xf]
    %v7638 = vld [vmem:[%s2 + $0x4c0] sm:$0xf]
    %v7639 = vld [vmem:[%s2 + $0x4c4] sm:$0xf]
    %v7640 = vld [vmem:[%s2 + $0x4c8] sm:$0xf]
    %v7641 = vld [vmem:[%s2 + $0x4cc] sm:$0xf]
    %v7642 = vld [vmem:[%s2 + $0x4d0] sm:$0xf]
    %v7643 = vld [vmem:[%s2 + $0x4d4] sm:$0xf]
    %v7652 = vunpack.c.l.b16 %v7636
    %v7653 = vunpack.c.l.b16 %v7637
    %v7654 = vunpack.c.l.b16 %v7638
    %v7655 = vunpack.c.l.b16 %v7639
    %v7656 = vunpack.c.l.b16 %v7640
    %v7657 = vunpack.c.l.b16 %v7641
    %v7658 = vunpack.c.l.b16 %v7642
    %v7659 = vunpack.c.l.b16 %v7643
    %v7660 = vpack.c.b16 %v7653, %v7652
    %v7661 = vpack.c.b16 %v7655, %v7654
    %v7662 = vpack.c.b16 %v7657, %v7656
    %v7663 = vpack.c.b16 %v7659, %v7658
    %v7669 = vsel %vm6290, %v7024, 0
    %7671 = vmatprep.subr.bf16.mxu0 0
    %7672 = vmatpush1.bf16.msra.mxu0 %v7660
    %7673 = vmatprep.subr.bf16.mxu0 0
    %7674 = vmatpush1.bf16.msra.mxu0 %v7661
    %7675 = vmatprep.subr.bf16.mxu0 0
    %7676 = vmatpush1.bf16.msra.mxu0 %v7662
    %7677 = vmatprep.subr.bf16.mxu0 0
    %7678 = vmatpush1.bf16.msra.mxu0 %v7663
    %7679 = vmatprep.subr.bf16.mxu0 0
    %7680 = vmatpush1.bf16.msra.mxu0 0
    %7681 = vmatprep.subr.bf16.mxu0 0
    %7682 = vmatpush1.bf16.msra.mxu0 0
    %7683 = vmatprep.subr.bf16.mxu0 0
    %7684 = vmatpush1.bf16.msra.mxu0 0
    %7685 = vmatprep.subr.bf16.mxu0 0
    %7686 = vmatpush1.bf16.msra.mxu0 0
    %7687 = vmatprep.subr.bf16.mxu0 0
    %7688 = vmatpush1.bf16.msra.mxu0 0
    %7689 = vmatprep.subr.bf16.mxu0 0
    %7690 = vmatpush1.bf16.msra.mxu0 0
    %7691 = vmatprep.subr.bf16.mxu0 0
    %7692 = vmatpush1.bf16.msra.mxu0 0
    %7693 = vmatprep.subr.bf16.mxu0 0
    %7694 = vmatpush1.bf16.msra.mxu0 0
    %7695 = vmatprep.subr.bf16.mxu0 0
    %7696 = vmatpush1.bf16.msra.mxu0 0
    %7697 = vmatprep.subr.bf16.mxu0 0
    %7698 = vmatpush1.bf16.msra.mxu0 0
    %7699 = vmatprep.subr.bf16.mxu0 0
    %7700 = vmatpush1.bf16.msra.mxu0 0
    %7701 = vmatprep.subr.bf16.mxu0 0
    %7702 = vmatpush1.bf16.msra.mxu0 0
    %7703 = vmatprep.mubr.bf16.mxu0 0
    %7704 = vmatmul.mubr.bf16.gmra.mrb[0].mxu0 %v7669
    %v7705 = vpop.f32.mrb[0].mxu0
    %v7706 = vadd.f32 0.0, %v7705
    %v7707 = vpop.f32.mrb[0].mxu0
    %v7708 = vpop.f32.mrb[0].mxu0
    %v7709 = vpop.f32.mrb[0].mxu0
    %7710 = vdwg.mxu0
    %v7711 = vadd.f32 %v7635, %v7706
    %v7712 = vld [vmem:[%s4 + $0x11] ss:$0 sm:$0xff]
    %v7713 = vadd.f32 %v7711, %v7712
    %v7714 = vmax.f32 %v7713, 0.0
    %v7715 = vpack.c.bf16 %v7714, %v7714
    %v7716 = vunpack.c.l.bf16 %v6944
    %v7718 = vsel %vm6167, %v7715, 0
    %7720 = vmatprep.subr.bf16.mxu0 0
    %7721 = vmatpush1.bf16.msra.mxu0 %v7718
    %7722 = vmatprep.subr.bf16.mxu0 0
    %7723 = vmatpush1.bf16.msra.mxu0 0
    %7724 = vmatprep.subr.bf16.mxu0 0
    %7725 = vmatpush1.bf16.msra.mxu0 0
    %7726 = vmatprep.subr.bf16.mxu0 0
    %7727 = vmatpush1.bf16.msra.mxu0 0
    %7728 = vmatprep.subr.bf16.mxu0 0
    %7729 = vmatpush1.bf16.msra.mxu0 0
    %7730 = vmatprep.subr.bf16.mxu0 0
    %7731 = vmatpush1.bf16.msra.mxu0 0
    %7732 = vmatprep.subr.bf16.mxu0 0
    %7733 = vmatpush1.bf16.msra.mxu0 0
    %7734 = vmatprep.subr.bf16.mxu0 0
    %7735 = vmatpush1.bf16.msra.mxu0 0
    %7736 = vmatprep.subr.bf16.mxu0 0
    %7737 = vmatpush1.bf16.msra.mxu0 0
    %7738 = vmatprep.subr.bf16.mxu0 0
    %7739 = vmatpush1.bf16.msra.mxu0 0
    %7740 = vmatprep.subr.bf16.mxu0 0
    %7741 = vmatpush1.bf16.msra.mxu0 0
    %7742 = vmatprep.subr.bf16.mxu0 0
    %7743 = vmatpush1.bf16.msra.mxu0 0
    %7744 = vmatprep.subr.bf16.mxu0 0
    %7745 = vmatpush1.bf16.msra.mxu0 0
    %7746 = vmatprep.subr.bf16.mxu0 0
    %7747 = vmatpush1.bf16.msra.mxu0 0
    %7748 = vmatprep.subr.bf16.mxu0 0
    %7749 = vmatpush1.bf16.msra.mxu0 0
    %7750 = vmatprep.subr.bf16.mxu0 0
    %7751 = vmatpush1.bf16.msra.mxu0 0
    %7752 = vmatprep.mubr.bf16.mxu0 0
    %7753 = vmatmul.mubr.bf16.gmra.mrb[0].mxu0 %v6153
    %v7754 = vpop.f32.mrb[0].mxu0
    %v7755 = vadd.f32 0.0, %v7754
    %v7756 = vpop.f32.mrb[0].mxu0
    %v7757 = vpop.f32.mrb[0].mxu0
    %v7758 = vadd.f32 0.0, %v7757
    %v7759 = vpop.f32.mrb[0].mxu0
    %7760 = vmatprep.mubr.bf16.mxu0 0
    %7761 = vmatmul.mubr.bf16.gmra.mrb[0].mxu0 %v6156
    %v7762 = vpop.f32.mrb[0].mxu0
    %v7763 = vadd.f32 0.0, %v7762
    %v7764 = vpop.f32.mrb[0].mxu0
    %v7765 = vpop.f32.mrb[0].mxu0
    %v7766 = vadd.f32 0.0, %v7765
    %v7767 = vpop.f32.mrb[0].mxu0
    %7768 = vmatprep.mubr.bf16.mxu0 0
    %7769 = vmatmul.mubr.bf16.gmra.mrb[0].mxu0 %v6159
    %v7770 = vpop.f32.mrb[0].mxu0
    %v7771 = vadd.f32 0.0, %v7770
    %v7772 = vpop.f32.mrb[0].mxu0
    %v7773 = vpop.f32.mrb[0].mxu0
    %v7774 = vadd.f32 0.0, %v7773
    %v7775 = vpop.f32.mrb[0].mxu0
    %7776 = vmatprep.mubr.bf16.mxu0 0
    %7777 = vmatmul.mubr.bf16.gmra.mrb[0].mxu0 %v6162
    %v7778 = vpop.f32.mrb[0].mxu0
    %v7779 = vadd.f32 0.0, %v7778
    %v7780 = vpop.f32.mrb[0].mxu0
    %v7781 = vpop.f32.mrb[0].mxu0
    %v7782 = vadd.f32 0.0, %v7781
    %v7783 = vpop.f32.mrb[0].mxu0
    %7784 = vmatprep.mubr.bf16.mxu0 0
    %7785 = vmatmul.mubr.bf16.gmra.mrb[0].mxu0 %v6165
    %v7786 = vpop.f32.mrb[0].mxu0
    %v7787 = vadd.f32 0.0, %v7786
    %v7788 = vpop.f32.mrb[0].mxu0
    %v7789 = vpop.f32.mrb[0].mxu0
    %v7790 = vpop.f32.mrb[0].mxu0
    %7791 = vdwg.mxu0
    %v7792 = vpack.c.bf16 %v7758, %v7755
    %v7793 = vpack.c.bf16 %v7766, %v7763
    %v7794 = vpack.c.bf16 %v7774, %v7771
    %v7795 = vpack.c.bf16 %v7782, %v7779
    %v7796 = vpack.c.bf16 %v7787, %v7787
    %v7797 = vld [vmem:[%s2 + $0x4d8] sm:$0xf]
    %v7798 = vld [vmem:[%s2 + $0x4dc] sm:$0xf]
    %v7799 = vld [vmem:[%s2 + $0x4e0] sm:$0xf]
    %v7800 = vld [vmem:[%s2 + $0x4e4] sm:$0xf]
    %v7801 = vld [vmem:[%s2 + $0x4e8] sm:$0xf]
    %v7802 = vld [vmem:[%s2 + $0x4ec] sm:$0xf]
    %v7803 = vld [vmem:[%s2 + $0x4f0] sm:$0xf]
    %v7804 = vld [vmem:[%s2 + $0x4f4] sm:$0xf]
    %v7805 = vld [vmem:[%s2 + $0x4f8] sm:$0xf]
    %v7806 = vld [vmem:[%s2 + $0x4fc] sm:$0xf]
    %v7807 = vld [vmem:[%s2 + $0x500] sm:$0xf]
    %v7808 = vld [vmem:[%s2 + $0x504] sm:$0xf]
    %v7809 = vld [vmem:[%s2 + $0x508] sm:$0xf]
    %v7810 = vld [vmem:[%s2 + $0x50c] sm:$0xf]
    %v7811 = vld [vmem:[%s2 + $0x510] sm:$0xf]
    %v7812 = vld [vmem:[%s2 + $0x514] sm:$0xf]
    %v7814 = vrot.slane %v7792, 4
    %v7823 = vunpack.c.l.b16 %v7805
    %v7824 = vunpack.c.l.b16 %v7806
    %v7825 = vunpack.c.l.b16 %v7807
    %v7826 = vunpack.c.l.b16 %v7808
    %v7827 = vunpack.c.l.b16 %v7809
    %v7828 = vunpack.c.l.b16 %v7810
    %v7829 = vunpack.c.l.b16 %v7811
    %v7830 = vunpack.c.l.b16 %v7812
    %v7831 = vpack.c.b16 %v7824, %v7823
    %v7832 = vpack.c.b16 %v7826, %v7825
    %v7833 = vpack.c.b16 %v7828, %v7827
    %v7834 = vpack.c.b16 %v7830, %v7829
    %v7840 = vsel %vm6290, %v7814, 0
    %7842 = vmatprep.subr.bf16.mxu0 0
    %7843 = vmatpush1.bf16.msra.mxu0 %v7831
    %7844 = vmatprep.subr.bf16.mxu0 0
    %7845 = vmatpush1.bf16.msra.mxu0 %v7832
    %7846 = vmatprep.subr.bf16.mxu0 0
    %7847 = vmatpush1.bf16.msra.mxu0 %v7833
    %7848 = vmatprep.subr.bf16.mxu0 0
    %7849 = vmatpush1.bf16.msra.mxu0 %v7834
    %7850 = vmatprep.subr.bf16.mxu0 0
    %7851 = vmatpush1.bf16.msra.mxu0 0
    %7852 = vmatprep.subr.bf16.mxu0 0
    %7853 = vmatpush1.bf16.msra.mxu0 0
    %7854 = vmatprep.subr.bf16.mxu0 0
    %7855 = vmatpush1.bf16.msra.mxu0 0
    %7856 = vmatprep.subr.bf16.mxu0 0
    %7857 = vmatpush1.bf16.msra.mxu0 0
    %7858 = vmatprep.subr.bf16.mxu0 0
    %7859 = vmatpush1.bf16.msra.mxu0 0
    %7860 = vmatprep.subr.bf16.mxu0 0
    %7861 = vmatpush1.bf16.msra.mxu0 0
    %7862 = vmatprep.subr.bf16.mxu0 0
    %7863 = vmatpush1.bf16.msra.mxu0 0
    %7864 = vmatprep.subr.bf16.mxu0 0
    %7865 = vmatpush1.bf16.msra.mxu0 0
    %7866 = vmatprep.subr.bf16.mxu0 0
    %7867 = vmatpush1.bf16.msra.mxu0 0
    %7868 = vmatprep.subr.bf16.mxu0 0
    %7869 = vmatpush1.bf16.msra.mxu0 0
    %7870 = vmatprep.subr.bf16.mxu0 0
    %7871 = vmatpush1.bf16.msra.mxu0 0
    %7872 = vmatprep.subr.bf16.mxu0 0
    %7873 = vmatpush1.bf16.msra.mxu0 0
    %7874 = vmatprep.mubr.bf16.mxu0 0
    %7875 = vmatmul.mubr.bf16.gmra.mrb[0].mxu0 %v7840
    %v7876 = vpop.f32.mrb[0].mxu0
    %v7877 = vadd.f32 0.0, %v7876
    %v7878 = vpop.f32.mrb[0].mxu0
    %v7879 = vpop.f32.mrb[0].mxu0
    %v7880 = vpop.f32.mrb[0].mxu0
    %7881 = vdwg.mxu0
    %v7890 = vunpack.c.l.b16 %v7797
    %v7891 = vunpack.c.l.b16 %v7798
    %v7892 = vunpack.c.l.b16 %v7799
    %v7893 = vunpack.c.l.b16 %v7800
    %v7894 = vunpack.c.l.b16 %v7801
    %v7895 = vunpack.c.l.b16 %v7802
    %v7896 = vunpack.c.l.b16 %v7803
    %v7897 = vunpack.c.l.b16 %v7804
    %v7898 = vpack.c.b16 %v7891, %v7890
    %v7899 = vpack.c.b16 %v7893, %v7892
    %v7900 = vpack.c.b16 %v7895, %v7894
    %v7901 = vpack.c.b16 %v7897, %v7896
    %v7907 = vsel %vm6290, %v7792, 0
    %7909 = vmatprep.subr.bf16.mxu0 0
    %7910 = vmatpush1.bf16.msra.mxu0 %v7898
    %7911 = vmatprep.subr.bf16.mxu0 0
    %7912 = vmatpush1.bf16.msra.mxu0 %v7899
    %7913 = vmatprep.subr.bf16.mxu0 0
    %7914 = vmatpush1.bf16.msra.mxu0 %v7900
    %7915 = vmatprep.subr.bf16.mxu0 0
    %7916 = vmatpush1.bf16.msra.mxu0 %v7901
    %7917 = vmatprep.subr.bf16.mxu0 0
    %7918 = vmatpush1.bf16.msra.mxu0 0
    %7919 = vmatprep.subr.bf16.mxu0 0
    %7920 = vmatpush1.bf16.msra.mxu0 0
    %7921 = vmatprep.subr.bf16.mxu0 0
    %7922 = vmatpush1.bf16.msra.mxu0 0
    %7923 = vmatprep.subr.bf16.mxu0 0
    %7924 = vmatpush1.bf16.msra.mxu0 0
    %7925 = vmatprep.subr.bf16.mxu0 0
    %7926 = vmatpush1.bf16.msra.mxu0 0
    %7927 = vmatprep.subr.bf16.mxu0 0
    %7928 = vmatpush1.bf16.msra.mxu0 0
    %7929 = vmatprep.subr.bf16.mxu0 0
    %7930 = vmatpush1.bf16.msra.mxu0 0
    %7931 = vmatprep.subr.bf16.mxu0 0
    %7932 = vmatpush1.bf16.msra.mxu0 0
    %7933 = vmatprep.subr.bf16.mxu0 0
    %7934 = vmatpush1.bf16.msra.mxu0 0
    %7935 = vmatprep.subr.bf16.mxu0 0
    %7936 = vmatpush1.bf16.msra.mxu0 0
    %7937 = vmatprep.subr.bf16.mxu0 0
    %7938 = vmatpush1.bf16.msra.mxu0 0
    %7939 = vmatprep.subr.bf16.mxu0 0
    %7940 = vmatpush1.bf16.msra.mxu0 0
    %7941 = vmatprep.mubr.bf16.mxu0 0
    %7942 = vmatmul.mubr.bf16.gmra.mrb[0].mxu0 %v7907
    %v7943 = vpop.f32.mrb[0].mxu0
    %v7944 = vadd.f32 %v7877, %v7943
    %v7945 = vpop.f32.mrb[0].mxu0
    %v7946 = vpop.f32.mrb[0].mxu0
    %v7947 = vpop.f32.mrb[0].mxu0
    %7948 = vdwg.mxu0
    %v7949 = vld [vmem:[%s2 + $0x518] sm:$0xf]
    %v7950 = vld [vmem:[%s2 + $0x51c] sm:$0xf]
    %v7951 = vld [vmem:[%s2 + $0x520] sm:$0xf]
    %v7952 = vld [vmem:[%s2 + $0x524] sm:$0xf]
    %v7953 = vld [vmem:[%s2 + $0x528] sm:$0xf]
    %v7954 = vld [vmem:[%s2 + $0x52c] sm:$0xf]
    %v7955 = vld [vmem:[%s2 + $0x530] sm:$0xf]
    %v7956 = vld [vmem:[%s2 + $0x534] sm:$0xf]
    %v7957 = vld [vmem:[%s2 + $0x538] sm:$0xf]
    %v7958 = vld [vmem:[%s2 + $0x53c] sm:$0xf]
    %v7959 = vld [vmem:[%s2 + $0x540] sm:$0xf]
    %v7960 = vld [vmem:[%s2 + $0x544] sm:$0xf]
    %v7961 = vld [vmem:[%s2 + $0x548] sm:$0xf]
    %v7962 = vld [vmem:[%s2 + $0x54c] sm:$0xf]
    %v7963 = vld [vmem:[%s2 + $0x550] sm:$0xf]
    %v7964 = vld [vmem:[%s2 + $0x554] sm:$0xf]
    %v7966 = vrot.slane %v7793, 4
    %v7975 = vunpack.c.l.b16 %v7957
    %v7976 = vunpack.c.l.b16 %v7958
    %v7977 = vunpack.c.l.b16 %v7959
    %v7978 = vunpack.c.l.b16 %v7960
    %v7979 = vunpack.c.l.b16 %v7961
    %v7980 = vunpack.c.l.b16 %v7962
    %v7981 = vunpack.c.l.b16 %v7963
    %v7982 = vunpack.c.l.b16 %v7964
    %v7983 = vpack.c.b16 %v7976, %v7975
    %v7984 = vpack.c.b16 %v7978, %v7977
    %v7985 = vpack.c.b16 %v7980, %v7979
    %v7986 = vpack.c.b16 %v7982, %v7981
    %v7992 = vsel %vm6290, %v7966, 0
    %7994 = vmatprep.subr.bf16.mxu0 0
    %7995 = vmatpush1.bf16.msra.mxu0 %v7983
    %7996 = vmatprep.subr.bf16.mxu0 0
    %7997 = vmatpush1.bf16.msra.mxu0 %v7984
    %7998 = vmatprep.subr.bf16.mxu0 0
    %7999 = vmatpush1.bf16.msra.mxu0 %v7985
    %8000 = vmatprep.subr.bf16.mxu0 0
    %8001 = vmatpush1.bf16.msra.mxu0 %v7986
    %8002 = vmatprep.subr.bf16.mxu0 0
    %8003 = vmatpush1.bf16.msra.mxu0 0
    %8004 = vmatprep.subr.bf16.mxu0 0
    %8005 = vmatpush1.bf16.msra.mxu0 0
    %8006 = vmatprep.subr.bf16.mxu0 0
    %8007 = vmatpush1.bf16.msra.mxu0 0
    %8008 = vmatprep.subr.bf16.mxu0 0
    %8009 = vmatpush1.bf16.msra.mxu0 0
    %8010 = vmatprep.subr.bf16.mxu0 0
    %8011 = vmatpush1.bf16.msra.mxu0 0
    %8012 = vmatprep.subr.bf16.mxu0 0
    %8013 = vmatpush1.bf16.msra.mxu0 0
    %8014 = vmatprep.subr.bf16.mxu0 0
    %8015 = vmatpush1.bf16.msra.mxu0 0
    %8016 = vmatprep.subr.bf16.mxu0 0
    %8017 = vmatpush1.bf16.msra.mxu0 0
    %8018 = vmatprep.subr.bf16.mxu0 0
    %8019 = vmatpush1.bf16.msra.mxu0 0
    %8020 = vmatprep.subr.bf16.mxu0 0
    %8021 = vmatpush1.bf16.msra.mxu0 0
    %8022 = vmatprep.subr.bf16.mxu0 0
    %8023 = vmatpush1.bf16.msra.mxu0 0
    %8024 = vmatprep.subr.bf16.mxu0 0
    %8025 = vmatpush1.bf16.msra.mxu0 0
    %8026 = vmatprep.mubr.bf16.mxu0 0
    %8027 = vmatmul.mubr.bf16.gmra.mrb[0].mxu0 %v7992
    %v8028 = vpop.f32.mrb[0].mxu0
    %v8029 = vadd.f32 0.0, %v8028
    %v8030 = vpop.f32.mrb[0].mxu0
    %v8031 = vpop.f32.mrb[0].mxu0
    %v8032 = vpop.f32.mrb[0].mxu0
    %8033 = vdwg.mxu0
    %v8042 = vunpack.c.l.b16 %v7949
    %v8043 = vunpack.c.l.b16 %v7950
    %v8044 = vunpack.c.l.b16 %v7951
    %v8045 = vunpack.c.l.b16 %v7952
    %v8046 = vunpack.c.l.b16 %v7953
    %v8047 = vunpack.c.l.b16 %v7954
    %v8048 = vunpack.c.l.b16 %v7955
    %v8049 = vunpack.c.l.b16 %v7956
    %v8050 = vpack.c.b16 %v8043, %v8042
    %v8051 = vpack.c.b16 %v8045, %v8044
    %v8052 = vpack.c.b16 %v8047, %v8046
    %v8053 = vpack.c.b16 %v8049, %v8048
    %v8059 = vsel %vm6290, %v7793, 0
    %8061 = vmatprep.subr.bf16.mxu0 0
    %8062 = vmatpush1.bf16.msra.mxu0 %v8050
    %8063 = vmatprep.subr.bf16.mxu0 0
    %8064 = vmatpush1.bf16.msra.mxu0 %v8051
    %8065 = vmatprep.subr.bf16.mxu0 0
    %8066 = vmatpush1.bf16.msra.mxu0 %v8052
    %8067 = vmatprep.subr.bf16.mxu0 0
    %8068 = vmatpush1.bf16.msra.mxu0 %v8053
    %8069 = vmatprep.subr.bf16.mxu0 0
    %8070 = vmatpush1.bf16.msra.mxu0 0
    %8071 = vmatprep.subr.bf16.mxu0 0
    %8072 = vmatpush1.bf16.msra.mxu0 0
    %8073 = vmatprep.subr.bf16.mxu0 0
    %8074 = vmatpush1.bf16.msra.mxu0 0
    %8075 = vmatprep.subr.bf16.mxu0 0
    %8076 = vmatpush1.bf16.msra.mxu0 0
    %8077 = vmatprep.subr.bf16.mxu0 0
    %8078 = vmatpush1.bf16.msra.mxu0 0
    %8079 = vmatprep.subr.bf16.mxu0 0
    %8080 = vmatpush1.bf16.msra.mxu0 0
    %8081 = vmatprep.subr.bf16.mxu0 0
    %8082 = vmatpush1.bf16.msra.mxu0 0
    %8083 = vmatprep.subr.bf16.mxu0 0
    %8084 = vmatpush1.bf16.msra.mxu0 0
    %8085 = vmatprep.subr.bf16.mxu0 0
    %8086 = vmatpush1.bf16.msra.mxu0 0
    %8087 = vmatprep.subr.bf16.mxu0 0
    %8088 = vmatpush1.bf16.msra.mxu0 0
    %8089 = vmatprep.subr.bf16.mxu0 0
    %8090 = vmatpush1.bf16.msra.mxu0 0
    %8091 = vmatprep.subr.bf16.mxu0 0
    %8092 = vmatpush1.bf16.msra.mxu0 0
    %8093 = vmatprep.mubr.bf16.mxu0 0
    %8094 = vmatmul.mubr.bf16.gmra.mrb[0].mxu0 %v8059
    %v8095 = vpop.f32.mrb[0].mxu0
    %v8096 = vadd.f32 %v8029, %v8095
    %v8097 = vpop.f32.mrb[0].mxu0
    %v8098 = vpop.f32.mrb[0].mxu0
    %v8099 = vpop.f32.mrb[0].mxu0
    %8100 = vdwg.mxu0
    %v8101 = vld [vmem:[%s2 + $0x558] sm:$0xf]
    %v8102 = vld [vmem:[%s2 + $0x55c] sm:$0xf]
    %v8103 = vld [vmem:[%s2 + $0x560] sm:$0xf]
    %v8104 = vld [vmem:[%s2 + $0x564] sm:$0xf]
    %v8105 = vld [vmem:[%s2 + $0x568] sm:$0xf]
    %v8106 = vld [vmem:[%s2 + $0x56c] sm:$0xf]
    %v8107 = vld [vmem:[%s2 + $0x570] sm:$0xf]
    %v8108 = vld [vmem:[%s2 + $0x574] sm:$0xf]
    %v8109 = vld [vmem:[%s2 + $0x578] sm:$0xf]
    %v8110 = vld [vmem:[%s2 + $0x57c] sm:$0xf]
    %v8111 = vld [vmem:[%s2 + $0x580] sm:$0xf]
    %v8112 = vld [vmem:[%s2 + $0x584] sm:$0xf]
    %v8113 = vld [vmem:[%s2 + $0x588] sm:$0xf]
    %v8114 = vld [vmem:[%s2 + $0x58c] sm:$0xf]
    %v8115 = vld [vmem:[%s2 + $0x590] sm:$0xf]
    %v8116 = vld [vmem:[%s2 + $0x594] sm:$0xf]
    %v8118 = vrot.slane %v7794, 4
    %v8127 = vunpack.c.l.b16 %v8109
    %v8128 = vunpack.c.l.b16 %v8110
    %v8129 = vunpack.c.l.b16 %v8111
    %v8130 = vunpack.c.l.b16 %v8112
    %v8131 = vunpack.c.l.b16 %v8113
    %v8132 = vunpack.c.l.b16 %v8114
    %v8133 = vunpack.c.l.b16 %v8115
    %v8134 = vunpack.c.l.b16 %v8116
    %v8135 = vpack.c.b16 %v8128, %v8127
    %v8136 = vpack.c.b16 %v8130, %v8129
    %v8137 = vpack.c.b16 %v8132, %v8131
    %v8138 = vpack.c.b16 %v8134, %v8133
    %v8144 = vsel %vm6290, %v8118, 0
    %8146 = vmatprep.subr.bf16.mxu0 0
    %8147 = vmatpush1.bf16.msra.mxu0 %v8135
    %8148 = vmatprep.subr.bf16.mxu0 0
    %8149 = vmatpush1.bf16.msra.mxu0 %v8136
    %8150 = vmatprep.subr.bf16.mxu0 0
    %8151 = vmatpush1.bf16.msra.mxu0 %v8137
    %8152 = vmatprep.subr.bf16.mxu0 0
    %8153 = vmatpush1.bf16.msra.mxu0 %v8138
    %8154 = vmatprep.subr.bf16.mxu0 0
    %8155 = vmatpush1.bf16.msra.mxu0 0
    %8156 = vmatprep.subr.bf16.mxu0 0
    %8157 = vmatpush1.bf16.msra.mxu0 0
    %8158 = vmatprep.subr.bf16.mxu0 0
    %8159 = vmatpush1.bf16.msra.mxu0 0
    %8160 = vmatprep.subr.bf16.mxu0 0
    %8161 = vmatpush1.bf16.msra.mxu0 0
    %8162 = vmatprep.subr.bf16.mxu0 0
    %8163 = vmatpush1.bf16.msra.mxu0 0
    %8164 = vmatprep.subr.bf16.mxu0 0
    %8165 = vmatpush1.bf16.msra.mxu0 0
    %8166 = vmatprep.subr.bf16.mxu0 0
    %8167 = vmatpush1.bf16.msra.mxu0 0
    %8168 = vmatprep.subr.bf16.mxu0 0
    %8169 = vmatpush1.bf16.msra.mxu0 0
    %8170 = vmatprep.subr.bf16.mxu0 0
    %8171 = vmatpush1.bf16.msra.mxu0 0
    %8172 = vmatprep.subr.bf16.mxu0 0
    %8173 = vmatpush1.bf16.msra.mxu0 0
    %8174 = vmatprep.subr.bf16.mxu0 0
    %8175 = vmatpush1.bf16.msra.mxu0 0
    %8176 = vmatprep.subr.bf16.mxu0 0
    %8177 = vmatpush1.bf16.msra.mxu0 0
    %8178 = vmatprep.mubr.bf16.mxu0 0
    %8179 = vmatmul.mubr.bf16.gmra.mrb[0].mxu0 %v8144
    %v8180 = vpop.f32.mrb[0].mxu0
    %v8181 = vadd.f32 0.0, %v8180
    %v8182 = vpop.f32.mrb[0].mxu0
    %v8183 = vpop.f32.mrb[0].mxu0
    %v8184 = vpop.f32.mrb[0].mxu0
    %8185 = vdwg.mxu0
    %v8194 = vunpack.c.l.b16 %v8101
    %v8195 = vunpack.c.l.b16 %v8102
    %v8196 = vunpack.c.l.b16 %v8103
    %v8197 = vunpack.c.l.b16 %v8104
    %v8198 = vunpack.c.l.b16 %v8105
    %v8199 = vunpack.c.l.b16 %v8106
    %v8200 = vunpack.c.l.b16 %v8107
    %v8201 = vunpack.c.l.b16 %v8108
    %v8202 = vpack.c.b16 %v8195, %v8194
    %v8203 = vpack.c.b16 %v8197, %v8196
    %v8204 = vpack.c.b16 %v8199, %v8198
    %v8205 = vpack.c.b16 %v8201, %v8200
    %v8211 = vsel %vm6290, %v7794, 0
    %8213 = vmatprep.subr.bf16.mxu0 0
    %8214 = vmatpush1.bf16.msra.mxu0 %v8202
    %8215 = vmatprep.subr.bf16.mxu0 0
    %8216 = vmatpush1.bf16.msra.mxu0 %v8203
    %8217 = vmatprep.subr.bf16.mxu0 0
    %8218 = vmatpush1.bf16.msra.mxu0 %v8204
    %8219 = vmatprep.subr.bf16.mxu0 0
    %8220 = vmatpush1.bf16.msra.mxu0 %v8205
    %8221 = vmatprep.subr.bf16.mxu0 0
    %8222 = vmatpush1.bf16.msra.mxu0 0
    %8223 = vmatprep.subr.bf16.mxu0 0
    %8224 = vmatpush1.bf16.msra.mxu0 0
    %8225 = vmatprep.subr.bf16.mxu0 0
    %8226 = vmatpush1.bf16.msra.mxu0 0
    %8227 = vmatprep.subr.bf16.mxu0 0
    %8228 = vmatpush1.bf16.msra.mxu0 0
    %8229 = vmatprep.subr.bf16.mxu0 0
    %8230 = vmatpush1.bf16.msra.mxu0 0
    %8231 = vmatprep.subr.bf16.mxu0 0
    %8232 = vmatpush1.bf16.msra.mxu0 0
    %8233 = vmatprep.subr.bf16.mxu0 0
    %8234 = vmatpush1.bf16.msra.mxu0 0
    %8235 = vmatprep.subr.bf16.mxu0 0
    %8236 = vmatpush1.bf16.msra.mxu0 0
    %8237 = vmatprep.subr.bf16.mxu0 0
    %8238 = vmatpush1.bf16.msra.mxu0 0
    %8239 = vmatprep.subr.bf16.mxu0 0
    %8240 = vmatpush1.bf16.msra.mxu0 0
    %8241 = vmatprep.subr.bf16.mxu0 0
    %8242 = vmatpush1.bf16.msra.mxu0 0
    %8243 = vmatprep.subr.bf16.mxu0 0
    %8244 = vmatpush1.bf16.msra.mxu0 0
    %8245 = vmatprep.mubr.bf16.mxu0 0
    %8246 = vmatmul.mubr.bf16.gmra.mrb[0].mxu0 %v8211
    %v8247 = vpop.f32.mrb[0].mxu0
    %v8248 = vadd.f32 %v8181, %v8247
    %v8249 = vpop.f32.mrb[0].mxu0
    %v8250 = vpop.f32.mrb[0].mxu0
    %v8251 = vpop.f32.mrb[0].mxu0
    %8252 = vdwg.mxu0
    %v8253 = vld [vmem:[%s2 + $0x598] sm:$0xf]
    %v8254 = vld [vmem:[%s2 + $0x59c] sm:$0xf]
    %v8255 = vld [vmem:[%s2 + $0x5a0] sm:$0xf]
    %v8256 = vld [vmem:[%s2 + $0x5a4] sm:$0xf]
    %v8257 = vld [vmem:[%s2 + $0x5a8] sm:$0xf]
    %v8258 = vld [vmem:[%s2 + $0x5ac] sm:$0xf]
    %v8259 = vld [vmem:[%s2 + $0x5b0] sm:$0xf]
    %v8260 = vld [vmem:[%s2 + $0x5b4] sm:$0xf]
    %v8261 = vld [vmem:[%s2 + $0x5b8] sm:$0xf]
    %v8262 = vld [vmem:[%s2 + $0x5bc] sm:$0xf]
    %v8263 = vld [vmem:[%s2 + $0x5c0] sm:$0xf]
    %v8264 = vld [vmem:[%s2 + $0x5c4] sm:$0xf]
    %v8265 = vld [vmem:[%s2 + $0x5c8] sm:$0xf]
    %v8266 = vld [vmem:[%s2 + $0x5cc] sm:$0xf]
    %v8267 = vld [vmem:[%s2 + $0x5d0] sm:$0xf]
    %v8268 = vld [vmem:[%s2 + $0x5d4] sm:$0xf]
    %v8270 = vrot.slane %v7795, 4
    %v8279 = vunpack.c.l.b16 %v8261
    %v8280 = vunpack.c.l.b16 %v8262
    %v8281 = vunpack.c.l.b16 %v8263
    %v8282 = vunpack.c.l.b16 %v8264
    %v8283 = vunpack.c.l.b16 %v8265
    %v8284 = vunpack.c.l.b16 %v8266
    %v8285 = vunpack.c.l.b16 %v8267
    %v8286 = vunpack.c.l.b16 %v8268
    %v8287 = vpack.c.b16 %v8280, %v8279
    %v8288 = vpack.c.b16 %v8282, %v8281
    %v8289 = vpack.c.b16 %v8284, %v8283
    %v8290 = vpack.c.b16 %v8286, %v8285
    %v8296 = vsel %vm6290, %v8270, 0
    %8298 = vmatprep.subr.bf16.mxu0 0
    %8299 = vmatpush1.bf16.msra.mxu0 %v8287
    %8300 = vmatprep.subr.bf16.mxu0 0
    %8301 = vmatpush1.bf16.msra.mxu0 %v8288
    %8302 = vmatprep.subr.bf16.mxu0 0
    %8303 = vmatpush1.bf16.msra.mxu0 %v8289
    %8304 = vmatprep.subr.bf16.mxu0 0
    %8305 = vmatpush1.bf16.msra.mxu0 %v8290
    %8306 = vmatprep.subr.bf16.mxu0 0
    %8307 = vmatpush1.bf16.msra.mxu0 0
    %8308 = vmatprep.subr.bf16.mxu0 0
    %8309 = vmatpush1.bf16.msra.mxu0 0
    %8310 = vmatprep.subr.bf16.mxu0 0
    %8311 = vmatpush1.bf16.msra.mxu0 0
    %8312 = vmatprep.subr.bf16.mxu0 0
    %8313 = vmatpush1.bf16.msra.mxu0 0
    %8314 = vmatprep.subr.bf16.mxu0 0
    %8315 = vmatpush1.bf16.msra.mxu0 0
    %8316 = vmatprep.subr.bf16.mxu0 0
    %8317 = vmatpush1.bf16.msra.mxu0 0
    %8318 = vmatprep.subr.bf16.mxu0 0
    %8319 = vmatpush1.bf16.msra.mxu0 0
    %8320 = vmatprep.subr.bf16.mxu0 0
    %8321 = vmatpush1.bf16.msra.mxu0 0
    %8322 = vmatprep.subr.bf16.mxu0 0
    %8323 = vmatpush1.bf16.msra.mxu0 0
    %8324 = vmatprep.subr.bf16.mxu0 0
    %8325 = vmatpush1.bf16.msra.mxu0 0
    %8326 = vmatprep.subr.bf16.mxu0 0
    %8327 = vmatpush1.bf16.msra.mxu0 0
    %8328 = vmatprep.subr.bf16.mxu0 0
    %8329 = vmatpush1.bf16.msra.mxu0 0
    %8330 = vmatprep.mubr.bf16.mxu0 0
    %8331 = vmatmul.mubr.bf16.gmra.mrb[0].mxu0 %v8296
    %v8332 = vpop.f32.mrb[0].mxu0
    %v8333 = vadd.f32 0.0, %v8332
    %v8334 = vpop.f32.mrb[0].mxu0
    %v8335 = vpop.f32.mrb[0].mxu0
    %v8336 = vpop.f32.mrb[0].mxu0
    %8337 = vdwg.mxu0
    %v8346 = vunpack.c.l.b16 %v8253
    %v8347 = vunpack.c.l.b16 %v8254
    %v8348 = vunpack.c.l.b16 %v8255
    %v8349 = vunpack.c.l.b16 %v8256
    %v8350 = vunpack.c.l.b16 %v8257
    %v8351 = vunpack.c.l.b16 %v8258
    %v8352 = vunpack.c.l.b16 %v8259
    %v8353 = vunpack.c.l.b16 %v8260
    %v8354 = vpack.c.b16 %v8347, %v8346
    %v8355 = vpack.c.b16 %v8349, %v8348
    %v8356 = vpack.c.b16 %v8351, %v8350
    %v8357 = vpack.c.b16 %v8353, %v8352
    %v8363 = vsel %vm6290, %v7795, 0
    %8365 = vmatprep.subr.bf16.mxu0 0
    %8366 = vmatpush1.bf16.msra.mxu0 %v8354
    %8367 = vmatprep.subr.bf16.mxu0 0
    %8368 = vmatpush1.bf16.msra.mxu0 %v8355
    %8369 = vmatprep.subr.bf16.mxu0 0
    %8370 = vmatpush1.bf16.msra.mxu0 %v8356
    %8371 = vmatprep.subr.bf16.mxu0 0
    %8372 = vmatpush1.bf16.msra.mxu0 %v8357
    %8373 = vmatprep.subr.bf16.mxu0 0
    %8374 = vmatpush1.bf16.msra.mxu0 0
    %8375 = vmatprep.subr.bf16.mxu0 0
    %8376 = vmatpush1.bf16.msra.mxu0 0
    %8377 = vmatprep.subr.bf16.mxu0 0
    %8378 = vmatpush1.bf16.msra.mxu0 0
    %8379 = vmatprep.subr.bf16.mxu0 0
    %8380 = vmatpush1.bf16.msra.mxu0 0
    %8381 = vmatprep.subr.bf16.mxu0 0
    %8382 = vmatpush1.bf16.msra.mxu0 0
    %8383 = vmatprep.subr.bf16.mxu0 0
    %8384 = vmatpush1.bf16.msra.mxu0 0
    %8385 = vmatprep.subr.bf16.mxu0 0
    %8386 = vmatpush1.bf16.msra.mxu0 0
    %8387 = vmatprep.subr.bf16.mxu0 0
    %8388 = vmatpush1.bf16.msra.mxu0 0
    %8389 = vmatprep.subr.bf16.mxu0 0
    %8390 = vmatpush1.bf16.msra.mxu0 0
    %8391 = vmatprep.subr.bf16.mxu0 0
    %8392 = vmatpush1.bf16.msra.mxu0 0
    %8393 = vmatprep.subr.bf16.mxu0 0
    %8394 = vmatpush1.bf16.msra.mxu0 0
    %8395 = vmatprep.subr.bf16.mxu0 0
    %8396 = vmatpush1.bf16.msra.mxu0 0
    %8397 = vmatprep.mubr.bf16.mxu0 0
    %8398 = vmatmul.mubr.bf16.gmra.mrb[0].mxu0 %v8363
    %v8399 = vpop.f32.mrb[0].mxu0
    %v8400 = vadd.f32 %v8333, %v8399
    %v8401 = vpop.f32.mrb[0].mxu0
    %v8402 = vpop.f32.mrb[0].mxu0
    %v8403 = vpop.f32.mrb[0].mxu0
    %8404 = vdwg.mxu0
    %v8405 = vadd.f32 %v7944, %v8096
    %v8406 = vadd.f32 %v8248, %v8400
    %v8407 = vadd.f32 %v8405, %v8406
    %v8408 = vld [vmem:[%s2 + $0x5d8] sm:$0xf]
    %v8409 = vld [vmem:[%s2 + $0x5dc] sm:$0xf]
    %v8410 = vld [vmem:[%s2 + $0x5e0] sm:$0xf]
    %v8411 = vld [vmem:[%s2 + $0x5e4] sm:$0xf]
    %v8412 = vld [vmem:[%s2 + $0x5e8] sm:$0xf]
    %v8413 = vld [vmem:[%s2 + $0x5ec] sm:$0xf]
    %v8414 = vld [vmem:[%s2 + $0x5f0] sm:$0xf]
    %v8415 = vld [vmem:[%s2 + $0x5f4] sm:$0xf]
    %v8424 = vunpack.c.l.b16 %v8408
    %v8425 = vunpack.c.l.b16 %v8409
    %v8426 = vunpack.c.l.b16 %v8410
    %v8427 = vunpack.c.l.b16 %v8411
    %v8428 = vunpack.c.l.b16 %v8412
    %v8429 = vunpack.c.l.b16 %v8413
    %v8430 = vunpack.c.l.b16 %v8414
    %v8431 = vunpack.c.l.b16 %v8415
    %v8432 = vpack.c.b16 %v8425, %v8424
    %v8433 = vpack.c.b16 %v8427, %v8426
    %v8434 = vpack.c.b16 %v8429, %v8428
    %v8435 = vpack.c.b16 %v8431, %v8430
    %v8441 = vsel %vm6290, %v7796, 0
    %8443 = vmatprep.subr.bf16.mxu0 0
    %8444 = vmatpush1.bf16.msra.mxu0 %v8432
    %8445 = vmatprep.subr.bf16.mxu0 0
    %8446 = vmatpush1.bf16.msra.mxu0 %v8433
    %8447 = vmatprep.subr.bf16.mxu0 0
    %8448 = vmatpush1.bf16.msra.mxu0 %v8434
    %8449 = vmatprep.subr.bf16.mxu0 0
    %8450 = vmatpush1.bf16.msra.mxu0 %v8435
    %8451 = vmatprep.subr.bf16.mxu0 0
    %8452 = vmatpush1.bf16.msra.mxu0 0
    %8453 = vmatprep.subr.bf16.mxu0 0
    %8454 = vmatpush1.bf16.msra.mxu0 0
    %8455 = vmatprep.subr.bf16.mxu0 0
    %8456 = vmatpush1.bf16.msra.mxu0 0
    %8457 = vmatprep.subr.bf16.mxu0 0
    %8458 = vmatpush1.bf16.msra.mxu0 0
    %8459 = vmatprep.subr.bf16.mxu0 0
    %8460 = vmatpush1.bf16.msra.mxu0 0
    %8461 = vmatprep.subr.bf16.mxu0 0
    %8462 = vmatpush1.bf16.msra.mxu0 0
    %8463 = vmatprep.subr.bf16.mxu0 0
    %8464 = vmatpush1.bf16.msra.mxu0 0
    %8465 = vmatprep.subr.bf16.mxu0 0
    %8466 = vmatpush1.bf16.msra.mxu0 0
    %8467 = vmatprep.subr.bf16.mxu0 0
    %8468 = vmatpush1.bf16.msra.mxu0 0
    %8469 = vmatprep.subr.bf16.mxu0 0
    %8470 = vmatpush1.bf16.msra.mxu0 0
    %8471 = vmatprep.subr.bf16.mxu0 0
    %8472 = vmatpush1.bf16.msra.mxu0 0
    %8473 = vmatprep.subr.bf16.mxu0 0
    %8474 = vmatpush1.bf16.msra.mxu0 0
    %8475 = vmatprep.mubr.bf16.mxu0 0
    %8476 = vmatmul.mubr.bf16.gmra.mrb[0].mxu0 %v8441
    %v8477 = vpop.f32.mrb[0].mxu0
    %v8478 = vadd.f32 0.0, %v8477
    %v8479 = vpop.f32.mrb[0].mxu0
    %v8480 = vpop.f32.mrb[0].mxu0
    %v8481 = vpop.f32.mrb[0].mxu0
    %8482 = vdwg.mxu0
    %v8483 = vadd.f32 %v8407, %v8478
    %v8484 = vld [vmem:[%s4 + $0x12] ss:$0 sm:$0xff]
    %v8485 = vadd.f32 %v8483, %v8484
    %v8486 = vadd.f32 %v8485, %v7716
    %v8487 = vmax.f32 %v8486, 0.0
    %v8488 = vpack.c.bf16 %v8487, %v8487
    %v8490 = vsel %vm6167, %v8488, 0
    %8492 = vmatprep.subr.bf16.mxu0 0
    %8493 = vmatpush1.bf16.msra.mxu0 %v8490
    %8494 = vmatprep.subr.bf16.mxu0 0
    %8495 = vmatpush1.bf16.msra.mxu0 0
    %8496 = vmatprep.subr.bf16.mxu0 0
    %8497 = vmatpush1.bf16.msra.mxu0 0
    %8498 = vmatprep.subr.bf16.mxu0 0
    %8499 = vmatpush1.bf16.msra.mxu0 0
    %8500 = vmatprep.subr.bf16.mxu0 0
    %8501 = vmatpush1.bf16.msra.mxu0 0
    %8502 = vmatprep.subr.bf16.mxu0 0
    %8503 = vmatpush1.bf16.msra.mxu0 0
    %8504 = vmatprep.subr.bf16.mxu0 0
    %8505 = vmatpush1.bf16.msra.mxu0 0
    %8506 = vmatprep.subr.bf16.mxu0 0
    %8507 = vmatpush1.bf16.msra.mxu0 0
    %8508 = vmatprep.subr.bf16.mxu0 0
    %8509 = vmatpush1.bf16.msra.mxu0 0
    %8510 = vmatprep.subr.bf16.mxu0 0
    %8511 = vmatpush1.bf16.msra.mxu0 0
    %8512 = vmatprep.subr.bf16.mxu0 0
    %8513 = vmatpush1.bf16.msra.mxu0 0
    %8514 = vmatprep.subr.bf16.mxu0 0
    %8515 = vmatpush1.bf16.msra.mxu0 0
    %8516 = vmatprep.subr.bf16.mxu0 0
    %8517 = vmatpush1.bf16.msra.mxu0 0
    %8518 = vmatprep.subr.bf16.mxu0 0
    %8519 = vmatpush1.bf16.msra.mxu0 0
    %8520 = vmatprep.subr.bf16.mxu0 0
    %8521 = vmatpush1.bf16.msra.mxu0 0
    %8522 = vmatprep.subr.bf16.mxu0 0
    %8523 = vmatpush1.bf16.msra.mxu0 0
    %8524 = vmatprep.mubr.bf16.mxu0 0
    %8525 = vmatmul.mubr.bf16.gmra.mrb[0].mxu0 %v6153
    %v8526 = vpop.f32.mrb[0].mxu0
    %v8527 = vadd.f32 0.0, %v8526
    %v8528 = vpop.f32.mrb[0].mxu0
    %v8529 = vpop.f32.mrb[0].mxu0
    %v8530 = vadd.f32 0.0, %v8529
    %v8531 = vpop.f32.mrb[0].mxu0
    %8532 = vmatprep.mubr.bf16.mxu0 0
    %8533 = vmatmul.mubr.bf16.gmra.mrb[0].mxu0 %v6156
    %v8534 = vpop.f32.mrb[0].mxu0
    %v8535 = vadd.f32 0.0, %v8534
    %v8536 = vpop.f32.mrb[0].mxu0
    %v8537 = vpop.f32.mrb[0].mxu0
    %v8538 = vadd.f32 0.0, %v8537
    %v8539 = vpop.f32.mrb[0].mxu0
    %8540 = vmatprep.mubr.bf16.mxu0 0
    %8541 = vmatmul.mubr.bf16.gmra.mrb[0].mxu0 %v6159
    %v8542 = vpop.f32.mrb[0].mxu0
    %v8543 = vadd.f32 0.0, %v8542
    %v8544 = vpop.f32.mrb[0].mxu0
    %v8545 = vpop.f32.mrb[0].mxu0
    %v8546 = vadd.f32 0.0, %v8545
    %v8547 = vpop.f32.mrb[0].mxu0
    %8548 = vmatprep.mubr.bf16.mxu0 0
    %8549 = vmatmul.mubr.bf16.gmra.mrb[0].mxu0 %v6162
    %v8550 = vpop.f32.mrb[0].mxu0
    %v8551 = vadd.f32 0.0, %v8550
    %v8552 = vpop.f32.mrb[0].mxu0
    %v8553 = vpop.f32.mrb[0].mxu0
    %v8554 = vadd.f32 0.0, %v8553
    %v8555 = vpop.f32.mrb[0].mxu0
    %8556 = vmatprep.mubr.bf16.mxu0 0
    %8557 = vmatmul.mubr.bf16.gmra.mrb[0].mxu0 %v6165
    %v8558 = vpop.f32.mrb[0].mxu0
    %v8559 = vadd.f32 0.0, %v8558
    %v8560 = vpop.f32.mrb[0].mxu0
    %v8561 = vpop.f32.mrb[0].mxu0
    %v8562 = vpop.f32.mrb[0].mxu0
    %8563 = vdwg.mxu0
    %v8564 = vpack.c.bf16 %v8530, %v8527
    %v8565 = vpack.c.bf16 %v8538, %v8535
    %v8566 = vpack.c.bf16 %v8546, %v8543
    %v8567 = vpack.c.bf16 %v8554, %v8551
    %v8568 = vpack.c.bf16 %v8559, %v8559
    %v8569 = vld [vmem:[#allocation5] sm:$0xff]
    %v8570 = vld [vmem:[#allocation5 + $0x8] sm:$0xff]
    %v8571 = vld [vmem:[#allocation5 + $0x10] sm:$0xff]
    %v8572 = vld [vmem:[#allocation5 + $0x18] sm:$0xff]
    %v8573 = vld [vmem:[#allocation5 + $0x20] sm:$0xff]
    %v8574 = vld [vmem:[#allocation5 + $0x28] sm:$0xff]
    %v8575 = vld [vmem:[#allocation5 + $0x30] sm:$0xff]
    %v8576 = vld [vmem:[#allocation5 + $0x38] sm:$0xff]
    %v8577 = vld [vmem:[#allocation5 + $0x40] sm:$0xff]
    %v8578 = vld [vmem:[#allocation5 + $0x48] sm:$0xff]
    %v8579 = vld [vmem:[#allocation5 + $0x50] sm:$0xff]
    %v8580 = vld [vmem:[#allocation5 + $0x58] sm:$0xff]
    %v8581 = vld [vmem:[#allocation5 + $0x60] sm:$0xff]
    %v8582 = vld [vmem:[#allocation5 + $0x68] sm:$0xff]
    %v8583 = vld [vmem:[#allocation5 + $0x70] sm:$0xff]
    %v8584 = vld [vmem:[#allocation5 + $0x78] sm:$0xff]
    %v8586 = vrot.slane %v8564, 4
    %v8595 = vunpack.c.l.b16 %v8577
    %v8596 = vunpack.c.h.b16 %v8577
    %v8597 = vunpack.c.l.b16 %v8578
    %v8598 = vunpack.c.h.b16 %v8578
    %v8599 = vunpack.c.l.b16 %v8579
    %v8600 = vunpack.c.h.b16 %v8579
    %v8601 = vunpack.c.l.b16 %v8580
    %v8602 = vunpack.c.h.b16 %v8580
    %v8603 = vunpack.c.l.b16 %v8581
    %v8604 = vunpack.c.h.b16 %v8581
    %v8605 = vunpack.c.l.b16 %v8582
    %v8606 = vunpack.c.h.b16 %v8582
    %v8607 = vunpack.c.l.b16 %v8583
    %v8608 = vunpack.c.h.b16 %v8583
    %v8609 = vunpack.c.l.b16 %v8584
    %v8610 = vunpack.c.h.b16 %v8584
    %v8611 = vpack.c.b16 %v8597, %v8595
    %v8612 = vpack.c.b16 %v8598, %v8596
    %v8613 = vpack.c.b16 %v8601, %v8599
    %v8614 = vpack.c.b16 %v8602, %v8600
    %v8615 = vpack.c.b16 %v8605, %v8603
    %v8616 = vpack.c.b16 %v8606, %v8604
    %v8617 = vpack.c.b16 %v8609, %v8607
    %v8618 = vpack.c.b16 %v8610, %v8608
    %v8628 = vsel %vm6290, %v8586, 0
    %8630 = vmatprep.subr.bf16.mxu0 %v8612
    %8631 = vmatpush1.bf16.msra.mxu0 %v8611
    %8632 = vmatprep.subr.bf16.mxu0 %v8614
    %8633 = vmatpush1.bf16.msra.mxu0 %v8613
    %8634 = vmatprep.subr.bf16.mxu0 %v8616
    %8635 = vmatpush1.bf16.msra.mxu0 %v8615
    %8636 = vmatprep.subr.bf16.mxu0 %v8618
    %8637 = vmatpush1.bf16.msra.mxu0 %v8617
    %8638 = vmatprep.subr.bf16.mxu0 0
    %8639 = vmatpush1.bf16.msra.mxu0 0
    %8640 = vmatprep.subr.bf16.mxu0 0
    %8641 = vmatpush1.bf16.msra.mxu0 0
    %8642 = vmatprep.subr.bf16.mxu0 0
    %8643 = vmatpush1.bf16.msra.mxu0 0
    %8644 = vmatprep.subr.bf16.mxu0 0
    %8645 = vmatpush1.bf16.msra.mxu0 0
    %8646 = vmatprep.subr.bf16.mxu0 0
    %8647 = vmatpush1.bf16.msra.mxu0 0
    %8648 = vmatprep.subr.bf16.mxu0 0
    %8649 = vmatpush1.bf16.msra.mxu0 0
    %8650 = vmatprep.subr.bf16.mxu0 0
    %8651 = vmatpush1.bf16.msra.mxu0 0
    %8652 = vmatprep.subr.bf16.mxu0 0
    %8653 = vmatpush1.bf16.msra.mxu0 0
    %8654 = vmatprep.subr.bf16.mxu0 0
    %8655 = vmatpush1.bf16.msra.mxu0 0
    %8656 = vmatprep.subr.bf16.mxu0 0
    %8657 = vmatpush1.bf16.msra.mxu0 0
    %8658 = vmatprep.subr.bf16.mxu0 0
    %8659 = vmatpush1.bf16.msra.mxu0 0
    %8660 = vmatprep.subr.bf16.mxu0 0
    %8661 = vmatpush1.bf16.msra.mxu0 0
    %8662 = vmatprep.mubr.bf16.mxu0 0
    %8663 = vmatmul.mubr.bf16.gmra.mrb[0].mxu0 %v8628
    %v8664 = vpop.f32.mrb[0].mxu0
    %v8665 = vadd.f32 0.0, %v8664
    %v8666 = vpop.f32.mrb[0].mxu0
    %v8667 = vadd.f32 0.0, %v8666
    %v8668 = vpop.f32.mrb[0].mxu0
    %v8669 = vpop.f32.mrb[0].mxu0
    %8670 = vdwg.mxu0
    %v8679 = vunpack.c.l.b16 %v8569
    %v8680 = vunpack.c.h.b16 %v8569
    %v8681 = vunpack.c.l.b16 %v8570
    %v8682 = vunpack.c.h.b16 %v8570
    %v8683 = vunpack.c.l.b16 %v8571
    %v8684 = vunpack.c.h.b16 %v8571
    %v8685 = vunpack.c.l.b16 %v8572
    %v8686 = vunpack.c.h.b16 %v8572
    %v8687 = vunpack.c.l.b16 %v8573
    %v8688 = vunpack.c.h.b16 %v8573
    %v8689 = vunpack.c.l.b16 %v8574
    %v8690 = vunpack.c.h.b16 %v8574
    %v8691 = vunpack.c.l.b16 %v8575
    %v8692 = vunpack.c.h.b16 %v8575
    %v8693 = vunpack.c.l.b16 %v8576
    %v8694 = vunpack.c.h.b16 %v8576
    %v8695 = vpack.c.b16 %v8681, %v8679
    %v8696 = vpack.c.b16 %v8682, %v8680
    %v8697 = vpack.c.b16 %v8685, %v8683
    %v8698 = vpack.c.b16 %v8686, %v8684
    %v8699 = vpack.c.b16 %v8689, %v8687
    %v8700 = vpack.c.b16 %v8690, %v8688
    %v8701 = vpack.c.b16 %v8693, %v8691
    %v8702 = vpack.c.b16 %v8694, %v8692
    %v8712 = vsel %vm6290, %v8564, 0
    %8714 = vmatprep.subr.bf16.mxu0 %v8696
    %8715 = vmatpush1.bf16.msra.mxu0 %v8695
    %8716 = vmatprep.subr.bf16.mxu0 %v8698
    %8717 = vmatpush1.bf16.msra.mxu0 %v8697
    %8718 = vmatprep.subr.bf16.mxu0 %v8700
    %8719 = vmatpush1.bf16.msra.mxu0 %v8699
    %8720 = vmatprep.subr.bf16.mxu0 %v8702
    %8721 = vmatpush1.bf16.msra.mxu0 %v8701
    %8722 = vmatprep.subr.bf16.mxu0 0
    %8723 = vmatpush1.bf16.msra.mxu0 0
    %8724 = vmatprep.subr.bf16.mxu0 0
    %8725 = vmatpush1.bf16.msra.mxu0 0
    %8726 = vmatprep.subr.bf16.mxu0 0
    %8727 = vmatpush1.bf16.msra.mxu0 0
    %8728 = vmatprep.subr.bf16.mxu0 0
    %8729 = vmatpush1.bf16.msra.mxu0 0
    %8730 = vmatprep.subr.bf16.mxu0 0
    %8731 = vmatpush1.bf16.msra.mxu0 0
    %8732 = vmatprep.subr.bf16.mxu0 0
    %8733 = vmatpush1.bf16.msra.mxu0 0
    %8734 = vmatprep.subr.bf16.mxu0 0
    %8735 = vmatpush1.bf16.msra.mxu0 0
    %8736 = vmatprep.subr.bf16.mxu0 0
    %8737 = vmatpush1.bf16.msra.mxu0 0
    %8738 = vmatprep.subr.bf16.mxu0 0
    %8739 = vmatpush1.bf16.msra.mxu0 0
    %8740 = vmatprep.subr.bf16.mxu0 0
    %8741 = vmatpush1.bf16.msra.mxu0 0
    %8742 = vmatprep.subr.bf16.mxu0 0
    %8743 = vmatpush1.bf16.msra.mxu0 0
    %8744 = vmatprep.subr.bf16.mxu0 0
    %8745 = vmatpush1.bf16.msra.mxu0 0
    %8746 = vmatprep.mubr.bf16.mxu0 0
    %8747 = vmatmul.mubr.bf16.gmra.mrb[0].mxu0 %v8712
    %v8748 = vpop.f32.mrb[0].mxu0
    %v8749 = vadd.f32 %v8665, %v8748
    %v8750 = vpop.f32.mrb[0].mxu0
    %v8751 = vadd.f32 %v8667, %v8750
    %v8752 = vpop.f32.mrb[0].mxu0
    %v8753 = vpop.f32.mrb[0].mxu0
    %8754 = vdwg.mxu0
    %v8755 = vld [vmem:[#allocation5 + $0x80] sm:$0xff]
    %v8756 = vld [vmem:[#allocation5 + $0x88] sm:$0xff]
    %v8757 = vld [vmem:[#allocation5 + $0x90] sm:$0xff]
    %v8758 = vld [vmem:[#allocation5 + $0x98] sm:$0xff]
    %v8759 = vld [vmem:[#allocation5 + $0xa0] sm:$0xff]
    %v8760 = vld [vmem:[#allocation5 + $0xa8] sm:$0xff]
    %v8761 = vld [vmem:[#allocation5 + $0xb0] sm:$0xff]
    %v8762 = vld [vmem:[#allocation5 + $0xb8] sm:$0xff]
    %v8763 = vld [vmem:[#allocation5 + $0xc0] sm:$0xff]
    %v8764 = vld [vmem:[#allocation5 + $0xc8] sm:$0xff]
    %v8765 = vld [vmem:[#allocation5 + $0xd0] sm:$0xff]
    %v8766 = vld [vmem:[#allocation5 + $0xd8] sm:$0xff]
    %v8767 = vld [vmem:[#allocation5 + $0xe0] sm:$0xff]
    %v8768 = vld [vmem:[#allocation5 + $0xe8] sm:$0xff]
    %v8769 = vld [vmem:[#allocation5 + $0xf0] sm:$0xff]
    %v8770 = vld [vmem:[#allocation5 + $0xf8] sm:$0xff]
    %v8772 = vrot.slane %v8565, 4
    %v8781 = vunpack.c.l.b16 %v8763
    %v8782 = vunpack.c.h.b16 %v8763
    %v8783 = vunpack.c.l.b16 %v8764
    %v8784 = vunpack.c.h.b16 %v8764
    %v8785 = vunpack.c.l.b16 %v8765
    %v8786 = vunpack.c.h.b16 %v8765
    %v8787 = vunpack.c.l.b16 %v8766
    %v8788 = vunpack.c.h.b16 %v8766
    %v8789 = vunpack.c.l.b16 %v8767
    %v8790 = vunpack.c.h.b16 %v8767
    %v8791 = vunpack.c.l.b16 %v8768
    %v8792 = vunpack.c.h.b16 %v8768
    %v8793 = vunpack.c.l.b16 %v8769
    %v8794 = vunpack.c.h.b16 %v8769
    %v8795 = vunpack.c.l.b16 %v8770
    %v8796 = vunpack.c.h.b16 %v8770
    %v8797 = vpack.c.b16 %v8783, %v8781
    %v8798 = vpack.c.b16 %v8784, %v8782
    %v8799 = vpack.c.b16 %v8787, %v8785
    %v8800 = vpack.c.b16 %v8788, %v8786
    %v8801 = vpack.c.b16 %v8791, %v8789
    %v8802 = vpack.c.b16 %v8792, %v8790
    %v8803 = vpack.c.b16 %v8795, %v8793
    %v8804 = vpack.c.b16 %v8796, %v8794
    %v8814 = vsel %vm6290, %v8772, 0
    %8816 = vmatprep.subr.bf16.mxu0 %v8798
    %8817 = vmatpush1.bf16.msra.mxu0 %v8797
    %8818 = vmatprep.subr.bf16.mxu0 %v8800
    %8819 = vmatpush1.bf16.msra.mxu0 %v8799
    %8820 = vmatprep.subr.bf16.mxu0 %v8802
    %8821 = vmatpush1.bf16.msra.mxu0 %v8801
    %8822 = vmatprep.subr.bf16.mxu0 %v8804
    %8823 = vmatpush1.bf16.msra.mxu0 %v8803
    %8824 = vmatprep.subr.bf16.mxu0 0
    %8825 = vmatpush1.bf16.msra.mxu0 0
    %8826 = vmatprep.subr.bf16.mxu0 0
    %8827 = vmatpush1.bf16.msra.mxu0 0
    %8828 = vmatprep.subr.bf16.mxu0 0
    %8829 = vmatpush1.bf16.msra.mxu0 0
    %8830 = vmatprep.subr.bf16.mxu0 0
    %8831 = vmatpush1.bf16.msra.mxu0 0
    %8832 = vmatprep.subr.bf16.mxu0 0
    %8833 = vmatpush1.bf16.msra.mxu0 0
    %8834 = vmatprep.subr.bf16.mxu0 0
    %8835 = vmatpush1.bf16.msra.mxu0 0
    %8836 = vmatprep.subr.bf16.mxu0 0
    %8837 = vmatpush1.bf16.msra.mxu0 0
    %8838 = vmatprep.subr.bf16.mxu0 0
    %8839 = vmatpush1.bf16.msra.mxu0 0
    %8840 = vmatprep.subr.bf16.mxu0 0
    %8841 = vmatpush1.bf16.msra.mxu0 0
    %8842 = vmatprep.subr.bf16.mxu0 0
    %8843 = vmatpush1.bf16.msra.mxu0 0
    %8844 = vmatprep.subr.bf16.mxu0 0
    %8845 = vmatpush1.bf16.msra.mxu0 0
    %8846 = vmatprep.subr.bf16.mxu0 0
    %8847 = vmatpush1.bf16.msra.mxu0 0
    %8848 = vmatprep.mubr.bf16.mxu0 0
    %8849 = vmatmul.mubr.bf16.gmra.mrb[0].mxu0 %v8814
    %v8850 = vpop.f32.mrb[0].mxu0
    %v8851 = vadd.f32 0.0, %v8850
    %v8852 = vpop.f32.mrb[0].mxu0
    %v8853 = vadd.f32 0.0, %v8852
    %v8854 = vpop.f32.mrb[0].mxu0
    %v8855 = vpop.f32.mrb[0].mxu0
    %8856 = vdwg.mxu0
    %v8865 = vunpack.c.l.b16 %v8755
    %v8866 = vunpack.c.h.b16 %v8755
    %v8867 = vunpack.c.l.b16 %v8756
    %v8868 = vunpack.c.h.b16 %v8756
    %v8869 = vunpack.c.l.b16 %v8757
    %v8870 = vunpack.c.h.b16 %v8757
    %v8871 = vunpack.c.l.b16 %v8758
    %v8872 = vunpack.c.h.b16 %v8758
    %v8873 = vunpack.c.l.b16 %v8759
    %v8874 = vunpack.c.h.b16 %v8759
    %v8875 = vunpack.c.l.b16 %v8760
    %v8876 = vunpack.c.h.b16 %v8760
    %v8877 = vunpack.c.l.b16 %v8761
    %v8878 = vunpack.c.h.b16 %v8761
    %v8879 = vunpack.c.l.b16 %v8762
    %v8880 = vunpack.c.h.b16 %v8762
    %v8881 = vpack.c.b16 %v8867, %v8865
    %v8882 = vpack.c.b16 %v8868, %v8866
    %v8883 = vpack.c.b16 %v8871, %v8869
    %v8884 = vpack.c.b16 %v8872, %v8870
    %v8885 = vpack.c.b16 %v8875, %v8873
    %v8886 = vpack.c.b16 %v8876, %v8874
    %v8887 = vpack.c.b16 %v8879, %v8877
    %v8888 = vpack.c.b16 %v8880, %v8878
    %v8898 = vsel %vm6290, %v8565, 0
    %8900 = vmatprep.subr.bf16.mxu0 %v8882
    %8901 = vmatpush1.bf16.msra.mxu0 %v8881
    %8902 = vmatprep.subr.bf16.mxu0 %v8884
    %8903 = vmatpush1.bf16.msra.mxu0 %v8883
    %8904 = vmatprep.subr.bf16.mxu0 %v8886
    %8905 = vmatpush1.bf16.msra.mxu0 %v8885
    %8906 = vmatprep.subr.bf16.mxu0 %v8888
    %8907 = vmatpush1.bf16.msra.mxu0 %v8887
    %8908 = vmatprep.subr.bf16.mxu0 0
    %8909 = vmatpush1.bf16.msra.mxu0 0
    %8910 = vmatprep.subr.bf16.mxu0 0
    %8911 = vmatpush1.bf16.msra.mxu0 0
    %8912 = vmatprep.subr.bf16.mxu0 0
    %8913 = vmatpush1.bf16.msra.mxu0 0
    %8914 = vmatprep.subr.bf16.mxu0 0
    %8915 = vmatpush1.bf16.msra.mxu0 0
    %8916 = vmatprep.subr.bf16.mxu0 0
    %8917 = vmatpush1.bf16.msra.mxu0 0
    %8918 = vmatprep.subr.bf16.mxu0 0
    %8919 = vmatpush1.bf16.msra.mxu0 0
    %8920 = vmatprep.subr.bf16.mxu0 0
    %8921 = vmatpush1.bf16.msra.mxu0 0
    %8922 = vmatprep.subr.bf16.mxu0 0
    %8923 = vmatpush1.bf16.msra.mxu0 0
    %8924 = vmatprep.subr.bf16.mxu0 0
    %8925 = vmatpush1.bf16.msra.mxu0 0
    %8926 = vmatprep.subr.bf16.mxu0 0
    %8927 = vmatpush1.bf16.msra.mxu0 0
    %8928 = vmatprep.subr.bf16.mxu0 0
    %8929 = vmatpush1.bf16.msra.mxu0 0
    %8930 = vmatprep.subr.bf16.mxu0 0
    %8931 = vmatpush1.bf16.msra.mxu0 0
    %8932 = vmatprep.mubr.bf16.mxu0 0
    %8933 = vmatmul.mubr.bf16.gmra.mrb[0].mxu0 %v8898
    %v8934 = vpop.f32.mrb[0].mxu0
    %v8935 = vadd.f32 %v8851, %v8934
    %v8936 = vpop.f32.mrb[0].mxu0
    %v8937 = vadd.f32 %v8853, %v8936
    %v8938 = vpop.f32.mrb[0].mxu0
    %v8939 = vpop.f32.mrb[0].mxu0
    %8940 = vdwg.mxu0
    %v8941 = vld [vmem:[#allocation5 + $0x100] sm:$0xff]
    %v8942 = vld [vmem:[#allocation5 + $0x108] sm:$0xff]
    %v8943 = vld [vmem:[#allocation5 + $0x110] sm:$0xff]
    %v8944 = vld [vmem:[#allocation5 + $0x118] sm:$0xff]
    %v8945 = vld [vmem:[#allocation5 + $0x120] sm:$0xff]
    %v8946 = vld [vmem:[#allocation5 + $0x128] sm:$0xff]
    %v8947 = vld [vmem:[#allocation5 + $0x130] sm:$0xff]
    %v8948 = vld [vmem:[#allocation5 + $0x138] sm:$0xff]
    %v8949 = vld [vmem:[#allocation5 + $0x140] sm:$0xff]
    %v8950 = vld [vmem:[#allocation5 + $0x148] sm:$0xff]
    %v8951 = vld [vmem:[#allocation5 + $0x150] sm:$0xff]
    %v8952 = vld [vmem:[#allocation5 + $0x158] sm:$0xff]
    %v8953 = vld [vmem:[#allocation5 + $0x160] sm:$0xff]
    %v8954 = vld [vmem:[#allocation5 + $0x168] sm:$0xff]
    %v8955 = vld [vmem:[#allocation5 + $0x170] sm:$0xff]
    %v8956 = vld [vmem:[#allocation5 + $0x178] sm:$0xff]
    %v8958 = vrot.slane %v8566, 4
    %v8967 = vunpack.c.l.b16 %v8949
    %v8968 = vunpack.c.h.b16 %v8949
    %v8969 = vunpack.c.l.b16 %v8950
    %v8970 = vunpack.c.h.b16 %v8950
    %v8971 = vunpack.c.l.b16 %v8951
    %v8972 = vunpack.c.h.b16 %v8951
    %v8973 = vunpack.c.l.b16 %v8952
    %v8974 = vunpack.c.h.b16 %v8952
    %v8975 = vunpack.c.l.b16 %v8953
    %v8976 = vunpack.c.h.b16 %v8953
    %v8977 = vunpack.c.l.b16 %v8954
    %v8978 = vunpack.c.h.b16 %v8954
    %v8979 = vunpack.c.l.b16 %v8955
    %v8980 = vunpack.c.h.b16 %v8955
    %v8981 = vunpack.c.l.b16 %v8956
    %v8982 = vunpack.c.h.b16 %v8956
    %v8983 = vpack.c.b16 %v8969, %v8967
    %v8984 = vpack.c.b16 %v8970, %v8968
    %v8985 = vpack.c.b16 %v8973, %v8971
    %v8986 = vpack.c.b16 %v8974, %v8972
    %v8987 = vpack.c.b16 %v8977, %v8975
    %v8988 = vpack.c.b16 %v8978, %v8976
    %v8989 = vpack.c.b16 %v8981, %v8979
    %v8990 = vpack.c.b16 %v8982, %v8980
    %v9000 = vsel %vm6290, %v8958, 0
    %9002 = vmatprep.subr.bf16.mxu0 %v8984
    %9003 = vmatpush1.bf16.msra.mxu0 %v8983
    %9004 = vmatprep.subr.bf16.mxu0 %v8986
    %9005 = vmatpush1.bf16.msra.mxu0 %v8985
    %9006 = vmatprep.subr.bf16.mxu0 %v8988
    %9007 = vmatpush1.bf16.msra.mxu0 %v8987
    %9008 = vmatprep.subr.bf16.mxu0 %v8990
    %9009 = vmatpush1.bf16.msra.mxu0 %v8989
    %9010 = vmatprep.subr.bf16.mxu0 0
    %9011 = vmatpush1.bf16.msra.mxu0 0
    %9012 = vmatprep.subr.bf16.mxu0 0
    %9013 = vmatpush1.bf16.msra.mxu0 0
    %9014 = vmatprep.subr.bf16.mxu0 0
    %9015 = vmatpush1.bf16.msra.mxu0 0
    %9016 = vmatprep.subr.bf16.mxu0 0
    %9017 = vmatpush1.bf16.msra.mxu0 0
    %9018 = vmatprep.subr.bf16.mxu0 0
    %9019 = vmatpush1.bf16.msra.mxu0 0
    %9020 = vmatprep.subr.bf16.mxu0 0
    %9021 = vmatpush1.bf16.msra.mxu0 0
    %9022 = vmatprep.subr.bf16.mxu0 0
    %9023 = vmatpush1.bf16.msra.mxu0 0
    %9024 = vmatprep.subr.bf16.mxu0 0
    %9025 = vmatpush1.bf16.msra.mxu0 0
    %9026 = vmatprep.subr.bf16.mxu0 0
    %9027 = vmatpush1.bf16.msra.mxu0 0
    %9028 = vmatprep.subr.bf16.mxu0 0
    %9029 = vmatpush1.bf16.msra.mxu0 0
    %9030 = vmatprep.subr.bf16.mxu0 0
    %9031 = vmatpush1.bf16.msra.mxu0 0
    %9032 = vmatprep.subr.bf16.mxu0 0
    %9033 = vmatpush1.bf16.msra.mxu0 0
    %9034 = vmatprep.mubr.bf16.mxu0 0
    %9035 = vmatmul.mubr.bf16.gmra.mrb[0].mxu0 %v9000
    %v9036 = vpop.f32.mrb[0].mxu0
    %v9037 = vadd.f32 0.0, %v9036
    %v9038 = vpop.f32.mrb[0].mxu0
    %v9039 = vadd.f32 0.0, %v9038
    %v9040 = vpop.f32.mrb[0].mxu0
    %v9041 = vpop.f32.mrb[0].mxu0
    %9042 = vdwg.mxu0
    %v9051 = vunpack.c.l.b16 %v8941
    %v9052 = vunpack.c.h.b16 %v8941
    %v9053 = vunpack.c.l.b16 %v8942
    %v9054 = vunpack.c.h.b16 %v8942
    %v9055 = vunpack.c.l.b16 %v8943
    %v9056 = vunpack.c.h.b16 %v8943
    %v9057 = vunpack.c.l.b16 %v8944
    %v9058 = vunpack.c.h.b16 %v8944
    %v9059 = vunpack.c.l.b16 %v8945
    %v9060 = vunpack.c.h.b16 %v8945
    %v9061 = vunpack.c.l.b16 %v8946
    %v9062 = vunpack.c.h.b16 %v8946
    %v9063 = vunpack.c.l.b16 %v8947
    %v9064 = vunpack.c.h.b16 %v8947
    %v9065 = vunpack.c.l.b16 %v8948
    %v9066 = vunpack.c.h.b16 %v8948
    %v9067 = vpack.c.b16 %v9053, %v9051
    %v9068 = vpack.c.b16 %v9054, %v9052
    %v9069 = vpack.c.b16 %v9057, %v9055
    %v9070 = vpack.c.b16 %v9058, %v9056
    %v9071 = vpack.c.b16 %v9061, %v9059
    %v9072 = vpack.c.b16 %v9062, %v9060
    %v9073 = vpack.c.b16 %v9065, %v9063
    %v9074 = vpack.c.b16 %v9066, %v9064
    %v9084 = vsel %vm6290, %v8566, 0
    %9086 = vmatprep.subr.bf16.mxu0 %v9068
    %9087 = vmatpush1.bf16.msra.mxu0 %v9067
    %9088 = vmatprep.subr.bf16.mxu0 %v9070
    %9089 = vmatpush1.bf16.msra.mxu0 %v9069
    %9090 = vmatprep.subr.bf16.mxu0 %v9072
    %9091 = vmatpush1.bf16.msra.mxu0 %v9071
    %9092 = vmatprep.subr.bf16.mxu0 %v9074
    %9093 = vmatpush1.bf16.msra.mxu0 %v9073
    %9094 = vmatprep.subr.bf16.mxu0 0
    %9095 = vmatpush1.bf16.msra.mxu0 0
    %9096 = vmatprep.subr.bf16.mxu0 0
    %9097 = vmatpush1.bf16.msra.mxu0 0
    %9098 = vmatprep.subr.bf16.mxu0 0
    %9099 = vmatpush1.bf16.msra.mxu0 0
    %9100 = vmatprep.subr.bf16.mxu0 0
    %9101 = vmatpush1.bf16.msra.mxu0 0
    %9102 = vmatprep.subr.bf16.mxu0 0
    %9103 = vmatpush1.bf16.msra.mxu0 0
    %9104 = vmatprep.subr.bf16.mxu0 0
    %9105 = vmatpush1.bf16.msra.mxu0 0
    %9106 = vmatprep.subr.bf16.mxu0 0
    %9107 = vmatpush1.bf16.msra.mxu0 0
    %9108 = vmatprep.subr.bf16.mxu0 0
    %9109 = vmatpush1.bf16.msra.mxu0 0
    %9110 = vmatprep.subr.bf16.mxu0 0
    %9111 = vmatpush1.bf16.msra.mxu0 0
    %9112 = vmatprep.subr.bf16.mxu0 0
    %9113 = vmatpush1.bf16.msra.mxu0 0
    %9114 = vmatprep.subr.bf16.mxu0 0
    %9115 = vmatpush1.bf16.msra.mxu0 0
    %9116 = vmatprep.subr.bf16.mxu0 0
    %9117 = vmatpush1.bf16.msra.mxu0 0
    %9118 = vmatprep.mubr.bf16.mxu0 0
    %9119 = vmatmul.mubr.bf16.gmra.mrb[0].mxu0 %v9084
    %v9120 = vpop.f32.mrb[0].mxu0
    %v9121 = vadd.f32 %v9037, %v9120
    %v9122 = vpop.f32.mrb[0].mxu0
    %v9123 = vadd.f32 %v9039, %v9122
    %v9124 = vpop.f32.mrb[0].mxu0
    %v9125 = vpop.f32.mrb[0].mxu0
    %9126 = vdwg.mxu0
    %v9127 = vld [vmem:[#allocation5 + $0x180] sm:$0xff]
    %v9128 = vld [vmem:[#allocation5 + $0x188] sm:$0xff]
    %v9129 = vld [vmem:[#allocation5 + $0x190] sm:$0xff]
    %v9130 = vld [vmem:[#allocation5 + $0x198] sm:$0xff]
    %v9131 = vld [vmem:[#allocation5 + $0x1a0] sm:$0xff]
    %v9132 = vld [vmem:[#allocation5 + $0x1a8] sm:$0xff]
    %v9133 = vld [vmem:[#allocation5 + $0x1b0] sm:$0xff]
    %v9134 = vld [vmem:[#allocation5 + $0x1b8] sm:$0xff]
    %v9135 = vld [vmem:[#allocation5 + $0x1c0] sm:$0xff]
    %v9136 = vld [vmem:[#allocation5 + $0x1c8] sm:$0xff]
    %v9137 = vld [vmem:[#allocation5 + $0x1d0] sm:$0xff]
    %v9138 = vld [vmem:[#allocation5 + $0x1d8] sm:$0xff]
    %v9139 = vld [vmem:[#allocation5 + $0x1e0] sm:$0xff]
    %v9140 = vld [vmem:[#allocation5 + $0x1e8] sm:$0xff]
    %v9141 = vld [vmem:[#allocation5 + $0x1f0] sm:$0xff]
    %v9142 = vld [vmem:[#allocation5 + $0x1f8] sm:$0xff]
    %v9144 = vrot.slane %v8567, 4
    %v9153 = vunpack.c.l.b16 %v9135
    %v9154 = vunpack.c.h.b16 %v9135
    %v9155 = vunpack.c.l.b16 %v9136
    %v9156 = vunpack.c.h.b16 %v9136
    %v9157 = vunpack.c.l.b16 %v9137
    %v9158 = vunpack.c.h.b16 %v9137
    %v9159 = vunpack.c.l.b16 %v9138
    %v9160 = vunpack.c.h.b16 %v9138
    %v9161 = vunpack.c.l.b16 %v9139
    %v9162 = vunpack.c.h.b16 %v9139
    %v9163 = vunpack.c.l.b16 %v9140
    %v9164 = vunpack.c.h.b16 %v9140
    %v9165 = vunpack.c.l.b16 %v9141
    %v9166 = vunpack.c.h.b16 %v9141
    %v9167 = vunpack.c.l.b16 %v9142
    %v9168 = vunpack.c.h.b16 %v9142
    %v9169 = vpack.c.b16 %v9155, %v9153
    %v9170 = vpack.c.b16 %v9156, %v9154
    %v9171 = vpack.c.b16 %v9159, %v9157
    %v9172 = vpack.c.b16 %v9160, %v9158
    %v9173 = vpack.c.b16 %v9163, %v9161
    %v9174 = vpack.c.b16 %v9164, %v9162
    %v9175 = vpack.c.b16 %v9167, %v9165
    %v9176 = vpack.c.b16 %v9168, %v9166
    %v9186 = vsel %vm6290, %v9144, 0
    %9188 = vmatprep.subr.bf16.mxu0 %v9170
    %9189 = vmatpush1.bf16.msra.mxu0 %v9169
    %9190 = vmatprep.subr.bf16.mxu0 %v9172
    %9191 = vmatpush1.bf16.msra.mxu0 %v9171
    %9192 = vmatprep.subr.bf16.mxu0 %v9174
    %9193 = vmatpush1.bf16.msra.mxu0 %v9173
    %9194 = vmatprep.subr.bf16.mxu0 %v9176
    %9195 = vmatpush1.bf16.msra.mxu0 %v9175
    %9196 = vmatprep.subr.bf16.mxu0 0
    %9197 = vmatpush1.bf16.msra.mxu0 0
    %9198 = vmatprep.subr.bf16.mxu0 0
    %9199 = vmatpush1.bf16.msra.mxu0 0
    %9200 = vmatprep.subr.bf16.mxu0 0
    %9201 = vmatpush1.bf16.msra.mxu0 0
    %9202 = vmatprep.subr.bf16.mxu0 0
    %9203 = vmatpush1.bf16.msra.mxu0 0
    %9204 = vmatprep.subr.bf16.mxu0 0
    %9205 = vmatpush1.bf16.msra.mxu0 0
    %9206 = vmatprep.subr.bf16.mxu0 0
    %9207 = vmatpush1.bf16.msra.mxu0 0
    %9208 = vmatprep.subr.bf16.mxu0 0
    %9209 = vmatpush1.bf16.msra.mxu0 0
    %9210 = vmatprep.subr.bf16.mxu0 0
    %9211 = vmatpush1.bf16.msra.mxu0 0
    %9212 = vmatprep.subr.bf16.mxu0 0
    %9213 = vmatpush1.bf16.msra.mxu0 0
    %9214 = vmatprep.subr.bf16.mxu0 0
    %9215 = vmatpush1.bf16.msra.mxu0 0
    %9216 = vmatprep.subr.bf16.mxu0 0
    %9217 = vmatpush1.bf16.msra.mxu0 0
    %9218 = vmatprep.subr.bf16.mxu0 0
    %9219 = vmatpush1.bf16.msra.mxu0 0
    %9220 = vmatprep.mubr.bf16.mxu0 0
    %9221 = vmatmul.mubr.bf16.gmra.mrb[0].mxu0 %v9186
    %v9222 = vpop.f32.mrb[0].mxu0
    %v9223 = vadd.f32 0.0, %v9222
    %v9224 = vpop.f32.mrb[0].mxu0
    %v9225 = vadd.f32 0.0, %v9224
    %v9226 = vpop.f32.mrb[0].mxu0
    %v9227 = vpop.f32.mrb[0].mxu0
    %9228 = vdwg.mxu0
    %v9237 = vunpack.c.l.b16 %v9127
    %v9238 = vunpack.c.h.b16 %v9127
    %v9239 = vunpack.c.l.b16 %v9128
    %v9240 = vunpack.c.h.b16 %v9128
    %v9241 = vunpack.c.l.b16 %v9129
    %v9242 = vunpack.c.h.b16 %v9129
    %v9243 = vunpack.c.l.b16 %v9130
    %v9244 = vunpack.c.h.b16 %v9130
    %v9245 = vunpack.c.l.b16 %v9131
    %v9246 = vunpack.c.h.b16 %v9131
    %v9247 = vunpack.c.l.b16 %v9132
    %v9248 = vunpack.c.h.b16 %v9132
    %v9249 = vunpack.c.l.b16 %v9133
    %v9250 = vunpack.c.h.b16 %v9133
    %v9251 = vunpack.c.l.b16 %v9134
    %v9252 = vunpack.c.h.b16 %v9134
    %v9253 = vpack.c.b16 %v9239, %v9237
    %v9254 = vpack.c.b16 %v9240, %v9238
    %v9255 = vpack.c.b16 %v9243, %v9241
    %v9256 = vpack.c.b16 %v9244, %v9242
    %v9257 = vpack.c.b16 %v9247, %v9245
    %v9258 = vpack.c.b16 %v9248, %v9246
    %v9259 = vpack.c.b16 %v9251, %v9249
    %v9260 = vpack.c.b16 %v9252, %v9250
    %v9270 = vsel %vm6290, %v8567, 0
    %9272 = vmatprep.subr.bf16.mxu0 %v9254
    %9273 = vmatpush1.bf16.msra.mxu0 %v9253
    %9274 = vmatprep.subr.bf16.mxu0 %v9256
    %9275 = vmatpush1.bf16.msra.mxu0 %v9255
    %9276 = vmatprep.subr.bf16.mxu0 %v9258
    %9277 = vmatpush1.bf16.msra.mxu0 %v9257
    %9278 = vmatprep.subr.bf16.mxu0 %v9260
    %9279 = vmatpush1.bf16.msra.mxu0 %v9259
    %9280 = vmatprep.subr.bf16.mxu0 0
    %9281 = vmatpush1.bf16.msra.mxu0 0
    %9282 = vmatprep.subr.bf16.mxu0 0
    %9283 = vmatpush1.bf16.msra.mxu0 0
    %9284 = vmatprep.subr.bf16.mxu0 0
    %9285 = vmatpush1.bf16.msra.mxu0 0
    %9286 = vmatprep.subr.bf16.mxu0 0
    %9287 = vmatpush1.bf16.msra.mxu0 0
    %9288 = vmatprep.subr.bf16.mxu0 0
    %9289 = vmatpush1.bf16.msra.mxu0 0
    %9290 = vmatprep.subr.bf16.mxu0 0
    %9291 = vmatpush1.bf16.msra.mxu0 0
    %9292 = vmatprep.subr.bf16.mxu0 0
    %9293 = vmatpush1.bf16.msra.mxu0 0
    %9294 = vmatprep.subr.bf16.mxu0 0
    %9295 = vmatpush1.bf16.msra.mxu0 0
    %9296 = vmatprep.subr.bf16.mxu0 0
    %9297 = vmatpush1.bf16.msra.mxu0 0
    %9298 = vmatprep.subr.bf16.mxu0 0
    %9299 = vmatpush1.bf16.msra.mxu0 0
    %9300 = vmatprep.subr.bf16.mxu0 0
    %9301 = vmatpush1.bf16.msra.mxu0 0
    %9302 = vmatprep.subr.bf16.mxu0 0
    %9303 = vmatpush1.bf16.msra.mxu0 0
    %9304 = vmatprep.mubr.bf16.mxu0 0
    %9305 = vmatmul.mubr.bf16.gmra.mrb[0].mxu0 %v9270
    %v9306 = vpop.f32.mrb[0].mxu0
    %v9307 = vadd.f32 %v9223, %v9306
    %v9308 = vpop.f32.mrb[0].mxu0
    %v9309 = vadd.f32 %v9225, %v9308
    %v9310 = vpop.f32.mrb[0].mxu0
    %v9311 = vpop.f32.mrb[0].mxu0
    %9312 = vdwg.mxu0
    %v9313 = vadd.f32 %v8749, %v8935
    %v9314 = vadd.f32 %v8751, %v8937
    %v9315 = vadd.f32 %v9121, %v9307
    %v9316 = vadd.f32 %v9123, %v9309
    %v9317 = vadd.f32 %v9313, %v9315
    %v9318 = vadd.f32 %v9314, %v9316
    %v9319 = vld [vmem:[#allocation5 + $0x200] sm:$0xff]
    %v9320 = vld [vmem:[#allocation5 + $0x208] sm:$0xff]
    %v9321 = vld [vmem:[#allocation5 + $0x210] sm:$0xff]
    %v9322 = vld [vmem:[#allocation5 + $0x218] sm:$0xff]
    %v9323 = vld [vmem:[#allocation5 + $0x220] sm:$0xff]
    %v9324 = vld [vmem:[#allocation5 + $0x228] sm:$0xff]
    %v9325 = vld [vmem:[#allocation5 + $0x230] sm:$0xff]
    %v9326 = vld [vmem:[#allocation5 + $0x238] sm:$0xff]
    %v9335 = vunpack.c.l.b16 %v9319
    %v9336 = vunpack.c.h.b16 %v9319
    %v9337 = vunpack.c.l.b16 %v9320
    %v9338 = vunpack.c.h.b16 %v9320
    %v9339 = vunpack.c.l.b16 %v9321
    %v9340 = vunpack.c.h.b16 %v9321
    %v9341 = vunpack.c.l.b16 %v9322
    %v9342 = vunpack.c.h.b16 %v9322
    %v9343 = vunpack.c.l.b16 %v9323
    %v9344 = vunpack.c.h.b16 %v9323
    %v9345 = vunpack.c.l.b16 %v9324
    %v9346 = vunpack.c.h.b16 %v9324
    %v9347 = vunpack.c.l.b16 %v9325
    %v9348 = vunpack.c.h.b16 %v9325
    %v9349 = vunpack.c.l.b16 %v9326
    %v9350 = vunpack.c.h.b16 %v9326
    %v9351 = vpack.c.b16 %v9337, %v9335
    %v9352 = vpack.c.b16 %v9338, %v9336
    %v9353 = vpack.c.b16 %v9341, %v9339
    %v9354 = vpack.c.b16 %v9342, %v9340
    %v9355 = vpack.c.b16 %v9345, %v9343
    %v9356 = vpack.c.b16 %v9346, %v9344
    %v9357 = vpack.c.b16 %v9349, %v9347
    %v9358 = vpack.c.b16 %v9350, %v9348
    %v9368 = vsel %vm6290, %v8568, 0
    %9370 = vmatprep.subr.bf16.mxu0 %v9352
    %9371 = vmatpush1.bf16.msra.mxu0 %v9351
    %9372 = vmatprep.subr.bf16.mxu0 %v9354
    %9373 = vmatpush1.bf16.msra.mxu0 %v9353
    %9374 = vmatprep.subr.bf16.mxu0 %v9356
    %9375 = vmatpush1.bf16.msra.mxu0 %v9355
    %9376 = vmatprep.subr.bf16.mxu0 %v9358
    %9377 = vmatpush1.bf16.msra.mxu0 %v9357
    %9378 = vmatprep.subr.bf16.mxu0 0
    %9379 = vmatpush1.bf16.msra.mxu0 0
    %9380 = vmatprep.subr.bf16.mxu0 0
    %9381 = vmatpush1.bf16.msra.mxu0 0
    %9382 = vmatprep.subr.bf16.mxu0 0
    %9383 = vmatpush1.bf16.msra.mxu0 0
    %9384 = vmatprep.subr.bf16.mxu0 0
    %9385 = vmatpush1.bf16.msra.mxu0 0
    %9386 = vmatprep.subr.bf16.mxu0 0
    %9387 = vmatpush1.bf16.msra.mxu0 0
    %9388 = vmatprep.subr.bf16.mxu0 0
    %9389 = vmatpush1.bf16.msra.mxu0 0
    %9390 = vmatprep.subr.bf16.mxu0 0
    %9391 = vmatpush1.bf16.msra.mxu0 0
    %9392 = vmatprep.subr.bf16.mxu0 0
    %9393 = vmatpush1.bf16.msra.mxu0 0
    %9394 = vmatprep.subr.bf16.mxu0 0
    %9395 = vmatpush1.bf16.msra.mxu0 0
    %9396 = vmatprep.subr.bf16.mxu0 0
    %9397 = vmatpush1.bf16.msra.mxu0 0
    %9398 = vmatprep.subr.bf16.mxu0 0
    %9399 = vmatpush1.bf16.msra.mxu0 0
    %9400 = vmatprep.subr.bf16.mxu0 0
    %9401 = vmatpush1.bf16.msra.mxu0 0
    %9402 = vmatprep.mubr.bf16.mxu0 0
    %9403 = vmatmul.mubr.bf16.gmra.mrb[0].mxu0 %v9368
    %v9404 = vpop.f32.mrb[0].mxu0
    %v9405 = vadd.f32 0.0, %v9404
    %v9406 = vpop.f32.mrb[0].mxu0
    %v9407 = vadd.f32 0.0, %v9406
    %v9408 = vpop.f32.mrb[0].mxu0
    %v9409 = vpop.f32.mrb[0].mxu0
    %9410 = vdwg.mxu0
    %v9411 = vadd.f32 %v9317, %v9405
    %v9412 = vadd.f32 %v9318, %v9407
    %s9413 = scalar_lea.vmem %s4, 19
    %v9414 = vld [vmem:[%s9413] ss:$8 sm:$0x3]
    %v9416 = vlaneseq
    %v9417 = vshrl.u32 %v9416, 7
    %v9418 = vsub.s32 0, %v9417
    %v9419 = vrot.slane %v9414, %v9418
    %v9420 = vlaneseq
    %v9421 = vshrl.u32 %v9420, 7
    %v9422 = vsub.s32 1, %v9421
    %v9423 = vrot.slane %v9414, %v9422
    %v9426 = vadd.f32 %v9411, %v9419
    %v9427 = vadd.f32 %v9412, %v9423
    %v9428 = vmax.f32 %v9426, 0.0
    %v9429 = vpack.c.bf16 %v9428, %v9428
    %v9431 = vsel %vm6167, %v9429, 0
    %9433 = vmatprep.subr.bf16.mxu0 0
    %9434 = vmatpush1.bf16.msra.mxu0 %v9431
    %9435 = vmatprep.subr.bf16.mxu0 0
    %9436 = vmatpush1.bf16.msra.mxu0 0
    %9437 = vmatprep.subr.bf16.mxu0 0
    %9438 = vmatpush1.bf16.msra.mxu0 0
    %9439 = vmatprep.subr.bf16.mxu0 0
    %9440 = vmatpush1.bf16.msra.mxu0 0
    %9441 = vmatprep.subr.bf16.mxu0 0
    %9442 = vmatpush1.bf16.msra.mxu0 0
    %9443 = vmatprep.subr.bf16.mxu0 0
    %9444 = vmatpush1.bf16.msra.mxu0 0
    %9445 = vmatprep.subr.bf16.mxu0 0
    %9446 = vmatpush1.bf16.msra.mxu0 0
    %9447 = vmatprep.subr.bf16.mxu0 0
    %9448 = vmatpush1.bf16.msra.mxu0 0
    %9449 = vmatprep.subr.bf16.mxu0 0
    %9450 = vmatpush1.bf16.msra.mxu0 0
    %9451 = vmatprep.subr.bf16.mxu0 0
    %9452 = vmatpush1.bf16.msra.mxu0 0
    %9453 = vmatprep.subr.bf16.mxu0 0
    %9454 = vmatpush1.bf16.msra.mxu0 0
    %9455 = vmatprep.subr.bf16.mxu0 0
    %9456 = vmatpush1.bf16.msra.mxu0 0
    %9457 = vmatprep.subr.bf16.mxu0 0
    %9458 = vmatpush1.bf16.msra.mxu0 0
    %9459 = vmatprep.subr.bf16.mxu0 0
    %9460 = vmatpush1.bf16.msra.mxu0 0
    %9461 = vmatprep.subr.bf16.mxu0 0
    %9462 = vmatpush1.bf16.msra.mxu0 0
    %9463 = vmatprep.subr.bf16.mxu0 0
    %9464 = vmatpush1.bf16.msra.mxu0 0
    %9465 = vmatprep.mubr.bf16.mxu0 0
    %9466 = vmatmul.mubr.bf16.gmra.mrb[0].mxu0 %v6153
    %v9467 = vpop.f32.mrb[0].mxu0
    %v9468 = vadd.f32 0.0, %v9467
    %v9469 = vpop.f32.mrb[0].mxu0
    %v9470 = vpop.f32.mrb[0].mxu0
    %v9471 = vadd.f32 0.0, %v9470
    %v9472 = vpop.f32.mrb[0].mxu0
    %9473 = vmatprep.mubr.bf16.mxu0 0
    %9474 = vmatmul.mubr.bf16.gmra.mrb[0].mxu0 %v6156
    %v9475 = vpop.f32.mrb[0].mxu0
    %v9476 = vadd.f32 0.0, %v9475
    %v9477 = vpop.f32.mrb[0].mxu0
    %v9478 = vpop.f32.mrb[0].mxu0
    %v9479 = vadd.f32 0.0, %v9478
    %v9480 = vpop.f32.mrb[0].mxu0
    %9481 = vmatprep.mubr.bf16.mxu0 0
    %9482 = vmatmul.mubr.bf16.gmra.mrb[0].mxu0 %v6159
    %v9483 = vpop.f32.mrb[0].mxu0
    %v9484 = vadd.f32 0.0, %v9483
    %v9485 = vpop.f32.mrb[0].mxu0
    %v9486 = vpop.f32.mrb[0].mxu0
    %v9487 = vadd.f32 0.0, %v9486
    %v9488 = vpop.f32.mrb[0].mxu0
    %9489 = vmatprep.mubr.bf16.mxu0 0
    %9490 = vmatmul.mubr.bf16.gmra.mrb[0].mxu0 %v6162
    %v9491 = vpop.f32.mrb[0].mxu0
    %v9492 = vadd.f32 0.0, %v9491
    %v9493 = vpop.f32.mrb[0].mxu0
    %v9494 = vpop.f32.mrb[0].mxu0
    %v9495 = vadd.f32 0.0, %v9494
    %v9496 = vpop.f32.mrb[0].mxu0
    %9497 = vmatprep.mubr.bf16.mxu0 0
    %9498 = vmatmul.mubr.bf16.gmra.mrb[0].mxu0 %v6165
    %v9499 = vpop.f32.mrb[0].mxu0
    %v9500 = vadd.f32 0.0, %v9499
    %v9501 = vpop.f32.mrb[0].mxu0
    %v9502 = vpop.f32.mrb[0].mxu0
    %v9503 = vpop.f32.mrb[0].mxu0
    %9504 = vdwg.mxu0
    %v9505 = vpack.c.bf16 %v9471, %v9468
    %v9506 = vpack.c.bf16 %v9479, %v9476
    %v9507 = vpack.c.bf16 %v9487, %v9484
    %v9508 = vpack.c.bf16 %v9495, %v9492
    %v9509 = vpack.c.bf16 %v9500, %v9500
    %v9510 = vld [vmem:[%s2 + $0x5f8] sm:$0xf]
    %v9511 = vld [vmem:[%s2 + $0x5fc] sm:$0xf]
    %v9512 = vld [vmem:[%s2 + $0x600] sm:$0xf]
    %v9513 = vld [vmem:[%s2 + $0x604] sm:$0xf]
    %v9514 = vld [vmem:[%s2 + $0x608] sm:$0xf]
    %v9515 = vld [vmem:[%s2 + $0x60c] sm:$0xf]
    %v9516 = vld [vmem:[%s2 + $0x610] sm:$0xf]
    %v9517 = vld [vmem:[%s2 + $0x614] sm:$0xf]
    %v9518 = vld [vmem:[%s2 + $0x618] sm:$0xf]
    %v9519 = vld [vmem:[%s2 + $0x61c] sm:$0xf]
    %v9520 = vld [vmem:[%s2 + $0x620] sm:$0xf]
    %v9521 = vld [vmem:[%s2 + $0x624] sm:$0xf]
    %v9522 = vld [vmem:[%s2 + $0x628] sm:$0xf]
    %v9523 = vld [vmem:[%s2 + $0x62c] sm:$0xf]
    %v9524 = vld [vmem:[%s2 + $0x630] sm:$0xf]
    %v9525 = vld [vmem:[%s2 + $0x634] sm:$0xf]
    %v9526 = vld [vmem:[%s2 + $0x638] sm:$0xf]
    %v9527 = vld [vmem:[%s2 + $0x63c] sm:$0xf]
    %v9528 = vld [vmem:[%s2 + $0x640] sm:$0xf]
    %v9529 = vld [vmem:[%s2 + $0x644] sm:$0xf]
    %v9530 = vld [vmem:[%s2 + $0x648] sm:$0xf]
    %v9531 = vld [vmem:[%s2 + $0x64c] sm:$0xf]
    %v9532 = vld [vmem:[%s2 + $0x650] sm:$0xf]
    %v9533 = vld [vmem:[%s2 + $0x654] sm:$0xf]
    %v9534 = vld [vmem:[%s2 + $0x658] sm:$0xf]
    %v9535 = vld [vmem:[%s2 + $0x65c] sm:$0xf]
    %v9536 = vld [vmem:[%s2 + $0x660] sm:$0xf]
    %v9537 = vld [vmem:[%s2 + $0x664] sm:$0xf]
    %v9538 = vld [vmem:[%s2 + $0x668] sm:$0xf]
    %v9539 = vld [vmem:[%s2 + $0x66c] sm:$0xf]
    %v9540 = vld [vmem:[%s2 + $0x670] sm:$0xf]
    %v9541 = vld [vmem:[%s2 + $0x674] sm:$0xf]
    %v9543 = vrot.slane %v9505, 4
    %v9561 = vunpack.c.l.b16 %v9526
    %v9562 = vunpack.c.l.b16 %v9527
    %v9563 = vunpack.c.l.b16 %v9528
    %v9564 = vunpack.c.l.b16 %v9529
    %v9565 = vunpack.c.l.b16 %v9530
    %v9566 = vunpack.c.l.b16 %v9531
    %v9567 = vunpack.c.l.b16 %v9532
    %v9568 = vunpack.c.l.b16 %v9533
    %v9569 = vunpack.c.l.b16 %v9534
    %v9570 = vunpack.c.l.b16 %v9535
    %v9571 = vunpack.c.l.b16 %v9536
    %v9572 = vunpack.c.l.b16 %v9537
    %v9573 = vunpack.c.l.b16 %v9538
    %v9574 = vunpack.c.l.b16 %v9539
    %v9575 = vunpack.c.l.b16 %v9540
    %v9576 = vunpack.c.l.b16 %v9541
    %v9577 = vpack.c.b16 %v9562, %v9561
    %v9578 = vpack.c.b16 %v9564, %v9563
    %v9579 = vpack.c.b16 %v9566, %v9565
    %v9580 = vpack.c.b16 %v9568, %v9567
    %v9581 = vpack.c.b16 %v9570, %v9569
    %v9582 = vpack.c.b16 %v9572, %v9571
    %v9583 = vpack.c.b16 %v9574, %v9573
    %v9584 = vpack.c.b16 %v9576, %v9575
    %9593 = vmatprep.subr.bf16.mxu0 0
    %9594 = vmatpush1.bf16.msra.mxu0 %v9577
    %9595 = vmatprep.subr.bf16.mxu0 0
    %9596 = vmatpush1.bf16.msra.mxu0 %v9578
    %9597 = vmatprep.subr.bf16.mxu0 0
    %9598 = vmatpush1.bf16.msra.mxu0 %v9579
    %9599 = vmatprep.subr.bf16.mxu0 0
    %9600 = vmatpush1.bf16.msra.mxu0 %v9580
    %9601 = vmatprep.subr.bf16.mxu0 0
    %9602 = vmatpush1.bf16.msra.mxu0 %v9581
    %9603 = vmatprep.subr.bf16.mxu0 0
    %9604 = vmatpush1.bf16.msra.mxu0 %v9582
    %9605 = vmatprep.subr.bf16.mxu0 0
    %9606 = vmatpush1.bf16.msra.mxu0 %v9583
    %9607 = vmatprep.subr.bf16.mxu0 0
    %9608 = vmatpush1.bf16.msra.mxu0 %v9584
    %9609 = vmatprep.subr.bf16.mxu0 0
    %9610 = vmatpush1.bf16.msra.mxu0 0
    %9611 = vmatprep.subr.bf16.mxu0 0
    %9612 = vmatpush1.bf16.msra.mxu0 0
    %9613 = vmatprep.subr.bf16.mxu0 0
    %9614 = vmatpush1.bf16.msra.mxu0 0
    %9615 = vmatprep.subr.bf16.mxu0 0
    %9616 = vmatpush1.bf16.msra.mxu0 0
    %9617 = vmatprep.subr.bf16.mxu0 0
    %9618 = vmatpush1.bf16.msra.mxu0 0
    %9619 = vmatprep.subr.bf16.mxu0 0
    %9620 = vmatpush1.bf16.msra.mxu0 0
    %9621 = vmatprep.subr.bf16.mxu0 0
    %9622 = vmatpush1.bf16.msra.mxu0 0
    %9623 = vmatprep.subr.bf16.mxu0 0
    %9624 = vmatpush1.bf16.msra.mxu0 0
    %9625 = vmatprep.mubr.bf16.mxu0 0
    %9626 = vmatmul.mubr.bf16.gmra.mrb[0].mxu0 %v9543
    %v9627 = vpop.f32.mrb[0].mxu0
    %v9628 = vadd.f32 0.0, %v9627
    %v9629 = vpop.f32.mrb[0].mxu0
    %v9630 = vpop.f32.mrb[0].mxu0
    %v9631 = vpop.f32.mrb[0].mxu0
    %9632 = vdwg.mxu0
    %v9649 = vunpack.c.l.b16 %v9510
    %v9650 = vunpack.c.l.b16 %v9511
    %v9651 = vunpack.c.l.b16 %v9512
    %v9652 = vunpack.c.l.b16 %v9513
    %v9653 = vunpack.c.l.b16 %v9514
    %v9654 = vunpack.c.l.b16 %v9515
    %v9655 = vunpack.c.l.b16 %v9516
    %v9656 = vunpack.c.l.b16 %v9517
    %v9657 = vunpack.c.l.b16 %v9518
    %v9658 = vunpack.c.l.b16 %v9519
    %v9659 = vunpack.c.l.b16 %v9520
    %v9660 = vunpack.c.l.b16 %v9521
    %v9661 = vunpack.c.l.b16 %v9522
    %v9662 = vunpack.c.l.b16 %v9523
    %v9663 = vunpack.c.l.b16 %v9524
    %v9664 = vunpack.c.l.b16 %v9525
    %v9665 = vpack.c.b16 %v9650, %v9649
    %v9666 = vpack.c.b16 %v9652, %v9651
    %v9667 = vpack.c.b16 %v9654, %v9653
    %v9668 = vpack.c.b16 %v9656, %v9655
    %v9669 = vpack.c.b16 %v9658, %v9657
    %v9670 = vpack.c.b16 %v9660, %v9659
    %v9671 = vpack.c.b16 %v9662, %v9661
    %v9672 = vpack.c.b16 %v9664, %v9663
    %9681 = vmatprep.subr.bf16.mxu0 0
    %9682 = vmatpush1.bf16.msra.mxu0 %v9665
    %9683 = vmatprep.subr.bf16.mxu0 0
    %9684 = vmatpush1.bf16.msra.mxu0 %v9666
    %9685 = vmatprep.subr.bf16.mxu0 0
    %9686 = vmatpush1.bf16.msra.mxu0 %v9667
    %9687 = vmatprep.subr.bf16.mxu0 0
    %9688 = vmatpush1.bf16.msra.mxu0 %v9668
    %9689 = vmatprep.subr.bf16.mxu0 0
    %9690 = vmatpush1.bf16.msra.mxu0 %v9669
    %9691 = vmatprep.subr.bf16.mxu0 0
    %9692 = vmatpush1.bf16.msra.mxu0 %v9670
    %9693 = vmatprep.subr.bf16.mxu0 0
    %9694 = vmatpush1.bf16.msra.mxu0 %v9671
    %9695 = vmatprep.subr.bf16.mxu0 0
    %9696 = vmatpush1.bf16.msra.mxu0 %v9672
    %9697 = vmatprep.subr.bf16.mxu0 0
    %9698 = vmatpush1.bf16.msra.mxu0 0
    %9699 = vmatprep.subr.bf16.mxu0 0
    %9700 = vmatpush1.bf16.msra.mxu0 0
    %9701 = vmatprep.subr.bf16.mxu0 0
    %9702 = vmatpush1.bf16.msra.mxu0 0
    %9703 = vmatprep.subr.bf16.mxu0 0
    %9704 = vmatpush1.bf16.msra.mxu0 0
    %9705 = vmatprep.subr.bf16.mxu0 0
    %9706 = vmatpush1.bf16.msra.mxu0 0
    %9707 = vmatprep.subr.bf16.mxu0 0
    %9708 = vmatpush1.bf16.msra.mxu0 0
    %9709 = vmatprep.subr.bf16.mxu0 0
    %9710 = vmatpush1.bf16.msra.mxu0 0
    %9711 = vmatprep.subr.bf16.mxu0 0
    %9712 = vmatpush1.bf16.msra.mxu0 0
    %9713 = vmatprep.mubr.bf16.mxu0 0
    %9714 = vmatmul.mubr.bf16.gmra.mrb[0].mxu0 %v9505
    %v9715 = vpop.f32.mrb[0].mxu0
    %v9716 = vadd.f32 %v9628, %v9715
    %v9717 = vpop.f32.mrb[0].mxu0
    %v9718 = vpop.f32.mrb[0].mxu0
    %v9719 = vpop.f32.mrb[0].mxu0
    %9720 = vdwg.mxu0
    %v9721 = vld [vmem:[%s2 + $0x678] sm:$0xf]
    %v9722 = vld [vmem:[%s2 + $0x67c] sm:$0xf]
    %v9723 = vld [vmem:[%s2 + $0x680] sm:$0xf]
    %v9724 = vld [vmem:[%s2 + $0x684] sm:$0xf]
    %v9725 = vld [vmem:[%s2 + $0x688] sm:$0xf]
    %v9726 = vld [vmem:[%s2 + $0x68c] sm:$0xf]
    %v9727 = vld [vmem:[%s2 + $0x690] sm:$0xf]
    %v9728 = vld [vmem:[%s2 + $0x694] sm:$0xf]
    %v9729 = vld [vmem:[%s2 + $0x698] sm:$0xf]
    %v9730 = vld [vmem:[%s2 + $0x69c] sm:$0xf]
    %v9731 = vld [vmem:[%s2 + $0x6a0] sm:$0xf]
    %v9732 = vld [vmem:[%s2 + $0x6a4] sm:$0xf]
    %v9733 = vld [vmem:[%s2 + $0x6a8] sm:$0xf]
    %v9734 = vld [vmem:[%s2 + $0x6ac] sm:$0xf]
    %v9735 = vld [vmem:[%s2 + $0x6b0] sm:$0xf]
    %v9736 = vld [vmem:[%s2 + $0x6b4] sm:$0xf]
    %v9737 = vld [vmem:[%s2 + $0x6b8] sm:$0xf]
    %v9738 = vld [vmem:[%s2 + $0x6bc] sm:$0xf]
    %v9739 = vld [vmem:[%s2 + $0x6c0] sm:$0xf]
    %v9740 = vld [vmem:[%s2 + $0x6c4] sm:$0xf]
    %v9741 = vld [vmem:[%s2 + $0x6c8] sm:$0xf]
    %v9742 = vld [vmem:[%s2 + $0x6cc] sm:$0xf]
    %v9743 = vld [vmem:[%s2 + $0x6d0] sm:$0xf]
    %v9744 = vld [vmem:[%s2 + $0x6d4] sm:$0xf]
    %v9745 = vld [vmem:[%s2 + $0x6d8] sm:$0xf]
    %v9746 = vld [vmem:[%s2 + $0x6dc] sm:$0xf]
    %v9747 = vld [vmem:[%s2 + $0x6e0] sm:$0xf]
    %v9748 = vld [vmem:[%s2 + $0x6e4] sm:$0xf]
    %v9749 = vld [vmem:[%s2 + $0x6e8] sm:$0xf]
    %v9750 = vld [vmem:[%s2 + $0x6ec] sm:$0xf]
    %v9751 = vld [vmem:[%s2 + $0x6f0] sm:$0xf]
    %v9752 = vld [vmem:[%s2 + $0x6f4] sm:$0xf]
    %v9754 = vrot.slane %v9506, 4
    %v9772 = vunpack.c.l.b16 %v9737
    %v9773 = vunpack.c.l.b16 %v9738
    %v9774 = vunpack.c.l.b16 %v9739
    %v9775 = vunpack.c.l.b16 %v9740
    %v9776 = vunpack.c.l.b16 %v9741
    %v9777 = vunpack.c.l.b16 %v9742
    %v9778 = vunpack.c.l.b16 %v9743
    %v9779 = vunpack.c.l.b16 %v9744
    %v9780 = vunpack.c.l.b16 %v9745
    %v9781 = vunpack.c.l.b16 %v9746
    %v9782 = vunpack.c.l.b16 %v9747
    %v9783 = vunpack.c.l.b16 %v9748
    %v9784 = vunpack.c.l.b16 %v9749
    %v9785 = vunpack.c.l.b16 %v9750
    %v9786 = vunpack.c.l.b16 %v9751
    %v9787 = vunpack.c.l.b16 %v9752
    %v9788 = vpack.c.b16 %v9773, %v9772
    %v9789 = vpack.c.b16 %v9775, %v9774
    %v9790 = vpack.c.b16 %v9777, %v9776
    %v9791 = vpack.c.b16 %v9779, %v9778
    %v9792 = vpack.c.b16 %v9781, %v9780
    %v9793 = vpack.c.b16 %v9783, %v9782
    %v9794 = vpack.c.b16 %v9785, %v9784
    %v9795 = vpack.c.b16 %v9787, %v9786
    %9804 = vmatprep.subr.bf16.mxu0 0
    %9805 = vmatpush1.bf16.msra.mxu0 %v9788
    %9806 = vmatprep.subr.bf16.mxu0 0
    %9807 = vmatpush1.bf16.msra.mxu0 %v9789
    %9808 = vmatprep.subr.bf16.mxu0 0
    %9809 = vmatpush1.bf16.msra.mxu0 %v9790
    %9810 = vmatprep.subr.bf16.mxu0 0
    %9811 = vmatpush1.bf16.msra.mxu0 %v9791
    %9812 = vmatprep.subr.bf16.mxu0 0
    %9813 = vmatpush1.bf16.msra.mxu0 %v9792
    %9814 = vmatprep.subr.bf16.mxu0 0
    %9815 = vmatpush1.bf16.msra.mxu0 %v9793
    %9816 = vmatprep.subr.bf16.mxu0 0
    %9817 = vmatpush1.bf16.msra.mxu0 %v9794
    %9818 = vmatprep.subr.bf16.mxu0 0
    %9819 = vmatpush1.bf16.msra.mxu0 %v9795
    %9820 = vmatprep.subr.bf16.mxu0 0
    %9821 = vmatpush1.bf16.msra.mxu0 0
    %9822 = vmatprep.subr.bf16.mxu0 0
    %9823 = vmatpush1.bf16.msra.mxu0 0
    %9824 = vmatprep.subr.bf16.mxu0 0
    %9825 = vmatpush1.bf16.msra.mxu0 0
    %9826 = vmatprep.subr.bf16.mxu0 0
    %9827 = vmatpush1.bf16.msra.mxu0 0
    %9828 = vmatprep.subr.bf16.mxu0 0
    %9829 = vmatpush1.bf16.msra.mxu0 0
    %9830 = vmatprep.subr.bf16.mxu0 0
    %9831 = vmatpush1.bf16.msra.mxu0 0
    %9832 = vmatprep.subr.bf16.mxu0 0
    %9833 = vmatpush1.bf16.msra.mxu0 0
    %9834 = vmatprep.subr.bf16.mxu0 0
    %9835 = vmatpush1.bf16.msra.mxu0 0
    %9836 = vmatprep.mubr.bf16.mxu0 0
    %9837 = vmatmul.mubr.bf16.gmra.mrb[0].mxu0 %v9754
    %v9838 = vpop.f32.mrb[0].mxu0
    %v9839 = vadd.f32 0.0, %v9838
    %v9840 = vpop.f32.mrb[0].mxu0
    %v9841 = vpop.f32.mrb[0].mxu0
    %v9842 = vpop.f32.mrb[0].mxu0
    %9843 = vdwg.mxu0
    %v9860 = vunpack.c.l.b16 %v9721
    %v9861 = vunpack.c.l.b16 %v9722
    %v9862 = vunpack.c.l.b16 %v9723
    %v9863 = vunpack.c.l.b16 %v9724
    %v9864 = vunpack.c.l.b16 %v9725
    %v9865 = vunpack.c.l.b16 %v9726
    %v9866 = vunpack.c.l.b16 %v9727
    %v9867 = vunpack.c.l.b16 %v9728
    %v9868 = vunpack.c.l.b16 %v9729
    %v9869 = vunpack.c.l.b16 %v9730
    %v9870 = vunpack.c.l.b16 %v9731
    %v9871 = vunpack.c.l.b16 %v9732
    %v9872 = vunpack.c.l.b16 %v9733
    %v9873 = vunpack.c.l.b16 %v9734
    %v9874 = vunpack.c.l.b16 %v9735
    %v9875 = vunpack.c.l.b16 %v9736
    %v9876 = vpack.c.b16 %v9861, %v9860
    %v9877 = vpack.c.b16 %v9863, %v9862
    %v9878 = vpack.c.b16 %v9865, %v9864
    %v9879 = vpack.c.b16 %v9867, %v9866
    %v9880 = vpack.c.b16 %v9869, %v9868
    %v9881 = vpack.c.b16 %v9871, %v9870
    %v9882 = vpack.c.b16 %v9873, %v9872
    %v9883 = vpack.c.b16 %v9875, %v9874
    %9892 = vmatprep.subr.bf16.mxu0 0
    %9893 = vmatpush1.bf16.msra.mxu0 %v9876
    %9894 = vmatprep.subr.bf16.mxu0 0
    %9895 = vmatpush1.bf16.msra.mxu0 %v9877
    %9896 = vmatprep.subr.bf16.mxu0 0
    %9897 = vmatpush1.bf16.msra.mxu0 %v9878
    %9898 = vmatprep.subr.bf16.mxu0 0
    %9899 = vmatpush1.bf16.msra.mxu0 %v9879
    %9900 = vmatprep.subr.bf16.mxu0 0
    %9901 = vmatpush1.bf16.msra.mxu0 %v9880
    %9902 = vmatprep.subr.bf16.mxu0 0
    %9903 = vmatpush1.bf16.msra.mxu0 %v9881
    %9904 = vmatprep.subr.bf16.mxu0 0
    %9905 = vmatpush1.bf16.msra.mxu0 %v9882
    %9906 = vmatprep.subr.bf16.mxu0 0
    %9907 = vmatpush1.bf16.msra.mxu0 %v9883
    %9908 = vmatprep.subr.bf16.mxu0 0
    %9909 = vmatpush1.bf16.msra.mxu0 0
    %9910 = vmatprep.subr.bf16.mxu0 0
    %9911 = vmatpush1.bf16.msra.mxu0 0
    %9912 = vmatprep.subr.bf16.mxu0 0
    %9913 = vmatpush1.bf16.msra.mxu0 0
    %9914 = vmatprep.subr.bf16.mxu0 0
    %9915 = vmatpush1.bf16.msra.mxu0 0
    %9916 = vmatprep.subr.bf16.mxu0 0
    %9917 = vmatpush1.bf16.msra.mxu0 0
    %9918 = vmatprep.subr.bf16.mxu0 0
    %9919 = vmatpush1.bf16.msra.mxu0 0
    %9920 = vmatprep.subr.bf16.mxu0 0
    %9921 = vmatpush1.bf16.msra.mxu0 0
    %9922 = vmatprep.subr.bf16.mxu0 0
    %9923 = vmatpush1.bf16.msra.mxu0 0
    %9924 = vmatprep.mubr.bf16.mxu0 0
    %9925 = vmatmul.mubr.bf16.gmra.mrb[0].mxu0 %v9506
    %v9926 = vpop.f32.mrb[0].mxu0
    %v9927 = vadd.f32 %v9839, %v9926
    %v9928 = vpop.f32.mrb[0].mxu0
    %v9929 = vpop.f32.mrb[0].mxu0
    %v9930 = vpop.f32.mrb[0].mxu0
    %9931 = vdwg.mxu0
    %v9932 = vld [vmem:[%s2 + $0x6f8] sm:$0xf]
    %v9933 = vld [vmem:[%s2 + $0x6fc] sm:$0xf]
    %v9934 = vld [vmem:[%s2 + $0x700] sm:$0xf]
    %v9935 = vld [vmem:[%s2 + $0x704] sm:$0xf]
    %v9936 = vld [vmem:[%s2 + $0x708] sm:$0xf]
    %v9937 = vld [vmem:[%s2 + $0x70c] sm:$0xf]
    %v9938 = vld [vmem:[%s2 + $0x710] sm:$0xf]
    %v9939 = vld [vmem:[%s2 + $0x714] sm:$0xf]
    %v9940 = vld [vmem:[%s2 + $0x718] sm:$0xf]
    %v9941 = vld [vmem:[%s2 + $0x71c] sm:$0xf]
    %v9942 = vld [vmem:[%s2 + $0x720] sm:$0xf]
    %v9943 = vld [vmem:[%s2 + $0x724] sm:$0xf]
    %v9944 = vld [vmem:[%s2 + $0x728] sm:$0xf]
    %v9945 = vld [vmem:[%s2 + $0x72c] sm:$0xf]
    %v9946 = vld [vmem:[%s2 + $0x730] sm:$0xf]
    %v9947 = vld [vmem:[%s2 + $0x734] sm:$0xf]
    %v9948 = vld [vmem:[%s2 + $0x738] sm:$0xf]
    %v9949 = vld [vmem:[%s2 + $0x73c] sm:$0xf]
    %v9950 = vld [vmem:[%s2 + $0x740] sm:$0xf]
    %v9951 = vld [vmem:[%s2 + $0x744] sm:$0xf]
    %v9952 = vld [vmem:[%s2 + $0x748] sm:$0xf]
    %v9953 = vld [vmem:[%s2 + $0x74c] sm:$0xf]
    %v9954 = vld [vmem:[%s2 + $0x750] sm:$0xf]
    %v9955 = vld [vmem:[%s2 + $0x754] sm:$0xf]
    %v9956 = vld [vmem:[%s2 + $0x758] sm:$0xf]
    %v9957 = vld [vmem:[%s2 + $0x75c] sm:$0xf]
    %v9958 = vld [vmem:[%s2 + $0x760] sm:$0xf]
    %v9959 = vld [vmem:[%s2 + $0x764] sm:$0xf]
    %v9960 = vld [vmem:[%s2 + $0x768] sm:$0xf]
    %v9961 = vld [vmem:[%s2 + $0x76c] sm:$0xf]
    %v9962 = vld [vmem:[%s2 + $0x770] sm:$0xf]
    %v9963 = vld [vmem:[%s2 + $0x774] sm:$0xf]
    %v9965 = vrot.slane %v9507, 4
    %v9983 = vunpack.c.l.b16 %v9948
    %v9984 = vunpack.c.l.b16 %v9949
    %v9985 = vunpack.c.l.b16 %v9950
    %v9986 = vunpack.c.l.b16 %v9951
    %v9987 = vunpack.c.l.b16 %v9952
    %v9988 = vunpack.c.l.b16 %v9953
    %v9989 = vunpack.c.l.b16 %v9954
    %v9990 = vunpack.c.l.b16 %v9955
    %v9991 = vunpack.c.l.b16 %v9956
    %v9992 = vunpack.c.l.b16 %v9957
    %v9993 = vunpack.c.l.b16 %v9958
    %v9994 = vunpack.c.l.b16 %v9959
    %v9995 = vunpack.c.l.b16 %v9960
    %v9996 = vunpack.c.l.b16 %v9961
    %v9997 = vunpack.c.l.b16 %v9962
    %v9998 = vunpack.c.l.b16 %v9963
    %v9999 = vpack.c.b16 %v9984, %v9983
    %v10000 = vpack.c.b16 %v9986, %v9985
    %v10001 = vpack.c.b16 %v9988, %v9987
    %v10002 = vpack.c.b16 %v9990, %v9989
    %v10003 = vpack.c.b16 %v9992, %v9991
    %v10004 = vpack.c.b16 %v9994, %v9993
    %v10005 = vpack.c.b16 %v9996, %v9995
    %v10006 = vpack.c.b16 %v9998, %v9997
    %10015 = vmatprep.subr.bf16.mxu0 0
    %10016 = vmatpush1.bf16.msra.mxu0 %v9999
    %10017 = vmatprep.subr.bf16.mxu0 0
    %10018 = vmatpush1.bf16.msra.mxu0 %v10000
    %10019 = vmatprep.subr.bf16.mxu0 0
    %10020 = vmatpush1.bf16.msra.mxu0 %v10001
    %10021 = vmatprep.subr.bf16.mxu0 0
    %10022 = vmatpush1.bf16.msra.mxu0 %v10002
    %10023 = vmatprep.subr.bf16.mxu0 0
    %10024 = vmatpush1.bf16.msra.mxu0 %v10003
    %10025 = vmatprep.subr.bf16.mxu0 0
    %10026 = vmatpush1.bf16.msra.mxu0 %v10004
    %10027 = vmatprep.subr.bf16.mxu0 0
    %10028 = vmatpush1.bf16.msra.mxu0 %v10005
    %10029 = vmatprep.subr.bf16.mxu0 0
    %10030 = vmatpush1.bf16.msra.mxu0 %v10006
    %10031 = vmatprep.subr.bf16.mxu0 0
    %10032 = vmatpush1.bf16.msra.mxu0 0
    %10033 = vmatprep.subr.bf16.mxu0 0
    %10034 = vmatpush1.bf16.msra.mxu0 0
    %10035 = vmatprep.subr.bf16.mxu0 0
    %10036 = vmatpush1.bf16.msra.mxu0 0
    %10037 = vmatprep.subr.bf16.mxu0 0
    %10038 = vmatpush1.bf16.msra.mxu0 0
    %10039 = vmatprep.subr.bf16.mxu0 0
    %10040 = vmatpush1.bf16.msra.mxu0 0
    %10041 = vmatprep.subr.bf16.mxu0 0
    %10042 = vmatpush1.bf16.msra.mxu0 0
    %10043 = vmatprep.subr.bf16.mxu0 0
    %10044 = vmatpush1.bf16.msra.mxu0 0
    %10045 = vmatprep.subr.bf16.mxu0 0
    %10046 = vmatpush1.bf16.msra.mxu0 0
    %10047 = vmatprep.mubr.bf16.mxu0 0
    %10048 = vmatmul.mubr.bf16.gmra.mrb[0].mxu0 %v9965
    %v10049 = vpop.f32.mrb[0].mxu0
    %v10050 = vadd.f32 0.0, %v10049
    %v10051 = vpop.f32.mrb[0].mxu0
    %v10052 = vpop.f32.mrb[0].mxu0
    %v10053 = vpop.f32.mrb[0].mxu0
    %10054 = vdwg.mxu0
    %v10071 = vunpack.c.l.b16 %v9932
    %v10072 = vunpack.c.l.b16 %v9933
    %v10073 = vunpack.c.l.b16 %v9934
    %v10074 = vunpack.c.l.b16 %v9935
    %v10075 = vunpack.c.l.b16 %v9936
    %v10076 = vunpack.c.l.b16 %v9937
    %v10077 = vunpack.c.l.b16 %v9938
    %v10078 = vunpack.c.l.b16 %v9939
    %v10079 = vunpack.c.l.b16 %v9940
    %v10080 = vunpack.c.l.b16 %v9941
    %v10081 = vunpack.c.l.b16 %v9942
    %v10082 = vunpack.c.l.b16 %v9943
    %v10083 = vunpack.c.l.b16 %v9944
    %v10084 = vunpack.c.l.b16 %v9945
    %v10085 = vunpack.c.l.b16 %v9946
    %v10086 = vunpack.c.l.b16 %v9947
    %v10087 = vpack.c.b16 %v10072, %v10071
    %v10088 = vpack.c.b16 %v10074, %v10073
    %v10089 = vpack.c.b16 %v10076, %v10075
    %v10090 = vpack.c.b16 %v10078, %v10077
    %v10091 = vpack.c.b16 %v10080, %v10079
    %v10092 = vpack.c.b16 %v10082, %v10081
    %v10093 = vpack.c.b16 %v10084, %v10083
    %v10094 = vpack.c.b16 %v10086, %v10085
    %10103 = vmatprep.subr.bf16.mxu0 0
    %10104 = vmatpush1.bf16.msra.mxu0 %v10087
    %10105 = vmatprep.subr.bf16.mxu0 0
    %10106 = vmatpush1.bf16.msra.mxu0 %v10088
    %10107 = vmatprep.subr.bf16.mxu0 0
    %10108 = vmatpush1.bf16.msra.mxu0 %v10089
    %10109 = vmatprep.subr.bf16.mxu0 0
    %10110 = vmatpush1.bf16.msra.mxu0 %v10090
    %10111 = vmatprep.subr.bf16.mxu0 0
    %10112 = vmatpush1.bf16.msra.mxu0 %v10091
    %10113 = vmatprep.subr.bf16.mxu0 0
    %10114 = vmatpush1.bf16.msra.mxu0 %v10092
    %10115 = vmatprep.subr.bf16.mxu0 0
    %10116 = vmatpush1.bf16.msra.mxu0 %v10093
    %10117 = vmatprep.subr.bf16.mxu0 0
    %10118 = vmatpush1.bf16.msra.mxu0 %v10094
    %10119 = vmatprep.subr.bf16.mxu0 0
    %10120 = vmatpush1.bf16.msra.mxu0 0
    %10121 = vmatprep.subr.bf16.mxu0 0
    %10122 = vmatpush1.bf16.msra.mxu0 0
    %10123 = vmatprep.subr.bf16.mxu0 0
    %10124 = vmatpush1.bf16.msra.mxu0 0
    %10125 = vmatprep.subr.bf16.mxu0 0
    %10126 = vmatpush1.bf16.msra.mxu0 0
    %10127 = vmatprep.subr.bf16.mxu0 0
    %10128 = vmatpush1.bf16.msra.mxu0 0
    %10129 = vmatprep.subr.bf16.mxu0 0
    %10130 = vmatpush1.bf16.msra.mxu0 0
    %10131 = vmatprep.subr.bf16.mxu0 0
    %10132 = vmatpush1.bf16.msra.mxu0 0
    %10133 = vmatprep.subr.bf16.mxu0 0
    %10134 = vmatpush1.bf16.msra.mxu0 0
    %10135 = vmatprep.mubr.bf16.mxu0 0
    %10136 = vmatmul.mubr.bf16.gmra.mrb[0].mxu0 %v9507
    %v10137 = vpop.f32.mrb[0].mxu0
    %v10138 = vadd.f32 %v10050, %v10137
    %v10139 = vpop.f32.mrb[0].mxu0
    %v10140 = vpop.f32.mrb[0].mxu0
    %v10141 = vpop.f32.mrb[0].mxu0
    %10142 = vdwg.mxu0
    %v10143 = vld [vmem:[%s2 + $0x778] sm:$0xf]
    %v10144 = vld [vmem:[%s2 + $0x77c] sm:$0xf]
    %v10145 = vld [vmem:[%s2 + $0x780] sm:$0xf]
    %v10146 = vld [vmem:[%s2 + $0x784] sm:$0xf]
    %v10147 = vld [vmem:[%s2 + $0x788] sm:$0xf]
    %v10148 = vld [vmem:[%s2 + $0x78c] sm:$0xf]
    %v10149 = vld [vmem:[%s2 + $0x790] sm:$0xf]
    %v10150 = vld [vmem:[%s2 + $0x794] sm:$0xf]
    %v10151 = vld [vmem:[%s2 + $0x798] sm:$0xf]
    %v10152 = vld [vmem:[%s2 + $0x79c] sm:$0xf]
    %v10153 = vld [vmem:[%s2 + $0x7a0] sm:$0xf]
    %v10154 = vld [vmem:[%s2 + $0x7a4] sm:$0xf]
    %v10155 = vld [vmem:[%s2 + $0x7a8] sm:$0xf]
    %v10156 = vld [vmem:[%s2 + $0x7ac] sm:$0xf]
    %v10157 = vld [vmem:[%s2 + $0x7b0] sm:$0xf]
    %v10158 = vld [vmem:[%s2 + $0x7b4] sm:$0xf]
    %v10159 = vld [vmem:[%s2 + $0x7b8] sm:$0xf]
    %v10160 = vld [vmem:[%s2 + $0x7bc] sm:$0xf]
    %v10161 = vld [vmem:[%s2 + $0x7c0] sm:$0xf]
    %v10162 = vld [vmem:[%s2 + $0x7c4] sm:$0xf]
    %v10163 = vld [vmem:[%s2 + $0x7c8] sm:$0xf]
    %v10164 = vld [vmem:[%s2 + $0x7cc] sm:$0xf]
    %v10165 = vld [vmem:[%s2 + $0x7d0] sm:$0xf]
    %v10166 = vld [vmem:[%s2 + $0x7d4] sm:$0xf]
    %v10167 = vld [vmem:[%s2 + $0x7d8] sm:$0xf]
    %v10168 = vld [vmem:[%s2 + $0x7dc] sm:$0xf]
    %v10169 = vld [vmem:[%s2 + $0x7e0] sm:$0xf]
    %v10170 = vld [vmem:[%s2 + $0x7e4] sm:$0xf]
    %v10171 = vld [vmem:[%s2 + $0x7e8] sm:$0xf]
    %v10172 = vld [vmem:[%s2 + $0x7ec] sm:$0xf]
    %v10173 = vld [vmem:[%s2 + $0x7f0] sm:$0xf]
    %v10174 = vld [vmem:[%s2 + $0x7f4] sm:$0xf]
    %v10176 = vrot.slane %v9508, 4
    %v10194 = vunpack.c.l.b16 %v10159
    %v10195 = vunpack.c.l.b16 %v10160
    %v10196 = vunpack.c.l.b16 %v10161
    %v10197 = vunpack.c.l.b16 %v10162
    %v10198 = vunpack.c.l.b16 %v10163
    %v10199 = vunpack.c.l.b16 %v10164
    %v10200 = vunpack.c.l.b16 %v10165
    %v10201 = vunpack.c.l.b16 %v10166
    %v10202 = vunpack.c.l.b16 %v10167
    %v10203 = vunpack.c.l.b16 %v10168
    %v10204 = vunpack.c.l.b16 %v10169
    %v10205 = vunpack.c.l.b16 %v10170
    %v10206 = vunpack.c.l.b16 %v10171
    %v10207 = vunpack.c.l.b16 %v10172
    %v10208 = vunpack.c.l.b16 %v10173
    %v10209 = vunpack.c.l.b16 %v10174
    %v10210 = vpack.c.b16 %v10195, %v10194
    %v10211 = vpack.c.b16 %v10197, %v10196
    %v10212 = vpack.c.b16 %v10199, %v10198
    %v10213 = vpack.c.b16 %v10201, %v10200
    %v10214 = vpack.c.b16 %v10203, %v10202
    %v10215 = vpack.c.b16 %v10205, %v10204
    %v10216 = vpack.c.b16 %v10207, %v10206
    %v10217 = vpack.c.b16 %v10209, %v10208
    %10226 = vmatprep.subr.bf16.mxu0 0
    %10227 = vmatpush1.bf16.msra.mxu0 %v10210
    %10228 = vmatprep.subr.bf16.mxu0 0
    %10229 = vmatpush1.bf16.msra.mxu0 %v10211
    %10230 = vmatprep.subr.bf16.mxu0 0
    %10231 = vmatpush1.bf16.msra.mxu0 %v10212
    %10232 = vmatprep.subr.bf16.mxu0 0
    %10233 = vmatpush1.bf16.msra.mxu0 %v10213
    %10234 = vmatprep.subr.bf16.mxu0 0
    %10235 = vmatpush1.bf16.msra.mxu0 %v10214
    %10236 = vmatprep.subr.bf16.mxu0 0
    %10237 = vmatpush1.bf16.msra.mxu0 %v10215
    %10238 = vmatprep.subr.bf16.mxu0 0
    %10239 = vmatpush1.bf16.msra.mxu0 %v10216
    %10240 = vmatprep.subr.bf16.mxu0 0
    %10241 = vmatpush1.bf16.msra.mxu0 %v10217
    %10242 = vmatprep.subr.bf16.mxu0 0
    %10243 = vmatpush1.bf16.msra.mxu0 0
    %10244 = vmatprep.subr.bf16.mxu0 0
    %10245 = vmatpush1.bf16.msra.mxu0 0
    %10246 = vmatprep.subr.bf16.mxu0 0
    %10247 = vmatpush1.bf16.msra.mxu0 0
    %10248 = vmatprep.subr.bf16.mxu0 0
    %10249 = vmatpush1.bf16.msra.mxu0 0
    %10250 = vmatprep.subr.bf16.mxu0 0
    %10251 = vmatpush1.bf16.msra.mxu0 0
    %10252 = vmatprep.subr.bf16.mxu0 0
    %10253 = vmatpush1.bf16.msra.mxu0 0
    %10254 = vmatprep.subr.bf16.mxu0 0
    %10255 = vmatpush1.bf16.msra.mxu0 0
    %10256 = vmatprep.subr.bf16.mxu0 0
    %10257 = vmatpush1.bf16.msra.mxu0 0
    %10258 = vmatprep.mubr.bf16.mxu0 0
    %10259 = vmatmul.mubr.bf16.gmra.mrb[0].mxu0 %v10176
    %v10260 = vpop.f32.mrb[0].mxu0
    %v10261 = vadd.f32 0.0, %v10260
    %v10262 = vpop.f32.mrb[0].mxu0
    %v10263 = vpop.f32.mrb[0].mxu0
    %v10264 = vpop.f32.mrb[0].mxu0
    %10265 = vdwg.mxu0
    %v10282 = vunpack.c.l.b16 %v10143
    %v10283 = vunpack.c.l.b16 %v10144
    %v10284 = vunpack.c.l.b16 %v10145
    %v10285 = vunpack.c.l.b16 %v10146
    %v10286 = vunpack.c.l.b16 %v10147
    %v10287 = vunpack.c.l.b16 %v10148
    %v10288 = vunpack.c.l.b16 %v10149
    %v10289 = vunpack.c.l.b16 %v10150
    %v10290 = vunpack.c.l.b16 %v10151
    %v10291 = vunpack.c.l.b16 %v10152
    %v10292 = vunpack.c.l.b16 %v10153
    %v10293 = vunpack.c.l.b16 %v10154
    %v10294 = vunpack.c.l.b16 %v10155
    %v10295 = vunpack.c.l.b16 %v10156
    %v10296 = vunpack.c.l.b16 %v10157
    %v10297 = vunpack.c.l.b16 %v10158
    %v10298 = vpack.c.b16 %v10283, %v10282
    %v10299 = vpack.c.b16 %v10285, %v10284
    %v10300 = vpack.c.b16 %v10287, %v10286
    %v10301 = vpack.c.b16 %v10289, %v10288
    %v10302 = vpack.c.b16 %v10291, %v10290
    %v10303 = vpack.c.b16 %v10293, %v10292
    %v10304 = vpack.c.b16 %v10295, %v10294
    %v10305 = vpack.c.b16 %v10297, %v10296
    %10314 = vmatprep.subr.bf16.mxu0 0
    %10315 = vmatpush1.bf16.msra.mxu0 %v10298
    %10316 = vmatprep.subr.bf16.mxu0 0
    %10317 = vmatpush1.bf16.msra.mxu0 %v10299
    %10318 = vmatprep.subr.bf16.mxu0 0
    %10319 = vmatpush1.bf16.msra.mxu0 %v10300
    %10320 = vmatprep.subr.bf16.mxu0 0
    %10321 = vmatpush1.bf16.msra.mxu0 %v10301
    %10322 = vmatprep.subr.bf16.mxu0 0
    %10323 = vmatpush1.bf16.msra.mxu0 %v10302
    %10324 = vmatprep.subr.bf16.mxu0 0
    %10325 = vmatpush1.bf16.msra.mxu0 %v10303
    %10326 = vmatprep.subr.bf16.mxu0 0
    %10327 = vmatpush1.bf16.msra.mxu0 %v10304
    %10328 = vmatprep.subr.bf16.mxu0 0
    %10329 = vmatpush1.bf16.msra.mxu0 %v10305
    %10330 = vmatprep.subr.bf16.mxu0 0
    %10331 = vmatpush1.bf16.msra.mxu0 0
    %10332 = vmatprep.subr.bf16.mxu0 0
    %10333 = vmatpush1.bf16.msra.mxu0 0
    %10334 = vmatprep.subr.bf16.mxu0 0
    %10335 = vmatpush1.bf16.msra.mxu0 0
    %10336 = vmatprep.subr.bf16.mxu0 0
    %10337 = vmatpush1.bf16.msra.mxu0 0
    %10338 = vmatprep.subr.bf16.mxu0 0
    %10339 = vmatpush1.bf16.msra.mxu0 0
    %10340 = vmatprep.subr.bf16.mxu0 0
    %10341 = vmatpush1.bf16.msra.mxu0 0
    %10342 = vmatprep.subr.bf16.mxu0 0
    %10343 = vmatpush1.bf16.msra.mxu0 0
    %10344 = vmatprep.subr.bf16.mxu0 0
    %10345 = vmatpush1.bf16.msra.mxu0 0
    %10346 = vmatprep.mubr.bf16.mxu0 0
    %10347 = vmatmul.mubr.bf16.gmra.mrb[0].mxu0 %v9508
    %v10348 = vpop.f32.mrb[0].mxu0
    %v10349 = vadd.f32 %v10261, %v10348
    %v10350 = vpop.f32.mrb[0].mxu0
    %v10351 = vpop.f32.mrb[0].mxu0
    %v10352 = vpop.f32.mrb[0].mxu0
    %10353 = vdwg.mxu0
    %v10354 = vadd.f32 %v9716, %v9927
    %v10355 = vadd.f32 %v10138, %v10349
    %v10356 = vadd.f32 %v10354, %v10355
    %v10357 = vld [vmem:[%s2 + $0x7f8] sm:$0xf]
    %v10358 = vld [vmem:[%s2 + $0x7fc] sm:$0xf]
    %v10359 = vld [vmem:[%s2 + $0x800] sm:$0xf]
    %v10360 = vld [vmem:[%s2 + $0x804] sm:$0xf]
    %v10361 = vld [vmem:[%s2 + $0x808] sm:$0xf]
    %v10362 = vld [vmem:[%s2 + $0x80c] sm:$0xf]
    %v10363 = vld [vmem:[%s2 + $0x810] sm:$0xf]
    %v10364 = vld [vmem:[%s2 + $0x814] sm:$0xf]
    %v10365 = vld [vmem:[%s2 + $0x818] sm:$0xf]
    %v10366 = vld [vmem:[%s2 + $0x81c] sm:$0xf]
    %v10367 = vld [vmem:[%s2 + $0x820] sm:$0xf]
    %v10368 = vld [vmem:[%s2 + $0x824] sm:$0xf]
    %v10369 = vld [vmem:[%s2 + $0x828] sm:$0xf]
    %v10370 = vld [vmem:[%s2 + $0x82c] sm:$0xf]
    %v10371 = vld [vmem:[%s2 + $0x830] sm:$0xf]
    %v10372 = vld [vmem:[%s2 + $0x834] sm:$0xf]
    %v10389 = vunpack.c.l.b16 %v10357
    %v10390 = vunpack.c.l.b16 %v10358
    %v10391 = vunpack.c.l.b16 %v10359
    %v10392 = vunpack.c.l.b16 %v10360
    %v10393 = vunpack.c.l.b16 %v10361
    %v10394 = vunpack.c.l.b16 %v10362
    %v10395 = vunpack.c.l.b16 %v10363
    %v10396 = vunpack.c.l.b16 %v10364
    %v10397 = vunpack.c.l.b16 %v10365
    %v10398 = vunpack.c.l.b16 %v10366
    %v10399 = vunpack.c.l.b16 %v10367
    %v10400 = vunpack.c.l.b16 %v10368
    %v10401 = vunpack.c.l.b16 %v10369
    %v10402 = vunpack.c.l.b16 %v10370
    %v10403 = vunpack.c.l.b16 %v10371
    %v10404 = vunpack.c.l.b16 %v10372
    %v10405 = vpack.c.b16 %v10390, %v10389
    %v10406 = vpack.c.b16 %v10392, %v10391
    %v10407 = vpack.c.b16 %v10394, %v10393
    %v10408 = vpack.c.b16 %v10396, %v10395
    %v10409 = vpack.c.b16 %v10398, %v10397
    %v10410 = vpack.c.b16 %v10400, %v10399
    %v10411 = vpack.c.b16 %v10402, %v10401
    %v10412 = vpack.c.b16 %v10404, %v10403
    %10421 = vmatprep.subr.bf16.mxu0 0
    %10422 = vmatpush1.bf16.msra.mxu0 %v10405
    %10423 = vmatprep.subr.bf16.mxu0 0
    %10424 = vmatpush1.bf16.msra.mxu0 %v10406
    %10425 = vmatprep.subr.bf16.mxu0 0
    %10426 = vmatpush1.bf16.msra.mxu0 %v10407
    %10427 = vmatprep.subr.bf16.mxu0 0
    %10428 = vmatpush1.bf16.msra.mxu0 %v10408
    %10429 = vmatprep.subr.bf16.mxu0 0
    %10430 = vmatpush1.bf16.msra.mxu0 %v10409
    %10431 = vmatprep.subr.bf16.mxu0 0
    %10432 = vmatpush1.bf16.msra.mxu0 %v10410
    %10433 = vmatprep.subr.bf16.mxu0 0
    %10434 = vmatpush1.bf16.msra.mxu0 %v10411
    %10435 = vmatprep.subr.bf16.mxu0 0
    %10436 = vmatpush1.bf16.msra.mxu0 %v10412
    %10437 = vmatprep.subr.bf16.mxu0 0
    %10438 = vmatpush1.bf16.msra.mxu0 0
    %10439 = vmatprep.subr.bf16.mxu0 0
    %10440 = vmatpush1.bf16.msra.mxu0 0
    %10441 = vmatprep.subr.bf16.mxu0 0
    %10442 = vmatpush1.bf16.msra.mxu0 0
    %10443 = vmatprep.subr.bf16.mxu0 0
    %10444 = vmatpush1.bf16.msra.mxu0 0
    %10445 = vmatprep.subr.bf16.mxu0 0
    %10446 = vmatpush1.bf16.msra.mxu0 0
    %10447 = vmatprep.subr.bf16.mxu0 0
    %10448 = vmatpush1.bf16.msra.mxu0 0
    %10449 = vmatprep.subr.bf16.mxu0 0
    %10450 = vmatpush1.bf16.msra.mxu0 0
    %10451 = vmatprep.subr.bf16.mxu0 0
    %10452 = vmatpush1.bf16.msra.mxu0 0
    %10453 = vmatprep.mubr.bf16.mxu0 0
    %10454 = vmatmul.mubr.bf16.gmra.mrb[0].mxu0 %v9509
    %v10455 = vpop.f32.mrb[0].mxu0
    %v10456 = vadd.f32 0.0, %v10455
    %v10457 = vpop.f32.mrb[0].mxu0
    %v10458 = vpop.f32.mrb[0].mxu0
    %v10459 = vpop.f32.mrb[0].mxu0
    %10460 = vdwg.mxu0
    %v10461 = vadd.f32 %v10356, %v10456
    %v10462 = vld [vmem:[%s4 + $0x14] ss:$0 sm:$0xff]
    %v10463 = vadd.f32 %v10461, %v10462
    %v10464 = vadd.f32 %v10463, %v9427
    %v10465 = vmax.f32 %v10464, 0.0
    %10466 = vst [vmem:[#allocation7] sm:$0xff] %v10465
    // Predicated region
    $region30: #{resnet_forward.1} parent=1 // pred_check
      _
    $region31: #{resnet_forward.1} parent=1 // pred_check_branch
      %10468 = sbr.rel (0) target = $region33
    $region32: #{resnet_forward.1} parent=1 // pred_region
      %s10470 = ssub.s32 128, 128
      %10471 = vsyncadd [#allocation4], %s10470
      %s10473 = sshll.u32 [#allocation7], 4
      %s10474 = int_to_ptr.vmem [resolvable:$true] %s10473
      %10476 = dma.vmem_to_hbm [thread:$0]  %s10474, 128, %s5, [#allocation4]
    $region33: #{resnet_forward.1} parent=1 // pred_fallthru
      _
    // Predicated region
    $region34: #{resnet_forward.1} parent=1 // pred_check
      _
    $region35: #{resnet_forward.1} parent=1 // pred_check_branch
      %10478 = sbr.rel (0) target = $region37
    $region36: #{resnet_forward.1} parent=1 // pred_region
      %10479 = dma.done [#allocation4], 128
    $region37: #{resnet_forward.1} parent=1 // pred_fallthru
      _
    %10480 = vsyncpa [#allocation3], 1
    %10481 = vsyncpa [#allocation6], 1
    %10482 = vsyncpa [#allocation4], 1

</llo_original>
